<compile_context>
chip_gen: v6e
topology: v6e:2x2x1
jax: 0.10.0
libtpu: 0.0.40
codegen_flags: <defaults>
</compile_context>

<pallas_src>
import functools

import jax
import jax.numpy as jnp
from jax import lax
from jax.experimental import pallas as pl
from jax.experimental.pallas import tpu as pltpu

EPS = 1e-5
VMEM_BUDGET = 32 * 1024 * 1024     # rough per-step working-set budget


def _pick_tile_m(M, K, Cout):
    """Largest M tile (from a divisor list) whose per-step VMEM working set
    fits the budget; falls back to the smallest divisor, else full M."""
    divs = [t for t in (1024, 512, 256, 128, 64, 32, 16, 8) if M % t == 0]
    if not divs:
        return M
    for t in divs:
        # A (bf16, 2 bufs) + f32 affine temp + bf16 copy, out (2 bufs) + f32 y,
        # resident full-K bf16 B (2 bufs).
        need = t * K * 8 + t * Cout * 8 + K * Cout * 4
        if need <= VMEM_BUDGET:
            return t
    return divs[-1]


# ----------------------------- Pallas kernel ------------------------------- #

def _mm_kernel(*refs, a_affine, activation, out_cols, compute_stats):
    """One grid step: full-K matmul of one M tile for one parity group.

    Fused, in order: (optional) previous-layer BatchNorm affine + ReLU on the
    A tile, MXU dot (f32 accumulation), bias, (optional) per-tile BN
    sum / sum-of-squares, (optional) output-channel slice, (optional) tanh.
    """
    a_ref, b_ref, bias_ref = refs[:3]
    pos = 3
    if a_affine:
        scale_ref, shift_ref = refs[pos], refs[pos + 1]
        pos += 2
    o_ref = refs[pos]
    if compute_stats:
        sum_ref, ssq_ref = refs[pos + 1], refs[pos + 2]

    a = a_ref[0]
    if a_affine:
        # BN-apply + ReLU of the PREVIOUS layer, applied per A column
        # (per-channel affine tiled over the 4 sub-pixel taps).
        a = jnp.maximum(a.astype(jnp.float32) * scale_ref[0] + shift_ref[0], 0.0)
        a = a.astype(b_ref.dtype)

    y = jnp.dot(a, b_ref[0], preferred_element_type=jnp.float32) + bias_ref[0]

    if compute_stats:
        # Per-M-tile partial BN statistics of the pre-activation output;
        # reduced in JAX so the grid stays fully parallel (megacore-safe).
        sum_ref[0, 0] = jnp.sum(y, axis=0, keepdims=True)
        ssq_ref[0, 0] = jnp.sum(y * y, axis=0, keepdims=True)

    if out_cols is not None:
        y = y[:, :out_cols]          # drop MXU lane padding before tanh/store
    if activation == "tanh":
        y = jnp.tanh(y)
    o_ref[0] = y.astype(o_ref.dtype)


def fused_matmul(a, b, bias, scale=None, shift=None, *, activation="none",
                 compute_stats=False, out_cols=None, out_dtype=jnp.bfloat16):
    """(G, M, K) @ (G, K, Cout) + bias(1,1,Cout), with the fusions above.

    Returns `out` of shape (G, M, out_cols or Cout); if compute_stats, also
    per-(group, M-tile) partial column sums / sums-of-squares of the
    pre-activation output, each of shape (G, M_tiles, 1, Cout)."""
    G, M, K = a.shape
    _, _, Cout = b.shape
    n_out = Cout if out_cols is None else out_cols
    a_affine = scale is not None

    tm = _pick_tile_m(M, K, Cout)
    mt = M // tm

    kern = functools.partial(_mm_kernel, a_affine=a_affine,
                             activation=activation, out_cols=out_cols,
                             compute_stats=compute_stats)

    in_specs = [
        pl.BlockSpec((1, tm, K), lambda g, m: (g, m, 0)),
        # Full-K weight block, index constant in m -> stays resident in VMEM.
        pl.BlockSpec((1, K, Cout), lambda g, m: (g, 0, 0)),
        pl.BlockSpec((1, 1, Cout), lambda g, m: (0, 0, 0)),
    ]
    operands = [a, b, bias]
    if a_affine:
        in_specs += [pl.BlockSpec((1, 1, K), lambda g, m: (0, 0, 0))] * 2
        operands += [scale.reshape(1, 1, K).astype(jnp.float32),
                     shift.reshape(1, 1, K).astype(jnp.float32)]

    out_shape = [jax.ShapeDtypeStruct((G, M, n_out), out_dtype)]
    out_specs = [pl.BlockSpec((1, tm, n_out), lambda g, m: (g, m, 0))]
    if compute_stats:
        out_shape += [jax.ShapeDtypeStruct((G, mt, 1, Cout), jnp.float32)] * 2
        out_specs += [pl.BlockSpec((1, 1, 1, Cout),
                                   lambda g, m: (g, m, 0, 0))] * 2

    results = pl.pallas_call(
        kern,
        out_shape=tuple(out_shape),
        grid=(G, mt),
        in_specs=in_specs,
        out_specs=tuple(out_specs),
        compiler_params=pltpu.CompilerParams(
            dimension_semantics=("parallel", "parallel"),
            vmem_limit_bytes=48 * 1024 * 1024),
    )(*operands)

    if compute_stats:
        return results
    return results[0] if isinstance(results, (tuple, list)) else results


# ------------------------------ JAX glue ----------------------------------- #

def _bn_scale_shift(total_sum, total_ssq, count, gamma, beta):
    """Training-mode (biased) batch statistics -> per-channel scale/shift."""
    mean = total_sum / count
    var = jnp.maximum(total_ssq / count - mean * mean, 0.0)
    scale = gamma * lax.rsqrt(var + EPS)
    shift = beta - mean * scale
    return scale, shift


def _bn_pad_value(scale, shift):
    """Per-channel value of the PRE-BN slab that the fused affine+ReLU maps to
    exactly 0 (== zero padding of the post-BN/ReLU activation)."""
    safe = jnp.where(scale != 0.0, scale, 1.0)
    return jnp.where(scale != 0.0, -shift / safe, 0.0)


def subpixel_gather(x, pad_value):
    """x: (N, H, W, C) pre-BN NHWC slab -> (4, N*H*W, 4*C): for each output
    parity (py, px) the 2x2 input neighbourhood (zero-free sub-pixel
    decomposition of ConvTranspose2d k=4 s=2 p=1).  Border uses `pad_value`."""
    N, H, W, C = x.shape
    xp = jnp.broadcast_to(pad_value.astype(x.dtype), (N, H + 2, W + 2, C))
    xp = xp.at[:, 1:-1, 1:-1, :].set(x)
    slabs = []
    for py in range(2):
        for px in range(2):
            taps = [xp[:, py + dy:py + dy + H, px + dx:px + dx + W, :]
                    for dy in range(2) for dx in range(2)]
            slabs.append(jnp.concatenate(taps, axis=-1).reshape(N * H * W, 4 * C))
    return jnp.stack(slabs, axis=0)


def interleave_parities(y, N, H, W):
    """y: (4, N*H*W, C), group g = 2*py + px  ->  (N, 2H, 2W, C)."""
    C = y.shape[-1]
    y = y.reshape(2, 2, N, H, W, C)
    y = jnp.transpose(y, (2, 3, 0, 4, 1, 5))
    return y.reshape(N, 2 * H, 2 * W, C)


# Kernel tap used by (output parity, 2x2-neighbour index) along each axis,
# derived from   oy = 2*iy - 1 + ky  (stride 2, padding 1).
_KTAP = ((3, 1), (2, 0))


def prep_deconv(W, b, cout_pad=None, dtype=jnp.bfloat16):
    """W: (Cin, Cout, 4, 4) torch ConvTranspose2d(k=4,s=2,p=1) weight ->
    per-parity (4, 4*Cin, Cout') bf16 weights + (1, 1, Cout') f32 bias;
    Cout optionally zero-padded so the MXU tile stays 128 wide."""
    groups = []
    for py in range(2):
        for px in range(2):
            taps = [W[:, :, _KTAP[py][dy], _KTAP[px][dx]]
                    for dy in range(2) for dx in range(2)]       # (Cin, Cout)
            groups.append(jnp.concatenate(taps, axis=0))          # (4*Cin, Cout)
    Wg = jnp.stack(groups, axis=0)
    Cout = W.shape[1]
    bias = b.reshape(1, 1, Cout).astype(jnp.float32)
    if cout_pad is not None and cout_pad > Cout:
        pad = cout_pad - Cout
        Wg = jnp.pad(Wg, ((0, 0), (0, 0), (0, pad)))
        bias = jnp.pad(bias, ((0, 0), (0, 0), (0, pad)))
    return Wg.astype(dtype), bias


def prep_deconv1(W, b, dtype=jnp.bfloat16):
    """deconv1 (k=4, s=1, p=0) on a 1x1 input == matmul.  Columns ordered
    (ky, kx, cout) so the result reshapes straight to NHWC (N, 4, 4, Cout)."""
    Cin, Cout = W.shape[0], W.shape[1]
    Wm = jnp.transpose(W, (0, 2, 3, 1)).reshape(Cin, 16 * Cout)
    bias = jnp.tile(b, 16).reshape(1, 1, 16 * Cout).astype(jnp.float32)
    return Wm[None].astype(dtype), bias


def prepare_params(params):
    """One-time weight preprocessing, hoisted out of the per-forward path."""
    prep = {}
    prep["W1"], prep["b1"] = prep_deconv1(params["W1"], params["b1"])
    for i in (2, 3, 4):
        prep[f"W{i}"], prep[f"b{i}"] = prep_deconv(params[f"W{i}"], params[f"b{i}"])
    # deconv5: pad Cout 3 -> 128 (lane/MXU dense); sliced back to 3 in-kernel.
    prep["W5"], prep["b5"] = prep_deconv(params["W5"], params["b5"], cout_pad=128)
    for i in (1, 2, 3, 4):
        prep[f"g{i}"] = params[f"g{i}"].astype(jnp.float32)
        prep[f"be{i}"] = params[f"be{i}"].astype(jnp.float32)
    return prep


def generator_forward(noise, prep):
    """noise: (N, noise_size); PyTorch reshapes it to (N, noise, 1, 1)."""
    N = noise.shape[0]
    C1 = prep["g1"].shape[0]

    # ---- deconv1 (1x1 -> 4x4): pure matmul + fused BN-statistics epilogue --
    y, ps, pq = fused_matmul(noise[None].astype(jnp.bfloat16),
                             prep["W1"], prep["b1"], compute_stats=True)
    s = ps.sum(axis=(0, 1, 2)).reshape(16, C1).sum(0)   # fold 16 spatial pos.
    q = pq.sum(axis=(0, 1, 2)).reshape(16, C1).sum(0)
    scale, shift = _bn_scale_shift(s, q, N * 16.0, prep["g1"], prep["be1"])
    x = y.reshape(N, 4, 4, C1)                           # pre-BN NHWC
    h, w = 4, 4

    # ---- deconv2..4: sub-pixel ConvTranspose; previous BN+ReLU fused on A --
    for i in (2, 3, 4):
        A = subpixel_gather(x, _bn_pad_value(scale, shift))   # (4, N*h*w, 4Cin)
        y, ps, pq = fused_matmul(A, prep[f"W{i}"], prep[f"b{i}"],
                                 scale=jnp.tile(scale, 4),
                                 shift=jnp.tile(shift, 4),
                                 compute_stats=True)
        s = ps.sum(axis=(0, 1, 2))
        q = pq.sum(axis=(0, 1, 2))
        scale, shift = _bn_scale_shift(s, q, 4.0 * N * h * w,
                                       prep[f"g{i}"], prep[f"be{i}"])
        x = interleave_parities(y, N, h, w)              # pre-BN (N, 2h, 2w, C)
        h, w = 2 * h, 2 * w

    # ---- deconv5: BN4+ReLU fused on A; 3-channel slice + tanh in-kernel ----
    A = subpixel_gather(x, _bn_pad_value(scale, shift))
    y = fused_matmul(A, prep["W5"], prep["b5"],
                     scale=jnp.tile(scale, 4), shift=jnp.tile(shift, 4),
                     activation="tanh", out_cols=3, out_dtype=jnp.float32)
    out = interleave_parities(y, N, h, w)                # (N, 64, 64, 3)
    return out.transpose(0, 3, 1, 2)                     # NCHW, like PyTorch


def init_params(key, noise_size, d=16, std=0.02):
    """Synthetic init: normal(0, std) weights, zero bias, BN gamma=1/beta=0."""
    keys = jax.random.split(key, 5)
    io = [(noise_size, d * 8), (d * 8, d * 4), (d * 4, d * 2), (d * 2, d), (d, 3)]
    params = {}
    for i, (cin, cout) in enumerate(io, start=1):
        params[f"W{i}"] = std * jax.random.normal(keys[i - 1], (cin, cout, 4, 4),
                                                  jnp.float32)
        params[f"b{i}"] = jnp.zeros((cout,), jnp.float32)
        if i <= 4:
            params[f"g{i}"] = jnp.ones((cout,), jnp.float32)
            params[f"be{i}"] = jnp.zeros((cout,), jnp.float32)
    return params


if __name__ == "__main__":
    key = jax.random.PRNGKey(0)
    kp, kx = jax.random.split(key)

    noise_size, d, batch = 32, 16, 2     # small synthetic config (paper: d=128)
    params = init_params(kp, noise_size, d=d)
    prep = prepare_params(params)        # one-time weight prep (hoisted)
    noise = jax.random.normal(kx, (batch, noise_size), jnp.float32)

    fwd = jax.jit(generator_forward)
    out = jax.block_until_ready(fwd(noise, prep))

    assert out.shape == (batch, 3, 64, 64), out.shape
    assert bool(jnp.all(jnp.isfinite(out)))
    assert bool(jnp.all(jnp.abs(out) <= 1.0 + 1e-6))   # tanh range
    print("KERNEL_OK")
</pallas_src>

<mosaic_0001>
module attributes {stable_mosaic.version = 11 : i64} {
  func.func @_mm_kernel(%arg0: i32, %arg1: i32, %arg2: memref<1x2x32xbf16, #tpu.memory_space<vmem>>, %arg3: memref<1x32x2048xbf16, #tpu.memory_space<vmem>>, %arg4: memref<1x1x2048xf32, #tpu.memory_space<vmem>>, %arg5: memref<1x2x2048xbf16, #tpu.memory_space<vmem>>, %arg6: memref<1x1x1x2048xf32, #tpu.memory_space<vmem>>, %arg7: memref<1x1x1x2048xf32, #tpu.memory_space<vmem>>) attributes {dimension_semantics = [#tpu.dimension_semantics<parallel>, #tpu.dimension_semantics<parallel>], iteration_bounds = array<i64: 1, 1>, scalar_prefetch = 0 : i64, scratch_operands = 0 : i64, tpu.core_type = #tpu.core_type<tc>, window_params = [{transform_indices = @transform_0, window_bounds = array<i64: 1, 2, 32>}, {transform_indices = @transform_1, window_bounds = array<i64: 1, 32, 2048>}, {pipeline_mode = #tpu.pipeline_mode<synchronous>, transform_indices = @transform_2, window_bounds = array<i64: 1, 1, 2048>}, {transform_indices = @transform_3, window_bounds = array<i64: 1, 2, 2048>}, {transform_indices = @transform_4, window_bounds = array<i64: 1, 1, 1, 2048>}, {transform_indices = @transform_5, window_bounds = array<i64: 1, 1, 1, 2048>}]} {
    %c0 = arith.constant 0 : index
    %c0_0 = arith.constant 0 : index
    %c0_1 = arith.constant 0 : index
    %0 = vector.load %arg2[%c0, %c0_0, %c0_1] : memref<1x2x32xbf16, #tpu.memory_space<vmem>>, vector<1x2x32xbf16>
    %1 = vector.shape_cast %0 : vector<1x2x32xbf16> to vector<2x32xbf16>
    %c0_2 = arith.constant 0 : index
    %c0_3 = arith.constant 0 : index
    %c0_4 = arith.constant 0 : index
    %2 = vector.load %arg3[%c0_2, %c0_3, %c0_4] : memref<1x32x2048xbf16, #tpu.memory_space<vmem>>, vector<1x32x2048xbf16>
    %3 = vector.shape_cast %2 : vector<1x32x2048xbf16> to vector<32x2048xbf16>
    %cst = arith.constant dense<0.000000e+00> : vector<2x2048xf32>
    %4 = tpu.matmul %1, %3, %cst {dimension_numbers = #tpu.dot_dimension_numbers<[1], [0], [0], [1], [0, 0, 1, 1], [], []>} : vector<2x32xbf16>, vector<32x2048xbf16>, vector<2x2048xf32> -> vector<2x2048xf32>
    %c0_5 = arith.constant 0 : index
    %c0_6 = arith.constant 0 : index
    %c0_7 = arith.constant 0 : index
    %5 = vector.load %arg4[%c0_5, %c0_6, %c0_7] : memref<1x1x2048xf32, #tpu.memory_space<vmem>>, vector<1x1x2048xf32>
    %6 = vector.shape_cast %5 : vector<1x1x2048xf32> to vector<1x2048xf32>
    %7 = vector.broadcast %6 : vector<1x2048xf32> to vector<2x2048xf32>
    %8 = arith.addf %4, %7 : vector<2x2048xf32>
    %cst_8 = arith.constant dense<0.000000e+00> : vector<2048xf32>
    %9 = vector.multi_reduction <add>, %8, %cst_8 [0] : vector<2x2048xf32> to vector<2048xf32>
    %10 = vector.shape_cast %9 : vector<2048xf32> to vector<1x2048xf32>
    %c0_9 = arith.constant 0 : index
    %c0_10 = arith.constant 0 : index
    %c0_11 = arith.constant 0 : index
    %c0_12 = arith.constant 0 : index
    %11 = vector.load %arg6[%c0_9, %c0_10, %c0_11, %c0_12] : memref<1x1x1x2048xf32, #tpu.memory_space<vmem>>, vector<1x1x1x2048xf32>
    %12 = vector.shape_cast %11 : vector<1x1x1x2048xf32> to vector<1x2048xf32>
    %13 = vector.shape_cast %10 : vector<1x2048xf32> to vector<1x1x1x2048xf32>
    tpu.vector_store %arg6[%c0_9, %c0_10, %c0_11, %c0_12], %13 {strides = array<i32>} : memref<1x1x1x2048xf32, #tpu.memory_space<vmem>>, vector<1x1x1x2048xf32>,
    %14 = arith.mulf %8, %8 : vector<2x2048xf32>
    %cst_13 = arith.constant dense<0.000000e+00> : vector<2048xf32>
    %15 = vector.multi_reduction <add>, %14, %cst_13 [0] : vector<2x2048xf32> to vector<2048xf32>
    %16 = vector.shape_cast %15 : vector<2048xf32> to vector<1x2048xf32>
    %c0_14 = arith.constant 0 : index
    %c0_15 = arith.constant 0 : index
    %c0_16 = arith.constant 0 : index
    %c0_17 = arith.constant 0 : index
    %17 = vector.load %arg7[%c0_14, %c0_15, %c0_16, %c0_17] : memref<1x1x1x2048xf32, #tpu.memory_space<vmem>>, vector<1x1x1x2048xf32>
    %18 = vector.shape_cast %17 : vector<1x1x1x2048xf32> to vector<1x2048xf32>
    %19 = vector.shape_cast %16 : vector<1x2048xf32> to vector<1x1x1x2048xf32>
    tpu.vector_store %arg7[%c0_14, %c0_15, %c0_16, %c0_17], %19 {strides = array<i32>} : memref<1x1x1x2048xf32, #tpu.memory_space<vmem>>, vector<1x1x1x2048xf32>,
    %20 = arith.truncf %8 : vector<2x2048xf32> to vector<2x2048xbf16>
    %c0_18 = arith.constant 0 : index
    %c0_19 = arith.constant 0 : index
    %c0_20 = arith.constant 0 : index
    %21 = vector.load %arg5[%c0_18, %c0_19, %c0_20] : memref<1x2x2048xbf16, #tpu.memory_space<vmem>>, vector<1x2x2048xbf16>
    %22 = vector.shape_cast %21 : vector<1x2x2048xbf16> to vector<2x2048xbf16>
    %23 = vector.shape_cast %20 : vector<2x2048xbf16> to vector<1x2x2048xbf16>
    tpu.vector_store %arg5[%c0_18, %c0_19, %c0_20], %23 {strides = array<i32>} : memref<1x2x2048xbf16, #tpu.memory_space<vmem>>, vector<1x2x2048xbf16>,
    return
  }
  func.func @transform_0(%arg0: i32, %arg1: i32) -> (i32, i32, i32) {
    %c0_i32 = arith.constant 0 : i32
    %c0_i32_0 = arith.constant 0 : i32
    return %arg0, %arg1, %c0_i32 : i32, i32, i32
  }
  func.func @transform_1(%arg0: i32, %arg1: i32) -> (i32, i32, i32) {
    %c0_i32 = arith.constant 0 : i32
    %c0_i32_0 = arith.constant 0 : i32
    %c0_i32_1 = arith.constant 0 : i32
    return %arg0, %c0_i32, %c0_i32_0 : i32, i32, i32
  }
  func.func @transform_2(%arg0: i32, %arg1: i32) -> (i32, i32, i32) {
    %c0_i32 = arith.constant 0 : i32
    %c0_i32_0 = arith.constant 0 : i32
    %c0_i32_1 = arith.constant 0 : i32
    %c0_i32_2 = arith.constant 0 : i32
    return %c0_i32, %c0_i32_0, %c0_i32_1 : i32, i32, i32
  }
  func.func @transform_3(%arg0: i32, %arg1: i32) -> (i32, i32, i32) {
    %c0_i32 = arith.constant 0 : i32
    %c0_i32_0 = arith.constant 0 : i32
    return %arg0, %arg1, %c0_i32 : i32, i32, i32
  }
  func.func @transform_4(%arg0: i32, %arg1: i32) -> (i32, i32, i32, i32) {
    %c0_i32 = arith.constant 0 : i32
    %c0_i32_0 = arith.constant 0 : i32
    %c0_i32_1 = arith.constant 0 : i32
    return %arg0, %arg1, %c0_i32, %c0_i32_0 : i32, i32, i32, i32
  }
  func.func @transform_5(%arg0: i32, %arg1: i32) -> (i32, i32, i32, i32) {
    %c0_i32 = arith.constant 0 : i32
    %c0_i32_0 = arith.constant 0 : i32
    %c0_i32_1 = arith.constant 0 : i32
    return %arg0, %arg1, %c0_i32, %c0_i32_0 : i32, i32, i32, i32
  }
}

module attributes {stable_mosaic.version = 11 : i64} {
  func.func @_mm_kernel(%arg0: i32, %arg1: i32, %arg2: memref<1x32x512xbf16, #tpu.memory_space<vmem>>, %arg3: memref<1x512x64xbf16, #tpu.memory_space<vmem>>, %arg4: memref<1x1x64xf32, #tpu.memory_space<vmem>>, %arg5: memref<1x1x512xf32, #tpu.memory_space<vmem>>, %arg6: memref<1x1x512xf32, #tpu.memory_space<vmem>>, %arg7: memref<1x32x64xbf16, #tpu.memory_space<vmem>>, %arg8: memref<1x1x1x64xf32, #tpu.memory_space<vmem>>, %arg9: memref<1x1x1x64xf32, #tpu.memory_space<vmem>>) attributes {dimension_semantics = [#tpu.dimension_semantics<parallel>, #tpu.dimension_semantics<parallel>], iteration_bounds = array<i64: 4, 1>, scalar_prefetch = 0 : i64, scratch_operands = 0 : i64, tpu.core_type = #tpu.core_type<tc>, window_params = [{transform_indices = @transform_0, window_bounds = array<i64: 1, 32, 512>}, {transform_indices = @transform_1, window_bounds = array<i64: 1, 512, 64>}, {pipeline_mode = #tpu.pipeline_mode<synchronous>, transform_indices = @transform_2, window_bounds = array<i64: 1, 1, 64>}, {pipeline_mode = #tpu.pipeline_mode<synchronous>, transform_indices = @transform_3, window_bounds = array<i64: 1, 1, 512>}, {pipeline_mode = #tpu.pipeline_mode<synchronous>, transform_indices = @transform_4, window_bounds = array<i64: 1, 1, 512>}, {transform_indices = @transform_5, window_bounds = array<i64: 1, 32, 64>}, {transform_indices = @transform_6, window_bounds = array<i64: 1, 1, 1, 64>}, {transform_indices = @transform_7, window_bounds = array<i64: 1, 1, 1, 64>}]} {
    %c0 = arith.constant 0 : index
    %c0_0 = arith.constant 0 : index
    %c0_1 = arith.constant 0 : index
    %0 = vector.load %arg2[%c0, %c0_0, %c0_1] : memref<1x32x512xbf16, #tpu.memory_space<vmem>>, vector<1x32x512xbf16>
    %1 = vector.shape_cast %0 : vector<1x32x512xbf16> to vector<32x512xbf16>
    %2 = arith.extf %1 : vector<32x512xbf16> to vector<32x512xf32>
    %c0_2 = arith.constant 0 : index
    %c0_3 = arith.constant 0 : index
    %c0_4 = arith.constant 0 : index
    %3 = vector.load %arg5[%c0_2, %c0_3, %c0_4] : memref<1x1x512xf32, #tpu.memory_space<vmem>>, vector<1x1x512xf32>
    %4 = vector.shape_cast %3 : vector<1x1x512xf32> to vector<1x512xf32>
    %5 = vector.broadcast %4 : vector<1x512xf32> to vector<32x512xf32>
    %6 = arith.mulf %2, %5 : vector<32x512xf32>
    %c0_5 = arith.constant 0 : index
    %c0_6 = arith.constant 0 : index
    %c0_7 = arith.constant 0 : index
    %7 = vector.load %arg6[%c0_5, %c0_6, %c0_7] : memref<1x1x512xf32, #tpu.memory_space<vmem>>, vector<1x1x512xf32>
    %8 = vector.shape_cast %7 : vector<1x1x512xf32> to vector<1x512xf32>
    %9 = vector.broadcast %8 : vector<1x512xf32> to vector<32x512xf32>
    %10 = arith.addf %6, %9 : vector<32x512xf32>
    %cst = arith.constant 0.000000e+00 : f32
    %11 = vector.broadcast %cst : f32 to vector<32x512xf32>
    %12 = arith.maximumf %10, %11 : vector<32x512xf32>
    %13 = arith.truncf %12 : vector<32x512xf32> to vector<32x512xbf16>
    %c0_8 = arith.constant 0 : index
    %c0_9 = arith.constant 0 : index
    %c0_10 = arith.constant 0 : index
    %14 = vector.load %arg3[%c0_8, %c0_9, %c0_10] : memref<1x512x64xbf16, #tpu.memory_space<vmem>>, vector<1x512x64xbf16>
    %15 = vector.shape_cast %14 : vector<1x512x64xbf16> to vector<512x64xbf16>
    %cst_11 = arith.constant dense<0.000000e+00> : vector<32x64xf32>
    %16 = tpu.matmul %13, %15, %cst_11 {dimension_numbers = #tpu.dot_dimension_numbers<[1], [0], [0], [1], [0, 0, 1, 1], [], []>} : vector<32x512xbf16>, vector<512x64xbf16>, vector<32x64xf32> -> vector<32x64xf32>
    %c0_12 = arith.constant 0 : index
    %c0_13 = arith.constant 0 : index
    %c0_14 = arith.constant 0 : index
    %17 = vector.load %arg4[%c0_12, %c0_13, %c0_14] : memref<1x1x64xf32, #tpu.memory_space<vmem>>, vector<1x1x64xf32>
    %18 = vector.shape_cast %17 : vector<1x1x64xf32> to vector<1x64xf32>
    %19 = vector.broadcast %18 : vector<1x64xf32> to vector<32x64xf32>
    %20 = arith.addf %16, %19 : vector<32x64xf32>
    %cst_15 = arith.constant dense<0.000000e+00> : vector<64xf32>
    %21 = vector.multi_reduction <add>, %20, %cst_15 [0] : vector<32x64xf32> to vector<64xf32>
    %22 = vector.shape_cast %21 : vector<64xf32> to vector<1x64xf32>
    %c0_16 = arith.constant 0 : index
    %c0_17 = arith.constant 0 : index
    %c0_18 = arith.constant 0 : index
    %c0_19 = arith.constant 0 : index
    %23 = vector.load %arg8[%c0_16, %c0_17, %c0_18, %c0_19] : memref<1x1x1x64xf32, #tpu.memory_space<vmem>>, vector<1x1x1x64xf32>
    %24 = vector.shape_cast %23 : vector<1x1x1x64xf32> to vector<1x64xf32>
    %25 = vector.shape_cast %22 : vector<1x64xf32> to vector<1x1x1x64xf32>
    tpu.vector_store %arg8[%c0_16, %c0_17, %c0_18, %c0_19], %25 {strides = array<i32>} : memref<1x1x1x64xf32, #tpu.memory_space<vmem>>, vector<1x1x1x64xf32>,
    %26 = arith.mulf %20, %20 : vector<32x64xf32>
    %cst_20 = arith.constant dense<0.000000e+00> : vector<64xf32>
    %27 = vector.multi_reduction <add>, %26, %cst_20 [0] : vector<32x64xf32> to vector<64xf32>
    %28 = vector.shape_cast %27 : vector<64xf32> to vector<1x64xf32>
    %c0_21 = arith.constant 0 : index
    %c0_22 = arith.constant 0 : index
    %c0_23 = arith.constant 0 : index
    %c0_24 = arith.constant 0 : index
    %29 = vector.load %arg9[%c0_21, %c0_22, %c0_23, %c0_24] : memref<1x1x1x64xf32, #tpu.memory_space<vmem>>, vector<1x1x1x64xf32>
    %30 = vector.shape_cast %29 : vector<1x1x1x64xf32> to vector<1x64xf32>
    %31 = vector.shape_cast %28 : vector<1x64xf32> to vector<1x1x1x64xf32>
    tpu.vector_store %arg9[%c0_21, %c0_22, %c0_23, %c0_24], %31 {strides = array<i32>} : memref<1x1x1x64xf32, #tpu.memory_space<vmem>>, vector<1x1x1x64xf32>,
    %32 = arith.truncf %20 : vector<32x64xf32> to vector<32x64xbf16>
    %c0_25 = arith.constant 0 : index
    %c0_26 = arith.constant 0 : index
    %c0_27 = arith.constant 0 : index
    %33 = vector.load %arg7[%c0_25, %c0_26, %c0_27] : memref<1x32x64xbf16, #tpu.memory_space<vmem>>, vector<1x32x64xbf16>
    %34 = vector.shape_cast %33 : vector<1x32x64xbf16> to vector<32x64xbf16>
    %35 = vector.shape_cast %32 : vector<32x64xbf16> to vector<1x32x64xbf16>
    tpu.vector_store %arg7[%c0_25, %c0_26, %c0_27], %35 {strides = array<i32>} : memref<1x32x64xbf16, #tpu.memory_space<vmem>>, vector<1x32x64xbf16>,
    return
  }
  func.func @transform_0(%arg0: i32, %arg1: i32) -> (i32, i32, i32) {
    %c0_i32 = arith.constant 0 : i32
    %c0_i32_0 = arith.constant 0 : i32
    return %arg0, %arg1, %c0_i32 : i32, i32, i32
  }
  func.func @transform_1(%arg0: i32, %arg1: i32) -> (i32, i32, i32) {
    %c0_i32 = arith.constant 0 : i32
    %c0_i32_0 = arith.constant 0 : i32
    %c0_i32_1 = arith.constant 0 : i32
    return %arg0, %c0_i32, %c0_i32_0 : i32, i32, i32
  }
  func.func @transform_2(%arg0: i32, %arg1: i32) -> (i32, i32, i32) {
    %c0_i32 = arith.constant 0 : i32
    %c0_i32_0 = arith.constant 0 : i32
    %c0_i32_1 = arith.constant 0 : i32
    %c0_i32_2 = arith.constant 0 : i32
    return %c0_i32, %c0_i32_0, %c0_i32_1 : i32, i32, i32
  }
  func.func @transform_3(%arg0: i32, %arg1: i32) -> (i32, i32, i32) {
    %c0_i32 = arith.constant 0 : i32
    %c0_i32_0 = arith.constant 0 : i32
    %c0_i32_1 = arith.constant 0 : i32
    %c0_i32_2 = arith.constant 0 : i32
    return %c0_i32, %c0_i32_0, %c0_i32_1 : i32, i32, i32
  }
  func.func @transform_4(%arg0: i32, %arg1: i32) -> (i32, i32, i32) {
    %c0_i32 = arith.constant 0 : i32
    %c0_i32_0 = arith.constant 0 : i32
    %c0_i32_1 = arith.constant 0 : i32
    %c0_i32_2 = arith.constant 0 : i32
    return %c0_i32, %c0_i32_0, %c0_i32_1 : i32, i32, i32
  }
  func.func @transform_5(%arg0: i32, %arg1: i32) -> (i32, i32, i32) {
    %c0_i32 = arith.constant 0 : i32
    %c0_i32_0 = arith.constant 0 : i32
    return %arg0, %arg1, %c0_i32 : i32, i32, i32
  }
  func.func @transform_6(%arg0: i32, %arg1: i32) -> (i32, i32, i32, i32) {
    %c0_i32 = arith.constant 0 : i32
    %c0_i32_0 = arith.constant 0 : i32
    %c0_i32_1 = arith.constant 0 : i32
    return %arg0, %arg1, %c0_i32, %c0_i32_0 : i32, i32, i32, i32
  }
  func.func @transform_7(%arg0: i32, %arg1: i32) -> (i32, i32, i32, i32) {
    %c0_i32 = arith.constant 0 : i32
    %c0_i32_0 = arith.constant 0 : i32
    %c0_i32_1 = arith.constant 0 : i32
    return %arg0, %arg1, %c0_i32, %c0_i32_0 : i32, i32, i32, i32
  }
}

module attributes {stable_mosaic.version = 11 : i64} {
  func.func @_mm_kernel(%arg0: i32, %arg1: i32, %arg2: memref<1x128x256xbf16, #tpu.memory_space<vmem>>, %arg3: memref<1x256x32xbf16, #tpu.memory_space<vmem>>, %arg4: memref<1x1x32xf32, #tpu.memory_space<vmem>>, %arg5: memref<1x1x256xf32, #tpu.memory_space<vmem>>, %arg6: memref<1x1x256xf32, #tpu.memory_space<vmem>>, %arg7: memref<1x128x32xbf16, #tpu.memory_space<vmem>>, %arg8: memref<1x1x1x32xf32, #tpu.memory_space<vmem>>, %arg9: memref<1x1x1x32xf32, #tpu.memory_space<vmem>>) attributes {dimension_semantics = [#tpu.dimension_semantics<parallel>, #tpu.dimension_semantics<parallel>], iteration_bounds = array<i64: 4, 1>, scalar_prefetch = 0 : i64, scratch_operands = 0 : i64, tpu.core_type = #tpu.core_type<tc>, window_params = [{transform_indices = @transform_0, window_bounds = array<i64: 1, 128, 256>}, {transform_indices = @transform_1, window_bounds = array<i64: 1, 256, 32>}, {pipeline_mode = #tpu.pipeline_mode<synchronous>, transform_indices = @transform_2, window_bounds = array<i64: 1, 1, 32>}, {pipeline_mode = #tpu.pipeline_mode<synchronous>, transform_indices = @transform_3, window_bounds = array<i64: 1, 1, 256>}, {pipeline_mode = #tpu.pipeline_mode<synchronous>, transform_indices = @transform_4, window_bounds = array<i64: 1, 1, 256>}, {transform_indices = @transform_5, window_bounds = array<i64: 1, 128, 32>}, {transform_indices = @transform_6, window_bounds = array<i64: 1, 1, 1, 32>}, {transform_indices = @transform_7, window_bounds = array<i64: 1, 1, 1, 32>}]} {
    %c0 = arith.constant 0 : index
    %c0_0 = arith.constant 0 : index
    %c0_1 = arith.constant 0 : index
    %0 = vector.load %arg2[%c0, %c0_0, %c0_1] : memref<1x128x256xbf16, #tpu.memory_space<vmem>>, vector<1x128x256xbf16>
    %1 = vector.shape_cast %0 : vector<1x128x256xbf16> to vector<128x256xbf16>
    %2 = arith.extf %1 : vector<128x256xbf16> to vector<128x256xf32>
    %c0_2 = arith.constant 0 : index
    %c0_3 = arith.constant 0 : index
    %c0_4 = arith.constant 0 : index
    %3 = vector.load %arg5[%c0_2, %c0_3, %c0_4] : memref<1x1x256xf32, #tpu.memory_space<vmem>>, vector<1x1x256xf32>
    %4 = vector.shape_cast %3 : vector<1x1x256xf32> to vector<1x256xf32>
    %5 = vector.broadcast %4 : vector<1x256xf32> to vector<128x256xf32>
    %6 = arith.mulf %2, %5 : vector<128x256xf32>
    %c0_5 = arith.constant 0 : index
    %c0_6 = arith.constant 0 : index
    %c0_7 = arith.constant 0 : index
    %7 = vector.load %arg6[%c0_5, %c0_6, %c0_7] : memref<1x1x256xf32, #tpu.memory_space<vmem>>, vector<1x1x256xf32>
    %8 = vector.shape_cast %7 : vector<1x1x256xf32> to vector<1x256xf32>
    %9 = vector.broadcast %8 : vector<1x256xf32> to vector<128x256xf32>
    %10 = arith.addf %6, %9 : vector<128x256xf32>
    %cst = arith.constant 0.000000e+00 : f32
    %11 = vector.broadcast %cst : f32 to vector<128x256xf32>
    %12 = arith.maximumf %10, %11 : vector<128x256xf32>
    %13 = arith.truncf %12 : vector<128x256xf32> to vector<128x256xbf16>
    %c0_8 = arith.constant 0 : index
    %c0_9 = arith.constant 0 : index
    %c0_10 = arith.constant 0 : index
    %14 = vector.load %arg3[%c0_8, %c0_9, %c0_10] : memref<1x256x32xbf16, #tpu.memory_space<vmem>>, vector<1x256x32xbf16>
    %15 = vector.shape_cast %14 : vector<1x256x32xbf16> to vector<256x32xbf16>
    %cst_11 = arith.constant dense<0.000000e+00> : vector<128x32xf32>
    %16 = tpu.matmul %13, %15, %cst_11 {dimension_numbers = #tpu.dot_dimension_numbers<[1], [0], [0], [1], [0, 0, 1, 1], [], []>} : vector<128x256xbf16>, vector<256x32xbf16>, vector<128x32xf32> -> vector<128x32xf32>
    %c0_12 = arith.constant 0 : index
    %c0_13 = arith.constant 0 : index
    %c0_14 = arith.constant 0 : index
    %17 = vector.load %arg4[%c0_12, %c0_13, %c0_14] : memref<1x1x32xf32, #tpu.memory_space<vmem>>, vector<1x1x32xf32>
    %18 = vector.shape_cast %17 : vector<1x1x32xf32> to vector<1x32xf32>
    %19 = vector.broadcast %18 : vector<1x32xf32> to vector<128x32xf32>
    %20 = arith.addf %16, %19 : vector<128x32xf32>
    %cst_15 = arith.constant dense<0.000000e+00> : vector<32xf32>
    %21 = vector.multi_reduction <add>, %20, %cst_15 [0] : vector<128x32xf32> to vector<32xf32>
    %22 = vector.shape_cast %21 : vector<32xf32> to vector<1x32xf32>
    %c0_16 = arith.constant 0 : index
    %c0_17 = arith.constant 0 : index
    %c0_18 = arith.constant 0 : index
    %c0_19 = arith.constant 0 : index
    %23 = vector.load %arg8[%c0_16, %c0_17, %c0_18, %c0_19] : memref<1x1x1x32xf32, #tpu.memory_space<vmem>>, vector<1x1x1x32xf32>
    %24 = vector.shape_cast %23 : vector<1x1x1x32xf32> to vector<1x32xf32>
    %25 = vector.shape_cast %22 : vector<1x32xf32> to vector<1x1x1x32xf32>
    tpu.vector_store %arg8[%c0_16, %c0_17, %c0_18, %c0_19], %25 {strides = array<i32>} : memref<1x1x1x32xf32, #tpu.memory_space<vmem>>, vector<1x1x1x32xf32>,
    %26 = arith.mulf %20, %20 : vector<128x32xf32>
    %cst_20 = arith.constant dense<0.000000e+00> : vector<32xf32>
    %27 = vector.multi_reduction <add>, %26, %cst_20 [0] : vector<128x32xf32> to vector<32xf32>
    %28 = vector.shape_cast %27 : vector<32xf32> to vector<1x32xf32>
    %c0_21 = arith.constant 0 : index
    %c0_22 = arith.constant 0 : index
    %c0_23 = arith.constant 0 : index
    %c0_24 = arith.constant 0 : index
    %29 = vector.load %arg9[%c0_21, %c0_22, %c0_23, %c0_24] : memref<1x1x1x32xf32, #tpu.memory_space<vmem>>, vector<1x1x1x32xf32>
    %30 = vector.shape_cast %29 : vector<1x1x1x32xf32> to vector<1x32xf32>
    %31 = vector.shape_cast %28 : vector<1x32xf32> to vector<1x1x1x32xf32>
    tpu.vector_store %arg9[%c0_21, %c0_22, %c0_23, %c0_24], %31 {strides = array<i32>} : memref<1x1x1x32xf32, #tpu.memory_space<vmem>>, vector<1x1x1x32xf32>,
    %32 = arith.truncf %20 : vector<128x32xf32> to vector<128x32xbf16>
    %c0_25 = arith.constant 0 : index
    %c0_26 = arith.constant 0 : index
    %c0_27 = arith.constant 0 : index
    %33 = vector.load %arg7[%c0_25, %c0_26, %c0_27] : memref<1x128x32xbf16, #tpu.memory_space<vmem>>, vector<1x128x32xbf16>
    %34 = vector.shape_cast %33 : vector<1x128x32xbf16> to vector<128x32xbf16>
    %35 = vector.shape_cast %32 : vector<128x32xbf16> to vector<1x128x32xbf16>
    tpu.vector_store %arg7[%c0_25, %c0_26, %c0_27], %35 {strides = array<i32>} : memref<1x128x32xbf16, #tpu.memory_space<vmem>>, vector<1x128x32xbf16>,
    return
  }
  func.func @transform_0(%arg0: i32, %arg1: i32) -> (i32, i32, i32) {
    %c0_i32 = arith.constant 0 : i32
    %c0_i32_0 = arith.constant 0 : i32
    return %arg0, %arg1, %c0_i32 : i32, i32, i32
  }
  func.func @transform_1(%arg0: i32, %arg1: i32) -> (i32, i32, i32) {
    %c0_i32 = arith.constant 0 : i32
    %c0_i32_0 = arith.constant 0 : i32
    %c0_i32_1 = arith.constant 0 : i32
    return %arg0, %c0_i32, %c0_i32_0 : i32, i32, i32
  }
  func.func @transform_2(%arg0: i32, %arg1: i32) -> (i32, i32, i32) {
    %c0_i32 = arith.constant 0 : i32
    %c0_i32_0 = arith.constant 0 : i32
    %c0_i32_1 = arith.constant 0 : i32
    %c0_i32_2 = arith.constant 0 : i32
    return %c0_i32, %c0_i32_0, %c0_i32_1 : i32, i32, i32
  }
  func.func @transform_3(%arg0: i32, %arg1: i32) -> (i32, i32, i32) {
    %c0_i32 = arith.constant 0 : i32
    %c0_i32_0 = arith.constant 0 : i32
    %c0_i32_1 = arith.constant 0 : i32
    %c0_i32_2 = arith.constant 0 : i32
    return %c0_i32, %c0_i32_0, %c0_i32_1 : i32, i32, i32
  }
  func.func @transform_4(%arg0: i32, %arg1: i32) -> (i32, i32, i32) {
    %c0_i32 = arith.constant 0 : i32
    %c0_i32_0 = arith.constant 0 : i32
    %c0_i32_1 = arith.constant 0 : i32
    %c0_i32_2 = arith.constant 0 : i32
    return %c0_i32, %c0_i32_0, %c0_i32_1 : i32, i32, i32
  }
  func.func @transform_5(%arg0: i32, %arg1: i32) -> (i32, i32, i32) {
    %c0_i32 = arith.constant 0 : i32
    %c0_i32_0 = arith.constant 0 : i32
    return %arg0, %arg1, %c0_i32 : i32, i32, i32
  }
  func.func @transform_6(%arg0: i32, %arg1: i32) -> (i32, i32, i32, i32) {
    %c0_i32 = arith.constant 0 : i32
    %c0_i32_0 = arith.constant 0 : i32
    %c0_i32_1 = arith.constant 0 : i32
    return %arg0, %arg1, %c0_i32, %c0_i32_0 : i32, i32, i32, i32
  }
  func.func @transform_7(%arg0: i32, %arg1: i32) -> (i32, i32, i32, i32) {
    %c0_i32 = arith.constant 0 : i32
    %c0_i32_0 = arith.constant 0 : i32
    %c0_i32_1 = arith.constant 0 : i32
    return %arg0, %arg1, %c0_i32, %c0_i32_0 : i32, i32, i32, i32
  }
}

module attributes {stable_mosaic.version = 11 : i64} {
  func.func @_mm_kernel(%arg0: i32, %arg1: i32, %arg2: memref<1x512x128xbf16, #tpu.memory_space<vmem>>, %arg3: memref<1x128x16xbf16, #tpu.memory_space<vmem>>, %arg4: memref<1x1x16xf32, #tpu.memory_space<vmem>>, %arg5: memref<1x1x128xf32, #tpu.memory_space<vmem>>, %arg6: memref<1x1x128xf32, #tpu.memory_space<vmem>>, %arg7: memref<1x512x16xbf16, #tpu.memory_space<vmem>>, %arg8: memref<1x1x1x16xf32, #tpu.memory_space<vmem>>, %arg9: memref<1x1x1x16xf32, #tpu.memory_space<vmem>>) attributes {dimension_semantics = [#tpu.dimension_semantics<parallel>, #tpu.dimension_semantics<parallel>], iteration_bounds = array<i64: 4, 1>, scalar_prefetch = 0 : i64, scratch_operands = 0 : i64, tpu.core_type = #tpu.core_type<tc>, window_params = [{transform_indices = @transform_0, window_bounds = array<i64: 1, 512, 128>}, {transform_indices = @transform_1, window_bounds = array<i64: 1, 128, 16>}, {pipeline_mode = #tpu.pipeline_mode<synchronous>, transform_indices = @transform_2, window_bounds = array<i64: 1, 1, 16>}, {pipeline_mode = #tpu.pipeline_mode<synchronous>, transform_indices = @transform_3, window_bounds = array<i64: 1, 1, 128>}, {pipeline_mode = #tpu.pipeline_mode<synchronous>, transform_indices = @transform_4, window_bounds = array<i64: 1, 1, 128>}, {transform_indices = @transform_5, window_bounds = array<i64: 1, 512, 16>}, {transform_indices = @transform_6, window_bounds = array<i64: 1, 1, 1, 16>}, {transform_indices = @transform_7, window_bounds = array<i64: 1, 1, 1, 16>}]} {
    %c0 = arith.constant 0 : index
    %c0_0 = arith.constant 0 : index
    %c0_1 = arith.constant 0 : index
    %0 = vector.load %arg2[%c0, %c0_0, %c0_1] : memref<1x512x128xbf16, #tpu.memory_space<vmem>>, vector<1x512x128xbf16>
    %1 = vector.shape_cast %0 : vector<1x512x128xbf16> to vector<512x128xbf16>
    %2 = arith.extf %1 : vector<512x128xbf16> to vector<512x128xf32>
    %c0_2 = arith.constant 0 : index
    %c0_3 = arith.constant 0 : index
    %c0_4 = arith.constant 0 : index
    %3 = vector.load %arg5[%c0_2, %c0_3, %c0_4] : memref<1x1x128xf32, #tpu.memory_space<vmem>>, vector<1x1x128xf32>
    %4 = vector.shape_cast %3 : vector<1x1x128xf32> to vector<1x128xf32>
    %5 = vector.broadcast %4 : vector<1x128xf32> to vector<512x128xf32>
    %6 = arith.mulf %2, %5 : vector<512x128xf32>
    %c0_5 = arith.constant 0 : index
    %c0_6 = arith.constant 0 : index
    %c0_7 = arith.constant 0 : index
    %7 = vector.load %arg6[%c0_5, %c0_6, %c0_7] : memref<1x1x128xf32, #tpu.memory_space<vmem>>, vector<1x1x128xf32>
    %8 = vector.shape_cast %7 : vector<1x1x128xf32> to vector<1x128xf32>
    %9 = vector.broadcast %8 : vector<1x128xf32> to vector<512x128xf32>
    %10 = arith.addf %6, %9 : vector<512x128xf32>
    %cst = arith.constant 0.000000e+00 : f32
    %11 = vector.broadcast %cst : f32 to vector<512x128xf32>
    %12 = arith.maximumf %10, %11 : vector<512x128xf32>
    %13 = arith.truncf %12 : vector<512x128xf32> to vector<512x128xbf16>
    %c0_8 = arith.constant 0 : index
    %c0_9 = arith.constant 0 : index
    %c0_10 = arith.constant 0 : index
    %14 = vector.load %arg3[%c0_8, %c0_9, %c0_10] : memref<1x128x16xbf16, #tpu.memory_space<vmem>>, vector<1x128x16xbf16>
    %15 = vector.shape_cast %14 : vector<1x128x16xbf16> to vector<128x16xbf16>
    %cst_11 = arith.constant dense<0.000000e+00> : vector<512x16xf32>
    %16 = tpu.matmul %13, %15, %cst_11 {dimension_numbers = #tpu.dot_dimension_numbers<[1], [0], [0], [1], [0, 0, 1, 1], [], []>} : vector<512x128xbf16>, vector<128x16xbf16>, vector<512x16xf32> -> vector<512x16xf32>
    %c0_12 = arith.constant 0 : index
    %c0_13 = arith.constant 0 : index
    %c0_14 = arith.constant 0 : index
    %17 = vector.load %arg4[%c0_12, %c0_13, %c0_14] : memref<1x1x16xf32, #tpu.memory_space<vmem>>, vector<1x1x16xf32>
    %18 = vector.shape_cast %17 : vector<1x1x16xf32> to vector<1x16xf32>
    %19 = vector.broadcast %18 : vector<1x16xf32> to vector<512x16xf32>
    %20 = arith.addf %16, %19 : vector<512x16xf32>
    %cst_15 = arith.constant dense<0.000000e+00> : vector<16xf32>
    %21 = vector.multi_reduction <add>, %20, %cst_15 [0] : vector<512x16xf32> to vector<16xf32>
    %22 = vector.shape_cast %21 : vector<16xf32> to vector<1x16xf32>
    %c0_16 = arith.constant 0 : index
    %c0_17 = arith.constant 0 : index
    %c0_18 = arith.constant 0 : index
    %c0_19 = arith.constant 0 : index
    %23 = vector.load %arg8[%c0_16, %c0_17, %c0_18, %c0_19] : memref<1x1x1x16xf32, #tpu.memory_space<vmem>>, vector<1x1x1x16xf32>
    %24 = vector.shape_cast %23 : vector<1x1x1x16xf32> to vector<1x16xf32>
    %25 = vector.shape_cast %22 : vector<1x16xf32> to vector<1x1x1x16xf32>
    tpu.vector_store %arg8[%c0_16, %c0_17, %c0_18, %c0_19], %25 {strides = array<i32>} : memref<1x1x1x16xf32, #tpu.memory_space<vmem>>, vector<1x1x1x16xf32>,
    %26 = arith.mulf %20, %20 : vector<512x16xf32>
    %cst_20 = arith.constant dense<0.000000e+00> : vector<16xf32>
    %27 = vector.multi_reduction <add>, %26, %cst_20 [0] : vector<512x16xf32> to vector<16xf32>
    %28 = vector.shape_cast %27 : vector<16xf32> to vector<1x16xf32>
    %c0_21 = arith.constant 0 : index
    %c0_22 = arith.constant 0 : index
    %c0_23 = arith.constant 0 : index
    %c0_24 = arith.constant 0 : index
    %29 = vector.load %arg9[%c0_21, %c0_22, %c0_23, %c0_24] : memref<1x1x1x16xf32, #tpu.memory_space<vmem>>, vector<1x1x1x16xf32>
    %30 = vector.shape_cast %29 : vector<1x1x1x16xf32> to vector<1x16xf32>
    %31 = vector.shape_cast %28 : vector<1x16xf32> to vector<1x1x1x16xf32>
    tpu.vector_store %arg9[%c0_21, %c0_22, %c0_23, %c0_24], %31 {strides = array<i32>} : memref<1x1x1x16xf32, #tpu.memory_space<vmem>>, vector<1x1x1x16xf32>,
    %32 = arith.truncf %20 : vector<512x16xf32> to vector<512x16xbf16>
    %c0_25 = arith.constant 0 : index
    %c0_26 = arith.constant 0 : index
    %c0_27 = arith.constant 0 : index
    %33 = vector.load %arg7[%c0_25, %c0_26, %c0_27] : memref<1x512x16xbf16, #tpu.memory_space<vmem>>, vector<1x512x16xbf16>
    %34 = vector.shape_cast %33 : vector<1x512x16xbf16> to vector<512x16xbf16>
    %35 = vector.shape_cast %32 : vector<512x16xbf16> to vector<1x512x16xbf16>
    tpu.vector_store %arg7[%c0_25, %c0_26, %c0_27], %35 {strides = array<i32>} : memref<1x512x16xbf16, #tpu.memory_space<vmem>>, vector<1x512x16xbf16>,
    return
  }
  func.func @transform_0(%arg0: i32, %arg1: i32) -> (i32, i32, i32) {
    %c0_i32 = arith.constant 0 : i32
    %c0_i32_0 = arith.constant 0 : i32
    return %arg0, %arg1, %c0_i32 : i32, i32, i32
  }
  func.func @transform_1(%arg0: i32, %arg1: i32) -> (i32, i32, i32) {
    %c0_i32 = arith.constant 0 : i32
    %c0_i32_0 = arith.constant 0 : i32
    %c0_i32_1 = arith.constant 0 : i32
    return %arg0, %c0_i32, %c0_i32_0 : i32, i32, i32
  }
  func.func @transform_2(%arg0: i32, %arg1: i32) -> (i32, i32, i32) {
    %c0_i32 = arith.constant 0 : i32
    %c0_i32_0 = arith.constant 0 : i32
    %c0_i32_1 = arith.constant 0 : i32
    %c0_i32_2 = arith.constant 0 : i32
    return %c0_i32, %c0_i32_0, %c0_i32_1 : i32, i32, i32
  }
  func.func @transform_3(%arg0: i32, %arg1: i32) -> (i32, i32, i32) {
    %c0_i32 = arith.constant 0 : i32
    %c0_i32_0 = arith.constant 0 : i32
    %c0_i32_1 = arith.constant 0 : i32
    %c0_i32_2 = arith.constant 0 : i32
    return %c0_i32, %c0_i32_0, %c0_i32_1 : i32, i32, i32
  }
  func.func @transform_4(%arg0: i32, %arg1: i32) -> (i32, i32, i32) {
    %c0_i32 = arith.constant 0 : i32
    %c0_i32_0 = arith.constant 0 : i32
    %c0_i32_1 = arith.constant 0 : i32
    %c0_i32_2 = arith.constant 0 : i32
    return %c0_i32, %c0_i32_0, %c0_i32_1 : i32, i32, i32
  }
  func.func @transform_5(%arg0: i32, %arg1: i32) -> (i32, i32, i32) {
    %c0_i32 = arith.constant 0 : i32
    %c0_i32_0 = arith.constant 0 : i32
    return %arg0, %arg1, %c0_i32 : i32, i32, i32
  }
  func.func @transform_6(%arg0: i32, %arg1: i32) -> (i32, i32, i32, i32) {
    %c0_i32 = arith.constant 0 : i32
    %c0_i32_0 = arith.constant 0 : i32
    %c0_i32_1 = arith.constant 0 : i32
    return %arg0, %arg1, %c0_i32, %c0_i32_0 : i32, i32, i32, i32
  }
  func.func @transform_7(%arg0: i32, %arg1: i32) -> (i32, i32, i32, i32) {
    %c0_i32 = arith.constant 0 : i32
    %c0_i32_0 = arith.constant 0 : i32
    %c0_i32_1 = arith.constant 0 : i32
    return %arg0, %arg1, %c0_i32, %c0_i32_0 : i32, i32, i32, i32
  }
}

module attributes {stable_mosaic.version = 11 : i64} {
  func.func @_mm_kernel(%arg0: i32, %arg1: i32, %arg2: memref<1x1024x64xbf16, #tpu.memory_space<vmem>>, %arg3: memref<1x64x128xbf16, #tpu.memory_space<vmem>>, %arg4: memref<1x1x128xf32, #tpu.memory_space<vmem>>, %arg5: memref<1x1x64xf32, #tpu.memory_space<vmem>>, %arg6: memref<1x1x64xf32, #tpu.memory_space<vmem>>, %arg7: memref<1x1024x3xf32, #tpu.memory_space<vmem>>) attributes {dimension_semantics = [#tpu.dimension_semantics<parallel>, #tpu.dimension_semantics<parallel>], iteration_bounds = array<i64: 4, 2>, scalar_prefetch = 0 : i64, scratch_operands = 0 : i64, tpu.core_type = #tpu.core_type<tc>, window_params = [{transform_indices = @transform_0, window_bounds = array<i64: 1, 1024, 64>}, {transform_indices = @transform_1, window_bounds = array<i64: 1, 64, 128>}, {pipeline_mode = #tpu.pipeline_mode<synchronous>, transform_indices = @transform_2, window_bounds = array<i64: 1, 1, 128>}, {pipeline_mode = #tpu.pipeline_mode<synchronous>, transform_indices = @transform_3, window_bounds = array<i64: 1, 1, 64>}, {pipeline_mode = #tpu.pipeline_mode<synchronous>, transform_indices = @transform_4, window_bounds = array<i64: 1, 1, 64>}, {transform_indices = @transform_5, window_bounds = array<i64: 1, 1024, 3>}]} {
    %c0 = arith.constant 0 : index
    %c0_0 = arith.constant 0 : index
    %c0_1 = arith.constant 0 : index
    %0 = vector.load %arg2[%c0, %c0_0, %c0_1] : memref<1x1024x64xbf16, #tpu.memory_space<vmem>>, vector<1x1024x64xbf16>
    %1 = vector.shape_cast %0 : vector<1x1024x64xbf16> to vector<1024x64xbf16>
    %2 = arith.extf %1 : vector<1024x64xbf16> to vector<1024x64xf32>
    %c0_2 = arith.constant 0 : index
    %c0_3 = arith.constant 0 : index
    %c0_4 = arith.constant 0 : index
    %3 = vector.load %arg5[%c0_2, %c0_3, %c0_4] : memref<1x1x64xf32, #tpu.memory_space<vmem>>, vector<1x1x64xf32>
    %4 = vector.shape_cast %3 : vector<1x1x64xf32> to vector<1x64xf32>
    %5 = vector.broadcast %4 : vector<1x64xf32> to vector<1024x64xf32>
    %6 = arith.mulf %2, %5 : vector<1024x64xf32>
    %c0_5 = arith.constant 0 : index
    %c0_6 = arith.constant 0 : index
    %c0_7 = arith.constant 0 : index
    %7 = vector.load %arg6[%c0_5, %c0_6, %c0_7] : memref<1x1x64xf32, #tpu.memory_space<vmem>>, vector<1x1x64xf32>
    %8 = vector.shape_cast %7 : vector<1x1x64xf32> to vector<1x64xf32>
    %9 = vector.broadcast %8 : vector<1x64xf32> to vector<1024x64xf32>
    %10 = arith.addf %6, %9 : vector<1024x64xf32>
    %cst = arith.constant 0.000000e+00 : f32
    %11 = vector.broadcast %cst : f32 to vector<1024x64xf32>
    %12 = arith.maximumf %10, %11 : vector<1024x64xf32>
    %13 = arith.truncf %12 : vector<1024x64xf32> to vector<1024x64xbf16>
    %c0_8 = arith.constant 0 : index
    %c0_9 = arith.constant 0 : index
    %c0_10 = arith.constant 0 : index
    %14 = vector.load %arg3[%c0_8, %c0_9, %c0_10] : memref<1x64x128xbf16, #tpu.memory_space<vmem>>, vector<1x64x128xbf16>
    %15 = vector.shape_cast %14 : vector<1x64x128xbf16> to vector<64x128xbf16>
    %cst_11 = arith.constant dense<0.000000e+00> : vector<1024x128xf32>
    %16 = tpu.matmul %13, %15, %cst_11 {dimension_numbers = #tpu.dot_dimension_numbers<[1], [0], [0], [1], [0, 0, 1, 1], [], []>} : vector<1024x64xbf16>, vector<64x128xbf16>, vector<1024x128xf32> -> vector<1024x128xf32>
    %c0_12 = arith.constant 0 : index
    %c0_13 = arith.constant 0 : index
    %c0_14 = arith.constant 0 : index
    %17 = vector.load %arg4[%c0_12, %c0_13, %c0_14] : memref<1x1x128xf32, #tpu.memory_space<vmem>>, vector<1x1x128xf32>
    %18 = vector.shape_cast %17 : vector<1x1x128xf32> to vector<1x128xf32>
    %19 = vector.broadcast %18 : vector<1x128xf32> to vector<1024x128xf32>
    %20 = arith.addf %16, %19 : vector<1024x128xf32>
    %21 = vector.extract_strided_slice %20 {offsets = [0, 0], sizes = [1024, 3], strides = [1, 1]} : vector<1024x128xf32> to vector<1024x3xf32>
    %22 = math.tanh %21 : vector<1024x3xf32>
    %c0_15 = arith.constant 0 : index
    %c0_16 = arith.constant 0 : index
    %c0_17 = arith.constant 0 : index
    %23 = vector.load %arg7[%c0_15, %c0_16, %c0_17] : memref<1x1024x3xf32, #tpu.memory_space<vmem>>, vector<1x1024x3xf32>
    %24 = vector.shape_cast %23 : vector<1x1024x3xf32> to vector<1024x3xf32>
    %25 = vector.shape_cast %22 : vector<1024x3xf32> to vector<1x1024x3xf32>
    tpu.vector_store %arg7[%c0_15, %c0_16, %c0_17], %25 {strides = array<i32>} : memref<1x1024x3xf32, #tpu.memory_space<vmem>>, vector<1x1024x3xf32>,
    return
  }
  func.func @transform_0(%arg0: i32, %arg1: i32) -> (i32, i32, i32) {
    %c0_i32 = arith.constant 0 : i32
    %c0_i32_0 = arith.constant 0 : i32
    return %arg0, %arg1, %c0_i32 : i32, i32, i32
  }
  func.func @transform_1(%arg0: i32, %arg1: i32) -> (i32, i32, i32) {
    %c0_i32 = arith.constant 0 : i32
    %c0_i32_0 = arith.constant 0 : i32
    %c0_i32_1 = arith.constant 0 : i32
    return %arg0, %c0_i32, %c0_i32_0 : i32, i32, i32
  }
  func.func @transform_2(%arg0: i32, %arg1: i32) -> (i32, i32, i32) {
    %c0_i32 = arith.constant 0 : i32
    %c0_i32_0 = arith.constant 0 : i32
    %c0_i32_1 = arith.constant 0 : i32
    %c0_i32_2 = arith.constant 0 : i32
    return %c0_i32, %c0_i32_0, %c0_i32_1 : i32, i32, i32
  }
  func.func @transform_3(%arg0: i32, %arg1: i32) -> (i32, i32, i32) {
    %c0_i32 = arith.constant 0 : i32
    %c0_i32_0 = arith.constant 0 : i32
    %c0_i32_1 = arith.constant 0 : i32
    %c0_i32_2 = arith.constant 0 : i32
    return %c0_i32, %c0_i32_0, %c0_i32_1 : i32, i32, i32
  }
  func.func @transform_4(%arg0: i32, %arg1: i32) -> (i32, i32, i32) {
    %c0_i32 = arith.constant 0 : i32
    %c0_i32_0 = arith.constant 0 : i32
    %c0_i32_1 = arith.constant 0 : i32
    %c0_i32_2 = arith.constant 0 : i32
    return %c0_i32, %c0_i32_0, %c0_i32_1 : i32, i32, i32
  }
  func.func @transform_5(%arg0: i32, %arg1: i32) -> (i32, i32, i32) {
    %c0_i32 = arith.constant 0 : i32
    %c0_i32_0 = arith.constant 0 : i32
    return %arg0, %arg1, %c0_i32 : i32, i32, i32
  }
}

</mosaic_0001>

<llo_original>
// kernel: tile.47
$region0: #{tile.47}
  #allocation0 [shape = 's32[1]{0}', space=sflag, size = 0x4, scoped, tag = 'scoped memory for tile.47']
  %s0 = inlined_call_operand.vmem [shape: f32[128], index: 0, kind: input, shape index: {}]
  %s1 = inlined_call_operand.vmem [shape: f32[4,128], index: 1, kind: output, shape index: {}]
  // Predicated region
  $region2: #{tile.47} parent=0 // pred_check
    _
  $region3: #{tile.47} parent=0 // pred_check_branch
    %3 = sbr.rel (0) target = $region5
  $region4: #{tile.47} parent=0 // pred_region
    _
  $region5: #{tile.47} parent=0 // pred_fallthru
    _
  %v4 = vld [vmem:[%s0] ss:$0 sm:$0xff]
  %5 = vst [vmem:[%s1] sm:$0xf] %v4

// kernel: generator_forward.5
$region0: #{generator_forward.5}
  #allocation0 [shape = 'u32[]', space=smem, size = 0x4, offset = 0x4, fixed_abs, tag = 'smem constant byte address 0x4 - core index']
  #allocation1 [shape = 'u32[144,128]{1,0:T(1,128)}', space=vmem, size = 0x12000, scoped, tag = 'internal scratch']
  %s0 = inlined_call_operand.vmem [shape: bf16[1,2,32], index: 0, kind: input, shape index: {}]
  %s1 = inlined_call_operand.hbm [shape: bf16[1,32,2048], index: 1, kind: input, shape index: {}]
  %s2 = inlined_call_operand.hbm [shape: f32[1,1,2048], index: 2, kind: input, shape index: {}]
  %s3 = inlined_call_operand.vmem [shape: bf16[1,2,2048], index: 3, kind: output, shape index: {0}]
  %s4 = inlined_call_operand.vmem [shape: f32[1,1,1,2048], index: 4, kind: output, shape index: {1}]
  %s5 = inlined_call_operand.vmem [shape: f32[1,1,1,2048], index: 5, kind: output, shape index: {2}]
  %6 = xla_tuple %s3, %s4, %s5
  %s7 = sld [smem:[#allocation0]]
  $region46: #{generator_forward.5} parent=0
    _
  %s9 = ssub.s32 1, %s7
  %s10 = scalar_select 0, %s9, %s7
  $region1: #{generator_forward.5} parent=0
    #allocation2 [shape = 'u8[131072]{0}', space=vmem, size = 0x20000, scoped, tag = 'input window, operand 1, single buffered']
    #allocation3 [shape = 's32[1]{0}', space=sflag, size = 0x4, scoped, tag = 'scoped memory for generator_forward.5']
    #allocation4 [shape = 'u8[8192]{0}', space=vmem, size = 0x2000, scoped, tag = 'input window, operand 2, single buffered']
    #allocation5 [shape = 's32[1]{0}', space=sflag, size = 0x4, scoped, tag = 'scoped memory for generator_forward.5']
    %11 = vsyncpa [#allocation3], 0
    %12 = vsyncpa [#allocation5], 0
    // Predicated region
    $region2: #{generator_forward.5} parent=1 // pred_check
      _
    $region3: #{generator_forward.5} parent=1 // pred_check_branch
      %14 = sbr.rel (0) target = $region5
    $region4: #{generator_forward.5} parent=1 // pred_region
      _
    $region5: #{generator_forward.5} parent=1 // pred_fallthru
      _
    // Predicated region
    $region6: #{generator_forward.5} parent=1 // pred_check
      _
    $region7: #{generator_forward.5} parent=1 // pred_check_branch
      %16 = sbr.rel (0) target = $region9
    $region8: #{generator_forward.5} parent=1 // pred_region
      %s18 = ssub.s32 4096, 4096
      %19 = vsyncadd [#allocation3], %s18
      %s20 = sshll.u32 [#allocation2], 4
      %s21 = int_to_ptr.vmem [resolvable:$true] %s20
      %26 = dma.hbm_to_vmem [thread:$0]  %s1, 4096, %s21, [#allocation3], 1024, 1024, 64
    $region9: #{generator_forward.5} parent=1 // pred_fallthru
      _
    // Predicated region
    $region10: #{generator_forward.5} parent=1 // pred_check
      _
    $region11: #{generator_forward.5} parent=1 // pred_check_branch
      %28 = sbr.rel (0) target = $region13
    $region12: #{generator_forward.5} parent=1 // pred_region
      %s30 = ssub.s32 256, 256
      %31 = vsyncadd [#allocation5], %s30
      %s33 = sshll.u32 [#allocation4], 4
      %s34 = int_to_ptr.vmem [resolvable:$true] %s33
      %36 = dma.hbm_to_vmem [thread:$0]  %s2, 256, %s34, [#allocation5]
    $region13: #{generator_forward.5} parent=1 // pred_fallthru
      _
    // Predicated region
    $region14: #{generator_forward.5} parent=1 // pred_check
      _
    $region15: #{generator_forward.5} parent=1 // pred_check_branch
      %38 = sbr.rel (0) target = $region17
    $region16: #{generator_forward.5} parent=1 // pred_region
      %39 = dma.done [#allocation3], 4096
    $region17: #{generator_forward.5} parent=1 // pred_fallthru
      _
    // Predicated region
    $region18: #{generator_forward.5} parent=1 // pred_check
      _
    $region19: #{generator_forward.5} parent=1 // pred_check_branch
      %41 = sbr.rel (0) target = $region21
    $region20: #{generator_forward.5} parent=1 // pred_region
      %42 = dma.done [#allocation5], 256
    $region21: #{generator_forward.5} parent=1 // pred_fallthru
      _
    %v44 = vld [vmem:[%s0] sm:$0x1]
    %v45 = vld [vmem:[#allocation2] sm:$0xff]
    %v46 = vld [vmem:[#allocation2 + $0x8] sm:$0xff]
    %v47 = vld [vmem:[#allocation2 + $0x10] sm:$0xff]
    %v48 = vld [vmem:[#allocation2 + $0x18] sm:$0xff]
    %v49 = vld [vmem:[#allocation2 + $0x20] sm:$0xff]
    %v50 = vld [vmem:[#allocation2 + $0x28] sm:$0xff]
    %v51 = vld [vmem:[#allocation2 + $0x30] sm:$0xff]
    %v52 = vld [vmem:[#allocation2 + $0x38] sm:$0xff]
    %v53 = vld [vmem:[#allocation2 + $0x40] sm:$0xff]
    %v54 = vld [vmem:[#allocation2 + $0x48] sm:$0xff]
    %v55 = vld [vmem:[#allocation2 + $0x50] sm:$0xff]
    %v56 = vld [vmem:[#allocation2 + $0x58] sm:$0xff]
    %v57 = vld [vmem:[#allocation2 + $0x60] sm:$0xff]
    %v58 = vld [vmem:[#allocation2 + $0x68] sm:$0xff]
    %v59 = vld [vmem:[#allocation2 + $0x70] sm:$0xff]
    %v60 = vld [vmem:[#allocation2 + $0x78] sm:$0xff]
    %v61 = vld [vmem:[#allocation2 + $0x80] sm:$0xff]
    %v62 = vld [vmem:[#allocation2 + $0x88] sm:$0xff]
    %v63 = vld [vmem:[#allocation2 + $0x90] sm:$0xff]
    %v64 = vld [vmem:[#allocation2 + $0x98] sm:$0xff]
    %v65 = vld [vmem:[#allocation2 + $0xa0] sm:$0xff]
    %v66 = vld [vmem:[#allocation2 + $0xa8] sm:$0xff]
    %v67 = vld [vmem:[#allocation2 + $0xb0] sm:$0xff]
    %v68 = vld [vmem:[#allocation2 + $0xb8] sm:$0xff]
    %v69 = vld [vmem:[#allocation2 + $0xc0] sm:$0xff]
    %v70 = vld [vmem:[#allocation2 + $0xc8] sm:$0xff]
    %v71 = vld [vmem:[#allocation2 + $0xd0] sm:$0xff]
    %v72 = vld [vmem:[#allocation2 + $0xd8] sm:$0xff]
    %v73 = vld [vmem:[#allocation2 + $0xe0] sm:$0xff]
    %v74 = vld [vmem:[#allocation2 + $0xe8] sm:$0xff]
    %v75 = vld [vmem:[#allocation2 + $0xf0] sm:$0xff]
    %v76 = vld [vmem:[#allocation2 + $0xf8] sm:$0xff]
    %v77 = vld [vmem:[#allocation4] sm:$0xff]
    %v78 = vld [vmem:[#allocation4 + $0x8] sm:$0xff]
    %v81 = vlaneseq
    %v82 = vshrl.u32 %v81, 7
    %v83 = vsub.s32 0, %v82
    %v84 = vrot.slane %v77, %v83
    %v85 = vlaneseq
    %v86 = vshrl.u32 %v85, 7
    %v87 = vsub.s32 1, %v86
    %v88 = vrot.slane %v77, %v87
    %v89 = vlaneseq
    %v90 = vshrl.u32 %v89, 7
    %v91 = vsub.s32 2, %v90
    %v92 = vrot.slane %v77, %v91
    %v93 = vlaneseq
    %v94 = vshrl.u32 %v93, 7
    %v95 = vsub.s32 3, %v94
    %v96 = vrot.slane %v77, %v95
    %v97 = vlaneseq
    %v98 = vshrl.u32 %v97, 7
    %v99 = vsub.s32 4, %v98
    %v100 = vrot.slane %v77, %v99
    %v101 = vlaneseq
    %v102 = vshrl.u32 %v101, 7
    %v103 = vsub.s32 5, %v102
    %v104 = vrot.slane %v77, %v103
    %v105 = vlaneseq
    %v106 = vshrl.u32 %v105, 7
    %v107 = vsub.s32 6, %v106
    %v108 = vrot.slane %v77, %v107
    %v109 = vlaneseq
    %v110 = vshrl.u32 %v109, 7
    %v111 = vsub.s32 7, %v110
    %v112 = vrot.slane %v77, %v111
    %v113 = vlaneseq
    %v114 = vshrl.u32 %v113, 7
    %v115 = vsub.s32 0, %v114
    %v116 = vrot.slane %v78, %v115
    %v117 = vlaneseq
    %v118 = vshrl.u32 %v117, 7
    %v119 = vsub.s32 1, %v118
    %v120 = vrot.slane %v78, %v119
    %v121 = vlaneseq
    %v122 = vshrl.u32 %v121, 7
    %v123 = vsub.s32 2, %v122
    %v124 = vrot.slane %v78, %v123
    %v125 = vlaneseq
    %v126 = vshrl.u32 %v125, 7
    %v127 = vsub.s32 3, %v126
    %v128 = vrot.slane %v78, %v127
    %v129 = vlaneseq
    %v130 = vshrl.u32 %v129, 7
    %v131 = vsub.s32 4, %v130
    %v132 = vrot.slane %v78, %v131
    %v133 = vlaneseq
    %v134 = vshrl.u32 %v133, 7
    %v135 = vsub.s32 5, %v134
    %v136 = vrot.slane %v78, %v135
    %v137 = vlaneseq
    %v138 = vshrl.u32 %v137, 7
    %v139 = vsub.s32 6, %v138
    %v140 = vrot.slane %v78, %v139
    %v141 = vlaneseq
    %v142 = vshrl.u32 %v141, 7
    %v143 = vsub.s32 7, %v142
    %v144 = vrot.slane %v78, %v143
    %v193 = vunpack.c.l.b16 %v45
    %v194 = vunpack.c.h.b16 %v45
    %v195 = vunpack.c.l.b16 %v46
    %v196 = vunpack.c.h.b16 %v46
    %v197 = vunpack.c.l.b16 %v47
    %v198 = vunpack.c.h.b16 %v47
    %v199 = vunpack.c.l.b16 %v48
    %v200 = vunpack.c.h.b16 %v48
    %v201 = vunpack.c.l.b16 %v49
    %v202 = vunpack.c.h.b16 %v49
    %v203 = vunpack.c.l.b16 %v50
    %v204 = vunpack.c.h.b16 %v50
    %v205 = vunpack.c.l.b16 %v51
    %v206 = vunpack.c.h.b16 %v51
    %v207 = vunpack.c.l.b16 %v52
    %v208 = vunpack.c.h.b16 %v52
    %v209 = vunpack.c.l.b16 %v53
    %v210 = vunpack.c.h.b16 %v53
    %v211 = vunpack.c.l.b16 %v54
    %v212 = vunpack.c.h.b16 %v54
    %v213 = vunpack.c.l.b16 %v55
    %v214 = vunpack.c.h.b16 %v55
    %v215 = vunpack.c.l.b16 %v56
    %v216 = vunpack.c.h.b16 %v56
    %v217 = vunpack.c.l.b16 %v57
    %v218 = vunpack.c.h.b16 %v57
    %v219 = vunpack.c.l.b16 %v58
    %v220 = vunpack.c.h.b16 %v58
    %v221 = vunpack.c.l.b16 %v59
    %v222 = vunpack.c.h.b16 %v59
    %v223 = vunpack.c.l.b16 %v60
    %v224 = vunpack.c.h.b16 %v60
    %v225 = vunpack.c.l.b16 %v61
    %v226 = vunpack.c.h.b16 %v61
    %v227 = vunpack.c.l.b16 %v62
    %v228 = vunpack.c.h.b16 %v62
    %v229 = vunpack.c.l.b16 %v63
    %v230 = vunpack.c.h.b16 %v63
    %v231 = vunpack.c.l.b16 %v64
    %v232 = vunpack.c.h.b16 %v64
    %v233 = vunpack.c.l.b16 %v65
    %v234 = vunpack.c.h.b16 %v65
    %v235 = vunpack.c.l.b16 %v66
    %v236 = vunpack.c.h.b16 %v66
    %v237 = vunpack.c.l.b16 %v67
    %v238 = vunpack.c.h.b16 %v67
    %v239 = vunpack.c.l.b16 %v68
    %v240 = vunpack.c.h.b16 %v68
    %v241 = vunpack.c.l.b16 %v69
    %v242 = vunpack.c.h.b16 %v69
    %v243 = vunpack.c.l.b16 %v70
    %v244 = vunpack.c.h.b16 %v70
    %v245 = vunpack.c.l.b16 %v71
    %v246 = vunpack.c.h.b16 %v71
    %v247 = vunpack.c.l.b16 %v72
    %v248 = vunpack.c.h.b16 %v72
    %v249 = vunpack.c.l.b16 %v73
    %v250 = vunpack.c.h.b16 %v73
    %v251 = vunpack.c.l.b16 %v74
    %v252 = vunpack.c.h.b16 %v74
    %v253 = vunpack.c.l.b16 %v75
    %v254 = vunpack.c.h.b16 %v75
    %v255 = vunpack.c.l.b16 %v76
    %v256 = vunpack.c.h.b16 %v76
    %v257 = vpack.c.b16 %v209, %v193
    %v258 = vpack.c.b16 %v210, %v194
    %v259 = vpack.c.b16 %v211, %v195
    %v260 = vpack.c.b16 %v212, %v196
    %v261 = vpack.c.b16 %v213, %v197
    %v262 = vpack.c.b16 %v214, %v198
    %v263 = vpack.c.b16 %v215, %v199
    %v264 = vpack.c.b16 %v216, %v200
    %v265 = vpack.c.b16 %v217, %v201
    %v266 = vpack.c.b16 %v218, %v202
    %v267 = vpack.c.b16 %v219, %v203
    %v268 = vpack.c.b16 %v220, %v204
    %v269 = vpack.c.b16 %v221, %v205
    %v270 = vpack.c.b16 %v222, %v206
    %v271 = vpack.c.b16 %v223, %v207
    %v272 = vpack.c.b16 %v224, %v208
    %v273 = vpack.c.b16 %v241, %v225
    %v274 = vpack.c.b16 %v242, %v226
    %v275 = vpack.c.b16 %v243, %v227
    %v276 = vpack.c.b16 %v244, %v228
    %v277 = vpack.c.b16 %v245, %v229
    %v278 = vpack.c.b16 %v246, %v230
    %v279 = vpack.c.b16 %v247, %v231
    %v280 = vpack.c.b16 %v248, %v232
    %v281 = vpack.c.b16 %v249, %v233
    %v282 = vpack.c.b16 %v250, %v234
    %v283 = vpack.c.b16 %v251, %v235
    %v284 = vpack.c.b16 %v252, %v236
    %v285 = vpack.c.b16 %v253, %v237
    %v286 = vpack.c.b16 %v254, %v238
    %v287 = vpack.c.b16 %v255, %v239
    %v288 = vpack.c.b16 %v256, %v240
    %vm321 = vcmask 261120
    %v323 = vsel %vm321, %v44, 0
    %325 = vmatprep.subr.bf16.mxu0 0
    %326 = vmatpush1.bf16.msra.mxu0 0
    %327 = vmatprep.subr.bf16.mxu0 0
    %328 = vmatpush1.bf16.msra.mxu0 0
    %329 = vmatprep.subr.bf16.mxu0 0
    %330 = vmatpush1.bf16.msra.mxu0 0
    %331 = vmatprep.subr.bf16.mxu0 0
    %332 = vmatpush1.bf16.msra.mxu0 0
    %333 = vmatprep.subr.bf16.mxu0 0
    %334 = vmatpush1.bf16.msra.mxu0 0
    %335 = vmatprep.subr.bf16.mxu0 0
    %336 = vmatpush1.bf16.msra.mxu0 0
    %337 = vmatprep.subr.bf16.mxu0 %v274
    %338 = vmatpush1.bf16.msra.mxu0 %v273
    %339 = vmatprep.subr.bf16.mxu0 %v258
    %340 = vmatpush1.bf16.msra.mxu0 %v257
    %341 = vmatprep.subr.bf16.mxu0 0
    %342 = vmatpush2.bf16.msra.mxu0 0
    %343 = vmatprep.subr.bf16.mxu0 0
    %344 = vmatpush2.bf16.msra.mxu0 0
    %345 = vmatprep.subr.bf16.mxu0 0
    %346 = vmatpush2.bf16.msra.mxu0 0
    %347 = vmatprep.subr.bf16.mxu0 0
    %348 = vmatpush2.bf16.msra.mxu0 0
    %349 = vmatprep.subr.bf16.mxu0 0
    %350 = vmatpush2.bf16.msra.mxu0 0
    %351 = vmatprep.subr.bf16.mxu0 0
    %352 = vmatpush2.bf16.msra.mxu0 0
    %353 = vmatprep.subr.bf16.mxu0 0
    %354 = vmatpush2.bf16.msra.mxu0 0
    %355 = vmatprep.subr.bf16.mxu0 0
    %356 = vmatpush2.bf16.msra.mxu0 0
    %357 = vmatprep.mubr.bf16.mxu0 0
    %358 = vmatmul.mubr.bf16.gmra.mxu0 %v323
    %v359 = vpop.f32.mrf.mxu0
    %v360 = vadd.f32 %v84, %v359
    %v361 = vpop.f32.mrf.mxu0
    %v362 = vadd.f32 %v88, %v361
    %v363 = vpop.f32.mrf.mxu0
    %v364 = vpop.f32.mrf.mxu0
    %365 = vdwg.mxu0
    %366 = vmatprep.subr.bf16.mxu0 0
    %367 = vmatpush1.bf16.msra.mxu0 0
    %368 = vmatprep.subr.bf16.mxu0 0
    %369 = vmatpush1.bf16.msra.mxu0 0
    %370 = vmatprep.subr.bf16.mxu0 0
    %371 = vmatpush1.bf16.msra.mxu0 0
    %372 = vmatprep.subr.bf16.mxu0 0
    %373 = vmatpush1.bf16.msra.mxu0 0
    %374 = vmatprep.subr.bf16.mxu0 0
    %375 = vmatpush1.bf16.msra.mxu0 0
    %376 = vmatprep.subr.bf16.mxu0 0
    %377 = vmatpush1.bf16.msra.mxu0 0
    %378 = vmatprep.subr.bf16.mxu0 %v276
    %379 = vmatpush1.bf16.msra.mxu0 %v275
    %380 = vmatprep.subr.bf16.mxu0 %v260
    %381 = vmatpush1.bf16.msra.mxu0 %v259
    %382 = vmatprep.subr.bf16.mxu0 0
    %383 = vmatpush2.bf16.msra.mxu0 0
    %384 = vmatprep.subr.bf16.mxu0 0
    %385 = vmatpush2.bf16.msra.mxu0 0
    %386 = vmatprep.subr.bf16.mxu0 0
    %387 = vmatpush2.bf16.msra.mxu0 0
    %388 = vmatprep.subr.bf16.mxu0 0
    %389 = vmatpush2.bf16.msra.mxu0 0
    %390 = vmatprep.subr.bf16.mxu0 0
    %391 = vmatpush2.bf16.msra.mxu0 0
    %392 = vmatprep.subr.bf16.mxu0 0
    %393 = vmatpush2.bf16.msra.mxu0 0
    %394 = vmatprep.subr.bf16.mxu0 0
    %395 = vmatpush2.bf16.msra.mxu0 0
    %396 = vmatprep.subr.bf16.mxu0 0
    %397 = vmatpush2.bf16.msra.mxu0 0
    %398 = vmatprep.mubr.bf16.mxu0 0
    %399 = vmatmul.mubr.bf16.gmra.mxu0 %v323
    %v400 = vpop.f32.mrf.mxu0
    %v401 = vadd.f32 %v92, %v400
    %v402 = vpop.f32.mrf.mxu0
    %v403 = vadd.f32 %v96, %v402
    %v404 = vpop.f32.mrf.mxu0
    %v405 = vpop.f32.mrf.mxu0
    %406 = vdwg.mxu0
    %407 = vmatprep.subr.bf16.mxu0 0
    %408 = vmatpush1.bf16.msra.mxu0 0
    %409 = vmatprep.subr.bf16.mxu0 0
    %410 = vmatpush1.bf16.msra.mxu0 0
    %411 = vmatprep.subr.bf16.mxu0 0
    %412 = vmatpush1.bf16.msra.mxu0 0
    %413 = vmatprep.subr.bf16.mxu0 0
    %414 = vmatpush1.bf16.msra.mxu0 0
    %415 = vmatprep.subr.bf16.mxu0 0
    %416 = vmatpush1.bf16.msra.mxu0 0
    %417 = vmatprep.subr.bf16.mxu0 0
    %418 = vmatpush1.bf16.msra.mxu0 0
    %419 = vmatprep.subr.bf16.mxu0 %v278
    %420 = vmatpush1.bf16.msra.mxu0 %v277
    %421 = vmatprep.subr.bf16.mxu0 %v262
    %422 = vmatpush1.bf16.msra.mxu0 %v261
    %423 = vmatprep.subr.bf16.mxu0 0
    %424 = vmatpush2.bf16.msra.mxu0 0
    %425 = vmatprep.subr.bf16.mxu0 0
    %426 = vmatpush2.bf16.msra.mxu0 0
    %427 = vmatprep.subr.bf16.mxu0 0
    %428 = vmatpush2.bf16.msra.mxu0 0
    %429 = vmatprep.subr.bf16.mxu0 0
    %430 = vmatpush2.bf16.msra.mxu0 0
    %431 = vmatprep.subr.bf16.mxu0 0
    %432 = vmatpush2.bf16.msra.mxu0 0
    %433 = vmatprep.subr.bf16.mxu0 0
    %434 = vmatpush2.bf16.msra.mxu0 0
    %435 = vmatprep.subr.bf16.mxu0 0
    %436 = vmatpush2.bf16.msra.mxu0 0
    %437 = vmatprep.subr.bf16.mxu0 0
    %438 = vmatpush2.bf16.msra.mxu0 0
    %439 = vmatprep.mubr.bf16.mxu0 0
    %440 = vmatmul.mubr.bf16.gmra.mxu0 %v323
    %v441 = vpop.f32.mrf.mxu0
    %v442 = vadd.f32 %v100, %v441
    %v443 = vpop.f32.mrf.mxu0
    %v444 = vadd.f32 %v104, %v443
    %v445 = vpop.f32.mrf.mxu0
    %v446 = vpop.f32.mrf.mxu0
    %447 = vdwg.mxu0
    %448 = vmatprep.subr.bf16.mxu0 0
    %449 = vmatpush1.bf16.msra.mxu0 0
    %450 = vmatprep.subr.bf16.mxu0 0
    %451 = vmatpush1.bf16.msra.mxu0 0
    %452 = vmatprep.subr.bf16.mxu0 0
    %453 = vmatpush1.bf16.msra.mxu0 0
    %454 = vmatprep.subr.bf16.mxu0 0
    %455 = vmatpush1.bf16.msra.mxu0 0
    %456 = vmatprep.subr.bf16.mxu0 0
    %457 = vmatpush1.bf16.msra.mxu0 0
    %458 = vmatprep.subr.bf16.mxu0 0
    %459 = vmatpush1.bf16.msra.mxu0 0
    %460 = vmatprep.subr.bf16.mxu0 %v280
    %461 = vmatpush1.bf16.msra.mxu0 %v279
    %462 = vmatprep.subr.bf16.mxu0 %v264
    %463 = vmatpush1.bf16.msra.mxu0 %v263
    %464 = vmatprep.subr.bf16.mxu0 0
    %465 = vmatpush2.bf16.msra.mxu0 0
    %466 = vmatprep.subr.bf16.mxu0 0
    %467 = vmatpush2.bf16.msra.mxu0 0
    %468 = vmatprep.subr.bf16.mxu0 0
    %469 = vmatpush2.bf16.msra.mxu0 0
    %470 = vmatprep.subr.bf16.mxu0 0
    %471 = vmatpush2.bf16.msra.mxu0 0
    %472 = vmatprep.subr.bf16.mxu0 0
    %473 = vmatpush2.bf16.msra.mxu0 0
    %474 = vmatprep.subr.bf16.mxu0 0
    %475 = vmatpush2.bf16.msra.mxu0 0
    %476 = vmatprep.subr.bf16.mxu0 0
    %477 = vmatpush2.bf16.msra.mxu0 0
    %478 = vmatprep.subr.bf16.mxu0 0
    %479 = vmatpush2.bf16.msra.mxu0 0
    %480 = vmatprep.mubr.bf16.mxu0 0
    %481 = vmatmul.mubr.bf16.gmra.mxu0 %v323
    %v482 = vpop.f32.mrf.mxu0
    %v483 = vadd.f32 %v108, %v482
    %v484 = vpop.f32.mrf.mxu0
    %v485 = vadd.f32 %v112, %v484
    %v486 = vpop.f32.mrf.mxu0
    %v487 = vpop.f32.mrf.mxu0
    %488 = vdwg.mxu0
    %489 = vmatprep.subr.bf16.mxu0 0
    %490 = vmatpush1.bf16.msra.mxu0 0
    %491 = vmatprep.subr.bf16.mxu0 0
    %492 = vmatpush1.bf16.msra.mxu0 0
    %493 = vmatprep.subr.bf16.mxu0 0
    %494 = vmatpush1.bf16.msra.mxu0 0
    %495 = vmatprep.subr.bf16.mxu0 0
    %496 = vmatpush1.bf16.msra.mxu0 0
    %497 = vmatprep.subr.bf16.mxu0 0
    %498 = vmatpush1.bf16.msra.mxu0 0
    %499 = vmatprep.subr.bf16.mxu0 0
    %500 = vmatpush1.bf16.msra.mxu0 0
    %501 = vmatprep.subr.bf16.mxu0 %v282
    %502 = vmatpush1.bf16.msra.mxu0 %v281
    %503 = vmatprep.subr.bf16.mxu0 %v266
    %504 = vmatpush1.bf16.msra.mxu0 %v265
    %505 = vmatprep.subr.bf16.mxu0 0
    %506 = vmatpush2.bf16.msra.mxu0 0
    %507 = vmatprep.subr.bf16.mxu0 0
    %508 = vmatpush2.bf16.msra.mxu0 0
    %509 = vmatprep.subr.bf16.mxu0 0
    %510 = vmatpush2.bf16.msra.mxu0 0
    %511 = vmatprep.subr.bf16.mxu0 0
    %512 = vmatpush2.bf16.msra.mxu0 0
    %513 = vmatprep.subr.bf16.mxu0 0
    %514 = vmatpush2.bf16.msra.mxu0 0
    %515 = vmatprep.subr.bf16.mxu0 0
    %516 = vmatpush2.bf16.msra.mxu0 0
    %517 = vmatprep.subr.bf16.mxu0 0
    %518 = vmatpush2.bf16.msra.mxu0 0
    %519 = vmatprep.subr.bf16.mxu0 0
    %520 = vmatpush2.bf16.msra.mxu0 0
    %521 = vmatprep.mubr.bf16.mxu0 0
    %522 = vmatmul.mubr.bf16.gmra.mxu0 %v323
    %v523 = vpop.f32.mrf.mxu0
    %v524 = vadd.f32 %v116, %v523
    %v525 = vpop.f32.mrf.mxu0
    %v526 = vadd.f32 %v120, %v525
    %v527 = vpop.f32.mrf.mxu0
    %v528 = vpop.f32.mrf.mxu0
    %529 = vdwg.mxu0
    %530 = vmatprep.subr.bf16.mxu0 0
    %531 = vmatpush1.bf16.msra.mxu0 0
    %532 = vmatprep.subr.bf16.mxu0 0
    %533 = vmatpush1.bf16.msra.mxu0 0
    %534 = vmatprep.subr.bf16.mxu0 0
    %535 = vmatpush1.bf16.msra.mxu0 0
    %536 = vmatprep.subr.bf16.mxu0 0
    %537 = vmatpush1.bf16.msra.mxu0 0
    %538 = vmatprep.subr.bf16.mxu0 0
    %539 = vmatpush1.bf16.msra.mxu0 0
    %540 = vmatprep.subr.bf16.mxu0 0
    %541 = vmatpush1.bf16.msra.mxu0 0
    %542 = vmatprep.subr.bf16.mxu0 %v284
    %543 = vmatpush1.bf16.msra.mxu0 %v283
    %544 = vmatprep.subr.bf16.mxu0 %v268
    %545 = vmatpush1.bf16.msra.mxu0 %v267
    %546 = vmatprep.subr.bf16.mxu0 0
    %547 = vmatpush2.bf16.msra.mxu0 0
    %548 = vmatprep.subr.bf16.mxu0 0
    %549 = vmatpush2.bf16.msra.mxu0 0
    %550 = vmatprep.subr.bf16.mxu0 0
    %551 = vmatpush2.bf16.msra.mxu0 0
    %552 = vmatprep.subr.bf16.mxu0 0
    %553 = vmatpush2.bf16.msra.mxu0 0
    %554 = vmatprep.subr.bf16.mxu0 0
    %555 = vmatpush2.bf16.msra.mxu0 0
    %556 = vmatprep.subr.bf16.mxu0 0
    %557 = vmatpush2.bf16.msra.mxu0 0
    %558 = vmatprep.subr.bf16.mxu0 0
    %559 = vmatpush2.bf16.msra.mxu0 0
    %560 = vmatprep.subr.bf16.mxu0 0
    %561 = vmatpush2.bf16.msra.mxu0 0
    %562 = vmatprep.mubr.bf16.mxu0 0
    %563 = vmatmul.mubr.bf16.gmra.mxu0 %v323
    %v564 = vpop.f32.mrf.mxu0
    %v565 = vadd.f32 %v124, %v564
    %v566 = vpop.f32.mrf.mxu0
    %v567 = vadd.f32 %v128, %v566
    %v568 = vpop.f32.mrf.mxu0
    %v569 = vpop.f32.mrf.mxu0
    %570 = vdwg.mxu0
    %571 = vmatprep.subr.bf16.mxu0 0
    %572 = vmatpush1.bf16.msra.mxu0 0
    %573 = vmatprep.subr.bf16.mxu0 0
    %574 = vmatpush1.bf16.msra.mxu0 0
    %575 = vmatprep.subr.bf16.mxu0 0
    %576 = vmatpush1.bf16.msra.mxu0 0
    %577 = vmatprep.subr.bf16.mxu0 0
    %578 = vmatpush1.bf16.msra.mxu0 0
    %579 = vmatprep.subr.bf16.mxu0 0
    %580 = vmatpush1.bf16.msra.mxu0 0
    %581 = vmatprep.subr.bf16.mxu0 0
    %582 = vmatpush1.bf16.msra.mxu0 0
    %583 = vmatprep.subr.bf16.mxu0 %v286
    %584 = vmatpush1.bf16.msra.mxu0 %v285
    %585 = vmatprep.subr.bf16.mxu0 %v270
    %586 = vmatpush1.bf16.msra.mxu0 %v269
    %587 = vmatprep.subr.bf16.mxu0 0
    %588 = vmatpush2.bf16.msra.mxu0 0
    %589 = vmatprep.subr.bf16.mxu0 0
    %590 = vmatpush2.bf16.msra.mxu0 0
    %591 = vmatprep.subr.bf16.mxu0 0
    %592 = vmatpush2.bf16.msra.mxu0 0
    %593 = vmatprep.subr.bf16.mxu0 0
    %594 = vmatpush2.bf16.msra.mxu0 0
    %595 = vmatprep.subr.bf16.mxu0 0
    %596 = vmatpush2.bf16.msra.mxu0 0
    %597 = vmatprep.subr.bf16.mxu0 0
    %598 = vmatpush2.bf16.msra.mxu0 0
    %599 = vmatprep.subr.bf16.mxu0 0
    %600 = vmatpush2.bf16.msra.mxu0 0
    %601 = vmatprep.subr.bf16.mxu0 0
    %602 = vmatpush2.bf16.msra.mxu0 0
    %603 = vmatprep.mubr.bf16.mxu0 0
    %604 = vmatmul.mubr.bf16.gmra.mxu0 %v323
    %v605 = vpop.f32.mrf.mxu0
    %v606 = vadd.f32 %v132, %v605
    %v607 = vpop.f32.mrf.mxu0
    %v608 = vadd.f32 %v136, %v607
    %v609 = vpop.f32.mrf.mxu0
    %v610 = vpop.f32.mrf.mxu0
    %611 = vdwg.mxu0
    %612 = vmatprep.subr.bf16.mxu0 0
    %613 = vmatpush1.bf16.msra.mxu0 0
    %614 = vmatprep.subr.bf16.mxu0 0
    %615 = vmatpush1.bf16.msra.mxu0 0
    %616 = vmatprep.subr.bf16.mxu0 0
    %617 = vmatpush1.bf16.msra.mxu0 0
    %618 = vmatprep.subr.bf16.mxu0 0
    %619 = vmatpush1.bf16.msra.mxu0 0
    %620 = vmatprep.subr.bf16.mxu0 0
    %621 = vmatpush1.bf16.msra.mxu0 0
    %622 = vmatprep.subr.bf16.mxu0 0
    %623 = vmatpush1.bf16.msra.mxu0 0
    %624 = vmatprep.subr.bf16.mxu0 %v288
    %625 = vmatpush1.bf16.msra.mxu0 %v287
    %626 = vmatprep.subr.bf16.mxu0 %v272
    %627 = vmatpush1.bf16.msra.mxu0 %v271
    %628 = vmatprep.subr.bf16.mxu0 0
    %629 = vmatpush2.bf16.msra.mxu0 0
    %630 = vmatprep.subr.bf16.mxu0 0
    %631 = vmatpush2.bf16.msra.mxu0 0
    %632 = vmatprep.subr.bf16.mxu0 0
    %633 = vmatpush2.bf16.msra.mxu0 0
    %634 = vmatprep.subr.bf16.mxu0 0
    %635 = vmatpush2.bf16.msra.mxu0 0
    %636 = vmatprep.subr.bf16.mxu0 0
    %637 = vmatpush2.bf16.msra.mxu0 0
    %638 = vmatprep.subr.bf16.mxu0 0
    %639 = vmatpush2.bf16.msra.mxu0 0
    %640 = vmatprep.subr.bf16.mxu0 0
    %641 = vmatpush2.bf16.msra.mxu0 0
    %642 = vmatprep.subr.bf16.mxu0 0
    %643 = vmatpush2.bf16.msra.mxu0 0
    %644 = vmatprep.mubr.bf16.mxu0 0
    %645 = vmatmul.mubr.bf16.gmra.mxu0 %v323
    %v646 = vpop.f32.mrf.mxu0
    %v647 = vadd.f32 %v140, %v646
    %v648 = vpop.f32.mrf.mxu0
    %v649 = vadd.f32 %v144, %v648
    %v650 = vpop.f32.mrf.mxu0
    %v651 = vpop.f32.mrf.mxu0
    %652 = vdwg.mxu0
    %vm653 = vcmask 1041408
    %v654 = vsel %vm653, %v360, 0.0
    %v655 = vrot.slane %v654, 4
    %v656 = vadd.f32 %v654, %v655
    %v657 = vrot.slane %v656, 2
    %v658 = vadd.f32 %v656, %v657
    %v659 = vrot.slane %v658, 1
    %v660 = vadd.f32 %v658, %v659
    %v661 = vsel %vm653, %v362, 0.0
    %v662 = vrot.slane %v661, 4
    %v663 = vadd.f32 %v661, %v662
    %v664 = vrot.slane %v663, 2
    %v665 = vadd.f32 %v663, %v664
    %v666 = vrot.slane %v665, 1
    %v667 = vadd.f32 %v665, %v666
    %v668 = vsel %vm653, %v401, 0.0
    %v669 = vrot.slane %v668, 4
    %v670 = vadd.f32 %v668, %v669
    %v671 = vrot.slane %v670, 2
    %v672 = vadd.f32 %v670, %v671
    %v673 = vrot.slane %v672, 1
    %v674 = vadd.f32 %v672, %v673
    %v675 = vsel %vm653, %v403, 0.0
    %v676 = vrot.slane %v675, 4
    %v677 = vadd.f32 %v675, %v676
    %v678 = vrot.slane %v677, 2
    %v679 = vadd.f32 %v677, %v678
    %v680 = vrot.slane %v679, 1
    %v681 = vadd.f32 %v679, %v680
    %v682 = vsel %vm653, %v442, 0.0
    %v683 = vrot.slane %v682, 4
    %v684 = vadd.f32 %v682, %v683
    %v685 = vrot.slane %v684, 2
    %v686 = vadd.f32 %v684, %v685
    %v687 = vrot.slane %v686, 1
    %v688 = vadd.f32 %v686, %v687
    %v689 = vsel %vm653, %v444, 0.0
    %v690 = vrot.slane %v689, 4
    %v691 = vadd.f32 %v689, %v690
    %v692 = vrot.slane %v691, 2
    %v693 = vadd.f32 %v691, %v692
    %v694 = vrot.slane %v693, 1
    %v695 = vadd.f32 %v693, %v694
    %v696 = vsel %vm653, %v483, 0.0
    %v697 = vrot.slane %v696, 4
    %v698 = vadd.f32 %v696, %v697
    %v699 = vrot.slane %v698, 2
    %v700 = vadd.f32 %v698, %v699
    %v701 = vrot.slane %v700, 1
    %v702 = vadd.f32 %v700, %v701
    %v703 = vsel %vm653, %v485, 0.0
    %v704 = vrot.slane %v703, 4
    %v705 = vadd.f32 %v703, %v704
    %v706 = vrot.slane %v705, 2
    %v707 = vadd.f32 %v705, %v706
    %v708 = vrot.slane %v707, 1
    %v709 = vadd.f32 %v707, %v708
    %v710 = vsel %vm653, %v524, 0.0
    %v711 = vrot.slane %v710, 4
    %v712 = vadd.f32 %v710, %v711
    %v713 = vrot.slane %v712, 2
    %v714 = vadd.f32 %v712, %v713
    %v715 = vrot.slane %v714, 1
    %v716 = vadd.f32 %v714, %v715
    %v717 = vsel %vm653, %v526, 0.0
    %v718 = vrot.slane %v717, 4
    %v719 = vadd.f32 %v717, %v718
    %v720 = vrot.slane %v719, 2
    %v721 = vadd.f32 %v719, %v720
    %v722 = vrot.slane %v721, 1
    %v723 = vadd.f32 %v721, %v722
    %v724 = vsel %vm653, %v565, 0.0
    %v725 = vrot.slane %v724, 4
    %v726 = vadd.f32 %v724, %v725
    %v727 = vrot.slane %v726, 2
    %v728 = vadd.f32 %v726, %v727
    %v729 = vrot.slane %v728, 1
    %v730 = vadd.f32 %v728, %v729
    %v731 = vsel %vm653, %v567, 0.0
    %v732 = vrot.slane %v731, 4
    %v733 = vadd.f32 %v731, %v732
    %v734 = vrot.slane %v733, 2
    %v735 = vadd.f32 %v733, %v734
    %v736 = vrot.slane %v735, 1
    %v737 = vadd.f32 %v735, %v736
    %v738 = vsel %vm653, %v606, 0.0
    %v739 = vrot.slane %v738, 4
    %v740 = vadd.f32 %v738, %v739
    %v741 = vrot.slane %v740, 2
    %v742 = vadd.f32 %v740, %v741
    %v743 = vrot.slane %v742, 1
    %v744 = vadd.f32 %v742, %v743
    %v745 = vsel %vm653, %v608, 0.0
    %v746 = vrot.slane %v745, 4
    %v747 = vadd.f32 %v745, %v746
    %v748 = vrot.slane %v747, 2
    %v749 = vadd.f32 %v747, %v748
    %v750 = vrot.slane %v749, 1
    %v751 = vadd.f32 %v749, %v750
    %v752 = vsel %vm653, %v647, 0.0
    %v753 = vrot.slane %v752, 4
    %v754 = vadd.f32 %v752, %v753
    %v755 = vrot.slane %v754, 2
    %v756 = vadd.f32 %v754, %v755
    %v757 = vrot.slane %v756, 1
    %v758 = vadd.f32 %v756, %v757
    %v759 = vsel %vm653, %v649, 0.0
    %v760 = vrot.slane %v759, 4
    %v761 = vadd.f32 %v759, %v760
    %v762 = vrot.slane %v761, 2
    %v763 = vadd.f32 %v761, %v762
    %v764 = vrot.slane %v763, 1
    %v765 = vadd.f32 %v763, %v764
    %v782 = vcombine.low %v660, %v667
    %v783 = vcombine.low %v674, %v681
    %v784 = vcombine.low %v688, %v695
    %v785 = vcombine.low %v702, %v709
    %v787 = vunpack.c.l.s4 1966171168
    %v788 = vunpack.c.0.s8 %v787
    %v789 = vlaneseq
    %v790 = vshrl.u32 %v789, 7
    %v791 = vsub.s32 %v788, %v790
    %v792 = vrot.slane %v782, %v791
    %v794 = vunpack.c.l.s4 1966171168
    %v795 = vunpack.c.0.s8 %v794
    %v796 = vlaneseq
    %v797 = vshrl.u32 %v796, 7
    %v798 = vsub.s32 %v795, %v797
    %v799 = vrot.slane %v783, %v798
    %v801 = vunpack.c.l.s4 1966171168
    %v802 = vunpack.c.0.s8 %v801
    %v803 = vlaneseq
    %v804 = vshrl.u32 %v803, 7
    %v805 = vsub.s32 %v802, %v804
    %v806 = vrot.slane %v784, %v805
    %v808 = vunpack.c.l.s4 1966171168
    %v809 = vunpack.c.0.s8 %v808
    %v810 = vlaneseq
    %v811 = vshrl.u32 %v810, 7
    %v812 = vsub.s32 %v809, %v811
    %v813 = vrot.slane %v785, %v812
    %v814 = vcombine.low %v792, %v799
    %v815 = vcombine.low %v806, %v813
    %v817 = vunpack.c.l.s4 1966171168
    %v818 = vunpack.c.0.s8 %v817
    %v819 = vlaneseq
    %v820 = vshrl.u32 %v819, 7
    %v821 = vsub.s32 %v818, %v820
    %v822 = vrot.slane %v814, %v821
    %v824 = vunpack.c.l.s4 1966171168
    %v825 = vunpack.c.0.s8 %v824
    %v826 = vlaneseq
    %v827 = vshrl.u32 %v826, 7
    %v828 = vsub.s32 %v825, %v827
    %v829 = vrot.slane %v815, %v828
    %v830 = vcombine.low %v822, %v829
    %v831 = vcombine.low %v716, %v723
    %v832 = vcombine.low %v730, %v737
    %v833 = vcombine.low %v744, %v751
    %v834 = vcombine.low %v758, %v765
    %v836 = vunpack.c.l.s4 1966171168
    %v837 = vunpack.c.0.s8 %v836
    %v838 = vlaneseq
    %v839 = vshrl.u32 %v838, 7
    %v840 = vsub.s32 %v837, %v839
    %v841 = vrot.slane %v831, %v840
    %v843 = vunpack.c.l.s4 1966171168
    %v844 = vunpack.c.0.s8 %v843
    %v845 = vlaneseq
    %v846 = vshrl.u32 %v845, 7
    %v847 = vsub.s32 %v844, %v846
    %v848 = vrot.slane %v832, %v847
    %v850 = vunpack.c.l.s4 1966171168
    %v851 = vunpack.c.0.s8 %v850
    %v852 = vlaneseq
    %v853 = vshrl.u32 %v852, 7
    %v854 = vsub.s32 %v851, %v853
    %v855 = vrot.slane %v833, %v854
    %v857 = vunpack.c.l.s4 1966171168
    %v858 = vunpack.c.0.s8 %v857
    %v859 = vlaneseq
    %v860 = vshrl.u32 %v859, 7
    %v861 = vsub.s32 %v858, %v860
    %v862 = vrot.slane %v834, %v861
    %v863 = vcombine.low %v841, %v848
    %v864 = vcombine.low %v855, %v862
    %v866 = vunpack.c.l.s4 1966171168
    %v867 = vunpack.c.0.s8 %v866
    %v868 = vlaneseq
    %v869 = vshrl.u32 %v868, 7
    %v870 = vsub.s32 %v867, %v869
    %v871 = vrot.slane %v863, %v870
    %v873 = vunpack.c.l.s4 1966171168
    %v874 = vunpack.c.0.s8 %v873
    %v875 = vlaneseq
    %v876 = vshrl.u32 %v875, 7
    %v877 = vsub.s32 %v874, %v876
    %v878 = vrot.slane %v864, %v877
    %v879 = vcombine.low %v871, %v878
    %882 = vst [vmem:[%s4] sm:$0xff] %v830
    %883 = vst [vmem:[%s4 + $0x8] sm:$0xff] %v879
    %v884 = vmul.f32 %v360, %v360
    %v885 = vmul.f32 %v362, %v362
    %v886 = vmul.f32 %v401, %v401
    %v887 = vmul.f32 %v403, %v403
    %v888 = vmul.f32 %v442, %v442
    %v889 = vmul.f32 %v444, %v444
    %v890 = vmul.f32 %v483, %v483
    %v891 = vmul.f32 %v485, %v485
    %v892 = vmul.f32 %v524, %v524
    %v893 = vmul.f32 %v526, %v526
    %v894 = vmul.f32 %v565, %v565
    %v895 = vmul.f32 %v567, %v567
    %v896 = vmul.f32 %v606, %v606
    %v897 = vmul.f32 %v608, %v608
    %v898 = vmul.f32 %v647, %v647
    %v899 = vmul.f32 %v649, %v649
    %v900 = vsel %vm653, %v884, 0.0
    %v901 = vrot.slane %v900, 4
    %v902 = vadd.f32 %v900, %v901
    %v903 = vrot.slane %v902, 2
    %v904 = vadd.f32 %v902, %v903
    %v905 = vrot.slane %v904, 1
    %v906 = vadd.f32 %v904, %v905
    %v907 = vsel %vm653, %v885, 0.0
    %v908 = vrot.slane %v907, 4
    %v909 = vadd.f32 %v907, %v908
    %v910 = vrot.slane %v909, 2
    %v911 = vadd.f32 %v909, %v910
    %v912 = vrot.slane %v911, 1
    %v913 = vadd.f32 %v911, %v912
    %v914 = vsel %vm653, %v886, 0.0
    %v915 = vrot.slane %v914, 4
    %v916 = vadd.f32 %v914, %v915
    %v917 = vrot.slane %v916, 2
    %v918 = vadd.f32 %v916, %v917
    %v919 = vrot.slane %v918, 1
    %v920 = vadd.f32 %v918, %v919
    %v921 = vsel %vm653, %v887, 0.0
    %v922 = vrot.slane %v921, 4
    %v923 = vadd.f32 %v921, %v922
    %v924 = vrot.slane %v923, 2
    %v925 = vadd.f32 %v923, %v924
    %v926 = vrot.slane %v925, 1
    %v927 = vadd.f32 %v925, %v926
    %v928 = vsel %vm653, %v888, 0.0
    %v929 = vrot.slane %v928, 4
    %v930 = vadd.f32 %v928, %v929
    %v931 = vrot.slane %v930, 2
    %v932 = vadd.f32 %v930, %v931
    %v933 = vrot.slane %v932, 1
    %v934 = vadd.f32 %v932, %v933
    %v935 = vsel %vm653, %v889, 0.0
    %v936 = vrot.slane %v935, 4
    %v937 = vadd.f32 %v935, %v936
    %v938 = vrot.slane %v937, 2
    %v939 = vadd.f32 %v937, %v938
    %v940 = vrot.slane %v939, 1
    %v941 = vadd.f32 %v939, %v940
    %v942 = vsel %vm653, %v890, 0.0
    %v943 = vrot.slane %v942, 4
    %v944 = vadd.f32 %v942, %v943
    %v945 = vrot.slane %v944, 2
    %v946 = vadd.f32 %v944, %v945
    %v947 = vrot.slane %v946, 1
    %v948 = vadd.f32 %v946, %v947
    %v949 = vsel %vm653, %v891, 0.0
    %v950 = vrot.slane %v949, 4
    %v951 = vadd.f32 %v949, %v950
    %v952 = vrot.slane %v951, 2
    %v953 = vadd.f32 %v951, %v952
    %v954 = vrot.slane %v953, 1
    %v955 = vadd.f32 %v953, %v954
    %v956 = vsel %vm653, %v892, 0.0
    %v957 = vrot.slane %v956, 4
    %v958 = vadd.f32 %v956, %v957
    %v959 = vrot.slane %v958, 2
    %v960 = vadd.f32 %v958, %v959
    %v961 = vrot.slane %v960, 1
    %v962 = vadd.f32 %v960, %v961
    %v963 = vsel %vm653, %v893, 0.0
    %v964 = vrot.slane %v963, 4
    %v965 = vadd.f32 %v963, %v964
    %v966 = vrot.slane %v965, 2
    %v967 = vadd.f32 %v965, %v966
    %v968 = vrot.slane %v967, 1
    %v969 = vadd.f32 %v967, %v968
    %v970 = vsel %vm653, %v894, 0.0
    %v971 = vrot.slane %v970, 4
    %v972 = vadd.f32 %v970, %v971
    %v973 = vrot.slane %v972, 2
    %v974 = vadd.f32 %v972, %v973
    %v975 = vrot.slane %v974, 1
    %v976 = vadd.f32 %v974, %v975
    %v977 = vsel %vm653, %v895, 0.0
    %v978 = vrot.slane %v977, 4
    %v979 = vadd.f32 %v977, %v978
    %v980 = vrot.slane %v979, 2
    %v981 = vadd.f32 %v979, %v980
    %v982 = vrot.slane %v981, 1
    %v983 = vadd.f32 %v981, %v982
    %v984 = vsel %vm653, %v896, 0.0
    %v985 = vrot.slane %v984, 4
    %v986 = vadd.f32 %v984, %v985
    %v987 = vrot.slane %v986, 2
    %v988 = vadd.f32 %v986, %v987
    %v989 = vrot.slane %v988, 1
    %v990 = vadd.f32 %v988, %v989
    %v991 = vsel %vm653, %v897, 0.0
    %v992 = vrot.slane %v991, 4
    %v993 = vadd.f32 %v991, %v992
    %v994 = vrot.slane %v993, 2
    %v995 = vadd.f32 %v993, %v994
    %v996 = vrot.slane %v995, 1
    %v997 = vadd.f32 %v995, %v996
    %v998 = vsel %vm653, %v898, 0.0
    %v999 = vrot.slane %v998, 4
    %v1000 = vadd.f32 %v998, %v999
    %v1001 = vrot.slane %v1000, 2
    %v1002 = vadd.f32 %v1000, %v1001
    %v1003 = vrot.slane %v1002, 1
    %v1004 = vadd.f32 %v1002, %v1003
    %v1005 = vsel %vm653, %v899, 0.0
    %v1006 = vrot.slane %v1005, 4
    %v1007 = vadd.f32 %v1005, %v1006
    %v1008 = vrot.slane %v1007, 2
    %v1009 = vadd.f32 %v1007, %v1008
    %v1010 = vrot.slane %v1009, 1
    %v1011 = vadd.f32 %v1009, %v1010
    %v1028 = vcombine.low %v906, %v913
    %v1029 = vcombine.low %v920, %v927
    %v1030 = vcombine.low %v934, %v941
    %v1031 = vcombine.low %v948, %v955
    %v1033 = vunpack.c.l.s4 1966171168
    %v1034 = vunpack.c.0.s8 %v1033
    %v1035 = vlaneseq
    %v1036 = vshrl.u32 %v1035, 7
    %v1037 = vsub.s32 %v1034, %v1036
    %v1038 = vrot.slane %v1028, %v1037
    %v1040 = vunpack.c.l.s4 1966171168
    %v1041 = vunpack.c.0.s8 %v1040
    %v1042 = vlaneseq
    %v1043 = vshrl.u32 %v1042, 7
    %v1044 = vsub.s32 %v1041, %v1043
    %v1045 = vrot.slane %v1029, %v1044
    %v1047 = vunpack.c.l.s4 1966171168
    %v1048 = vunpack.c.0.s8 %v1047
    %v1049 = vlaneseq
    %v1050 = vshrl.u32 %v1049, 7
    %v1051 = vsub.s32 %v1048, %v1050
    %v1052 = vrot.slane %v1030, %v1051
    %v1054 = vunpack.c.l.s4 1966171168
    %v1055 = vunpack.c.0.s8 %v1054
    %v1056 = vlaneseq
    %v1057 = vshrl.u32 %v1056, 7
    %v1058 = vsub.s32 %v1055, %v1057
    %v1059 = vrot.slane %v1031, %v1058
    %v1060 = vcombine.low %v1038, %v1045
    %v1061 = vcombine.low %v1052, %v1059
    %v1063 = vunpack.c.l.s4 1966171168
    %v1064 = vunpack.c.0.s8 %v1063
    %v1065 = vlaneseq
    %v1066 = vshrl.u32 %v1065, 7
    %v1067 = vsub.s32 %v1064, %v1066
    %v1068 = vrot.slane %v1060, %v1067
    %v1070 = vunpack.c.l.s4 1966171168
    %v1071 = vunpack.c.0.s8 %v1070
    %v1072 = vlaneseq
    %v1073 = vshrl.u32 %v1072, 7
    %v1074 = vsub.s32 %v1071, %v1073
    %v1075 = vrot.slane %v1061, %v1074
    %v1076 = vcombine.low %v1068, %v1075
    %v1077 = vcombine.low %v962, %v969
    %v1078 = vcombine.low %v976, %v983
    %v1079 = vcombine.low %v990, %v997
    %v1080 = vcombine.low %v1004, %v1011
    %v1082 = vunpack.c.l.s4 1966171168
    %v1083 = vunpack.c.0.s8 %v1082
    %v1084 = vlaneseq
    %v1085 = vshrl.u32 %v1084, 7
    %v1086 = vsub.s32 %v1083, %v1085
    %v1087 = vrot.slane %v1077, %v1086
    %v1089 = vunpack.c.l.s4 1966171168
    %v1090 = vunpack.c.0.s8 %v1089
    %v1091 = vlaneseq
    %v1092 = vshrl.u32 %v1091, 7
    %v1093 = vsub.s32 %v1090, %v1092
    %v1094 = vrot.slane %v1078, %v1093
    %v1096 = vunpack.c.l.s4 1966171168
    %v1097 = vunpack.c.0.s8 %v1096
    %v1098 = vlaneseq
    %v1099 = vshrl.u32 %v1098, 7
    %v1100 = vsub.s32 %v1097, %v1099
    %v1101 = vrot.slane %v1079, %v1100
    %v1103 = vunpack.c.l.s4 1966171168
    %v1104 = vunpack.c.0.s8 %v1103
    %v1105 = vlaneseq
    %v1106 = vshrl.u32 %v1105, 7
    %v1107 = vsub.s32 %v1104, %v1106
    %v1108 = vrot.slane %v1080, %v1107
    %v1109 = vcombine.low %v1087, %v1094
    %v1110 = vcombine.low %v1101, %v1108
    %v1112 = vunpack.c.l.s4 1966171168
    %v1113 = vunpack.c.0.s8 %v1112
    %v1114 = vlaneseq
    %v1115 = vshrl.u32 %v1114, 7
    %v1116 = vsub.s32 %v1113, %v1115
    %v1117 = vrot.slane %v1109, %v1116
    %v1119 = vunpack.c.l.s4 1966171168
    %v1120 = vunpack.c.0.s8 %v1119
    %v1121 = vlaneseq
    %v1122 = vshrl.u32 %v1121, 7
    %v1123 = vsub.s32 %v1120, %v1122
    %v1124 = vrot.slane %v1110, %v1123
    %v1125 = vcombine.low %v1117, %v1124
    %1128 = vst [vmem:[%s5] sm:$0xff] %v1076
    %1129 = vst [vmem:[%s5 + $0x8] sm:$0xff] %v1125
    %v1130 = vpack.c.bf16 %v360, %v360
    %v1131 = vpack.c.bf16 %v362, %v362
    %v1132 = vpack.c.bf16 %v401, %v401
    %v1133 = vpack.c.bf16 %v403, %v403
    %v1134 = vpack.c.bf16 %v442, %v442
    %v1135 = vpack.c.bf16 %v444, %v444
    %v1136 = vpack.c.bf16 %v483, %v483
    %v1137 = vpack.c.bf16 %v485, %v485
    %v1138 = vpack.c.bf16 %v524, %v524
    %v1139 = vpack.c.bf16 %v526, %v526
    %v1140 = vpack.c.bf16 %v565, %v565
    %v1141 = vpack.c.bf16 %v567, %v567
    %v1142 = vpack.c.bf16 %v606, %v606
    %v1143 = vpack.c.bf16 %v608, %v608
    %v1144 = vpack.c.bf16 %v647, %v647
    %v1145 = vpack.c.bf16 %v649, %v649
    %v1162 = vcombine.low %v1130, %v1131
    %v1163 = vcombine.low %v1132, %v1133
    %v1164 = vcombine.low %v1134, %v1135
    %v1165 = vcombine.low %v1136, %v1137
    %v1167 = vunpack.c.l.s4 1966171168
    %v1168 = vunpack.c.0.s8 %v1167
    %v1169 = vlaneseq
    %v1170 = vshrl.u32 %v1169, 7
    %v1171 = vsub.s32 %v1168, %v1170
    %v1172 = vrot.slane %v1162, %v1171
    %v1174 = vunpack.c.l.s4 1966171168
    %v1175 = vunpack.c.0.s8 %v1174
    %v1176 = vlaneseq
    %v1177 = vshrl.u32 %v1176, 7
    %v1178 = vsub.s32 %v1175, %v1177
    %v1179 = vrot.slane %v1163, %v1178
    %v1181 = vunpack.c.l.s4 1966171168
    %v1182 = vunpack.c.0.s8 %v1181
    %v1183 = vlaneseq
    %v1184 = vshrl.u32 %v1183, 7
    %v1185 = vsub.s32 %v1182, %v1184
    %v1186 = vrot.slane %v1164, %v1185
    %v1188 = vunpack.c.l.s4 1966171168
    %v1189 = vunpack.c.0.s8 %v1188
    %v1190 = vlaneseq
    %v1191 = vshrl.u32 %v1190, 7
    %v1192 = vsub.s32 %v1189, %v1191
    %v1193 = vrot.slane %v1165, %v1192
    %v1194 = vcombine.low %v1172, %v1179
    %v1195 = vcombine.low %v1186, %v1193
    %v1197 = vunpack.c.l.s4 1966171168
    %v1198 = vunpack.c.0.s8 %v1197
    %v1199 = vlaneseq
    %v1200 = vshrl.u32 %v1199, 7
    %v1201 = vsub.s32 %v1198, %v1200
    %v1202 = vrot.slane %v1194, %v1201
    %v1204 = vunpack.c.l.s4 1966171168
    %v1205 = vunpack.c.0.s8 %v1204
    %v1206 = vlaneseq
    %v1207 = vshrl.u32 %v1206, 7
    %v1208 = vsub.s32 %v1205, %v1207
    %v1209 = vrot.slane %v1195, %v1208
    %v1210 = vcombine.low %v1202, %v1209
    %v1211 = vcombine.low %v1138, %v1139
    %v1212 = vcombine.low %v1140, %v1141
    %v1213 = vcombine.low %v1142, %v1143
    %v1214 = vcombine.low %v1144, %v1145
    %v1216 = vunpack.c.l.s4 1966171168
    %v1217 = vunpack.c.0.s8 %v1216
    %v1218 = vlaneseq
    %v1219 = vshrl.u32 %v1218, 7
    %v1220 = vsub.s32 %v1217, %v1219
    %v1221 = vrot.slane %v1211, %v1220
    %v1223 = vunpack.c.l.s4 1966171168
    %v1224 = vunpack.c.0.s8 %v1223
    %v1225 = vlaneseq
    %v1226 = vshrl.u32 %v1225, 7
    %v1227 = vsub.s32 %v1224, %v1226
    %v1228 = vrot.slane %v1212, %v1227
    %v1230 = vunpack.c.l.s4 1966171168
    %v1231 = vunpack.c.0.s8 %v1230
    %v1232 = vlaneseq
    %v1233 = vshrl.u32 %v1232, 7
    %v1234 = vsub.s32 %v1231, %v1233
    %v1235 = vrot.slane %v1213, %v1234
    %v1237 = vunpack.c.l.s4 1966171168
    %v1238 = vunpack.c.0.s8 %v1237
    %v1239 = vlaneseq
    %v1240 = vshrl.u32 %v1239, 7
    %v1241 = vsub.s32 %v1238, %v1240
    %v1242 = vrot.slane %v1214, %v1241
    %v1243 = vcombine.low %v1221, %v1228
    %v1244 = vcombine.low %v1235, %v1242
    %v1246 = vunpack.c.l.s4 1966171168
    %v1247 = vunpack.c.0.s8 %v1246
    %v1248 = vlaneseq
    %v1249 = vshrl.u32 %v1248, 7
    %v1250 = vsub.s32 %v1247, %v1249
    %v1251 = vrot.slane %v1243, %v1250
    %v1253 = vunpack.c.l.s4 1966171168
    %v1254 = vunpack.c.0.s8 %v1253
    %v1255 = vlaneseq
    %v1256 = vshrl.u32 %v1255, 7
    %v1257 = vsub.s32 %v1254, %v1256
    %v1258 = vrot.slane %v1244, %v1257
    %v1259 = vcombine.low %v1251, %v1258
    %1262 = vst [vmem:[%s3] sm:$0xff] %v1210
    %1263 = vst [vmem:[%s3 + $0x8] sm:$0xff] %v1259
    // Predicated region
    $region22: #{generator_forward.5} parent=1 // pred_check
      _
    $region23: #{generator_forward.5} parent=1 // pred_check_branch
      %1265 = sbr.rel (0) target = $region25
    $region24: #{generator_forward.5} parent=1 // pred_region
      _
    $region25: #{generator_forward.5} parent=1 // pred_fallthru
      _
    // Predicated region
    $region26: #{generator_forward.5} parent=1 // pred_check
      _
    $region27: #{generator_forward.5} parent=1 // pred_check_branch
      %1267 = sbr.rel (0) target = $region29
    $region28: #{generator_forward.5} parent=1 // pred_region
      _
    $region29: #{generator_forward.5} parent=1 // pred_fallthru
      _
    // Predicated region
    $region30: #{generator_forward.5} parent=1 // pred_check
      _
    $region31: #{generator_forward.5} parent=1 // pred_check_branch
      %1269 = sbr.rel (0) target = $region33
    $region32: #{generator_forward.5} parent=1 // pred_region
      _
    $region33: #{generator_forward.5} parent=1 // pred_fallthru
      _
    // Predicated region
    $region34: #{generator_forward.5} parent=1 // pred_check
      _
    $region35: #{generator_forward.5} parent=1 // pred_check_branch
      %1271 = sbr.rel (0) target = $region37
    $region36: #{generator_forward.5} parent=1 // pred_region
      _
    $region37: #{generator_forward.5} parent=1 // pred_fallthru
      _
    // Predicated region
    $region38: #{generator_forward.5} parent=1 // pred_check
      _
    $region39: #{generator_forward.5} parent=1 // pred_check_branch
      %1273 = sbr.rel (0) target = $region41
    $region40: #{generator_forward.5} parent=1 // pred_region
      _
    $region41: #{generator_forward.5} parent=1 // pred_fallthru
      _
    // Predicated region
    $region42: #{generator_forward.5} parent=1 // pred_check
      _
    $region43: #{generator_forward.5} parent=1 // pred_check_branch
      %1275 = sbr.rel (0) target = $region45
    $region44: #{generator_forward.5} parent=1 // pred_region
      _
    $region45: #{generator_forward.5} parent=1 // pred_fallthru
      _
    %1276 = vsyncpa [#allocation3], 1
    %1277 = vsyncpa [#allocation5], 1

// kernel: tile.57
$region0: #{tile.57}
  #allocation0 [shape = 's32[1]{0}', space=sflag, size = 0x4, scoped, tag = 'scoped memory for tile.57']
  %s0 = inlined_call_operand.vmem [shape: f32[64], index: 0, kind: input, shape index: {}]
  %s1 = inlined_call_operand.vmem [shape: f32[4,64], index: 1, kind: output, shape index: {}]
  // Predicated region
  $region2: #{tile.57} parent=0 // pred_check
    _
  $region3: #{tile.57} parent=0 // pred_check_branch
    %3 = sbr.rel (0) target = $region5
  $region4: #{tile.57} parent=0 // pred_region
    _
  $region5: #{tile.57} parent=0 // pred_fallthru
    _
  %v4 = vld [vmem:[%s0] ss:$0 sm:$0xff]
  %5 = vst [vmem:[%s1] sm:$0xf] %v4

// kernel: tile.59
$region0: #{tile.59}
  %s0 = inlined_call_operand.vmem [shape: f32[4,64], index: 0, kind: input, shape index: {}]
  %s1 = inlined_call_operand.vmem [shape: f32[1,1,256], index: 1, kind: output, shape index: {}]
  $region1: #{tile.59} parent=0
    #allocation0 [shape = 'u8[8192]{0}', space=vmem, size = 0x2000, scoped, tag = 'scoped mem for output reshape']
    #allocation1 [shape = 'u8[4096]{0}', space=vmem, size = 0x1000, scoped, tag = 'scoped mem for input reshape']
    %s3 = sshll.u32 1, 4
    %s4 = ssub.s32 %s3, 1
    %v5 = vld [vmem:[%s0] sm:%s4]
    %6 = vst [vmem:[#allocation1] sm:%s4] %v5
    %s7 = smov 3
    %v8 = vld [vmem:[#allocation1] ss:$2 sm:%s7]
    %vm9 = vcmask 523264
    %10 = vst.msk [vmem:[#allocation0] ss:$8 sm:$0x3] %vm9, %v8
    %s11 = scalar_lea.vmem [#allocation1], 1
    %s12 = smov 3
    %v13 = vld [vmem:[%s11] ss:$2 sm:%s12]
    %14 = vrot.lane.b32.xlu0 %v13, 64
    %v15 = vpop.permute.xlu0 %14
    %vm16 = vcmask 1048064
    %17 = vst.msk [vmem:[#allocation0] ss:$8 sm:$0x3] %vm16, %v15
    %s19 = sshll.u32 1, 1
    %s20 = ssub.s32 %s19, 1
    %v22 = vld [vmem:[#allocation0] sm:%s20]
    %s23 = sshll.u32 1, 1
    %s24 = ssub.s32 %s23, 1
    %25 = vst [vmem:[%s1] sm:%s24] %v22
    %s26 = scalar_lea.vmem [#allocation0], 8
    %v27 = vld [vmem:[%s26] sm:%s20]
    %s28 = sshll.u32 1, 1
    %s29 = ssub.s32 %s28, 1
    %s30 = scalar_lea.vmem %s1, 1
    %31 = vst [vmem:[%s30] sm:%s29] %v27

// kernel: generator_forward.6
$region0: #{generator_forward.6}
  #allocation0 [shape = 'u32[]', space=smem, size = 0x4, offset = 0x4, fixed_abs, tag = 'smem constant byte address 0x4 - core index']
  #allocation1 [shape = 'u32[144,128]{1,0:T(1,128)}', space=vmem, size = 0x12000, scoped, tag = 'internal scratch']
  %s0 = inlined_call_operand.vmem [shape: bf16[4,32,512], index: 0, kind: input, shape index: {}]
  %s1 = inlined_call_operand.vmem [shape: bf16[4,512,64], index: 1, kind: input, shape index: {}]
  %s2 = inlined_call_operand.vmem [shape: f32[1,1,64], index: 2, kind: input, shape index: {}]
  %s3 = inlined_call_operand.vmem [shape: f32[1,1,512], index: 3, kind: input, shape index: {}]
  %s4 = inlined_call_operand.vmem [shape: f32[1,1,512], index: 4, kind: input, shape index: {}]
  %s5 = inlined_call_operand.vmem [shape: bf16[4,32,64], index: 5, kind: output, shape index: {0}]
  %s6 = inlined_call_operand.vmem [shape: f32[4,1,1,64], index: 6, kind: output, shape index: {1}]
  %s7 = inlined_call_operand.vmem [shape: f32[4,1,1,64], index: 7, kind: output, shape index: {2}]
  %8 = xla_tuple %s5, %s6, %s7
  %s9 = sld [smem:[#allocation0]]
  $region69: #{generator_forward.6} parent=0
    _
  %s11 = ssub.s32 1, %s9
  %s12 = scalar_select 0, %s11, %s9
  loop: start=0, step=1, limit=6
  $region2: #{generator_forward.6} parent=0 // loop_pre_header
    _
  $region3: #{generator_forward.6} parent=0 // loop_header
    %s14 = sphi 0, %s18
    %p15 = scmp.ge.s32.totalorder %s14, 6
    %s21 = sphi 0, %s33
    %s22 = sphi 0, %s29
    %s23 = sphi 0, %s21
    %s24 = sphi 0, %s22
    %s25 = sphi 0, %s23
    %s26 = sphi 0, %s24
    %s38 = sphi 0, %s40
    %s41 = sphi 0, %s38
    %s42 = sphi 0, %s41
    %s58 = sphi 0, %s42
    %s64 = sphi 0, %s66
    %s67 = sphi 0, %s64
    %s68 = sphi 0, %s67
    %s84 = sphi 0, %s68
    %s88 = sphi 0, %s88
    %s90 = sphi 0, %s88
    %s91 = sphi 0, %s90
    %s105 = sphi 0, %s91
    %s109 = sphi 0, %s109
    %s111 = sphi 0, %s109
    %s112 = sphi 0, %s111
    %s126 = sphi 0, %s112
    %s130 = sphi 0, %s130
    %s132 = sphi 0, %s130
    %s133 = sphi 0, %s132
    %s147 = sphi 0, %s133
    %s155 = sphi 0, %s157
    %s158 = sphi 0, %s155
    %s159 = sphi 0, %s158
    %s175 = sphi 0, %s159
    %s183 = sphi 0, %s185
    %s186 = sphi 0, %s183
    %s187 = sphi 0, %s186
    %s203 = sphi 0, %s187
    %s211 = sphi 0, %s213
    %s214 = sphi 0, %s211
    %s215 = sphi 0, %s214
    %s231 = sphi 0, %s215
  $region4: #{generator_forward.6} parent=0 // loop_header_branch
    %17 = sbr.rel (%p15) target = $region8
  $region5: #{generator_forward.6} parent=0 // loop_body
    %s19 = ssub.s32 %s14, 1
    %s20 = ssub.s32 %s14, 2
    %s27 = sadd.s32 1, %s22
    %p28 = scmp.ge.s32.totalorder %s27, 1
    %s29 = scalar_select %p28, 0, %s27
    %s30 = sadd.s32 1, %s21
    %s31 = scalar_select %p28, %s30, %s21
    %p32 = scmp.ge.s32.totalorder %s31, 4
    %s33 = scalar_select %p32, 0, %s31
    %s34 = ssub.s32 %s21, %s33
    %s35 = ssub.s32 %s22, %s29
    %s36 = sor.u32 %s34, %s35
    %p37 = scmp.eq.s32.totalorder %s36, 0
    %s39 = sadd.s32 %s38, 1
    %s40 = scalar_select %p37, %s38, %s39
    %p43 = pneg %p37
    %p44 = scmp.eq.s32.totalorder %s14, 3
    %p45 = por %p43, %p44
    %p46 = scmp.ne.s32.totalorder %s38, %s41
    %p47 = scmp.eq.s32.totalorder %s14, 0
    %p48 = por %p46, %p47
    %p49 = scmp.ne.s32.totalorder %s38, %s41
    %p50 = scmp.eq.s32.totalorder %s19, 3
    %p51 = por %p49, %p50
    %p52 = scmp.ne.s32.totalorder %s41, %s42
    %p53 = scmp.eq.s32.totalorder %s19, 0
    %p54 = por %p52, %p53
    %p55 = scmp.ne.s32.totalorder %s41, %s42
    %p56 = scmp.eq.s32.totalorder %s20, 3
    %p57 = por %p55, %p56
    %p59 = scmp.ne.s32.totalorder %s42, %s58
    %p60 = scmp.eq.s32.totalorder %s20, 0
    %p61 = por %p59, %p60
    %s62 = ssub.s32 %s21, %s33
    %p63 = scmp.eq.s32.totalorder %s62, 0
    %s65 = sadd.s32 %s64, 1
    %s66 = scalar_select %p63, %s64, %s65
    %p69 = pneg %p63
    %p70 = scmp.eq.s32.totalorder %s14, 3
    %p71 = por %p69, %p70
    %p72 = scmp.ne.s32.totalorder %s64, %s67
    %p73 = scmp.eq.s32.totalorder %s14, 0
    %p74 = por %p72, %p73
    %p75 = scmp.ne.s32.totalorder %s64, %s67
    %p76 = scmp.eq.s32.totalorder %s19, 3
    %p77 = por %p75, %p76
    %p78 = scmp.ne.s32.totalorder %s67, %s68
    %p79 = scmp.eq.s32.totalorder %s19, 0
    %p80 = por %p78, %p79
    %p81 = scmp.ne.s32.totalorder %s67, %s68
    %p82 = scmp.eq.s32.totalorder %s20, 3
    %p83 = por %p81, %p82
    %p85 = scmp.ne.s32.totalorder %s68, %s84
    %p86 = scmp.eq.s32.totalorder %s20, 0
    %p87 = por %p85, %p86
    %s89 = sadd.s32 %s88, 1
    %p92 = scmp.eq.s32.totalorder %s14, 3
    %p93 = scmp.ne.s32.totalorder %s88, %s90
    %p94 = scmp.eq.s32.totalorder %s14, 0
    %p95 = por %p93, %p94
    %p96 = scmp.ne.s32.totalorder %s88, %s90
    %p97 = scmp.eq.s32.totalorder %s19, 3
    %p98 = por %p96, %p97
    %p99 = scmp.ne.s32.totalorder %s90, %s91
    %p100 = scmp.eq.s32.totalorder %s19, 0
    %p101 = por %p99, %p100
    %p102 = scmp.ne.s32.totalorder %s90, %s91
    %p103 = scmp.eq.s32.totalorder %s20, 3
    %p104 = por %p102, %p103
    %p106 = scmp.ne.s32.totalorder %s91, %s105
    %p107 = scmp.eq.s32.totalorder %s20, 0
    %p108 = por %p106, %p107
    %s110 = sadd.s32 %s109, 1
    %p113 = scmp.eq.s32.totalorder %s14, 3
    %p114 = scmp.ne.s32.totalorder %s109, %s111
    %p115 = scmp.eq.s32.totalorder %s14, 0
    %p116 = por %p114, %p115
    %p117 = scmp.ne.s32.totalorder %s109, %s111
    %p118 = scmp.eq.s32.totalorder %s19, 3
    %p119 = por %p117, %p118
    %p120 = scmp.ne.s32.totalorder %s111, %s112
    %p121 = scmp.eq.s32.totalorder %s19, 0
    %p122 = por %p120, %p121
    %p123 = scmp.ne.s32.totalorder %s111, %s112
    %p124 = scmp.eq.s32.totalorder %s20, 3
    %p125 = por %p123, %p124
    %p127 = scmp.ne.s32.totalorder %s112, %s126
    %p128 = scmp.eq.s32.totalorder %s20, 0
    %p129 = por %p127, %p128
    %s131 = sadd.s32 %s130, 1
    %p134 = scmp.eq.s32.totalorder %s14, 3
    %p135 = scmp.ne.s32.totalorder %s130, %s132
    %p136 = scmp.eq.s32.totalorder %s14, 0
    %p137 = por %p135, %p136
    %p138 = scmp.ne.s32.totalorder %s130, %s132
    %p139 = scmp.eq.s32.totalorder %s19, 3
    %p140 = por %p138, %p139
    %p141 = scmp.ne.s32.totalorder %s132, %s133
    %p142 = scmp.eq.s32.totalorder %s19, 0
    %p143 = por %p141, %p142
    %p144 = scmp.ne.s32.totalorder %s132, %s133
    %p145 = scmp.eq.s32.totalorder %s20, 3
    %p146 = por %p144, %p145
    %p148 = scmp.ne.s32.totalorder %s133, %s147
    %p149 = scmp.eq.s32.totalorder %s20, 0
    %p150 = por %p148, %p149
    %s151 = ssub.s32 %s21, %s33
    %s152 = ssub.s32 %s22, %s29
    %s153 = sor.u32 %s151, %s152
    %p154 = scmp.eq.s32.totalorder %s153, 0
    %s156 = sadd.s32 %s155, 1
    %s157 = scalar_select %p154, %s155, %s156
    %p160 = pneg %p154
    %p161 = scmp.eq.s32.totalorder %s14, 3
    %p162 = por %p160, %p161
    %p163 = scmp.ne.s32.totalorder %s155, %s158
    %p164 = scmp.eq.s32.totalorder %s14, 0
    %p165 = por %p163, %p164
    %p166 = scmp.ne.s32.totalorder %s155, %s158
    %p167 = scmp.eq.s32.totalorder %s19, 3
    %p168 = por %p166, %p167
    %p169 = scmp.ne.s32.totalorder %s158, %s159
    %p170 = scmp.eq.s32.totalorder %s19, 0
    %p171 = por %p169, %p170
    %p172 = scmp.ne.s32.totalorder %s158, %s159
    %p173 = scmp.eq.s32.totalorder %s20, 3
    %p174 = por %p172, %p173
    %p176 = scmp.ne.s32.totalorder %s159, %s175
    %p177 = scmp.eq.s32.totalorder %s20, 0
    %p178 = por %p176, %p177
    %s179 = ssub.s32 %s21, %s33
    %s180 = ssub.s32 %s22, %s29
    %s181 = sor.u32 %s179, %s180
    %p182 = scmp.eq.s32.totalorder %s181, 0
    %s184 = sadd.s32 %s183, 1
    %s185 = scalar_select %p182, %s183, %s184
    %p188 = pneg %p182
    %p189 = scmp.eq.s32.totalorder %s14, 3
    %p190 = por %p188, %p189
    %p191 = scmp.ne.s32.totalorder %s183, %s186
    %p192 = scmp.eq.s32.totalorder %s14, 0
    %p193 = por %p191, %p192
    %p194 = scmp.ne.s32.totalorder %s183, %s186
    %p195 = scmp.eq.s32.totalorder %s19, 3
    %p196 = por %p194, %p195
    %p197 = scmp.ne.s32.totalorder %s186, %s187
    %p198 = scmp.eq.s32.totalorder %s19, 0
    %p199 = por %p197, %p198
    %p200 = scmp.ne.s32.totalorder %s186, %s187
    %p201 = scmp.eq.s32.totalorder %s20, 3
    %p202 = por %p200, %p201
    %p204 = scmp.ne.s32.totalorder %s187, %s203
    %p205 = scmp.eq.s32.totalorder %s20, 0
    %p206 = por %p204, %p205
    %s207 = ssub.s32 %s21, %s33
    %s208 = ssub.s32 %s22, %s29
    %s209 = sor.u32 %s207, %s208
    %p210 = scmp.eq.s32.totalorder %s209, 0
    %s212 = sadd.s32 %s211, 1
    %s213 = scalar_select %p210, %s211, %s212
    %p216 = pneg %p210
    %p217 = scmp.eq.s32.totalorder %s14, 3
    %p218 = por %p216, %p217
    %p219 = scmp.ne.s32.totalorder %s211, %s214
    %p220 = scmp.eq.s32.totalorder %s14, 0
    %p221 = por %p219, %p220
    %p222 = scmp.ne.s32.totalorder %s211, %s214
    %p223 = scmp.eq.s32.totalorder %s19, 3
    %p224 = por %p222, %p223
    %p225 = scmp.ne.s32.totalorder %s214, %s215
    %p226 = scmp.eq.s32.totalorder %s19, 0
    %p227 = por %p225, %p226
    %p228 = scmp.ne.s32.totalorder %s214, %s215
    %p229 = scmp.eq.s32.totalorder %s20, 3
    %p230 = por %p228, %p229
    %p232 = scmp.ne.s32.totalorder %s215, %s231
    %p233 = scmp.eq.s32.totalorder %s20, 0
    %p234 = por %p232, %p233
    %p235 = scmp.le.s32.totalorder 1, %s14
    %p236 = scmp.lt.s32.totalorder %s14, 5
    %p237 = pnand %p235, %p236
    %p238 = pneg %p237
    // Predicated region
    $region9: #{generator_forward.6} parent=5 // pred_check
      _
    $region10: #{generator_forward.6} parent=5 // pred_check_branch
      %240 = sbr.rel (%p237) target = $region12
    $region11: #{generator_forward.6} parent=5 // pred_region
      %s241 = ssub.s32 %s14, 1
      // Predicated region
      $region13: #{generator_forward.6} parent=11 // pred_check
        %p242 = pneg %p101
      $region14: #{generator_forward.6} parent=11 // pred_check_branch
        %244 = sbr.rel (%p242) target = $region16
      $region15: #{generator_forward.6} parent=11 // pred_region
        _
      $region16: #{generator_forward.6} parent=11 // pred_fallthru
        _
      // Predicated region
      $region17: #{generator_forward.6} parent=11 // pred_check
        %p245 = pneg %p122
      $region18: #{generator_forward.6} parent=11 // pred_check_branch
        %247 = sbr.rel (%p245) target = $region20
      $region19: #{generator_forward.6} parent=11 // pred_region
        _
      $region20: #{generator_forward.6} parent=11 // pred_fallthru
        _
      // Predicated region
      $region21: #{generator_forward.6} parent=11 // pred_check
        %p248 = pneg %p143
      $region22: #{generator_forward.6} parent=11 // pred_check_branch
        %250 = sbr.rel (%p248) target = $region24
      $region23: #{generator_forward.6} parent=11 // pred_region
        _
      $region24: #{generator_forward.6} parent=11 // pred_fallthru
        _
    $region12: #{generator_forward.6} parent=5 // pred_fallthru
      _
    %p251 = scmp.lt.s32.totalorder %s14, 4
    // Predicated region
    $region25: #{generator_forward.6} parent=5 // pred_check
      %p252 = pneg %p251
    $region26: #{generator_forward.6} parent=5 // pred_check_branch
      %254 = sbr.rel (%p252) target = $region28
    $region27: #{generator_forward.6} parent=5 // pred_region
      // Predicated region
      $region29: #{generator_forward.6} parent=27 // pred_check
        %p255 = pneg %p48
      $region30: #{generator_forward.6} parent=27 // pred_check_branch
        %257 = sbr.rel (%p255) target = $region32
      $region31: #{generator_forward.6} parent=27 // pred_region
        %s258 = smul.u32 4, %s22
        %p259 = scmp.lt.s32.totalorder %s21, 3
        %s260 = scalar_select %p259, %s21, 3
        %p261 = scmp.lt.s32.totalorder %s258, 3
        %s262 = scalar_select %p261, %s258, 3
        %s263 = smul.addr %s262, 4
        %s264 = smul.addr %s260, 16
        %s265 = sadd.s32 %s263, %s264
        %s266 = smul.addr %s265, 4
        %s267 = scalar_lea.vmem %s0, %s266
        %s268 = smul.u32 4, %s22
      $region32: #{generator_forward.6} parent=27 // pred_fallthru
        _
      // Predicated region
      $region33: #{generator_forward.6} parent=27 // pred_check
        %p269 = pneg %p74
      $region34: #{generator_forward.6} parent=27 // pred_check_branch
        %271 = sbr.rel (%p269) target = $region36
      $region35: #{generator_forward.6} parent=27 // pred_region
        %p272 = scmp.lt.s32.totalorder %s21, 3
        %s273 = scalar_select %p272, %s21, 3
        %s274 = smul.addr %s273, 64
        %s275 = smul.addr %s274, 4
        %s276 = scalar_lea.vmem %s1, %s275
      $region36: #{generator_forward.6} parent=27 // pred_fallthru
        _
    $region28: #{generator_forward.6} parent=5 // pred_fallthru
      _
    %p277 = scmp.le.s32.totalorder 1, %s14
    %p278 = scmp.lt.s32.totalorder %s14, 5
    %p279 = pnand %p277, %p278
    %p280 = pneg %p279
    // Predicated region
    $region37: #{generator_forward.6} parent=5 // pred_check
      _
    $region38: #{generator_forward.6} parent=5 // pred_check_branch
      %282 = sbr.rel (%p279) target = $region40
    $region39: #{generator_forward.6} parent=5 // pred_region
      %s283 = ssub.s32 %s14, 1
      %s284 = smul.u32 4, %s24
      %p285 = scmp.lt.s32.totalorder %s23, 3
      %s286 = scalar_select %p285, %s23, 3
      %p287 = scmp.lt.s32.totalorder %s284, 3
      %s288 = scalar_select %p287, %s284, 3
      %s289 = smul.addr %s288, 4
      %s290 = smul.addr %s286, 16
      %s291 = sadd.s32 %s289, %s290
      %s292 = smul.addr %s291, 4
      %s293 = scalar_lea.vmem %s0, %s292
      %p294 = pneg %p54
      %p295 = pneg %p51
      %p296 = scmp.lt.s32.totalorder %s23, 3
      %s297 = scalar_select %p296, %s23, 3
      %s298 = smul.addr %s297, 64
      %s299 = smul.addr %s298, 4
      %s300 = scalar_lea.vmem %s1, %s299
      %p301 = pneg %p80
      %p302 = pneg %p77
      %p303 = pneg %p101
      %p304 = pneg %p98
      %p305 = pneg %p122
      %p306 = pneg %p119
      %p307 = pneg %p143
      %p308 = pneg %p140
      %p309 = pneg %p171
      %p310 = pneg %p168
      %s311 = smul.u32 4, %s24
      %p312 = scmp.lt.s32.totalorder %s23, 3
      %s313 = scalar_select %p312, %s23, 3
      %p314 = scmp.lt.s32.totalorder %s311, 3
      %s315 = scalar_select %p314, %s311, 3
      %s316 = smul.addr %s313, 4
      %s317 = sadd.s32 %s315, %s316
      %s318 = smul.addr %s317, 4
      %s319 = scalar_lea.vmem %s5, %s318
      %p320 = pneg %p199
      %p321 = pneg %p196
      %p322 = scmp.lt.s32.totalorder %s23, 3
      %s323 = scalar_select %p322, %s23, 3
      %p324 = scmp.lt.s32.totalorder %s24, 0
      %s325 = scalar_select %p324, %s24, 0
      %s326 = sadd.s32 %s325, %s323
      %s327 = scalar_lea.vmem %s6, %s326
      %p328 = pneg %p227
      %p329 = pneg %p224
      %p330 = scmp.lt.s32.totalorder %s23, 3
      %s331 = scalar_select %p330, %s23, 3
      %p332 = scmp.lt.s32.totalorder %s24, 0
      %s333 = scalar_select %p332, %s24, 0
      %s334 = sadd.s32 %s333, %s331
      %s335 = scalar_lea.vmem %s7, %s334
      %s336 = smul.u32 4, %s24
      %p337 = scmp.lt.s32.totalorder %s23, 3
      %s338 = scalar_select %p337, %s23, 3
      %p339 = scmp.lt.s32.totalorder %s336, 3
      %s340 = scalar_select %p339, %s336, 3
      %s341 = smul.addr %s340, 4
      %s342 = smul.addr %s338, 16
      %s343 = sadd.s32 %s341, %s342
      %s344 = smul.addr %s343, 4
      %s345 = scalar_lea.vmem %s0, %s344
      %s346 = smul.u32 4, %s24
      %p347 = scmp.lt.s32.totalorder %s23, 3
      %s348 = scalar_select %p347, %s23, 3
      %s349 = smul.addr %s348, 64
      %s350 = smul.addr %s349, 4
      %s351 = scalar_lea.vmem %s1, %s350
      %s352 = smul.u32 4, %s24
      %p353 = scmp.lt.s32.totalorder %s23, 3
      %s354 = scalar_select %p353, %s23, 3
      %p355 = scmp.lt.s32.totalorder %s352, 3
      %s356 = scalar_select %p355, %s352, 3
      %s357 = smul.addr %s354, 4
      %s358 = sadd.s32 %s356, %s357
      %s359 = smul.addr %s358, 4
      %s360 = scalar_lea.vmem %s5, %s359
      %s361 = smul.u32 4, %s24
      %p362 = scmp.lt.s32.totalorder %s23, 3
      %s363 = scalar_select %p362, %s23, 3
      %p364 = scmp.lt.s32.totalorder %s24, 0
      %s365 = scalar_select %p364, %s24, 0
      %s366 = sadd.s32 %s365, %s363
      %s367 = scalar_lea.vmem %s6, %s366
      %p368 = scmp.lt.s32.totalorder %s23, 3
      %s369 = scalar_select %p368, %s23, 3
      %p370 = scmp.lt.s32.totalorder %s24, 0
      %s371 = scalar_select %p370, %s24, 0
      %s372 = sadd.s32 %s371, %s369
      %s373 = scalar_lea.vmem %s7, %s372
      %v375 = vld [vmem:[%s345] sm:$0xff]
      %v376 = vld [vmem:[%s345 + $0x8] sm:$0xff]
      %v377 = vld [vmem:[%s345 + $0x10] sm:$0xff]
      %v378 = vld [vmem:[%s345 + $0x18] sm:$0xff]
      %v379 = vld [vmem:[%s345 + $0x20] sm:$0xff]
      %v380 = vld [vmem:[%s345 + $0x28] sm:$0xff]
      %v381 = vld [vmem:[%s345 + $0x30] sm:$0xff]
      %v382 = vld [vmem:[%s345 + $0x38] sm:$0xff]
      %v383 = vunpack.c.l.bf16 %v375
      %v384 = vunpack.c.h.bf16 %v375
      %v385 = vunpack.c.l.bf16 %v376
      %v386 = vunpack.c.h.bf16 %v376
      %v387 = vunpack.c.l.bf16 %v377
      %v388 = vunpack.c.h.bf16 %v377
      %v389 = vunpack.c.l.bf16 %v378
      %v390 = vunpack.c.h.bf16 %v378
      %v391 = vunpack.c.l.bf16 %v379
      %v392 = vunpack.c.h.bf16 %v379
      %v393 = vunpack.c.l.bf16 %v380
      %v394 = vunpack.c.h.bf16 %v380
      %v395 = vunpack.c.l.bf16 %v381
      %v396 = vunpack.c.h.bf16 %v381
      %v397 = vunpack.c.l.bf16 %v382
      %v398 = vunpack.c.h.bf16 %v382
      %v399 = vld [vmem:[%s3] sm:$0xf]
      %v401 = vlaneseq
      %v402 = vshrl.u32 %v401, 7
      %v403 = vsub.s32 0, %v402
      %v404 = vrot.slane %v399, %v403
      %v405 = vlaneseq
      %v406 = vshrl.u32 %v405, 7
      %v407 = vsub.s32 1, %v406
      %v408 = vrot.slane %v399, %v407
      %v409 = vlaneseq
      %v410 = vshrl.u32 %v409, 7
      %v411 = vsub.s32 2, %v410
      %v412 = vrot.slane %v399, %v411
      %v413 = vlaneseq
      %v414 = vshrl.u32 %v413, 7
      %v415 = vsub.s32 3, %v414
      %v416 = vrot.slane %v399, %v415
      %v421 = vmul.f32 %v383, %v404
      %v422 = vmul.f32 %v384, %v408
      %v423 = vmul.f32 %v385, %v412
      %v424 = vmul.f32 %v386, %v416
      %v425 = vmul.f32 %v387, %v404
      %v426 = vmul.f32 %v388, %v408
      %v427 = vmul.f32 %v389, %v412
      %v428 = vmul.f32 %v390, %v416
      %v429 = vmul.f32 %v391, %v404
      %v430 = vmul.f32 %v392, %v408
      %v431 = vmul.f32 %v393, %v412
      %v432 = vmul.f32 %v394, %v416
      %v433 = vmul.f32 %v395, %v404
      %v434 = vmul.f32 %v396, %v408
      %v435 = vmul.f32 %v397, %v412
      %v436 = vmul.f32 %v398, %v416
      %v437 = vld [vmem:[%s4] sm:$0xf]
      %v439 = vlaneseq
      %v440 = vshrl.u32 %v439, 7
      %v441 = vsub.s32 0, %v440
      %v442 = vrot.slane %v437, %v441
      %v443 = vlaneseq
      %v444 = vshrl.u32 %v443, 7
      %v445 = vsub.s32 1, %v444
      %v446 = vrot.slane %v437, %v445
      %v447 = vlaneseq
      %v448 = vshrl.u32 %v447, 7
      %v449 = vsub.s32 2, %v448
      %v450 = vrot.slane %v437, %v449
      %v451 = vlaneseq
      %v452 = vshrl.u32 %v451, 7
      %v453 = vsub.s32 3, %v452
      %v454 = vrot.slane %v437, %v453
      %v459 = vadd.f32 %v421, %v442
      %v460 = vadd.f32 %v422, %v446
      %v461 = vadd.f32 %v423, %v450
      %v462 = vadd.f32 %v424, %v454
      %v463 = vadd.f32 %v425, %v442
      %v464 = vadd.f32 %v426, %v446
      %v465 = vadd.f32 %v427, %v450
      %v466 = vadd.f32 %v428, %v454
      %v467 = vadd.f32 %v429, %v442
      %v468 = vadd.f32 %v430, %v446
      %v469 = vadd.f32 %v431, %v450
      %v470 = vadd.f32 %v432, %v454
      %v471 = vadd.f32 %v433, %v442
      %v472 = vadd.f32 %v434, %v446
      %v473 = vadd.f32 %v435, %v450
      %v474 = vadd.f32 %v436, %v454
      %v475 = vmax.f32 %v459, 0.0
      %v476 = vmax.f32 %v460, 0.0
      %v477 = vmax.f32 %v461, 0.0
      %v478 = vmax.f32 %v462, 0.0
      %v479 = vmax.f32 %v463, 0.0
      %v480 = vmax.f32 %v464, 0.0
      %v481 = vmax.f32 %v465, 0.0
      %v482 = vmax.f32 %v466, 0.0
      %v483 = vmax.f32 %v467, 0.0
      %v484 = vmax.f32 %v468, 0.0
      %v485 = vmax.f32 %v469, 0.0
      %v486 = vmax.f32 %v470, 0.0
      %v487 = vmax.f32 %v471, 0.0
      %v488 = vmax.f32 %v472, 0.0
      %v489 = vmax.f32 %v473, 0.0
      %v490 = vmax.f32 %v474, 0.0
      %v491 = vpack.c.bf16 %v479, %v475
      %v492 = vpack.c.bf16 %v480, %v476
      %v493 = vpack.c.bf16 %v481, %v477
      %v494 = vpack.c.bf16 %v482, %v478
      %v495 = vpack.c.bf16 %v487, %v483
      %v496 = vpack.c.bf16 %v488, %v484
      %v497 = vpack.c.bf16 %v489, %v485
      %v498 = vpack.c.bf16 %v490, %v486
      %v499 = vld [vmem:[%s351] sm:$0xf]
      %v500 = vld [vmem:[%s351 + $0x4] sm:$0xf]
      %v501 = vld [vmem:[%s351 + $0x8] sm:$0xf]
      %v502 = vld [vmem:[%s351 + $0xc] sm:$0xf]
      %v503 = vld [vmem:[%s351 + $0x10] sm:$0xf]
      %v504 = vld [vmem:[%s351 + $0x14] sm:$0xf]
      %v505 = vld [vmem:[%s351 + $0x18] sm:$0xf]
      %v506 = vld [vmem:[%s351 + $0x1c] sm:$0xf]
      %v507 = vld [vmem:[%s351 + $0x20] sm:$0xf]
      %v508 = vld [vmem:[%s351 + $0x24] sm:$0xf]
      %v509 = vld [vmem:[%s351 + $0x28] sm:$0xf]
      %v510 = vld [vmem:[%s351 + $0x2c] sm:$0xf]
      %v511 = vld [vmem:[%s351 + $0x30] sm:$0xf]
      %v512 = vld [vmem:[%s351 + $0x34] sm:$0xf]
      %v513 = vld [vmem:[%s351 + $0x38] sm:$0xf]
      %v514 = vld [vmem:[%s351 + $0x3c] sm:$0xf]
      %v515 = vld [vmem:[%s351 + $0x40] sm:$0xf]
      %v516 = vld [vmem:[%s351 + $0x44] sm:$0xf]
      %v517 = vld [vmem:[%s351 + $0x48] sm:$0xf]
      %v518 = vld [vmem:[%s351 + $0x4c] sm:$0xf]
      %v519 = vld [vmem:[%s351 + $0x50] sm:$0xf]
      %v520 = vld [vmem:[%s351 + $0x54] sm:$0xf]
      %v521 = vld [vmem:[%s351 + $0x58] sm:$0xf]
      %v522 = vld [vmem:[%s351 + $0x5c] sm:$0xf]
      %v523 = vld [vmem:[%s351 + $0x60] sm:$0xf]
      %v524 = vld [vmem:[%s351 + $0x64] sm:$0xf]
      %v525 = vld [vmem:[%s351 + $0x68] sm:$0xf]
      %v526 = vld [vmem:[%s351 + $0x6c] sm:$0xf]
      %v527 = vld [vmem:[%s351 + $0x70] sm:$0xf]
      %v528 = vld [vmem:[%s351 + $0x74] sm:$0xf]
      %v529 = vld [vmem:[%s351 + $0x78] sm:$0xf]
      %v530 = vld [vmem:[%s351 + $0x7c] sm:$0xf]
      %v531 = vld [vmem:[%s351 + $0x80] sm:$0xf]
      %v532 = vld [vmem:[%s351 + $0x84] sm:$0xf]
      %v533 = vld [vmem:[%s351 + $0x88] sm:$0xf]
      %v534 = vld [vmem:[%s351 + $0x8c] sm:$0xf]
      %v535 = vld [vmem:[%s351 + $0x90] sm:$0xf]
      %v536 = vld [vmem:[%s351 + $0x94] sm:$0xf]
      %v537 = vld [vmem:[%s351 + $0x98] sm:$0xf]
      %v538 = vld [vmem:[%s351 + $0x9c] sm:$0xf]
      %v539 = vld [vmem:[%s351 + $0xa0] sm:$0xf]
      %v540 = vld [vmem:[%s351 + $0xa4] sm:$0xf]
      %v541 = vld [vmem:[%s351 + $0xa8] sm:$0xf]
      %v542 = vld [vmem:[%s351 + $0xac] sm:$0xf]
      %v543 = vld [vmem:[%s351 + $0xb0] sm:$0xf]
      %v544 = vld [vmem:[%s351 + $0xb4] sm:$0xf]
      %v545 = vld [vmem:[%s351 + $0xb8] sm:$0xf]
      %v546 = vld [vmem:[%s351 + $0xbc] sm:$0xf]
      %v547 = vld [vmem:[%s351 + $0xc0] sm:$0xf]
      %v548 = vld [vmem:[%s351 + $0xc4] sm:$0xf]
      %v549 = vld [vmem:[%s351 + $0xc8] sm:$0xf]
      %v550 = vld [vmem:[%s351 + $0xcc] sm:$0xf]
      %v551 = vld [vmem:[%s351 + $0xd0] sm:$0xf]
      %v552 = vld [vmem:[%s351 + $0xd4] sm:$0xf]
      %v553 = vld [vmem:[%s351 + $0xd8] sm:$0xf]
      %v554 = vld [vmem:[%s351 + $0xdc] sm:$0xf]
      %v555 = vld [vmem:[%s351 + $0xe0] sm:$0xf]
      %v556 = vld [vmem:[%s351 + $0xe4] sm:$0xf]
      %v557 = vld [vmem:[%s351 + $0xe8] sm:$0xf]
      %v558 = vld [vmem:[%s351 + $0xec] sm:$0xf]
      %v559 = vld [vmem:[%s351 + $0xf0] sm:$0xf]
      %v560 = vld [vmem:[%s351 + $0xf4] sm:$0xf]
      %v561 = vld [vmem:[%s351 + $0xf8] sm:$0xf]
      %v562 = vld [vmem:[%s351 + $0xfc] sm:$0xf]
      %v563 = vld [vmem:[%s2] sm:$0x1]
      %v565 = vlaneseq
      %v566 = vshrl.u32 %v565, 7
      %v567 = vsub.s32 0, %v566
      %v568 = vrot.slane %v563, %v567
      %v634 = vunpack.c.l.b16 %v499
      %v635 = vunpack.c.l.b16 %v500
      %v636 = vunpack.c.l.b16 %v501
      %v637 = vunpack.c.l.b16 %v502
      %v638 = vunpack.c.l.b16 %v503
      %v639 = vunpack.c.l.b16 %v504
      %v640 = vunpack.c.l.b16 %v505
      %v641 = vunpack.c.l.b16 %v506
      %v642 = vunpack.c.l.b16 %v507
      %v643 = vunpack.c.l.b16 %v508
      %v644 = vunpack.c.l.b16 %v509
      %v645 = vunpack.c.l.b16 %v510
      %v646 = vunpack.c.l.b16 %v511
      %v647 = vunpack.c.l.b16 %v512
      %v648 = vunpack.c.l.b16 %v513
      %v649 = vunpack.c.l.b16 %v514
      %v650 = vunpack.c.l.b16 %v515
      %v651 = vunpack.c.l.b16 %v516
      %v652 = vunpack.c.l.b16 %v517
      %v653 = vunpack.c.l.b16 %v518
      %v654 = vunpack.c.l.b16 %v519
      %v655 = vunpack.c.l.b16 %v520
      %v656 = vunpack.c.l.b16 %v521
      %v657 = vunpack.c.l.b16 %v522
      %v658 = vunpack.c.l.b16 %v523
      %v659 = vunpack.c.l.b16 %v524
      %v660 = vunpack.c.l.b16 %v525
      %v661 = vunpack.c.l.b16 %v526
      %v662 = vunpack.c.l.b16 %v527
      %v663 = vunpack.c.l.b16 %v528
      %v664 = vunpack.c.l.b16 %v529
      %v665 = vunpack.c.l.b16 %v530
      %v666 = vunpack.c.l.b16 %v531
      %v667 = vunpack.c.l.b16 %v532
      %v668 = vunpack.c.l.b16 %v533
      %v669 = vunpack.c.l.b16 %v534
      %v670 = vunpack.c.l.b16 %v535
      %v671 = vunpack.c.l.b16 %v536
      %v672 = vunpack.c.l.b16 %v537
      %v673 = vunpack.c.l.b16 %v538
      %v674 = vunpack.c.l.b16 %v539
      %v675 = vunpack.c.l.b16 %v540
      %v676 = vunpack.c.l.b16 %v541
      %v677 = vunpack.c.l.b16 %v542
      %v678 = vunpack.c.l.b16 %v543
      %v679 = vunpack.c.l.b16 %v544
      %v680 = vunpack.c.l.b16 %v545
      %v681 = vunpack.c.l.b16 %v546
      %v682 = vunpack.c.l.b16 %v547
      %v683 = vunpack.c.l.b16 %v548
      %v684 = vunpack.c.l.b16 %v549
      %v685 = vunpack.c.l.b16 %v550
      %v686 = vunpack.c.l.b16 %v551
      %v687 = vunpack.c.l.b16 %v552
      %v688 = vunpack.c.l.b16 %v553
      %v689 = vunpack.c.l.b16 %v554
      %v690 = vunpack.c.l.b16 %v555
      %v691 = vunpack.c.l.b16 %v556
      %v692 = vunpack.c.l.b16 %v557
      %v693 = vunpack.c.l.b16 %v558
      %v694 = vunpack.c.l.b16 %v559
      %v695 = vunpack.c.l.b16 %v560
      %v696 = vunpack.c.l.b16 %v561
      %v697 = vunpack.c.l.b16 %v562
      %v698 = vpack.c.b16 %v635, %v634
      %v699 = vpack.c.b16 %v637, %v636
      %v700 = vpack.c.b16 %v639, %v638
      %v701 = vpack.c.b16 %v641, %v640
      %v702 = vpack.c.b16 %v643, %v642
      %v703 = vpack.c.b16 %v645, %v644
      %v704 = vpack.c.b16 %v647, %v646
      %v705 = vpack.c.b16 %v649, %v648
      %v706 = vpack.c.b16 %v651, %v650
      %v707 = vpack.c.b16 %v653, %v652
      %v708 = vpack.c.b16 %v655, %v654
      %v709 = vpack.c.b16 %v657, %v656
      %v710 = vpack.c.b16 %v659, %v658
      %v711 = vpack.c.b16 %v661, %v660
      %v712 = vpack.c.b16 %v663, %v662
      %v713 = vpack.c.b16 %v665, %v664
      %v714 = vpack.c.b16 %v667, %v666
      %v715 = vpack.c.b16 %v669, %v668
      %v716 = vpack.c.b16 %v671, %v670
      %v717 = vpack.c.b16 %v673, %v672
      %v718 = vpack.c.b16 %v675, %v674
      %v719 = vpack.c.b16 %v677, %v676
      %v720 = vpack.c.b16 %v679, %v678
      %v721 = vpack.c.b16 %v681, %v680
      %v722 = vpack.c.b16 %v683, %v682
      %v723 = vpack.c.b16 %v685, %v684
      %v724 = vpack.c.b16 %v687, %v686
      %v725 = vpack.c.b16 %v689, %v688
      %v726 = vpack.c.b16 %v691, %v690
      %v727 = vpack.c.b16 %v693, %v692
      %v728 = vpack.c.b16 %v695, %v694
      %v729 = vpack.c.b16 %v697, %v696
      %762 = vmatprep.subr.bf16.mxu0 0
      %763 = vmatpush1.bf16.msra.mxu0 %v705
      %764 = vmatprep.subr.bf16.mxu0 0
      %765 = vmatpush1.bf16.msra.mxu0 %v704
      %766 = vmatprep.subr.bf16.mxu0 0
      %767 = vmatpush1.bf16.msra.mxu0 %v703
      %768 = vmatprep.subr.bf16.mxu0 0
      %769 = vmatpush1.bf16.msra.mxu0 %v702
      %770 = vmatprep.subr.bf16.mxu0 0
      %771 = vmatpush1.bf16.msra.mxu0 %v701
      %772 = vmatprep.subr.bf16.mxu0 0
      %773 = vmatpush1.bf16.msra.mxu0 %v700
      %774 = vmatprep.subr.bf16.mxu0 0
      %775 = vmatpush1.bf16.msra.mxu0 %v699
      %776 = vmatprep.subr.bf16.mxu0 0
      %777 = vmatpush1.bf16.msra.mxu0 %v698
      %778 = vmatprep.subr.bf16.mxu0 0
      %779 = vmatpush2.bf16.msra.mxu0 %v713
      %780 = vmatprep.subr.bf16.mxu0 0
      %781 = vmatpush2.bf16.msra.mxu0 %v712
      %782 = vmatprep.subr.bf16.mxu0 0
      %783 = vmatpush2.bf16.msra.mxu0 %v711
      %784 = vmatprep.subr.bf16.mxu0 0
      %785 = vmatpush2.bf16.msra.mxu0 %v710
      %786 = vmatprep.subr.bf16.mxu0 0
      %787 = vmatpush2.bf16.msra.mxu0 %v709
      %788 = vmatprep.subr.bf16.mxu0 0
      %789 = vmatpush2.bf16.msra.mxu0 %v708
      %790 = vmatprep.subr.bf16.mxu0 0
      %791 = vmatpush2.bf16.msra.mxu0 %v707
      %792 = vmatprep.subr.bf16.mxu0 0
      %793 = vmatpush2.bf16.msra.mxu0 %v706
      %794 = vmatprep.mubr.bf16.mxu0 %v492
      %795 = vmatmul.mubr.bf16.gmra.mxu0 %v491
      %v796 = vpop.f32.mrf.mxu0
      %v797 = vadd.f32 %v568, %v796
      %v798 = vpop.f32.mrf.mxu0
      %v799 = vpop.f32.mrf.mxu0
      %v800 = vadd.f32 %v568, %v799
      %v801 = vpop.f32.mrf.mxu0
      %802 = vmatprep.mubr.bf16.mxu0 %v496
      %803 = vmatmul.mubr.bf16.gmra.mxu0 %v495
      %v804 = vpop.f32.mrf.mxu0
      %v805 = vadd.f32 %v568, %v804
      %v806 = vpop.f32.mrf.mxu0
      %v807 = vpop.f32.mrf.mxu0
      %v808 = vadd.f32 %v568, %v807
      %v809 = vpop.f32.mrf.mxu0
      %810 = vdwg.mxu0
      %811 = vmatprep.subr.bf16.mxu0 0
      %812 = vmatpush1.bf16.msra.mxu0 %v721
      %813 = vmatprep.subr.bf16.mxu0 0
      %814 = vmatpush1.bf16.msra.mxu0 %v720
      %815 = vmatprep.subr.bf16.mxu0 0
      %816 = vmatpush1.bf16.msra.mxu0 %v719
      %817 = vmatprep.subr.bf16.mxu0 0
      %818 = vmatpush1.bf16.msra.mxu0 %v718
      %819 = vmatprep.subr.bf16.mxu0 0
      %820 = vmatpush1.bf16.msra.mxu0 %v717
      %821 = vmatprep.subr.bf16.mxu0 0
      %822 = vmatpush1.bf16.msra.mxu0 %v716
      %823 = vmatprep.subr.bf16.mxu0 0
      %824 = vmatpush1.bf16.msra.mxu0 %v715
      %825 = vmatprep.subr.bf16.mxu0 0
      %826 = vmatpush1.bf16.msra.mxu0 %v714
      %827 = vmatprep.subr.bf16.mxu0 0
      %828 = vmatpush2.bf16.msra.mxu0 %v729
      %829 = vmatprep.subr.bf16.mxu0 0
      %830 = vmatpush2.bf16.msra.mxu0 %v728
      %831 = vmatprep.subr.bf16.mxu0 0
      %832 = vmatpush2.bf16.msra.mxu0 %v727
      %833 = vmatprep.subr.bf16.mxu0 0
      %834 = vmatpush2.bf16.msra.mxu0 %v726
      %835 = vmatprep.subr.bf16.mxu0 0
      %836 = vmatpush2.bf16.msra.mxu0 %v725
      %837 = vmatprep.subr.bf16.mxu0 0
      %838 = vmatpush2.bf16.msra.mxu0 %v724
      %839 = vmatprep.subr.bf16.mxu0 0
      %840 = vmatpush2.bf16.msra.mxu0 %v723
      %841 = vmatprep.subr.bf16.mxu0 0
      %842 = vmatpush2.bf16.msra.mxu0 %v722
      %843 = vmatprep.mubr.bf16.mxu0 %v494
      %844 = vmatmul.mubr.bf16.gmra.mxu0 %v493
      %v845 = vpop.f32.mrf.mxu0
      %v846 = vadd.f32 %v797, %v845
      %v847 = vpop.f32.mrf.mxu0
      %v848 = vpop.f32.mrf.mxu0
      %v849 = vadd.f32 %v800, %v848
      %v850 = vpop.f32.mrf.mxu0
      %851 = vmatprep.mubr.bf16.mxu0 %v498
      %852 = vmatmul.mubr.bf16.gmra.mxu0 %v497
      %v853 = vpop.f32.mrf.mxu0
      %v854 = vadd.f32 %v805, %v853
      %v855 = vpop.f32.mrf.mxu0
      %v856 = vpop.f32.mrf.mxu0
      %v857 = vadd.f32 %v808, %v856
      %v858 = vpop.f32.mrf.mxu0
      %859 = vdwg.mxu0
      %vm860 = vcmask 523264
      %v861 = vsel %vm860, %v846, 0.0
      %v862 = vsel %vm860, %v849, 0.0
      %v863 = vadd.f32 %v861, %v862
      %v864 = vsel %vm860, %v854, 0.0
      %v865 = vadd.f32 %v863, %v864
      %v866 = vsel %vm860, %v857, 0.0
      %v867 = vadd.f32 %v865, %v866
      %v868 = vrot.slane %v867, 4
      %v869 = vadd.f32 %v867, %v868
      %v870 = vrot.slane %v869, 2
      %v871 = vadd.f32 %v869, %v870
      %v872 = vrot.slane %v871, 1
      %v873 = vadd.f32 %v871, %v872
      %vm874 = vcmask 516096
      %875 = vst.msk [vmem:[%s367] sm:$0x1] %vm874, %v873
      %v876 = vmul.f32 %v846, %v846
      %v877 = vmul.f32 %v849, %v849
      %v878 = vmul.f32 %v854, %v854
      %v879 = vmul.f32 %v857, %v857
      %v880 = vsel %vm860, %v876, 0.0
      %v881 = vsel %vm860, %v877, 0.0
      %v882 = vadd.f32 %v880, %v881
      %v883 = vsel %vm860, %v878, 0.0
      %v884 = vadd.f32 %v882, %v883
      %v885 = vsel %vm860, %v879, 0.0
      %v886 = vadd.f32 %v884, %v885
      %v887 = vrot.slane %v886, 4
      %v888 = vadd.f32 %v886, %v887
      %v889 = vrot.slane %v888, 2
      %v890 = vadd.f32 %v888, %v889
      %v891 = vrot.slane %v890, 1
      %v892 = vadd.f32 %v890, %v891
      %893 = vst.msk [vmem:[%s373] sm:$0x1] %vm874, %v892
      %v894 = vpack.c.bf16 %v849, %v846
      %v895 = vpack.c.bf16 %v857, %v854
      %v898 = vunpack.c.l.b16 %v894
      %v899 = vunpack.c.h.b16 %v894
      %v900 = vunpack.c.l.b16 %v895
      %v901 = vunpack.c.h.b16 %v895
      %v902 = vpack.c.b16 %v898, %v898
      %v903 = vpack.c.b16 %v899, %v899
      %v904 = vpack.c.b16 %v900, %v900
      %v905 = vpack.c.b16 %v901, %v901
      %vm910 = vcmask 519168
      %911 = vst.msk [vmem:[%s360] sm:$0xf] %vm910, %v902
      %912 = vst.msk [vmem:[%s360 + $0x4] sm:$0xf] %vm910, %v903
      %913 = vst.msk [vmem:[%s360 + $0x8] sm:$0xf] %vm910, %v904
      %914 = vst.msk [vmem:[%s360 + $0xc] sm:$0xf] %vm910, %v905
      %s915 = smul.u32 4, %s24
      %p916 = scmp.lt.s32.totalorder %s23, 3
      %s917 = scalar_select %p916, %s23, 3
      %p918 = scmp.lt.s32.totalorder %s915, 3
      %s919 = scalar_select %p918, %s915, 3
      %s920 = smul.addr %s917, 4
      %s921 = sadd.s32 %s919, %s920
      %s922 = smul.addr %s921, 4
      %s923 = scalar_lea.vmem %s5, %s922
      %p924 = scmp.lt.s32.totalorder %s23, 3
      %s925 = scalar_select %p924, %s23, 3
      %p926 = scmp.lt.s32.totalorder %s24, 0
      %s927 = scalar_select %p926, %s24, 0
      %s928 = sadd.s32 %s927, %s925
      %s929 = scalar_lea.vmem %s6, %s928
      %p930 = scmp.lt.s32.totalorder %s23, 3
      %s931 = scalar_select %p930, %s23, 3
      %p932 = scmp.lt.s32.totalorder %s24, 0
      %s933 = scalar_select %p932, %s24, 0
      %s934 = sadd.s32 %s933, %s931
      %s935 = scalar_lea.vmem %s7, %s934
      // Predicated region
      $region41: #{generator_forward.6} parent=39 // pred_check
        %p936 = pneg %p168
      $region42: #{generator_forward.6} parent=39 // pred_check_branch
        %938 = sbr.rel (%p936) target = $region44
      $region43: #{generator_forward.6} parent=39 // pred_region
        %s939 = smul.u32 4, %s24
      $region44: #{generator_forward.6} parent=39 // pred_fallthru
        _
      // Predicated region
      $region45: #{generator_forward.6} parent=39 // pred_check
        %p940 = pneg %p196
      $region46: #{generator_forward.6} parent=39 // pred_check_branch
        %942 = sbr.rel (%p940) target = $region48
      $region47: #{generator_forward.6} parent=39 // pred_region
        _
      $region48: #{generator_forward.6} parent=39 // pred_fallthru
        _
      // Predicated region
      $region49: #{generator_forward.6} parent=39 // pred_check
        %p943 = pneg %p224
      $region50: #{generator_forward.6} parent=39 // pred_check_branch
        %945 = sbr.rel (%p943) target = $region52
      $region51: #{generator_forward.6} parent=39 // pred_region
        _
      $region52: #{generator_forward.6} parent=39 // pred_fallthru
        _
    $region40: #{generator_forward.6} parent=5 // pred_fallthru
      _
    %p946 = scmp.le.s32.totalorder 2, %s14
    // Predicated region
    $region53: #{generator_forward.6} parent=5 // pred_check
      %p947 = pneg %p946
    $region54: #{generator_forward.6} parent=5 // pred_check_branch
      %949 = sbr.rel (%p947) target = $region56
    $region55: #{generator_forward.6} parent=5 // pred_region
      %s950 = ssub.s32 %s14, 2
      // Predicated region
      $region57: #{generator_forward.6} parent=55 // pred_check
        %p951 = pneg %p174
      $region58: #{generator_forward.6} parent=55 // pred_check_branch
        %953 = sbr.rel (%p951) target = $region60
      $region59: #{generator_forward.6} parent=55 // pred_region
        %s954 = smul.u32 4, %s26
        %p955 = scmp.lt.s32.totalorder %s25, 3
        %s956 = scalar_select %p955, %s25, 3
        %p957 = scmp.lt.s32.totalorder %s954, 3
        %s958 = scalar_select %p957, %s954, 3
        %s959 = smul.addr %s956, 4
        %s960 = sadd.s32 %s958, %s959
        %s961 = smul.addr %s960, 4
        %s962 = scalar_lea.vmem %s5, %s961
      $region60: #{generator_forward.6} parent=55 // pred_fallthru
        _
      // Predicated region
      $region61: #{generator_forward.6} parent=55 // pred_check
        %p963 = pneg %p202
      $region62: #{generator_forward.6} parent=55 // pred_check_branch
        %965 = sbr.rel (%p963) target = $region64
      $region63: #{generator_forward.6} parent=55 // pred_region
        %p966 = scmp.lt.s32.totalorder %s25, 3
        %s967 = scalar_select %p966, %s25, 3
        %p968 = scmp.lt.s32.totalorder %s26, 0
        %s969 = scalar_select %p968, %s26, 0
        %s970 = sadd.s32 %s969, %s967
        %s971 = scalar_lea.vmem %s6, %s970
      $region64: #{generator_forward.6} parent=55 // pred_fallthru
        _
      // Predicated region
      $region65: #{generator_forward.6} parent=55 // pred_check
        %p972 = pneg %p230
      $region66: #{generator_forward.6} parent=55 // pred_check_branch
        %974 = sbr.rel (%p972) target = $region68
      $region67: #{generator_forward.6} parent=55 // pred_region
        %p975 = scmp.lt.s32.totalorder %s25, 3
        %s976 = scalar_select %p975, %s25, 3
        %p977 = scmp.lt.s32.totalorder %s26, 0
        %s978 = scalar_select %p977, %s26, 0
        %s979 = sadd.s32 %s978, %s976
        %s980 = scalar_lea.vmem %s7, %s979
      $region68: #{generator_forward.6} parent=55 // pred_fallthru
        _
    $region56: #{generator_forward.6} parent=5 // pred_fallthru
      _
  $region6: #{generator_forward.6} parent=0 // loop_footer
    %s18 = sadd.s32 1, %s14
  $region7: #{generator_forward.6} parent=0 // loop_footer_branch
    %13 = sbr.rel target = $region3
  $region8: #{generator_forward.6} parent=0 // loop_exit
    _

// kernel: tile.67
$region0: #{tile.67}
  #allocation0 [shape = 's32[1]{0}', space=sflag, size = 0x4, scoped, tag = 'scoped memory for tile.67']
  %s0 = inlined_call_operand.vmem [shape: f32[32], index: 0, kind: input, shape index: {}]
  %s1 = inlined_call_operand.vmem [shape: f32[4,32], index: 1, kind: output, shape index: {}]
  // Predicated region
  $region2: #{tile.67} parent=0 // pred_check
    _
  $region3: #{tile.67} parent=0 // pred_check_branch
    %3 = sbr.rel (0) target = $region5
  $region4: #{tile.67} parent=0 // pred_region
    _
  $region5: #{tile.67} parent=0 // pred_fallthru
    _
  %v4 = vld [vmem:[%s0] ss:$0 sm:$0xff]
  %5 = vst [vmem:[%s1] sm:$0xf] %v4

// kernel: tile.69
$region0: #{tile.69}
  %s0 = inlined_call_operand.vmem [shape: f32[4,32], index: 0, kind: input, shape index: {}]
  %s1 = inlined_call_operand.vmem [shape: f32[1,1,128], index: 1, kind: output, shape index: {}]
  $region1: #{tile.69} parent=0
    #allocation0 [shape = 'u8[4096]{0}', space=vmem, size = 0x1000, scoped, tag = 'scoped mem for output reshape']
    #allocation1 [shape = 'u8[4096]{0}', space=vmem, size = 0x1000, scoped, tag = 'scoped mem for input reshape']
    %s3 = sshll.u32 1, 4
    %s4 = ssub.s32 %s3, 1
    %v5 = vld [vmem:[%s0] sm:%s4]
    %6 = vst [vmem:[#allocation1] sm:%s4] %v5
    %v7 = vld [vmem:[#allocation1] sm:$0x1]
    %vm8 = vcmask 261120
    %9 = vst.msk [vmem:[#allocation0] sm:$0x1] %vm8, %v7
    %s10 = scalar_lea.vmem [#allocation1], 3
    %v11 = vld [vmem:[%s10] sm:$0x1]
    %12 = vrot.lane.b32.xlu0 %v11, 96
    %v13 = vpop.permute.xlu0 %12
    %vm14 = vcmask 1048320
    %15 = vst.msk [vmem:[#allocation0] sm:$0x1] %vm14, %v13
    %s16 = scalar_lea.vmem [#allocation1], 2
    %v17 = vld [vmem:[%s16] sm:$0x1]
    %18 = vrot.lane.b32.xlu0 %v17, 64
    %v19 = vpop.permute.xlu0 %18
    %vm20 = vcmask 785920
    %21 = vst.msk [vmem:[#allocation0] sm:$0x1] %vm20, %v19
    %s22 = scalar_lea.vmem [#allocation1], 1
    %v23 = vld [vmem:[%s22] sm:$0x1]
    %24 = vrot.lane.b32.xlu0 %v23, 32
    %v25 = vpop.permute.xlu0 %24
    %vm26 = vcmask 523520
    %27 = vst.msk [vmem:[#allocation0] sm:$0x1] %vm26, %v25
    %s29 = sshll.u32 1, 1
    %s30 = ssub.s32 %s29, 1
    %v32 = vld [vmem:[#allocation0] sm:%s30]
    %s33 = sshll.u32 1, 1
    %s34 = ssub.s32 %s33, 1
    %35 = vst [vmem:[%s1] sm:%s34] %v32

// kernel: generator_forward.7
$region0: #{generator_forward.7}
  #allocation0 [shape = 'u32[]', space=smem, size = 0x4, offset = 0x4, fixed_abs, tag = 'smem constant byte address 0x4 - core index']
  #allocation1 [shape = 'u32[144,128]{1,0:T(1,128)}', space=vmem, size = 0x12000, scoped, tag = 'internal scratch']
  %s0 = inlined_call_operand.vmem [shape: bf16[4,128,256], index: 0, kind: input, shape index: {}]
  %s1 = inlined_call_operand.vmem [shape: bf16[4,256,32], index: 1, kind: input, shape index: {}]
  %s2 = inlined_call_operand.vmem [shape: f32[1,1,32], index: 2, kind: input, shape index: {}]
  %s3 = inlined_call_operand.vmem [shape: f32[1,1,256], index: 3, kind: input, shape index: {}]
  %s4 = inlined_call_operand.vmem [shape: f32[1,1,256], index: 4, kind: input, shape index: {}]
  %s5 = inlined_call_operand.vmem [shape: bf16[4,128,32], index: 5, kind: output, shape index: {0}]
  %s6 = inlined_call_operand.vmem [shape: f32[4,1,1,32], index: 6, kind: output, shape index: {1}]
  %s7 = inlined_call_operand.vmem [shape: f32[4,1,1,32], index: 7, kind: output, shape index: {2}]
  %8 = xla_tuple %s5, %s6, %s7
  %s9 = sld [smem:[#allocation0]]
  $region69: #{generator_forward.7} parent=0
    _
  %s11 = ssub.s32 1, %s9
  %s12 = scalar_select 0, %s11, %s9
  loop: start=0, step=1, limit=6
  $region2: #{generator_forward.7} parent=0 // loop_pre_header
    _
  $region3: #{generator_forward.7} parent=0 // loop_header
    %s14 = sphi 0, %s18
    %p15 = scmp.ge.s32.totalorder %s14, 6
    %s21 = sphi 0, %s33
    %s22 = sphi 0, %s29
    %s23 = sphi 0, %s21
    %s24 = sphi 0, %s22
    %s25 = sphi 0, %s23
    %s26 = sphi 0, %s24
    %s38 = sphi 0, %s40
    %s41 = sphi 0, %s38
    %s42 = sphi 0, %s41
    %s58 = sphi 0, %s42
    %s64 = sphi 0, %s66
    %s67 = sphi 0, %s64
    %s68 = sphi 0, %s67
    %s84 = sphi 0, %s68
    %s88 = sphi 0, %s88
    %s90 = sphi 0, %s88
    %s91 = sphi 0, %s90
    %s105 = sphi 0, %s91
    %s109 = sphi 0, %s109
    %s111 = sphi 0, %s109
    %s112 = sphi 0, %s111
    %s126 = sphi 0, %s112
    %s130 = sphi 0, %s130
    %s132 = sphi 0, %s130
    %s133 = sphi 0, %s132
    %s147 = sphi 0, %s133
    %s155 = sphi 0, %s157
    %s158 = sphi 0, %s155
    %s159 = sphi 0, %s158
    %s175 = sphi 0, %s159
    %s183 = sphi 0, %s185
    %s186 = sphi 0, %s183
    %s187 = sphi 0, %s186
    %s203 = sphi 0, %s187
    %s211 = sphi 0, %s213
    %s214 = sphi 0, %s211
    %s215 = sphi 0, %s214
    %s231 = sphi 0, %s215
  $region4: #{generator_forward.7} parent=0 // loop_header_branch
    %17 = sbr.rel (%p15) target = $region8
  $region5: #{generator_forward.7} parent=0 // loop_body
    %s19 = ssub.s32 %s14, 1
    %s20 = ssub.s32 %s14, 2
    %s27 = sadd.s32 1, %s22
    %p28 = scmp.ge.s32.totalorder %s27, 1
    %s29 = scalar_select %p28, 0, %s27
    %s30 = sadd.s32 1, %s21
    %s31 = scalar_select %p28, %s30, %s21
    %p32 = scmp.ge.s32.totalorder %s31, 4
    %s33 = scalar_select %p32, 0, %s31
    %s34 = ssub.s32 %s21, %s33
    %s35 = ssub.s32 %s22, %s29
    %s36 = sor.u32 %s34, %s35
    %p37 = scmp.eq.s32.totalorder %s36, 0
    %s39 = sadd.s32 %s38, 1
    %s40 = scalar_select %p37, %s38, %s39
    %p43 = pneg %p37
    %p44 = scmp.eq.s32.totalorder %s14, 3
    %p45 = por %p43, %p44
    %p46 = scmp.ne.s32.totalorder %s38, %s41
    %p47 = scmp.eq.s32.totalorder %s14, 0
    %p48 = por %p46, %p47
    %p49 = scmp.ne.s32.totalorder %s38, %s41
    %p50 = scmp.eq.s32.totalorder %s19, 3
    %p51 = por %p49, %p50
    %p52 = scmp.ne.s32.totalorder %s41, %s42
    %p53 = scmp.eq.s32.totalorder %s19, 0
    %p54 = por %p52, %p53
    %p55 = scmp.ne.s32.totalorder %s41, %s42
    %p56 = scmp.eq.s32.totalorder %s20, 3
    %p57 = por %p55, %p56
    %p59 = scmp.ne.s32.totalorder %s42, %s58
    %p60 = scmp.eq.s32.totalorder %s20, 0
    %p61 = por %p59, %p60
    %s62 = ssub.s32 %s21, %s33
    %p63 = scmp.eq.s32.totalorder %s62, 0
    %s65 = sadd.s32 %s64, 1
    %s66 = scalar_select %p63, %s64, %s65
    %p69 = pneg %p63
    %p70 = scmp.eq.s32.totalorder %s14, 3
    %p71 = por %p69, %p70
    %p72 = scmp.ne.s32.totalorder %s64, %s67
    %p73 = scmp.eq.s32.totalorder %s14, 0
    %p74 = por %p72, %p73
    %p75 = scmp.ne.s32.totalorder %s64, %s67
    %p76 = scmp.eq.s32.totalorder %s19, 3
    %p77 = por %p75, %p76
    %p78 = scmp.ne.s32.totalorder %s67, %s68
    %p79 = scmp.eq.s32.totalorder %s19, 0
    %p80 = por %p78, %p79
    %p81 = scmp.ne.s32.totalorder %s67, %s68
    %p82 = scmp.eq.s32.totalorder %s20, 3
    %p83 = por %p81, %p82
    %p85 = scmp.ne.s32.totalorder %s68, %s84
    %p86 = scmp.eq.s32.totalorder %s20, 0
    %p87 = por %p85, %p86
    %s89 = sadd.s32 %s88, 1
    %p92 = scmp.eq.s32.totalorder %s14, 3
    %p93 = scmp.ne.s32.totalorder %s88, %s90
    %p94 = scmp.eq.s32.totalorder %s14, 0
    %p95 = por %p93, %p94
    %p96 = scmp.ne.s32.totalorder %s88, %s90
    %p97 = scmp.eq.s32.totalorder %s19, 3
    %p98 = por %p96, %p97
    %p99 = scmp.ne.s32.totalorder %s90, %s91
    %p100 = scmp.eq.s32.totalorder %s19, 0
    %p101 = por %p99, %p100
    %p102 = scmp.ne.s32.totalorder %s90, %s91
    %p103 = scmp.eq.s32.totalorder %s20, 3
    %p104 = por %p102, %p103
    %p106 = scmp.ne.s32.totalorder %s91, %s105
    %p107 = scmp.eq.s32.totalorder %s20, 0
    %p108 = por %p106, %p107
    %s110 = sadd.s32 %s109, 1
    %p113 = scmp.eq.s32.totalorder %s14, 3
    %p114 = scmp.ne.s32.totalorder %s109, %s111
    %p115 = scmp.eq.s32.totalorder %s14, 0
    %p116 = por %p114, %p115
    %p117 = scmp.ne.s32.totalorder %s109, %s111
    %p118 = scmp.eq.s32.totalorder %s19, 3
    %p119 = por %p117, %p118
    %p120 = scmp.ne.s32.totalorder %s111, %s112
    %p121 = scmp.eq.s32.totalorder %s19, 0
    %p122 = por %p120, %p121
    %p123 = scmp.ne.s32.totalorder %s111, %s112
    %p124 = scmp.eq.s32.totalorder %s20, 3
    %p125 = por %p123, %p124
    %p127 = scmp.ne.s32.totalorder %s112, %s126
    %p128 = scmp.eq.s32.totalorder %s20, 0
    %p129 = por %p127, %p128
    %s131 = sadd.s32 %s130, 1
    %p134 = scmp.eq.s32.totalorder %s14, 3
    %p135 = scmp.ne.s32.totalorder %s130, %s132
    %p136 = scmp.eq.s32.totalorder %s14, 0
    %p137 = por %p135, %p136
    %p138 = scmp.ne.s32.totalorder %s130, %s132
    %p139 = scmp.eq.s32.totalorder %s19, 3
    %p140 = por %p138, %p139
    %p141 = scmp.ne.s32.totalorder %s132, %s133
    %p142 = scmp.eq.s32.totalorder %s19, 0
    %p143 = por %p141, %p142
    %p144 = scmp.ne.s32.totalorder %s132, %s133
    %p145 = scmp.eq.s32.totalorder %s20, 3
    %p146 = por %p144, %p145
    %p148 = scmp.ne.s32.totalorder %s133, %s147
    %p149 = scmp.eq.s32.totalorder %s20, 0
    %p150 = por %p148, %p149
    %s151 = ssub.s32 %s21, %s33
    %s152 = ssub.s32 %s22, %s29
    %s153 = sor.u32 %s151, %s152
    %p154 = scmp.eq.s32.totalorder %s153, 0
    %s156 = sadd.s32 %s155, 1
    %s157 = scalar_select %p154, %s155, %s156
    %p160 = pneg %p154
    %p161 = scmp.eq.s32.totalorder %s14, 3
    %p162 = por %p160, %p161
    %p163 = scmp.ne.s32.totalorder %s155, %s158
    %p164 = scmp.eq.s32.totalorder %s14, 0
    %p165 = por %p163, %p164
    %p166 = scmp.ne.s32.totalorder %s155, %s158
    %p167 = scmp.eq.s32.totalorder %s19, 3
    %p168 = por %p166, %p167
    %p169 = scmp.ne.s32.totalorder %s158, %s159
    %p170 = scmp.eq.s32.totalorder %s19, 0
    %p171 = por %p169, %p170
    %p172 = scmp.ne.s32.totalorder %s158, %s159
    %p173 = scmp.eq.s32.totalorder %s20, 3
    %p174 = por %p172, %p173
    %p176 = scmp.ne.s32.totalorder %s159, %s175
    %p177 = scmp.eq.s32.totalorder %s20, 0
    %p178 = por %p176, %p177
    %s179 = ssub.s32 %s21, %s33
    %s180 = ssub.s32 %s22, %s29
    %s181 = sor.u32 %s179, %s180
    %p182 = scmp.eq.s32.totalorder %s181, 0
    %s184 = sadd.s32 %s183, 1
    %s185 = scalar_select %p182, %s183, %s184
    %p188 = pneg %p182
    %p189 = scmp.eq.s32.totalorder %s14, 3
    %p190 = por %p188, %p189
    %p191 = scmp.ne.s32.totalorder %s183, %s186
    %p192 = scmp.eq.s32.totalorder %s14, 0
    %p193 = por %p191, %p192
    %p194 = scmp.ne.s32.totalorder %s183, %s186
    %p195 = scmp.eq.s32.totalorder %s19, 3
    %p196 = por %p194, %p195
    %p197 = scmp.ne.s32.totalorder %s186, %s187
    %p198 = scmp.eq.s32.totalorder %s19, 0
    %p199 = por %p197, %p198
    %p200 = scmp.ne.s32.totalorder %s186, %s187
    %p201 = scmp.eq.s32.totalorder %s20, 3
    %p202 = por %p200, %p201
    %p204 = scmp.ne.s32.totalorder %s187, %s203
    %p205 = scmp.eq.s32.totalorder %s20, 0
    %p206 = por %p204, %p205
    %s207 = ssub.s32 %s21, %s33
    %s208 = ssub.s32 %s22, %s29
    %s209 = sor.u32 %s207, %s208
    %p210 = scmp.eq.s32.totalorder %s209, 0
    %s212 = sadd.s32 %s211, 1
    %s213 = scalar_select %p210, %s211, %s212
    %p216 = pneg %p210
    %p217 = scmp.eq.s32.totalorder %s14, 3
    %p218 = por %p216, %p217
    %p219 = scmp.ne.s32.totalorder %s211, %s214
    %p220 = scmp.eq.s32.totalorder %s14, 0
    %p221 = por %p219, %p220
    %p222 = scmp.ne.s32.totalorder %s211, %s214
    %p223 = scmp.eq.s32.totalorder %s19, 3
    %p224 = por %p222, %p223
    %p225 = scmp.ne.s32.totalorder %s214, %s215
    %p226 = scmp.eq.s32.totalorder %s19, 0
    %p227 = por %p225, %p226
    %p228 = scmp.ne.s32.totalorder %s214, %s215
    %p229 = scmp.eq.s32.totalorder %s20, 3
    %p230 = por %p228, %p229
    %p232 = scmp.ne.s32.totalorder %s215, %s231
    %p233 = scmp.eq.s32.totalorder %s20, 0
    %p234 = por %p232, %p233
    %p235 = scmp.le.s32.totalorder 1, %s14
    %p236 = scmp.lt.s32.totalorder %s14, 5
    %p237 = pnand %p235, %p236
    %p238 = pneg %p237
    // Predicated region
    $region9: #{generator_forward.7} parent=5 // pred_check
      _
    $region10: #{generator_forward.7} parent=5 // pred_check_branch
      %240 = sbr.rel (%p237) target = $region12
    $region11: #{generator_forward.7} parent=5 // pred_region
      %s241 = ssub.s32 %s14, 1
      // Predicated region
      $region13: #{generator_forward.7} parent=11 // pred_check
        %p242 = pneg %p101
      $region14: #{generator_forward.7} parent=11 // pred_check_branch
        %244 = sbr.rel (%p242) target = $region16
      $region15: #{generator_forward.7} parent=11 // pred_region
        _
      $region16: #{generator_forward.7} parent=11 // pred_fallthru
        _
      // Predicated region
      $region17: #{generator_forward.7} parent=11 // pred_check
        %p245 = pneg %p122
      $region18: #{generator_forward.7} parent=11 // pred_check_branch
        %247 = sbr.rel (%p245) target = $region20
      $region19: #{generator_forward.7} parent=11 // pred_region
        _
      $region20: #{generator_forward.7} parent=11 // pred_fallthru
        _
      // Predicated region
      $region21: #{generator_forward.7} parent=11 // pred_check
        %p248 = pneg %p143
      $region22: #{generator_forward.7} parent=11 // pred_check_branch
        %250 = sbr.rel (%p248) target = $region24
      $region23: #{generator_forward.7} parent=11 // pred_region
        _
      $region24: #{generator_forward.7} parent=11 // pred_fallthru
        _
    $region12: #{generator_forward.7} parent=5 // pred_fallthru
      _
    %p251 = scmp.lt.s32.totalorder %s14, 4
    // Predicated region
    $region25: #{generator_forward.7} parent=5 // pred_check
      %p252 = pneg %p251
    $region26: #{generator_forward.7} parent=5 // pred_check_branch
      %254 = sbr.rel (%p252) target = $region28
    $region27: #{generator_forward.7} parent=5 // pred_region
      // Predicated region
      $region29: #{generator_forward.7} parent=27 // pred_check
        %p255 = pneg %p48
      $region30: #{generator_forward.7} parent=27 // pred_check_branch
        %257 = sbr.rel (%p255) target = $region32
      $region31: #{generator_forward.7} parent=27 // pred_region
        %s258 = smul.u32 16, %s22
        %p259 = scmp.lt.s32.totalorder %s21, 3
        %s260 = scalar_select %p259, %s21, 3
        %p261 = scmp.lt.s32.totalorder %s258, 15
        %s262 = scalar_select %p261, %s258, 15
        %s263 = smul.addr %s262, 2
        %s264 = smul.addr %s260, 32
        %s265 = sadd.s32 %s263, %s264
        %s266 = smul.addr %s265, 4
        %s267 = scalar_lea.vmem %s0, %s266
        %s268 = smul.u32 16, %s22
      $region32: #{generator_forward.7} parent=27 // pred_fallthru
        _
      // Predicated region
      $region33: #{generator_forward.7} parent=27 // pred_check
        %p269 = pneg %p74
      $region34: #{generator_forward.7} parent=27 // pred_check_branch
        %271 = sbr.rel (%p269) target = $region36
      $region35: #{generator_forward.7} parent=27 // pred_region
        %p272 = scmp.lt.s32.totalorder %s21, 3
        %s273 = scalar_select %p272, %s21, 3
        %s274 = smul.addr %s273, 32
        %s275 = smul.addr %s274, 4
        %s276 = scalar_lea.vmem %s1, %s275
      $region36: #{generator_forward.7} parent=27 // pred_fallthru
        _
    $region28: #{generator_forward.7} parent=5 // pred_fallthru
      _
    %p277 = scmp.le.s32.totalorder 1, %s14
    %p278 = scmp.lt.s32.totalorder %s14, 5
    %p279 = pnand %p277, %p278
    %p280 = pneg %p279
    // Predicated region
    $region37: #{generator_forward.7} parent=5 // pred_check
      _
    $region38: #{generator_forward.7} parent=5 // pred_check_branch
      %282 = sbr.rel (%p279) target = $region40
    $region39: #{generator_forward.7} parent=5 // pred_region
      %s283 = ssub.s32 %s14, 1
      %s284 = smul.u32 16, %s24
      %p285 = scmp.lt.s32.totalorder %s23, 3
      %s286 = scalar_select %p285, %s23, 3
      %p287 = scmp.lt.s32.totalorder %s284, 15
      %s288 = scalar_select %p287, %s284, 15
      %s289 = smul.addr %s288, 2
      %s290 = smul.addr %s286, 32
      %s291 = sadd.s32 %s289, %s290
      %s292 = smul.addr %s291, 4
      %s293 = scalar_lea.vmem %s0, %s292
      %p294 = pneg %p54
      %p295 = pneg %p51
      %p296 = scmp.lt.s32.totalorder %s23, 3
      %s297 = scalar_select %p296, %s23, 3
      %s298 = smul.addr %s297, 32
      %s299 = smul.addr %s298, 4
      %s300 = scalar_lea.vmem %s1, %s299
      %p301 = pneg %p80
      %p302 = pneg %p77
      %p303 = pneg %p101
      %p304 = pneg %p98
      %p305 = pneg %p122
      %p306 = pneg %p119
      %p307 = pneg %p143
      %p308 = pneg %p140
      %p309 = pneg %p171
      %p310 = pneg %p168
      %s311 = smul.u32 16, %s24
      %p312 = scmp.lt.s32.totalorder %s23, 3
      %s313 = scalar_select %p312, %s23, 3
      %p314 = scmp.lt.s32.totalorder %s311, 15
      %s315 = scalar_select %p314, %s311, 15
      %s316 = smul.addr %s313, 16
      %s317 = sadd.s32 %s315, %s316
      %s318 = smul.addr %s317, 4
      %s319 = scalar_lea.vmem %s5, %s318
      %p320 = pneg %p199
      %p321 = pneg %p196
      %p322 = scmp.lt.s32.totalorder %s23, 3
      %s323 = scalar_select %p322, %s23, 3
      %p324 = scmp.lt.s32.totalorder %s24, 0
      %s325 = scalar_select %p324, %s24, 0
      %s326 = sadd.s32 %s325, %s323
      %s327 = scalar_lea.vmem %s6, %s326
      %p328 = pneg %p227
      %p329 = pneg %p224
      %p330 = scmp.lt.s32.totalorder %s23, 3
      %s331 = scalar_select %p330, %s23, 3
      %p332 = scmp.lt.s32.totalorder %s24, 0
      %s333 = scalar_select %p332, %s24, 0
      %s334 = sadd.s32 %s333, %s331
      %s335 = scalar_lea.vmem %s7, %s334
      %s336 = smul.u32 16, %s24
      %p337 = scmp.lt.s32.totalorder %s23, 3
      %s338 = scalar_select %p337, %s23, 3
      %p339 = scmp.lt.s32.totalorder %s336, 15
      %s340 = scalar_select %p339, %s336, 15
      %s341 = smul.addr %s340, 2
      %s342 = smul.addr %s338, 32
      %s343 = sadd.s32 %s341, %s342
      %s344 = smul.addr %s343, 4
      %s345 = scalar_lea.vmem %s0, %s344
      %s346 = smul.u32 16, %s24
      %p347 = scmp.lt.s32.totalorder %s23, 3
      %s348 = scalar_select %p347, %s23, 3
      %s349 = smul.addr %s348, 32
      %s350 = smul.addr %s349, 4
      %s351 = scalar_lea.vmem %s1, %s350
      %s352 = smul.u32 16, %s24
      %p353 = scmp.lt.s32.totalorder %s23, 3
      %s354 = scalar_select %p353, %s23, 3
      %p355 = scmp.lt.s32.totalorder %s352, 15
      %s356 = scalar_select %p355, %s352, 15
      %s357 = smul.addr %s354, 16
      %s358 = sadd.s32 %s356, %s357
      %s359 = smul.addr %s358, 4
      %s360 = scalar_lea.vmem %s5, %s359
      %s361 = smul.u32 16, %s24
      %p362 = scmp.lt.s32.totalorder %s23, 3
      %s363 = scalar_select %p362, %s23, 3
      %p364 = scmp.lt.s32.totalorder %s24, 0
      %s365 = scalar_select %p364, %s24, 0
      %s366 = sadd.s32 %s365, %s363
      %s367 = scalar_lea.vmem %s6, %s366
      %p368 = scmp.lt.s32.totalorder %s23, 3
      %s369 = scalar_select %p368, %s23, 3
      %p370 = scmp.lt.s32.totalorder %s24, 0
      %s371 = scalar_select %p370, %s24, 0
      %s372 = sadd.s32 %s371, %s369
      %s373 = scalar_lea.vmem %s7, %s372
      %v375 = vld [vmem:[%s345] sm:$0xff]
      %v376 = vld [vmem:[%s345 + $0x8] sm:$0xff]
      %v377 = vld [vmem:[%s345 + $0x10] sm:$0xff]
      %v378 = vld [vmem:[%s345 + $0x18] sm:$0xff]
      %v379 = vld [vmem:[%s345 + $0x20] sm:$0xff]
      %v380 = vld [vmem:[%s345 + $0x28] sm:$0xff]
      %v381 = vld [vmem:[%s345 + $0x30] sm:$0xff]
      %v382 = vld [vmem:[%s345 + $0x38] sm:$0xff]
      %v383 = vld [vmem:[%s345 + $0x40] sm:$0xff]
      %v384 = vld [vmem:[%s345 + $0x48] sm:$0xff]
      %v385 = vld [vmem:[%s345 + $0x50] sm:$0xff]
      %v386 = vld [vmem:[%s345 + $0x58] sm:$0xff]
      %v387 = vld [vmem:[%s345 + $0x60] sm:$0xff]
      %v388 = vld [vmem:[%s345 + $0x68] sm:$0xff]
      %v389 = vld [vmem:[%s345 + $0x70] sm:$0xff]
      %v390 = vld [vmem:[%s345 + $0x78] sm:$0xff]
      %v391 = vunpack.c.l.bf16 %v375
      %v392 = vunpack.c.h.bf16 %v375
      %v393 = vunpack.c.l.bf16 %v376
      %v394 = vunpack.c.h.bf16 %v376
      %v395 = vunpack.c.l.bf16 %v377
      %v396 = vunpack.c.h.bf16 %v377
      %v397 = vunpack.c.l.bf16 %v378
      %v398 = vunpack.c.h.bf16 %v378
      %v399 = vunpack.c.l.bf16 %v379
      %v400 = vunpack.c.h.bf16 %v379
      %v401 = vunpack.c.l.bf16 %v380
      %v402 = vunpack.c.h.bf16 %v380
      %v403 = vunpack.c.l.bf16 %v381
      %v404 = vunpack.c.h.bf16 %v381
      %v405 = vunpack.c.l.bf16 %v382
      %v406 = vunpack.c.h.bf16 %v382
      %v407 = vunpack.c.l.bf16 %v383
      %v408 = vunpack.c.h.bf16 %v383
      %v409 = vunpack.c.l.bf16 %v384
      %v410 = vunpack.c.h.bf16 %v384
      %v411 = vunpack.c.l.bf16 %v385
      %v412 = vunpack.c.h.bf16 %v385
      %v413 = vunpack.c.l.bf16 %v386
      %v414 = vunpack.c.h.bf16 %v386
      %v415 = vunpack.c.l.bf16 %v387
      %v416 = vunpack.c.h.bf16 %v387
      %v417 = vunpack.c.l.bf16 %v388
      %v418 = vunpack.c.h.bf16 %v388
      %v419 = vunpack.c.l.bf16 %v389
      %v420 = vunpack.c.h.bf16 %v389
      %v421 = vunpack.c.l.bf16 %v390
      %v422 = vunpack.c.h.bf16 %v390
      %v423 = vld [vmem:[%s3] sm:$0x3]
      %v425 = vlaneseq
      %v426 = vshrl.u32 %v425, 7
      %v427 = vsub.s32 0, %v426
      %v428 = vrot.slane %v423, %v427
      %v429 = vlaneseq
      %v430 = vshrl.u32 %v429, 7
      %v431 = vsub.s32 1, %v430
      %v432 = vrot.slane %v423, %v431
      %v435 = vmul.f32 %v391, %v428
      %v436 = vmul.f32 %v392, %v432
      %v437 = vmul.f32 %v393, %v428
      %v438 = vmul.f32 %v394, %v432
      %v439 = vmul.f32 %v395, %v428
      %v440 = vmul.f32 %v396, %v432
      %v441 = vmul.f32 %v397, %v428
      %v442 = vmul.f32 %v398, %v432
      %v443 = vmul.f32 %v399, %v428
      %v444 = vmul.f32 %v400, %v432
      %v445 = vmul.f32 %v401, %v428
      %v446 = vmul.f32 %v402, %v432
      %v447 = vmul.f32 %v403, %v428
      %v448 = vmul.f32 %v404, %v432
      %v449 = vmul.f32 %v405, %v428
      %v450 = vmul.f32 %v406, %v432
      %v451 = vmul.f32 %v407, %v428
      %v452 = vmul.f32 %v408, %v432
      %v453 = vmul.f32 %v409, %v428
      %v454 = vmul.f32 %v410, %v432
      %v455 = vmul.f32 %v411, %v428
      %v456 = vmul.f32 %v412, %v432
      %v457 = vmul.f32 %v413, %v428
      %v458 = vmul.f32 %v414, %v432
      %v459 = vmul.f32 %v415, %v428
      %v460 = vmul.f32 %v416, %v432
      %v461 = vmul.f32 %v417, %v428
      %v462 = vmul.f32 %v418, %v432
      %v463 = vmul.f32 %v419, %v428
      %v464 = vmul.f32 %v420, %v432
      %v465 = vmul.f32 %v421, %v428
      %v466 = vmul.f32 %v422, %v432
      %v467 = vld [vmem:[%s4] sm:$0x3]
      %v469 = vlaneseq
      %v470 = vshrl.u32 %v469, 7
      %v471 = vsub.s32 0, %v470
      %v472 = vrot.slane %v467, %v471
      %v473 = vlaneseq
      %v474 = vshrl.u32 %v473, 7
      %v475 = vsub.s32 1, %v474
      %v476 = vrot.slane %v467, %v475
      %v479 = vadd.f32 %v435, %v472
      %v480 = vadd.f32 %v436, %v476
      %v481 = vadd.f32 %v437, %v472
      %v482 = vadd.f32 %v438, %v476
      %v483 = vadd.f32 %v439, %v472
      %v484 = vadd.f32 %v440, %v476
      %v485 = vadd.f32 %v441, %v472
      %v486 = vadd.f32 %v442, %v476
      %v487 = vadd.f32 %v443, %v472
      %v488 = vadd.f32 %v444, %v476
      %v489 = vadd.f32 %v445, %v472
      %v490 = vadd.f32 %v446, %v476
      %v491 = vadd.f32 %v447, %v472
      %v492 = vadd.f32 %v448, %v476
      %v493 = vadd.f32 %v449, %v472
      %v494 = vadd.f32 %v450, %v476
      %v495 = vadd.f32 %v451, %v472
      %v496 = vadd.f32 %v452, %v476
      %v497 = vadd.f32 %v453, %v472
      %v498 = vadd.f32 %v454, %v476
      %v499 = vadd.f32 %v455, %v472
      %v500 = vadd.f32 %v456, %v476
      %v501 = vadd.f32 %v457, %v472
      %v502 = vadd.f32 %v458, %v476
      %v503 = vadd.f32 %v459, %v472
      %v504 = vadd.f32 %v460, %v476
      %v505 = vadd.f32 %v461, %v472
      %v506 = vadd.f32 %v462, %v476
      %v507 = vadd.f32 %v463, %v472
      %v508 = vadd.f32 %v464, %v476
      %v509 = vadd.f32 %v465, %v472
      %v510 = vadd.f32 %v466, %v476
      %v511 = vmax.f32 %v479, 0.0
      %v512 = vmax.f32 %v480, 0.0
      %v513 = vmax.f32 %v481, 0.0
      %v514 = vmax.f32 %v482, 0.0
      %v515 = vmax.f32 %v483, 0.0
      %v516 = vmax.f32 %v484, 0.0
      %v517 = vmax.f32 %v485, 0.0
      %v518 = vmax.f32 %v486, 0.0
      %v519 = vmax.f32 %v487, 0.0
      %v520 = vmax.f32 %v488, 0.0
      %v521 = vmax.f32 %v489, 0.0
      %v522 = vmax.f32 %v490, 0.0
      %v523 = vmax.f32 %v491, 0.0
      %v524 = vmax.f32 %v492, 0.0
      %v525 = vmax.f32 %v493, 0.0
      %v526 = vmax.f32 %v494, 0.0
      %v527 = vmax.f32 %v495, 0.0
      %v528 = vmax.f32 %v496, 0.0
      %v529 = vmax.f32 %v497, 0.0
      %v530 = vmax.f32 %v498, 0.0
      %v531 = vmax.f32 %v499, 0.0
      %v532 = vmax.f32 %v500, 0.0
      %v533 = vmax.f32 %v501, 0.0
      %v534 = vmax.f32 %v502, 0.0
      %v535 = vmax.f32 %v503, 0.0
      %v536 = vmax.f32 %v504, 0.0
      %v537 = vmax.f32 %v505, 0.0
      %v538 = vmax.f32 %v506, 0.0
      %v539 = vmax.f32 %v507, 0.0
      %v540 = vmax.f32 %v508, 0.0
      %v541 = vmax.f32 %v509, 0.0
      %v542 = vmax.f32 %v510, 0.0
      %v543 = vpack.c.bf16 %v513, %v511
      %v544 = vpack.c.bf16 %v514, %v512
      %v545 = vpack.c.bf16 %v517, %v515
      %v546 = vpack.c.bf16 %v518, %v516
      %v547 = vpack.c.bf16 %v521, %v519
      %v548 = vpack.c.bf16 %v522, %v520
      %v549 = vpack.c.bf16 %v525, %v523
      %v550 = vpack.c.bf16 %v526, %v524
      %v551 = vpack.c.bf16 %v529, %v527
      %v552 = vpack.c.bf16 %v530, %v528
      %v553 = vpack.c.bf16 %v533, %v531
      %v554 = vpack.c.bf16 %v534, %v532
      %v555 = vpack.c.bf16 %v537, %v535
      %v556 = vpack.c.bf16 %v538, %v536
      %v557 = vpack.c.bf16 %v541, %v539
      %v558 = vpack.c.bf16 %v542, %v540
      %v559 = vld [vmem:[%s351] sm:$0xf]
      %v560 = vld [vmem:[%s351 + $0x4] sm:$0xf]
      %v561 = vld [vmem:[%s351 + $0x8] sm:$0xf]
      %v562 = vld [vmem:[%s351 + $0xc] sm:$0xf]
      %v563 = vld [vmem:[%s351 + $0x10] sm:$0xf]
      %v564 = vld [vmem:[%s351 + $0x14] sm:$0xf]
      %v565 = vld [vmem:[%s351 + $0x18] sm:$0xf]
      %v566 = vld [vmem:[%s351 + $0x1c] sm:$0xf]
      %v567 = vld [vmem:[%s351 + $0x20] sm:$0xf]
      %v568 = vld [vmem:[%s351 + $0x24] sm:$0xf]
      %v569 = vld [vmem:[%s351 + $0x28] sm:$0xf]
      %v570 = vld [vmem:[%s351 + $0x2c] sm:$0xf]
      %v571 = vld [vmem:[%s351 + $0x30] sm:$0xf]
      %v572 = vld [vmem:[%s351 + $0x34] sm:$0xf]
      %v573 = vld [vmem:[%s351 + $0x38] sm:$0xf]
      %v574 = vld [vmem:[%s351 + $0x3c] sm:$0xf]
      %v575 = vld [vmem:[%s351 + $0x40] sm:$0xf]
      %v576 = vld [vmem:[%s351 + $0x44] sm:$0xf]
      %v577 = vld [vmem:[%s351 + $0x48] sm:$0xf]
      %v578 = vld [vmem:[%s351 + $0x4c] sm:$0xf]
      %v579 = vld [vmem:[%s351 + $0x50] sm:$0xf]
      %v580 = vld [vmem:[%s351 + $0x54] sm:$0xf]
      %v581 = vld [vmem:[%s351 + $0x58] sm:$0xf]
      %v582 = vld [vmem:[%s351 + $0x5c] sm:$0xf]
      %v583 = vld [vmem:[%s351 + $0x60] sm:$0xf]
      %v584 = vld [vmem:[%s351 + $0x64] sm:$0xf]
      %v585 = vld [vmem:[%s351 + $0x68] sm:$0xf]
      %v586 = vld [vmem:[%s351 + $0x6c] sm:$0xf]
      %v587 = vld [vmem:[%s351 + $0x70] sm:$0xf]
      %v588 = vld [vmem:[%s351 + $0x74] sm:$0xf]
      %v589 = vld [vmem:[%s351 + $0x78] sm:$0xf]
      %v590 = vld [vmem:[%s351 + $0x7c] sm:$0xf]
      %v591 = vld [vmem:[%s2] sm:$0x1]
      %v593 = vlaneseq
      %v594 = vshrl.u32 %v593, 7
      %v595 = vsub.s32 0, %v594
      %v596 = vrot.slane %v591, %v595
      %v630 = vunpack.c.l.b16 %v559
      %v631 = vunpack.c.l.b16 %v560
      %v632 = vunpack.c.l.b16 %v561
      %v633 = vunpack.c.l.b16 %v562
      %v634 = vunpack.c.l.b16 %v563
      %v635 = vunpack.c.l.b16 %v564
      %v636 = vunpack.c.l.b16 %v565
      %v637 = vunpack.c.l.b16 %v566
      %v638 = vunpack.c.l.b16 %v567
      %v639 = vunpack.c.l.b16 %v568
      %v640 = vunpack.c.l.b16 %v569
      %v641 = vunpack.c.l.b16 %v570
      %v642 = vunpack.c.l.b16 %v571
      %v643 = vunpack.c.l.b16 %v572
      %v644 = vunpack.c.l.b16 %v573
      %v645 = vunpack.c.l.b16 %v574
      %v646 = vunpack.c.l.b16 %v575
      %v647 = vunpack.c.l.b16 %v576
      %v648 = vunpack.c.l.b16 %v577
      %v649 = vunpack.c.l.b16 %v578
      %v650 = vunpack.c.l.b16 %v579
      %v651 = vunpack.c.l.b16 %v580
      %v652 = vunpack.c.l.b16 %v581
      %v653 = vunpack.c.l.b16 %v582
      %v654 = vunpack.c.l.b16 %v583
      %v655 = vunpack.c.l.b16 %v584
      %v656 = vunpack.c.l.b16 %v585
      %v657 = vunpack.c.l.b16 %v586
      %v658 = vunpack.c.l.b16 %v587
      %v659 = vunpack.c.l.b16 %v588
      %v660 = vunpack.c.l.b16 %v589
      %v661 = vunpack.c.l.b16 %v590
      %v662 = vpack.c.b16 %v631, %v630
      %v663 = vpack.c.b16 %v633, %v632
      %v664 = vpack.c.b16 %v635, %v634
      %v665 = vpack.c.b16 %v637, %v636
      %v666 = vpack.c.b16 %v639, %v638
      %v667 = vpack.c.b16 %v641, %v640
      %v668 = vpack.c.b16 %v643, %v642
      %v669 = vpack.c.b16 %v645, %v644
      %v670 = vpack.c.b16 %v647, %v646
      %v671 = vpack.c.b16 %v649, %v648
      %v672 = vpack.c.b16 %v651, %v650
      %v673 = vpack.c.b16 %v653, %v652
      %v674 = vpack.c.b16 %v655, %v654
      %v675 = vpack.c.b16 %v657, %v656
      %v676 = vpack.c.b16 %v659, %v658
      %v677 = vpack.c.b16 %v661, %v660
      %694 = vmatprep.subr.bf16.mxu0 0
      %695 = vmatpush1.bf16.msra.mxu0 %v669
      %696 = vmatprep.subr.bf16.mxu0 0
      %697 = vmatpush1.bf16.msra.mxu0 %v668
      %698 = vmatprep.subr.bf16.mxu0 0
      %699 = vmatpush1.bf16.msra.mxu0 %v667
      %700 = vmatprep.subr.bf16.mxu0 0
      %701 = vmatpush1.bf16.msra.mxu0 %v666
      %702 = vmatprep.subr.bf16.mxu0 0
      %703 = vmatpush1.bf16.msra.mxu0 %v665
      %704 = vmatprep.subr.bf16.mxu0 0
      %705 = vmatpush1.bf16.msra.mxu0 %v664
      %706 = vmatprep.subr.bf16.mxu0 0
      %707 = vmatpush1.bf16.msra.mxu0 %v663
      %708 = vmatprep.subr.bf16.mxu0 0
      %709 = vmatpush1.bf16.msra.mxu0 %v662
      %710 = vmatprep.subr.bf16.mxu0 0
      %711 = vmatpush2.bf16.msra.mxu0 %v677
      %712 = vmatprep.subr.bf16.mxu0 0
      %713 = vmatpush2.bf16.msra.mxu0 %v676
      %714 = vmatprep.subr.bf16.mxu0 0
      %715 = vmatpush2.bf16.msra.mxu0 %v675
      %716 = vmatprep.subr.bf16.mxu0 0
      %717 = vmatpush2.bf16.msra.mxu0 %v674
      %718 = vmatprep.subr.bf16.mxu0 0
      %719 = vmatpush2.bf16.msra.mxu0 %v673
      %720 = vmatprep.subr.bf16.mxu0 0
      %721 = vmatpush2.bf16.msra.mxu0 %v672
      %722 = vmatprep.subr.bf16.mxu0 0
      %723 = vmatpush2.bf16.msra.mxu0 %v671
      %724 = vmatprep.subr.bf16.mxu0 0
      %725 = vmatpush2.bf16.msra.mxu0 %v670
      %726 = vmatprep.mubr.bf16.mxu0 %v544
      %727 = vmatmul.mubr.bf16.gmra.mxu0 %v543
      %v728 = vpop.f32.mrf.mxu0
      %v729 = vadd.f32 %v596, %v728
      %v730 = vpop.f32.mrf.mxu0
      %v731 = vpop.f32.mrf.mxu0
      %v732 = vadd.f32 %v596, %v731
      %v733 = vpop.f32.mrf.mxu0
      %734 = vmatprep.mubr.bf16.mxu0 %v546
      %735 = vmatmul.mubr.bf16.gmra.mxu0 %v545
      %v736 = vpop.f32.mrf.mxu0
      %v737 = vadd.f32 %v596, %v736
      %v738 = vpop.f32.mrf.mxu0
      %v739 = vpop.f32.mrf.mxu0
      %v740 = vadd.f32 %v596, %v739
      %v741 = vpop.f32.mrf.mxu0
      %742 = vmatprep.mubr.bf16.mxu0 %v548
      %743 = vmatmul.mubr.bf16.gmra.mxu0 %v547
      %v744 = vpop.f32.mrf.mxu0
      %v745 = vadd.f32 %v596, %v744
      %v746 = vpop.f32.mrf.mxu0
      %v747 = vpop.f32.mrf.mxu0
      %v748 = vadd.f32 %v596, %v747
      %v749 = vpop.f32.mrf.mxu0
      %750 = vmatprep.mubr.bf16.mxu0 %v550
      %751 = vmatmul.mubr.bf16.gmra.mxu0 %v549
      %v752 = vpop.f32.mrf.mxu0
      %v753 = vadd.f32 %v596, %v752
      %v754 = vpop.f32.mrf.mxu0
      %v755 = vpop.f32.mrf.mxu0
      %v756 = vadd.f32 %v596, %v755
      %v757 = vpop.f32.mrf.mxu0
      %758 = vmatprep.mubr.bf16.mxu0 %v552
      %759 = vmatmul.mubr.bf16.gmra.mxu0 %v551
      %v760 = vpop.f32.mrf.mxu0
      %v761 = vadd.f32 %v596, %v760
      %v762 = vpop.f32.mrf.mxu0
      %v763 = vpop.f32.mrf.mxu0
      %v764 = vadd.f32 %v596, %v763
      %v765 = vpop.f32.mrf.mxu0
      %766 = vmatprep.mubr.bf16.mxu0 %v554
      %767 = vmatmul.mubr.bf16.gmra.mxu0 %v553
      %v768 = vpop.f32.mrf.mxu0
      %v769 = vadd.f32 %v596, %v768
      %v770 = vpop.f32.mrf.mxu0
      %v771 = vpop.f32.mrf.mxu0
      %v772 = vadd.f32 %v596, %v771
      %v773 = vpop.f32.mrf.mxu0
      %774 = vmatprep.mubr.bf16.mxu0 %v556
      %775 = vmatmul.mubr.bf16.gmra.mxu0 %v555
      %v776 = vpop.f32.mrf.mxu0
      %v777 = vadd.f32 %v596, %v776
      %v778 = vpop.f32.mrf.mxu0
      %v779 = vpop.f32.mrf.mxu0
      %v780 = vadd.f32 %v596, %v779
      %v781 = vpop.f32.mrf.mxu0
      %782 = vmatprep.mubr.bf16.mxu0 %v558
      %783 = vmatmul.mubr.bf16.gmra.mxu0 %v557
      %v784 = vpop.f32.mrf.mxu0
      %v785 = vadd.f32 %v596, %v784
      %v786 = vpop.f32.mrf.mxu0
      %v787 = vpop.f32.mrf.mxu0
      %v788 = vadd.f32 %v596, %v787
      %v789 = vpop.f32.mrf.mxu0
      %790 = vdwg.mxu0
      %vm791 = vcmask 261120
      %v792 = vsel %vm791, %v729, 0.0
      %v793 = vsel %vm791, %v732, 0.0
      %v794 = vadd.f32 %v792, %v793
      %v795 = vsel %vm791, %v737, 0.0
      %v796 = vadd.f32 %v794, %v795
      %v797 = vsel %vm791, %v740, 0.0
      %v798 = vadd.f32 %v796, %v797
      %v799 = vsel %vm791, %v745, 0.0
      %v800 = vadd.f32 %v798, %v799
      %v801 = vsel %vm791, %v748, 0.0
      %v802 = vadd.f32 %v800, %v801
      %v803 = vsel %vm791, %v753, 0.0
      %v804 = vadd.f32 %v802, %v803
      %v805 = vsel %vm791, %v756, 0.0
      %v806 = vadd.f32 %v804, %v805
      %v807 = vsel %vm791, %v761, 0.0
      %v808 = vadd.f32 %v806, %v807
      %v809 = vsel %vm791, %v764, 0.0
      %v810 = vadd.f32 %v808, %v809
      %v811 = vsel %vm791, %v769, 0.0
      %v812 = vadd.f32 %v810, %v811
      %v813 = vsel %vm791, %v772, 0.0
      %v814 = vadd.f32 %v812, %v813
      %v815 = vsel %vm791, %v777, 0.0
      %v816 = vadd.f32 %v814, %v815
      %v817 = vsel %vm791, %v780, 0.0
      %v818 = vadd.f32 %v816, %v817
      %v819 = vsel %vm791, %v785, 0.0
      %v820 = vadd.f32 %v818, %v819
      %v821 = vsel %vm791, %v788, 0.0
      %v822 = vadd.f32 %v820, %v821
      %v823 = vrot.slane %v822, 4
      %v824 = vadd.f32 %v822, %v823
      %v825 = vrot.slane %v824, 2
      %v826 = vadd.f32 %v824, %v825
      %v827 = vrot.slane %v826, 1
      %v828 = vadd.f32 %v826, %v827
      %vm829 = vcmask 253952
      %830 = vst.msk [vmem:[%s367] sm:$0x1] %vm829, %v828
      %v831 = vmul.f32 %v729, %v729
      %v832 = vmul.f32 %v732, %v732
      %v833 = vmul.f32 %v737, %v737
      %v834 = vmul.f32 %v740, %v740
      %v835 = vmul.f32 %v745, %v745
      %v836 = vmul.f32 %v748, %v748
      %v837 = vmul.f32 %v753, %v753
      %v838 = vmul.f32 %v756, %v756
      %v839 = vmul.f32 %v761, %v761
      %v840 = vmul.f32 %v764, %v764
      %v841 = vmul.f32 %v769, %v769
      %v842 = vmul.f32 %v772, %v772
      %v843 = vmul.f32 %v777, %v777
      %v844 = vmul.f32 %v780, %v780
      %v845 = vmul.f32 %v785, %v785
      %v846 = vmul.f32 %v788, %v788
      %v847 = vsel %vm791, %v831, 0.0
      %v848 = vsel %vm791, %v832, 0.0
      %v849 = vadd.f32 %v847, %v848
      %v850 = vsel %vm791, %v833, 0.0
      %v851 = vadd.f32 %v849, %v850
      %v852 = vsel %vm791, %v834, 0.0
      %v853 = vadd.f32 %v851, %v852
      %v854 = vsel %vm791, %v835, 0.0
      %v855 = vadd.f32 %v853, %v854
      %v856 = vsel %vm791, %v836, 0.0
      %v857 = vadd.f32 %v855, %v856
      %v858 = vsel %vm791, %v837, 0.0
      %v859 = vadd.f32 %v857, %v858
      %v860 = vsel %vm791, %v838, 0.0
      %v861 = vadd.f32 %v859, %v860
      %v862 = vsel %vm791, %v839, 0.0
      %v863 = vadd.f32 %v861, %v862
      %v864 = vsel %vm791, %v840, 0.0
      %v865 = vadd.f32 %v863, %v864
      %v866 = vsel %vm791, %v841, 0.0
      %v867 = vadd.f32 %v865, %v866
      %v868 = vsel %vm791, %v842, 0.0
      %v869 = vadd.f32 %v867, %v868
      %v870 = vsel %vm791, %v843, 0.0
      %v871 = vadd.f32 %v869, %v870
      %v872 = vsel %vm791, %v844, 0.0
      %v873 = vadd.f32 %v871, %v872
      %v874 = vsel %vm791, %v845, 0.0
      %v875 = vadd.f32 %v873, %v874
      %v876 = vsel %vm791, %v846, 0.0
      %v877 = vadd.f32 %v875, %v876
      %v878 = vrot.slane %v877, 4
      %v879 = vadd.f32 %v877, %v878
      %v880 = vrot.slane %v879, 2
      %v881 = vadd.f32 %v879, %v880
      %v882 = vrot.slane %v881, 1
      %v883 = vadd.f32 %v881, %v882
      %884 = vst.msk [vmem:[%s373] sm:$0x1] %vm829, %v883
      %v885 = vpack.c.bf16 %v732, %v729
      %v886 = vpack.c.bf16 %v740, %v737
      %v887 = vpack.c.bf16 %v748, %v745
      %v888 = vpack.c.bf16 %v756, %v753
      %v889 = vpack.c.bf16 %v764, %v761
      %v890 = vpack.c.bf16 %v772, %v769
      %v891 = vpack.c.bf16 %v780, %v777
      %v892 = vpack.c.bf16 %v788, %v785
      %v901 = vunpack.c.l.b16 %v885
      %v902 = vunpack.c.h.b16 %v885
      %v903 = vunpack.c.l.b16 %v886
      %v904 = vunpack.c.h.b16 %v886
      %v905 = vunpack.c.l.b16 %v887
      %v906 = vunpack.c.h.b16 %v887
      %v907 = vunpack.c.l.b16 %v888
      %v908 = vunpack.c.h.b16 %v888
      %v909 = vunpack.c.l.b16 %v889
      %v910 = vunpack.c.h.b16 %v889
      %v911 = vunpack.c.l.b16 %v890
      %v912 = vunpack.c.h.b16 %v890
      %v913 = vunpack.c.l.b16 %v891
      %v914 = vunpack.c.h.b16 %v891
      %v915 = vunpack.c.l.b16 %v892
      %v916 = vunpack.c.h.b16 %v892
      %v917 = vpack.c.b16 %v901, %v901
      %v918 = vpack.c.b16 %v902, %v902
      %v919 = vpack.c.b16 %v903, %v903
      %v920 = vpack.c.b16 %v904, %v904
      %v921 = vpack.c.b16 %v905, %v905
      %v922 = vpack.c.b16 %v906, %v906
      %v923 = vpack.c.b16 %v907, %v907
      %v924 = vpack.c.b16 %v908, %v908
      %v925 = vpack.c.b16 %v909, %v909
      %v926 = vpack.c.b16 %v910, %v910
      %v927 = vpack.c.b16 %v911, %v911
      %v928 = vpack.c.b16 %v912, %v912
      %v929 = vpack.c.b16 %v913, %v913
      %v930 = vpack.c.b16 %v914, %v914
      %v931 = vpack.c.b16 %v915, %v915
      %v932 = vpack.c.b16 %v916, %v916
      %vm949 = vcmask 257024
      %950 = vst.msk [vmem:[%s360] sm:$0xf] %vm949, %v917
      %951 = vst.msk [vmem:[%s360 + $0x4] sm:$0xf] %vm949, %v918
      %952 = vst.msk [vmem:[%s360 + $0x8] sm:$0xf] %vm949, %v919
      %953 = vst.msk [vmem:[%s360 + $0xc] sm:$0xf] %vm949, %v920
      %954 = vst.msk [vmem:[%s360 + $0x10] sm:$0xf] %vm949, %v921
      %955 = vst.msk [vmem:[%s360 + $0x14] sm:$0xf] %vm949, %v922
      %956 = vst.msk [vmem:[%s360 + $0x18] sm:$0xf] %vm949, %v923
      %957 = vst.msk [vmem:[%s360 + $0x1c] sm:$0xf] %vm949, %v924
      %958 = vst.msk [vmem:[%s360 + $0x20] sm:$0xf] %vm949, %v925
      %959 = vst.msk [vmem:[%s360 + $0x24] sm:$0xf] %vm949, %v926
      %960 = vst.msk [vmem:[%s360 + $0x28] sm:$0xf] %vm949, %v927
      %961 = vst.msk [vmem:[%s360 + $0x2c] sm:$0xf] %vm949, %v928
      %962 = vst.msk [vmem:[%s360 + $0x30] sm:$0xf] %vm949, %v929
      %963 = vst.msk [vmem:[%s360 + $0x34] sm:$0xf] %vm949, %v930
      %964 = vst.msk [vmem:[%s360 + $0x38] sm:$0xf] %vm949, %v931
      %965 = vst.msk [vmem:[%s360 + $0x3c] sm:$0xf] %vm949, %v932
      %s966 = smul.u32 16, %s24
      %p967 = scmp.lt.s32.totalorder %s23, 3
      %s968 = scalar_select %p967, %s23, 3
      %p969 = scmp.lt.s32.totalorder %s966, 15
      %s970 = scalar_select %p969, %s966, 15
      %s971 = smul.addr %s968, 16
      %s972 = sadd.s32 %s970, %s971
      %s973 = smul.addr %s972, 4
      %s974 = scalar_lea.vmem %s5, %s973
      %p975 = scmp.lt.s32.totalorder %s23, 3
      %s976 = scalar_select %p975, %s23, 3
      %p977 = scmp.lt.s32.totalorder %s24, 0
      %s978 = scalar_select %p977, %s24, 0
      %s979 = sadd.s32 %s978, %s976
      %s980 = scalar_lea.vmem %s6, %s979
      %p981 = scmp.lt.s32.totalorder %s23, 3
      %s982 = scalar_select %p981, %s23, 3
      %p983 = scmp.lt.s32.totalorder %s24, 0
      %s984 = scalar_select %p983, %s24, 0
      %s985 = sadd.s32 %s984, %s982
      %s986 = scalar_lea.vmem %s7, %s985
      // Predicated region
      $region41: #{generator_forward.7} parent=39 // pred_check
        %p987 = pneg %p168
      $region42: #{generator_forward.7} parent=39 // pred_check_branch
        %989 = sbr.rel (%p987) target = $region44
      $region43: #{generator_forward.7} parent=39 // pred_region
        %s990 = smul.u32 16, %s24
      $region44: #{generator_forward.7} parent=39 // pred_fallthru
        _
      // Predicated region
      $region45: #{generator_forward.7} parent=39 // pred_check
        %p991 = pneg %p196
      $region46: #{generator_forward.7} parent=39 // pred_check_branch
        %993 = sbr.rel (%p991) target = $region48
      $region47: #{generator_forward.7} parent=39 // pred_region
        _
      $region48: #{generator_forward.7} parent=39 // pred_fallthru
        _
      // Predicated region
      $region49: #{generator_forward.7} parent=39 // pred_check
        %p994 = pneg %p224
      $region50: #{generator_forward.7} parent=39 // pred_check_branch
        %996 = sbr.rel (%p994) target = $region52
      $region51: #{generator_forward.7} parent=39 // pred_region
        _
      $region52: #{generator_forward.7} parent=39 // pred_fallthru
        _
    $region40: #{generator_forward.7} parent=5 // pred_fallthru
      _
    %p997 = scmp.le.s32.totalorder 2, %s14
    // Predicated region
    $region53: #{generator_forward.7} parent=5 // pred_check
      %p998 = pneg %p997
    $region54: #{generator_forward.7} parent=5 // pred_check_branch
      %1000 = sbr.rel (%p998) target = $region56
    $region55: #{generator_forward.7} parent=5 // pred_region
      %s1001 = ssub.s32 %s14, 2
      // Predicated region
      $region57: #{generator_forward.7} parent=55 // pred_check
        %p1002 = pneg %p174
      $region58: #{generator_forward.7} parent=55 // pred_check_branch
        %1004 = sbr.rel (%p1002) target = $region60
      $region59: #{generator_forward.7} parent=55 // pred_region
        %s1005 = smul.u32 16, %s26
        %p1006 = scmp.lt.s32.totalorder %s25, 3
        %s1007 = scalar_select %p1006, %s25, 3
        %p1008 = scmp.lt.s32.totalorder %s1005, 15
        %s1009 = scalar_select %p1008, %s1005, 15
        %s1010 = smul.addr %s1007, 16
        %s1011 = sadd.s32 %s1009, %s1010
        %s1012 = smul.addr %s1011, 4
        %s1013 = scalar_lea.vmem %s5, %s1012
      $region60: #{generator_forward.7} parent=55 // pred_fallthru
        _
      // Predicated region
      $region61: #{generator_forward.7} parent=55 // pred_check
        %p1014 = pneg %p202
      $region62: #{generator_forward.7} parent=55 // pred_check_branch
        %1016 = sbr.rel (%p1014) target = $region64
      $region63: #{generator_forward.7} parent=55 // pred_region
        %p1017 = scmp.lt.s32.totalorder %s25, 3
        %s1018 = scalar_select %p1017, %s25, 3
        %p1019 = scmp.lt.s32.totalorder %s26, 0
        %s1020 = scalar_select %p1019, %s26, 0
        %s1021 = sadd.s32 %s1020, %s1018
        %s1022 = scalar_lea.vmem %s6, %s1021
      $region64: #{generator_forward.7} parent=55 // pred_fallthru
        _
      // Predicated region
      $region65: #{generator_forward.7} parent=55 // pred_check
        %p1023 = pneg %p230
      $region66: #{generator_forward.7} parent=55 // pred_check_branch
        %1025 = sbr.rel (%p1023) target = $region68
      $region67: #{generator_forward.7} parent=55 // pred_region
        %p1026 = scmp.lt.s32.totalorder %s25, 3
        %s1027 = scalar_select %p1026, %s25, 3
        %p1028 = scmp.lt.s32.totalorder %s26, 0
        %s1029 = scalar_select %p1028, %s26, 0
        %s1030 = sadd.s32 %s1029, %s1027
        %s1031 = scalar_lea.vmem %s7, %s1030
      $region68: #{generator_forward.7} parent=55 // pred_fallthru
        _
    $region56: #{generator_forward.7} parent=5 // pred_fallthru
      _
  $region6: #{generator_forward.7} parent=0 // loop_footer
    %s18 = sadd.s32 1, %s14
  $region7: #{generator_forward.7} parent=0 // loop_footer_branch
    %13 = sbr.rel target = $region3
  $region8: #{generator_forward.7} parent=0 // loop_exit
    _

// kernel: tile.77
$region0: #{tile.77}
  #allocation0 [shape = 's32[1]{0}', space=sflag, size = 0x4, scoped, tag = 'scoped memory for tile.77']
  %s0 = inlined_call_operand.vmem [shape: f32[16], index: 0, kind: input, shape index: {}]
  %s1 = inlined_call_operand.vmem [shape: f32[4,16], index: 1, kind: output, shape index: {}]
  // Predicated region
  $region2: #{tile.77} parent=0 // pred_check
    _
  $region3: #{tile.77} parent=0 // pred_check_branch
    %3 = sbr.rel (0) target = $region5
  $region4: #{tile.77} parent=0 // pred_region
    _
  $region5: #{tile.77} parent=0 // pred_fallthru
    _
  %v4 = vld [vmem:[%s0] ss:$0 sm:$0xff]
  %5 = vst [vmem:[%s1] sm:$0xf] %v4

// kernel: tile.79
$region0: #{tile.79}
  %s0 = inlined_call_operand.vmem [shape: f32[4,16], index: 0, kind: input, shape index: {}]
  %s1 = inlined_call_operand.vmem [shape: f32[1,1,64], index: 1, kind: output, shape index: {}]
  $region1: #{tile.79} parent=0
    #allocation0 [shape = 'u8[4096]{0}', space=vmem, size = 0x1000, scoped, tag = 'scoped mem for output reshape']
    #allocation1 [shape = 'u8[4096]{0}', space=vmem, size = 0x1000, scoped, tag = 'scoped mem for input reshape']
    %s3 = sshll.u32 1, 4
    %s4 = ssub.s32 %s3, 1
    %v5 = vld [vmem:[%s0] sm:%s4]
    %6 = vst [vmem:[#allocation1] sm:%s4] %v5
    %v7 = vld [vmem:[#allocation1] sm:$0x1]
    %vm8 = vcmask 130048
    %9 = vst.msk [vmem:[#allocation0] sm:$0x1] %vm8, %v7
    %s10 = scalar_lea.vmem [#allocation1], 3
    %v11 = vld [vmem:[%s10] sm:$0x1]
    %12 = vrot.lane.b32.xlu0 %v11, 48
    %v13 = vpop.permute.xlu0 %12
    %vm14 = vcmask 523648
    %15 = vst.msk [vmem:[#allocation0] sm:$0x1] %vm14, %v13
    %s16 = scalar_lea.vmem [#allocation1], 2
    %v17 = vld [vmem:[%s16] sm:$0x1]
    %18 = vrot.lane.b32.xlu0 %v17, 32
    %v19 = vpop.permute.xlu0 %18
    %vm20 = vcmask 392448
    %21 = vst.msk [vmem:[#allocation0] sm:$0x1] %vm20, %v19
    %s22 = scalar_lea.vmem [#allocation1], 1
    %v23 = vld [vmem:[%s22] sm:$0x1]
    %24 = vrot.lane.b32.xlu0 %v23, 16
    %v25 = vpop.permute.xlu0 %24
    %vm26 = vcmask 261248
    %27 = vst.msk [vmem:[#allocation0] sm:$0x1] %vm26, %v25
    %s29 = sshll.u32 1, 1
    %s30 = ssub.s32 %s29, 1
    %v32 = vld [vmem:[#allocation0] sm:%s30]
    %s33 = sshll.u32 1, 1
    %s34 = ssub.s32 %s33, 1
    %35 = vst [vmem:[%s1] sm:%s34] %v32

// kernel: generator_forward.8
$region0: #{generator_forward.8}
  #allocation0 [shape = 'u32[]', space=smem, size = 0x4, offset = 0x4, fixed_abs, tag = 'smem constant byte address 0x4 - core index']
  #allocation1 [shape = 'u32[144,128]{1,0:T(1,128)}', space=vmem, size = 0x12000, scoped, tag = 'internal scratch']
  %s0 = inlined_call_operand.vmem [shape: bf16[4,512,128], index: 0, kind: input, shape index: {}]
  %s1 = inlined_call_operand.vmem [shape: bf16[4,128,16], index: 1, kind: input, shape index: {}]
  %s2 = inlined_call_operand.vmem [shape: f32[1,1,16], index: 2, kind: input, shape index: {}]
  %s3 = inlined_call_operand.vmem [shape: f32[1,1,128], index: 3, kind: input, shape index: {}]
  %s4 = inlined_call_operand.vmem [shape: f32[1,1,128], index: 4, kind: input, shape index: {}]
  %s5 = inlined_call_operand.vmem [shape: bf16[4,512,16], index: 5, kind: output, shape index: {0}]
  %s6 = inlined_call_operand.vmem [shape: f32[4,1,1,16], index: 6, kind: output, shape index: {1}]
  %s7 = inlined_call_operand.vmem [shape: f32[4,1,1,16], index: 7, kind: output, shape index: {2}]
  %8 = xla_tuple %s5, %s6, %s7
  %s9 = sld [smem:[#allocation0]]
  $region69: #{generator_forward.8} parent=0
    _
  %s11 = ssub.s32 1, %s9
  %s12 = scalar_select 0, %s11, %s9
  loop: start=0, step=1, limit=6
  $region2: #{generator_forward.8} parent=0 // loop_pre_header
    _
  $region3: #{generator_forward.8} parent=0 // loop_header
    %s14 = sphi 0, %s18
    %p15 = scmp.ge.s32.totalorder %s14, 6
    %s21 = sphi 0, %s33
    %s22 = sphi 0, %s29
    %s23 = sphi 0, %s21
    %s24 = sphi 0, %s22
    %s25 = sphi 0, %s23
    %s26 = sphi 0, %s24
    %s38 = sphi 0, %s40
    %s41 = sphi 0, %s38
    %s42 = sphi 0, %s41
    %s58 = sphi 0, %s42
    %s64 = sphi 0, %s66
    %s67 = sphi 0, %s64
    %s68 = sphi 0, %s67
    %s84 = sphi 0, %s68
    %s88 = sphi 0, %s88
    %s90 = sphi 0, %s88
    %s91 = sphi 0, %s90
    %s105 = sphi 0, %s91
    %s109 = sphi 0, %s109
    %s111 = sphi 0, %s109
    %s112 = sphi 0, %s111
    %s126 = sphi 0, %s112
    %s130 = sphi 0, %s130
    %s132 = sphi 0, %s130
    %s133 = sphi 0, %s132
    %s147 = sphi 0, %s133
    %s155 = sphi 0, %s157
    %s158 = sphi 0, %s155
    %s159 = sphi 0, %s158
    %s175 = sphi 0, %s159
    %s183 = sphi 0, %s185
    %s186 = sphi 0, %s183
    %s187 = sphi 0, %s186
    %s203 = sphi 0, %s187
    %s211 = sphi 0, %s213
    %s214 = sphi 0, %s211
    %s215 = sphi 0, %s214
    %s231 = sphi 0, %s215
  $region4: #{generator_forward.8} parent=0 // loop_header_branch
    %17 = sbr.rel (%p15) target = $region8
  $region5: #{generator_forward.8} parent=0 // loop_body
    %s19 = ssub.s32 %s14, 1
    %s20 = ssub.s32 %s14, 2
    %s27 = sadd.s32 1, %s22
    %p28 = scmp.ge.s32.totalorder %s27, 1
    %s29 = scalar_select %p28, 0, %s27
    %s30 = sadd.s32 1, %s21
    %s31 = scalar_select %p28, %s30, %s21
    %p32 = scmp.ge.s32.totalorder %s31, 4
    %s33 = scalar_select %p32, 0, %s31
    %s34 = ssub.s32 %s21, %s33
    %s35 = ssub.s32 %s22, %s29
    %s36 = sor.u32 %s34, %s35
    %p37 = scmp.eq.s32.totalorder %s36, 0
    %s39 = sadd.s32 %s38, 1
    %s40 = scalar_select %p37, %s38, %s39
    %p43 = pneg %p37
    %p44 = scmp.eq.s32.totalorder %s14, 3
    %p45 = por %p43, %p44
    %p46 = scmp.ne.s32.totalorder %s38, %s41
    %p47 = scmp.eq.s32.totalorder %s14, 0
    %p48 = por %p46, %p47
    %p49 = scmp.ne.s32.totalorder %s38, %s41
    %p50 = scmp.eq.s32.totalorder %s19, 3
    %p51 = por %p49, %p50
    %p52 = scmp.ne.s32.totalorder %s41, %s42
    %p53 = scmp.eq.s32.totalorder %s19, 0
    %p54 = por %p52, %p53
    %p55 = scmp.ne.s32.totalorder %s41, %s42
    %p56 = scmp.eq.s32.totalorder %s20, 3
    %p57 = por %p55, %p56
    %p59 = scmp.ne.s32.totalorder %s42, %s58
    %p60 = scmp.eq.s32.totalorder %s20, 0
    %p61 = por %p59, %p60
    %s62 = ssub.s32 %s21, %s33
    %p63 = scmp.eq.s32.totalorder %s62, 0
    %s65 = sadd.s32 %s64, 1
    %s66 = scalar_select %p63, %s64, %s65
    %p69 = pneg %p63
    %p70 = scmp.eq.s32.totalorder %s14, 3
    %p71 = por %p69, %p70
    %p72 = scmp.ne.s32.totalorder %s64, %s67
    %p73 = scmp.eq.s32.totalorder %s14, 0
    %p74 = por %p72, %p73
    %p75 = scmp.ne.s32.totalorder %s64, %s67
    %p76 = scmp.eq.s32.totalorder %s19, 3
    %p77 = por %p75, %p76
    %p78 = scmp.ne.s32.totalorder %s67, %s68
    %p79 = scmp.eq.s32.totalorder %s19, 0
    %p80 = por %p78, %p79
    %p81 = scmp.ne.s32.totalorder %s67, %s68
    %p82 = scmp.eq.s32.totalorder %s20, 3
    %p83 = por %p81, %p82
    %p85 = scmp.ne.s32.totalorder %s68, %s84
    %p86 = scmp.eq.s32.totalorder %s20, 0
    %p87 = por %p85, %p86
    %s89 = sadd.s32 %s88, 1
    %p92 = scmp.eq.s32.totalorder %s14, 3
    %p93 = scmp.ne.s32.totalorder %s88, %s90
    %p94 = scmp.eq.s32.totalorder %s14, 0
    %p95 = por %p93, %p94
    %p96 = scmp.ne.s32.totalorder %s88, %s90
    %p97 = scmp.eq.s32.totalorder %s19, 3
    %p98 = por %p96, %p97
    %p99 = scmp.ne.s32.totalorder %s90, %s91
    %p100 = scmp.eq.s32.totalorder %s19, 0
    %p101 = por %p99, %p100
    %p102 = scmp.ne.s32.totalorder %s90, %s91
    %p103 = scmp.eq.s32.totalorder %s20, 3
    %p104 = por %p102, %p103
    %p106 = scmp.ne.s32.totalorder %s91, %s105
    %p107 = scmp.eq.s32.totalorder %s20, 0
    %p108 = por %p106, %p107
    %s110 = sadd.s32 %s109, 1
    %p113 = scmp.eq.s32.totalorder %s14, 3
    %p114 = scmp.ne.s32.totalorder %s109, %s111
    %p115 = scmp.eq.s32.totalorder %s14, 0
    %p116 = por %p114, %p115
    %p117 = scmp.ne.s32.totalorder %s109, %s111
    %p118 = scmp.eq.s32.totalorder %s19, 3
    %p119 = por %p117, %p118
    %p120 = scmp.ne.s32.totalorder %s111, %s112
    %p121 = scmp.eq.s32.totalorder %s19, 0
    %p122 = por %p120, %p121
    %p123 = scmp.ne.s32.totalorder %s111, %s112
    %p124 = scmp.eq.s32.totalorder %s20, 3
    %p125 = por %p123, %p124
    %p127 = scmp.ne.s32.totalorder %s112, %s126
    %p128 = scmp.eq.s32.totalorder %s20, 0
    %p129 = por %p127, %p128
    %s131 = sadd.s32 %s130, 1
    %p134 = scmp.eq.s32.totalorder %s14, 3
    %p135 = scmp.ne.s32.totalorder %s130, %s132
    %p136 = scmp.eq.s32.totalorder %s14, 0
    %p137 = por %p135, %p136
    %p138 = scmp.ne.s32.totalorder %s130, %s132
    %p139 = scmp.eq.s32.totalorder %s19, 3
    %p140 = por %p138, %p139
    %p141 = scmp.ne.s32.totalorder %s132, %s133
    %p142 = scmp.eq.s32.totalorder %s19, 0
    %p143 = por %p141, %p142
    %p144 = scmp.ne.s32.totalorder %s132, %s133
    %p145 = scmp.eq.s32.totalorder %s20, 3
    %p146 = por %p144, %p145
    %p148 = scmp.ne.s32.totalorder %s133, %s147
    %p149 = scmp.eq.s32.totalorder %s20, 0
    %p150 = por %p148, %p149
    %s151 = ssub.s32 %s21, %s33
    %s152 = ssub.s32 %s22, %s29
    %s153 = sor.u32 %s151, %s152
    %p154 = scmp.eq.s32.totalorder %s153, 0
    %s156 = sadd.s32 %s155, 1
    %s157 = scalar_select %p154, %s155, %s156
    %p160 = pneg %p154
    %p161 = scmp.eq.s32.totalorder %s14, 3
    %p162 = por %p160, %p161
    %p163 = scmp.ne.s32.totalorder %s155, %s158
    %p164 = scmp.eq.s32.totalorder %s14, 0
    %p165 = por %p163, %p164
    %p166 = scmp.ne.s32.totalorder %s155, %s158
    %p167 = scmp.eq.s32.totalorder %s19, 3
    %p168 = por %p166, %p167
    %p169 = scmp.ne.s32.totalorder %s158, %s159
    %p170 = scmp.eq.s32.totalorder %s19, 0
    %p171 = por %p169, %p170
    %p172 = scmp.ne.s32.totalorder %s158, %s159
    %p173 = scmp.eq.s32.totalorder %s20, 3
    %p174 = por %p172, %p173
    %p176 = scmp.ne.s32.totalorder %s159, %s175
    %p177 = scmp.eq.s32.totalorder %s20, 0
    %p178 = por %p176, %p177
    %s179 = ssub.s32 %s21, %s33
    %s180 = ssub.s32 %s22, %s29
    %s181 = sor.u32 %s179, %s180
    %p182 = scmp.eq.s32.totalorder %s181, 0
    %s184 = sadd.s32 %s183, 1
    %s185 = scalar_select %p182, %s183, %s184
    %p188 = pneg %p182
    %p189 = scmp.eq.s32.totalorder %s14, 3
    %p190 = por %p188, %p189
    %p191 = scmp.ne.s32.totalorder %s183, %s186
    %p192 = scmp.eq.s32.totalorder %s14, 0
    %p193 = por %p191, %p192
    %p194 = scmp.ne.s32.totalorder %s183, %s186
    %p195 = scmp.eq.s32.totalorder %s19, 3
    %p196 = por %p194, %p195
    %p197 = scmp.ne.s32.totalorder %s186, %s187
    %p198 = scmp.eq.s32.totalorder %s19, 0
    %p199 = por %p197, %p198
    %p200 = scmp.ne.s32.totalorder %s186, %s187
    %p201 = scmp.eq.s32.totalorder %s20, 3
    %p202 = por %p200, %p201
    %p204 = scmp.ne.s32.totalorder %s187, %s203
    %p205 = scmp.eq.s32.totalorder %s20, 0
    %p206 = por %p204, %p205
    %s207 = ssub.s32 %s21, %s33
    %s208 = ssub.s32 %s22, %s29
    %s209 = sor.u32 %s207, %s208
    %p210 = scmp.eq.s32.totalorder %s209, 0
    %s212 = sadd.s32 %s211, 1
    %s213 = scalar_select %p210, %s211, %s212
    %p216 = pneg %p210
    %p217 = scmp.eq.s32.totalorder %s14, 3
    %p218 = por %p216, %p217
    %p219 = scmp.ne.s32.totalorder %s211, %s214
    %p220 = scmp.eq.s32.totalorder %s14, 0
    %p221 = por %p219, %p220
    %p222 = scmp.ne.s32.totalorder %s211, %s214
    %p223 = scmp.eq.s32.totalorder %s19, 3
    %p224 = por %p222, %p223
    %p225 = scmp.ne.s32.totalorder %s214, %s215
    %p226 = scmp.eq.s32.totalorder %s19, 0
    %p227 = por %p225, %p226
    %p228 = scmp.ne.s32.totalorder %s214, %s215
    %p229 = scmp.eq.s32.totalorder %s20, 3
    %p230 = por %p228, %p229
    %p232 = scmp.ne.s32.totalorder %s215, %s231
    %p233 = scmp.eq.s32.totalorder %s20, 0
    %p234 = por %p232, %p233
    %p235 = scmp.le.s32.totalorder 1, %s14
    %p236 = scmp.lt.s32.totalorder %s14, 5
    %p237 = pnand %p235, %p236
    %p238 = pneg %p237
    // Predicated region
    $region9: #{generator_forward.8} parent=5 // pred_check
      _
    $region10: #{generator_forward.8} parent=5 // pred_check_branch
      %240 = sbr.rel (%p237) target = $region12
    $region11: #{generator_forward.8} parent=5 // pred_region
      %s241 = ssub.s32 %s14, 1
      // Predicated region
      $region13: #{generator_forward.8} parent=11 // pred_check
        %p242 = pneg %p101
      $region14: #{generator_forward.8} parent=11 // pred_check_branch
        %244 = sbr.rel (%p242) target = $region16
      $region15: #{generator_forward.8} parent=11 // pred_region
        _
      $region16: #{generator_forward.8} parent=11 // pred_fallthru
        _
      // Predicated region
      $region17: #{generator_forward.8} parent=11 // pred_check
        %p245 = pneg %p122
      $region18: #{generator_forward.8} parent=11 // pred_check_branch
        %247 = sbr.rel (%p245) target = $region20
      $region19: #{generator_forward.8} parent=11 // pred_region
        _
      $region20: #{generator_forward.8} parent=11 // pred_fallthru
        _
      // Predicated region
      $region21: #{generator_forward.8} parent=11 // pred_check
        %p248 = pneg %p143
      $region22: #{generator_forward.8} parent=11 // pred_check_branch
        %250 = sbr.rel (%p248) target = $region24
      $region23: #{generator_forward.8} parent=11 // pred_region
        _
      $region24: #{generator_forward.8} parent=11 // pred_fallthru
        _
    $region12: #{generator_forward.8} parent=5 // pred_fallthru
      _
    %p251 = scmp.lt.s32.totalorder %s14, 4
    // Predicated region
    $region25: #{generator_forward.8} parent=5 // pred_check
      %p252 = pneg %p251
    $region26: #{generator_forward.8} parent=5 // pred_check_branch
      %254 = sbr.rel (%p252) target = $region28
    $region27: #{generator_forward.8} parent=5 // pred_region
      // Predicated region
      $region29: #{generator_forward.8} parent=27 // pred_check
        %p255 = pneg %p48
      $region30: #{generator_forward.8} parent=27 // pred_check_branch
        %257 = sbr.rel (%p255) target = $region32
      $region31: #{generator_forward.8} parent=27 // pred_region
        %s258 = smul.u32 64, %s22
        %p259 = scmp.lt.s32.totalorder %s21, 3
        %s260 = scalar_select %p259, %s21, 3
        %p261 = scmp.lt.s32.totalorder %s258, 63
        %s262 = scalar_select %p261, %s258, 63
        %s263 = smul.addr %s260, 64
        %s264 = sadd.s32 %s262, %s263
        %s265 = smul.addr %s264, 4
        %s266 = scalar_lea.vmem %s0, %s265
        %s267 = smul.u32 64, %s22
      $region32: #{generator_forward.8} parent=27 // pred_fallthru
        _
      // Predicated region
      $region33: #{generator_forward.8} parent=27 // pred_check
        %p268 = pneg %p74
      $region34: #{generator_forward.8} parent=27 // pred_check_branch
        %270 = sbr.rel (%p268) target = $region36
      $region35: #{generator_forward.8} parent=27 // pred_region
        %p271 = scmp.lt.s32.totalorder %s21, 3
        %s272 = scalar_select %p271, %s21, 3
        %s273 = smul.addr %s272, 16
        %s274 = smul.addr %s273, 4
        %s275 = scalar_lea.vmem %s1, %s274
      $region36: #{generator_forward.8} parent=27 // pred_fallthru
        _
    $region28: #{generator_forward.8} parent=5 // pred_fallthru
      _
    %p276 = scmp.le.s32.totalorder 1, %s14
    %p277 = scmp.lt.s32.totalorder %s14, 5
    %p278 = pnand %p276, %p277
    %p279 = pneg %p278
    // Predicated region
    $region37: #{generator_forward.8} parent=5 // pred_check
      _
    $region38: #{generator_forward.8} parent=5 // pred_check_branch
      %281 = sbr.rel (%p278) target = $region40
    $region39: #{generator_forward.8} parent=5 // pred_region
      %s282 = ssub.s32 %s14, 1
      %s283 = smul.u32 64, %s24
      %p284 = scmp.lt.s32.totalorder %s23, 3
      %s285 = scalar_select %p284, %s23, 3
      %p286 = scmp.lt.s32.totalorder %s283, 63
      %s287 = scalar_select %p286, %s283, 63
      %s288 = smul.addr %s285, 64
      %s289 = sadd.s32 %s287, %s288
      %s290 = smul.addr %s289, 4
      %s291 = scalar_lea.vmem %s0, %s290
      %p292 = pneg %p54
      %p293 = pneg %p51
      %p294 = scmp.lt.s32.totalorder %s23, 3
      %s295 = scalar_select %p294, %s23, 3
      %s296 = smul.addr %s295, 16
      %s297 = smul.addr %s296, 4
      %s298 = scalar_lea.vmem %s1, %s297
      %p299 = pneg %p80
      %p300 = pneg %p77
      %p301 = pneg %p101
      %p302 = pneg %p98
      %p303 = pneg %p122
      %p304 = pneg %p119
      %p305 = pneg %p143
      %p306 = pneg %p140
      %p307 = pneg %p171
      %p308 = pneg %p168
      %s309 = smul.u32 64, %s24
      %p310 = scmp.lt.s32.totalorder %s23, 3
      %s311 = scalar_select %p310, %s23, 3
      %p312 = scmp.lt.s32.totalorder %s309, 63
      %s313 = scalar_select %p312, %s309, 63
      %s314 = smul.addr %s311, 64
      %s315 = sadd.s32 %s313, %s314
      %s316 = smul.addr %s315, 4
      %s317 = scalar_lea.vmem %s5, %s316
      %p318 = pneg %p199
      %p319 = pneg %p196
      %p320 = scmp.lt.s32.totalorder %s23, 3
      %s321 = scalar_select %p320, %s23, 3
      %p322 = scmp.lt.s32.totalorder %s24, 0
      %s323 = scalar_select %p322, %s24, 0
      %s324 = sadd.s32 %s323, %s321
      %s325 = scalar_lea.vmem %s6, %s324
      %p326 = pneg %p227
      %p327 = pneg %p224
      %p328 = scmp.lt.s32.totalorder %s23, 3
      %s329 = scalar_select %p328, %s23, 3
      %p330 = scmp.lt.s32.totalorder %s24, 0
      %s331 = scalar_select %p330, %s24, 0
      %s332 = sadd.s32 %s331, %s329
      %s333 = scalar_lea.vmem %s7, %s332
      %s334 = smul.u32 64, %s24
      %p335 = scmp.lt.s32.totalorder %s23, 3
      %s336 = scalar_select %p335, %s23, 3
      %p337 = scmp.lt.s32.totalorder %s334, 63
      %s338 = scalar_select %p337, %s334, 63
      %s339 = smul.addr %s336, 64
      %s340 = sadd.s32 %s338, %s339
      %s341 = smul.addr %s340, 4
      %s342 = scalar_lea.vmem %s0, %s341
      %s343 = smul.u32 64, %s24
      %p344 = scmp.lt.s32.totalorder %s23, 3
      %s345 = scalar_select %p344, %s23, 3
      %s346 = smul.addr %s345, 16
      %s347 = smul.addr %s346, 4
      %s348 = scalar_lea.vmem %s1, %s347
      %s349 = smul.u32 64, %s24
      %p350 = scmp.lt.s32.totalorder %s23, 3
      %s351 = scalar_select %p350, %s23, 3
      %p352 = scmp.lt.s32.totalorder %s349, 63
      %s353 = scalar_select %p352, %s349, 63
      %s354 = smul.addr %s351, 64
      %s355 = sadd.s32 %s353, %s354
      %s356 = smul.addr %s355, 4
      %s357 = scalar_lea.vmem %s5, %s356
      %s358 = smul.u32 64, %s24
      %p359 = scmp.lt.s32.totalorder %s23, 3
      %s360 = scalar_select %p359, %s23, 3
      %p361 = scmp.lt.s32.totalorder %s24, 0
      %s362 = scalar_select %p361, %s24, 0
      %s363 = sadd.s32 %s362, %s360
      %s364 = scalar_lea.vmem %s6, %s363
      %p365 = scmp.lt.s32.totalorder %s23, 3
      %s366 = scalar_select %p365, %s23, 3
      %p367 = scmp.lt.s32.totalorder %s24, 0
      %s368 = scalar_select %p367, %s24, 0
      %s369 = sadd.s32 %s368, %s366
      %s370 = scalar_lea.vmem %s7, %s369
      %v372 = vld [vmem:[%s342] sm:$0xf]
      %v373 = vld [vmem:[%s342 + $0x4] sm:$0xf]
      %v374 = vld [vmem:[%s342 + $0x8] sm:$0xf]
      %v375 = vld [vmem:[%s342 + $0xc] sm:$0xf]
      %v376 = vld [vmem:[%s342 + $0x10] sm:$0xf]
      %v377 = vld [vmem:[%s342 + $0x14] sm:$0xf]
      %v378 = vld [vmem:[%s342 + $0x18] sm:$0xf]
      %v379 = vld [vmem:[%s342 + $0x1c] sm:$0xf]
      %v380 = vld [vmem:[%s342 + $0x20] sm:$0xf]
      %v381 = vld [vmem:[%s342 + $0x24] sm:$0xf]
      %v382 = vld [vmem:[%s342 + $0x28] sm:$0xf]
      %v383 = vld [vmem:[%s342 + $0x2c] sm:$0xf]
      %v384 = vld [vmem:[%s342 + $0x30] sm:$0xf]
      %v385 = vld [vmem:[%s342 + $0x34] sm:$0xf]
      %v386 = vld [vmem:[%s342 + $0x38] sm:$0xf]
      %v387 = vld [vmem:[%s342 + $0x3c] sm:$0xf]
      %v388 = vld [vmem:[%s342 + $0x40] sm:$0xf]
      %v389 = vld [vmem:[%s342 + $0x44] sm:$0xf]
      %v390 = vld [vmem:[%s342 + $0x48] sm:$0xf]
      %v391 = vld [vmem:[%s342 + $0x4c] sm:$0xf]
      %v392 = vld [vmem:[%s342 + $0x50] sm:$0xf]
      %v393 = vld [vmem:[%s342 + $0x54] sm:$0xf]
      %v394 = vld [vmem:[%s342 + $0x58] sm:$0xf]
      %v395 = vld [vmem:[%s342 + $0x5c] sm:$0xf]
      %v396 = vld [vmem:[%s342 + $0x60] sm:$0xf]
      %v397 = vld [vmem:[%s342 + $0x64] sm:$0xf]
      %v398 = vld [vmem:[%s342 + $0x68] sm:$0xf]
      %v399 = vld [vmem:[%s342 + $0x6c] sm:$0xf]
      %v400 = vld [vmem:[%s342 + $0x70] sm:$0xf]
      %v401 = vld [vmem:[%s342 + $0x74] sm:$0xf]
      %v402 = vld [vmem:[%s342 + $0x78] sm:$0xf]
      %v403 = vld [vmem:[%s342 + $0x7c] sm:$0xf]
      %v404 = vld [vmem:[%s342 + $0x80] sm:$0xf]
      %v405 = vld [vmem:[%s342 + $0x84] sm:$0xf]
      %v406 = vld [vmem:[%s342 + $0x88] sm:$0xf]
      %v407 = vld [vmem:[%s342 + $0x8c] sm:$0xf]
      %v408 = vld [vmem:[%s342 + $0x90] sm:$0xf]
      %v409 = vld [vmem:[%s342 + $0x94] sm:$0xf]
      %v410 = vld [vmem:[%s342 + $0x98] sm:$0xf]
      %v411 = vld [vmem:[%s342 + $0x9c] sm:$0xf]
      %v412 = vld [vmem:[%s342 + $0xa0] sm:$0xf]
      %v413 = vld [vmem:[%s342 + $0xa4] sm:$0xf]
      %v414 = vld [vmem:[%s342 + $0xa8] sm:$0xf]
      %v415 = vld [vmem:[%s342 + $0xac] sm:$0xf]
      %v416 = vld [vmem:[%s342 + $0xb0] sm:$0xf]
      %v417 = vld [vmem:[%s342 + $0xb4] sm:$0xf]
      %v418 = vld [vmem:[%s342 + $0xb8] sm:$0xf]
      %v419 = vld [vmem:[%s342 + $0xbc] sm:$0xf]
      %v420 = vld [vmem:[%s342 + $0xc0] sm:$0xf]
      %v421 = vld [vmem:[%s342 + $0xc4] sm:$0xf]
      %v422 = vld [vmem:[%s342 + $0xc8] sm:$0xf]
      %v423 = vld [vmem:[%s342 + $0xcc] sm:$0xf]
      %v424 = vld [vmem:[%s342 + $0xd0] sm:$0xf]
      %v425 = vld [vmem:[%s342 + $0xd4] sm:$0xf]
      %v426 = vld [vmem:[%s342 + $0xd8] sm:$0xf]
      %v427 = vld [vmem:[%s342 + $0xdc] sm:$0xf]
      %v428 = vld [vmem:[%s342 + $0xe0] sm:$0xf]
      %v429 = vld [vmem:[%s342 + $0xe4] sm:$0xf]
      %v430 = vld [vmem:[%s342 + $0xe8] sm:$0xf]
      %v431 = vld [vmem:[%s342 + $0xec] sm:$0xf]
      %v432 = vld [vmem:[%s342 + $0xf0] sm:$0xf]
      %v433 = vld [vmem:[%s342 + $0xf4] sm:$0xf]
      %v434 = vld [vmem:[%s342 + $0xf8] sm:$0xf]
      %v435 = vld [vmem:[%s342 + $0xfc] sm:$0xf]
      %v436 = vunpack.c.l.bf16 %v372
      %v437 = vunpack.c.l.bf16 %v373
      %v438 = vunpack.c.l.bf16 %v374
      %v439 = vunpack.c.l.bf16 %v375
      %v440 = vunpack.c.l.bf16 %v376
      %v441 = vunpack.c.l.bf16 %v377
      %v442 = vunpack.c.l.bf16 %v378
      %v443 = vunpack.c.l.bf16 %v379
      %v444 = vunpack.c.l.bf16 %v380
      %v445 = vunpack.c.l.bf16 %v381
      %v446 = vunpack.c.l.bf16 %v382
      %v447 = vunpack.c.l.bf16 %v383
      %v448 = vunpack.c.l.bf16 %v384
      %v449 = vunpack.c.l.bf16 %v385
      %v450 = vunpack.c.l.bf16 %v386
      %v451 = vunpack.c.l.bf16 %v387
      %v452 = vunpack.c.l.bf16 %v388
      %v453 = vunpack.c.l.bf16 %v389
      %v454 = vunpack.c.l.bf16 %v390
      %v455 = vunpack.c.l.bf16 %v391
      %v456 = vunpack.c.l.bf16 %v392
      %v457 = vunpack.c.l.bf16 %v393
      %v458 = vunpack.c.l.bf16 %v394
      %v459 = vunpack.c.l.bf16 %v395
      %v460 = vunpack.c.l.bf16 %v396
      %v461 = vunpack.c.l.bf16 %v397
      %v462 = vunpack.c.l.bf16 %v398
      %v463 = vunpack.c.l.bf16 %v399
      %v464 = vunpack.c.l.bf16 %v400
      %v465 = vunpack.c.l.bf16 %v401
      %v466 = vunpack.c.l.bf16 %v402
      %v467 = vunpack.c.l.bf16 %v403
      %v468 = vunpack.c.l.bf16 %v404
      %v469 = vunpack.c.l.bf16 %v405
      %v470 = vunpack.c.l.bf16 %v406
      %v471 = vunpack.c.l.bf16 %v407
      %v472 = vunpack.c.l.bf16 %v408
      %v473 = vunpack.c.l.bf16 %v409
      %v474 = vunpack.c.l.bf16 %v410
      %v475 = vunpack.c.l.bf16 %v411
      %v476 = vunpack.c.l.bf16 %v412
      %v477 = vunpack.c.l.bf16 %v413
      %v478 = vunpack.c.l.bf16 %v414
      %v479 = vunpack.c.l.bf16 %v415
      %v480 = vunpack.c.l.bf16 %v416
      %v481 = vunpack.c.l.bf16 %v417
      %v482 = vunpack.c.l.bf16 %v418
      %v483 = vunpack.c.l.bf16 %v419
      %v484 = vunpack.c.l.bf16 %v420
      %v485 = vunpack.c.l.bf16 %v421
      %v486 = vunpack.c.l.bf16 %v422
      %v487 = vunpack.c.l.bf16 %v423
      %v488 = vunpack.c.l.bf16 %v424
      %v489 = vunpack.c.l.bf16 %v425
      %v490 = vunpack.c.l.bf16 %v426
      %v491 = vunpack.c.l.bf16 %v427
      %v492 = vunpack.c.l.bf16 %v428
      %v493 = vunpack.c.l.bf16 %v429
      %v494 = vunpack.c.l.bf16 %v430
      %v495 = vunpack.c.l.bf16 %v431
      %v496 = vunpack.c.l.bf16 %v432
      %v497 = vunpack.c.l.bf16 %v433
      %v498 = vunpack.c.l.bf16 %v434
      %v499 = vunpack.c.l.bf16 %v435
      %v500 = vld [vmem:[%s3] sm:$0x1]
      %v502 = vlaneseq
      %v503 = vshrl.u32 %v502, 7
      %v504 = vsub.s32 0, %v503
      %v505 = vrot.slane %v500, %v504
      %v507 = vmul.f32 %v436, %v505
      %v508 = vmul.f32 %v437, %v505
      %v509 = vmul.f32 %v438, %v505
      %v510 = vmul.f32 %v439, %v505
      %v511 = vmul.f32 %v440, %v505
      %v512 = vmul.f32 %v441, %v505
      %v513 = vmul.f32 %v442, %v505
      %v514 = vmul.f32 %v443, %v505
      %v515 = vmul.f32 %v444, %v505
      %v516 = vmul.f32 %v445, %v505
      %v517 = vmul.f32 %v446, %v505
      %v518 = vmul.f32 %v447, %v505
      %v519 = vmul.f32 %v448, %v505
      %v520 = vmul.f32 %v449, %v505
      %v521 = vmul.f32 %v450, %v505
      %v522 = vmul.f32 %v451, %v505
      %v523 = vmul.f32 %v452, %v505
      %v524 = vmul.f32 %v453, %v505
      %v525 = vmul.f32 %v454, %v505
      %v526 = vmul.f32 %v455, %v505
      %v527 = vmul.f32 %v456, %v505
      %v528 = vmul.f32 %v457, %v505
      %v529 = vmul.f32 %v458, %v505
      %v530 = vmul.f32 %v459, %v505
      %v531 = vmul.f32 %v460, %v505
      %v532 = vmul.f32 %v461, %v505
      %v533 = vmul.f32 %v462, %v505
      %v534 = vmul.f32 %v463, %v505
      %v535 = vmul.f32 %v464, %v505
      %v536 = vmul.f32 %v465, %v505
      %v537 = vmul.f32 %v466, %v505
      %v538 = vmul.f32 %v467, %v505
      %v539 = vmul.f32 %v468, %v505
      %v540 = vmul.f32 %v469, %v505
      %v541 = vmul.f32 %v470, %v505
      %v542 = vmul.f32 %v471, %v505
      %v543 = vmul.f32 %v472, %v505
      %v544 = vmul.f32 %v473, %v505
      %v545 = vmul.f32 %v474, %v505
      %v546 = vmul.f32 %v475, %v505
      %v547 = vmul.f32 %v476, %v505
      %v548 = vmul.f32 %v477, %v505
      %v549 = vmul.f32 %v478, %v505
      %v550 = vmul.f32 %v479, %v505
      %v551 = vmul.f32 %v480, %v505
      %v552 = vmul.f32 %v481, %v505
      %v553 = vmul.f32 %v482, %v505
      %v554 = vmul.f32 %v483, %v505
      %v555 = vmul.f32 %v484, %v505
      %v556 = vmul.f32 %v485, %v505
      %v557 = vmul.f32 %v486, %v505
      %v558 = vmul.f32 %v487, %v505
      %v559 = vmul.f32 %v488, %v505
      %v560 = vmul.f32 %v489, %v505
      %v561 = vmul.f32 %v490, %v505
      %v562 = vmul.f32 %v491, %v505
      %v563 = vmul.f32 %v492, %v505
      %v564 = vmul.f32 %v493, %v505
      %v565 = vmul.f32 %v494, %v505
      %v566 = vmul.f32 %v495, %v505
      %v567 = vmul.f32 %v496, %v505
      %v568 = vmul.f32 %v497, %v505
      %v569 = vmul.f32 %v498, %v505
      %v570 = vmul.f32 %v499, %v505
      %v571 = vld [vmem:[%s4] sm:$0x1]
      %v573 = vlaneseq
      %v574 = vshrl.u32 %v573, 7
      %v575 = vsub.s32 0, %v574
      %v576 = vrot.slane %v571, %v575
      %v578 = vadd.f32 %v507, %v576
      %v579 = vadd.f32 %v508, %v576
      %v580 = vadd.f32 %v509, %v576
      %v581 = vadd.f32 %v510, %v576
      %v582 = vadd.f32 %v511, %v576
      %v583 = vadd.f32 %v512, %v576
      %v584 = vadd.f32 %v513, %v576
      %v585 = vadd.f32 %v514, %v576
      %v586 = vadd.f32 %v515, %v576
      %v587 = vadd.f32 %v516, %v576
      %v588 = vadd.f32 %v517, %v576
      %v589 = vadd.f32 %v518, %v576
      %v590 = vadd.f32 %v519, %v576
      %v591 = vadd.f32 %v520, %v576
      %v592 = vadd.f32 %v521, %v576
      %v593 = vadd.f32 %v522, %v576
      %v594 = vadd.f32 %v523, %v576
      %v595 = vadd.f32 %v524, %v576
      %v596 = vadd.f32 %v525, %v576
      %v597 = vadd.f32 %v526, %v576
      %v598 = vadd.f32 %v527, %v576
      %v599 = vadd.f32 %v528, %v576
      %v600 = vadd.f32 %v529, %v576
      %v601 = vadd.f32 %v530, %v576
      %v602 = vadd.f32 %v531, %v576
      %v603 = vadd.f32 %v532, %v576
      %v604 = vadd.f32 %v533, %v576
      %v605 = vadd.f32 %v534, %v576
      %v606 = vadd.f32 %v535, %v576
      %v607 = vadd.f32 %v536, %v576
      %v608 = vadd.f32 %v537, %v576
      %v609 = vadd.f32 %v538, %v576
      %v610 = vadd.f32 %v539, %v576
      %v611 = vadd.f32 %v540, %v576
      %v612 = vadd.f32 %v541, %v576
      %v613 = vadd.f32 %v542, %v576
      %v614 = vadd.f32 %v543, %v576
      %v615 = vadd.f32 %v544, %v576
      %v616 = vadd.f32 %v545, %v576
      %v617 = vadd.f32 %v546, %v576
      %v618 = vadd.f32 %v547, %v576
      %v619 = vadd.f32 %v548, %v576
      %v620 = vadd.f32 %v549, %v576
      %v621 = vadd.f32 %v550, %v576
      %v622 = vadd.f32 %v551, %v576
      %v623 = vadd.f32 %v552, %v576
      %v624 = vadd.f32 %v553, %v576
      %v625 = vadd.f32 %v554, %v576
      %v626 = vadd.f32 %v555, %v576
      %v627 = vadd.f32 %v556, %v576
      %v628 = vadd.f32 %v557, %v576
      %v629 = vadd.f32 %v558, %v576
      %v630 = vadd.f32 %v559, %v576
      %v631 = vadd.f32 %v560, %v576
      %v632 = vadd.f32 %v561, %v576
      %v633 = vadd.f32 %v562, %v576
      %v634 = vadd.f32 %v563, %v576
      %v635 = vadd.f32 %v564, %v576
      %v636 = vadd.f32 %v565, %v576
      %v637 = vadd.f32 %v566, %v576
      %v638 = vadd.f32 %v567, %v576
      %v639 = vadd.f32 %v568, %v576
      %v640 = vadd.f32 %v569, %v576
      %v641 = vadd.f32 %v570, %v576
      %v642 = vmax.f32 %v578, 0.0
      %v643 = vmax.f32 %v579, 0.0
      %v644 = vmax.f32 %v580, 0.0
      %v645 = vmax.f32 %v581, 0.0
      %v646 = vmax.f32 %v582, 0.0
      %v647 = vmax.f32 %v583, 0.0
      %v648 = vmax.f32 %v584, 0.0
      %v649 = vmax.f32 %v585, 0.0
      %v650 = vmax.f32 %v586, 0.0
      %v651 = vmax.f32 %v587, 0.0
      %v652 = vmax.f32 %v588, 0.0
      %v653 = vmax.f32 %v589, 0.0
      %v654 = vmax.f32 %v590, 0.0
      %v655 = vmax.f32 %v591, 0.0
      %v656 = vmax.f32 %v592, 0.0
      %v657 = vmax.f32 %v593, 0.0
      %v658 = vmax.f32 %v594, 0.0
      %v659 = vmax.f32 %v595, 0.0
      %v660 = vmax.f32 %v596, 0.0
      %v661 = vmax.f32 %v597, 0.0
      %v662 = vmax.f32 %v598, 0.0
      %v663 = vmax.f32 %v599, 0.0
      %v664 = vmax.f32 %v600, 0.0
      %v665 = vmax.f32 %v601, 0.0
      %v666 = vmax.f32 %v602, 0.0
      %v667 = vmax.f32 %v603, 0.0
      %v668 = vmax.f32 %v604, 0.0
      %v669 = vmax.f32 %v605, 0.0
      %v670 = vmax.f32 %v606, 0.0
      %v671 = vmax.f32 %v607, 0.0
      %v672 = vmax.f32 %v608, 0.0
      %v673 = vmax.f32 %v609, 0.0
      %v674 = vmax.f32 %v610, 0.0
      %v675 = vmax.f32 %v611, 0.0
      %v676 = vmax.f32 %v612, 0.0
      %v677 = vmax.f32 %v613, 0.0
      %v678 = vmax.f32 %v614, 0.0
      %v679 = vmax.f32 %v615, 0.0
      %v680 = vmax.f32 %v616, 0.0
      %v681 = vmax.f32 %v617, 0.0
      %v682 = vmax.f32 %v618, 0.0
      %v683 = vmax.f32 %v619, 0.0
      %v684 = vmax.f32 %v620, 0.0
      %v685 = vmax.f32 %v621, 0.0
      %v686 = vmax.f32 %v622, 0.0
      %v687 = vmax.f32 %v623, 0.0
      %v688 = vmax.f32 %v624, 0.0
      %v689 = vmax.f32 %v625, 0.0
      %v690 = vmax.f32 %v626, 0.0
      %v691 = vmax.f32 %v627, 0.0
      %v692 = vmax.f32 %v628, 0.0
      %v693 = vmax.f32 %v629, 0.0
      %v694 = vmax.f32 %v630, 0.0
      %v695 = vmax.f32 %v631, 0.0
      %v696 = vmax.f32 %v632, 0.0
      %v697 = vmax.f32 %v633, 0.0
      %v698 = vmax.f32 %v634, 0.0
      %v699 = vmax.f32 %v635, 0.0
      %v700 = vmax.f32 %v636, 0.0
      %v701 = vmax.f32 %v637, 0.0
      %v702 = vmax.f32 %v638, 0.0
      %v703 = vmax.f32 %v639, 0.0
      %v704 = vmax.f32 %v640, 0.0
      %v705 = vmax.f32 %v641, 0.0
      %v706 = vpack.c.bf16 %v643, %v642
      %v707 = vpack.c.bf16 %v645, %v644
      %v708 = vpack.c.bf16 %v647, %v646
      %v709 = vpack.c.bf16 %v649, %v648
      %v710 = vpack.c.bf16 %v651, %v650
      %v711 = vpack.c.bf16 %v653, %v652
      %v712 = vpack.c.bf16 %v655, %v654
      %v713 = vpack.c.bf16 %v657, %v656
      %v714 = vpack.c.bf16 %v659, %v658
      %v715 = vpack.c.bf16 %v661, %v660
      %v716 = vpack.c.bf16 %v663, %v662
      %v717 = vpack.c.bf16 %v665, %v664
      %v718 = vpack.c.bf16 %v667, %v666
      %v719 = vpack.c.bf16 %v669, %v668
      %v720 = vpack.c.bf16 %v671, %v670
      %v721 = vpack.c.bf16 %v673, %v672
      %v722 = vpack.c.bf16 %v675, %v674
      %v723 = vpack.c.bf16 %v677, %v676
      %v724 = vpack.c.bf16 %v679, %v678
      %v725 = vpack.c.bf16 %v681, %v680
      %v726 = vpack.c.bf16 %v683, %v682
      %v727 = vpack.c.bf16 %v685, %v684
      %v728 = vpack.c.bf16 %v687, %v686
      %v729 = vpack.c.bf16 %v689, %v688
      %v730 = vpack.c.bf16 %v691, %v690
      %v731 = vpack.c.bf16 %v693, %v692
      %v732 = vpack.c.bf16 %v695, %v694
      %v733 = vpack.c.bf16 %v697, %v696
      %v734 = vpack.c.bf16 %v699, %v698
      %v735 = vpack.c.bf16 %v701, %v700
      %v736 = vpack.c.bf16 %v703, %v702
      %v737 = vpack.c.bf16 %v705, %v704
      %v738 = vld [vmem:[%s348] sm:$0xf]
      %v739 = vld [vmem:[%s348 + $0x4] sm:$0xf]
      %v740 = vld [vmem:[%s348 + $0x8] sm:$0xf]
      %v741 = vld [vmem:[%s348 + $0xc] sm:$0xf]
      %v742 = vld [vmem:[%s348 + $0x10] sm:$0xf]
      %v743 = vld [vmem:[%s348 + $0x14] sm:$0xf]
      %v744 = vld [vmem:[%s348 + $0x18] sm:$0xf]
      %v745 = vld [vmem:[%s348 + $0x1c] sm:$0xf]
      %v746 = vld [vmem:[%s348 + $0x20] sm:$0xf]
      %v747 = vld [vmem:[%s348 + $0x24] sm:$0xf]
      %v748 = vld [vmem:[%s348 + $0x28] sm:$0xf]
      %v749 = vld [vmem:[%s348 + $0x2c] sm:$0xf]
      %v750 = vld [vmem:[%s348 + $0x30] sm:$0xf]
      %v751 = vld [vmem:[%s348 + $0x34] sm:$0xf]
      %v752 = vld [vmem:[%s348 + $0x38] sm:$0xf]
      %v753 = vld [vmem:[%s348 + $0x3c] sm:$0xf]
      %v754 = vld [vmem:[%s2] sm:$0x1]
      %v756 = vlaneseq
      %v757 = vshrl.u32 %v756, 7
      %v758 = vsub.s32 0, %v757
      %v759 = vrot.slane %v754, %v758
      %v777 = vunpack.c.l.b16 %v738
      %v778 = vunpack.c.l.b16 %v739
      %v779 = vunpack.c.l.b16 %v740
      %v780 = vunpack.c.l.b16 %v741
      %v781 = vunpack.c.l.b16 %v742
      %v782 = vunpack.c.l.b16 %v743
      %v783 = vunpack.c.l.b16 %v744
      %v784 = vunpack.c.l.b16 %v745
      %v785 = vunpack.c.l.b16 %v746
      %v786 = vunpack.c.l.b16 %v747
      %v787 = vunpack.c.l.b16 %v748
      %v788 = vunpack.c.l.b16 %v749
      %v789 = vunpack.c.l.b16 %v750
      %v790 = vunpack.c.l.b16 %v751
      %v791 = vunpack.c.l.b16 %v752
      %v792 = vunpack.c.l.b16 %v753
      %v793 = vpack.c.b16 %v778, %v777
      %v794 = vpack.c.b16 %v780, %v779
      %v795 = vpack.c.b16 %v782, %v781
      %v796 = vpack.c.b16 %v784, %v783
      %v797 = vpack.c.b16 %v786, %v785
      %v798 = vpack.c.b16 %v788, %v787
      %v799 = vpack.c.b16 %v790, %v789
      %v800 = vpack.c.b16 %v792, %v791
      %809 = vmatprep.subr.bf16.mxu0 0
      %810 = vmatpush1.bf16.msra.mxu0 %v800
      %811 = vmatprep.subr.bf16.mxu0 0
      %812 = vmatpush1.bf16.msra.mxu0 %v799
      %813 = vmatprep.subr.bf16.mxu0 0
      %814 = vmatpush1.bf16.msra.mxu0 %v798
      %815 = vmatprep.subr.bf16.mxu0 0
      %816 = vmatpush1.bf16.msra.mxu0 %v797
      %817 = vmatprep.subr.bf16.mxu0 0
      %818 = vmatpush1.bf16.msra.mxu0 %v796
      %819 = vmatprep.subr.bf16.mxu0 0
      %820 = vmatpush1.bf16.msra.mxu0 %v795
      %821 = vmatprep.subr.bf16.mxu0 0
      %822 = vmatpush1.bf16.msra.mxu0 %v794
      %823 = vmatprep.subr.bf16.mxu0 0
      %824 = vmatpush1.bf16.msra.mxu0 %v793
      %825 = vmatprep.subr.bf16.mxu0 0
      %826 = vmatpush2.bf16.msra.mxu0 0
      %827 = vmatprep.subr.bf16.mxu0 0
      %828 = vmatpush2.bf16.msra.mxu0 0
      %829 = vmatprep.subr.bf16.mxu0 0
      %830 = vmatpush2.bf16.msra.mxu0 0
      %831 = vmatprep.subr.bf16.mxu0 0
      %832 = vmatpush2.bf16.msra.mxu0 0
      %833 = vmatprep.subr.bf16.mxu0 0
      %834 = vmatpush2.bf16.msra.mxu0 0
      %835 = vmatprep.subr.bf16.mxu0 0
      %836 = vmatpush2.bf16.msra.mxu0 0
      %837 = vmatprep.subr.bf16.mxu0 0
      %838 = vmatpush2.bf16.msra.mxu0 0
      %839 = vmatprep.subr.bf16.mxu0 0
      %840 = vmatpush2.bf16.msra.mxu0 0
      %841 = vmatprep.mubr.bf16.mxu0 0
      %842 = vmatmul.mubr.bf16.gmra.mxu0 %v706
      %v843 = vpop.f32.mrf.mxu0
      %v844 = vadd.f32 %v759, %v843
      %v845 = vpop.f32.mrf.mxu0
      %v846 = vpop.f32.mrf.mxu0
      %v847 = vadd.f32 %v759, %v846
      %v848 = vpop.f32.mrf.mxu0
      %849 = vmatprep.mubr.bf16.mxu0 0
      %850 = vmatmul.mubr.bf16.gmra.mxu0 %v707
      %v851 = vpop.f32.mrf.mxu0
      %v852 = vadd.f32 %v759, %v851
      %v853 = vpop.f32.mrf.mxu0
      %v854 = vpop.f32.mrf.mxu0
      %v855 = vadd.f32 %v759, %v854
      %v856 = vpop.f32.mrf.mxu0
      %857 = vmatprep.mubr.bf16.mxu0 0
      %858 = vmatmul.mubr.bf16.gmra.mxu0 %v708
      %v859 = vpop.f32.mrf.mxu0
      %v860 = vadd.f32 %v759, %v859
      %v861 = vpop.f32.mrf.mxu0
      %v862 = vpop.f32.mrf.mxu0
      %v863 = vadd.f32 %v759, %v862
      %v864 = vpop.f32.mrf.mxu0
      %865 = vmatprep.mubr.bf16.mxu0 0
      %866 = vmatmul.mubr.bf16.gmra.mxu0 %v709
      %v867 = vpop.f32.mrf.mxu0
      %v868 = vadd.f32 %v759, %v867
      %v869 = vpop.f32.mrf.mxu0
      %v870 = vpop.f32.mrf.mxu0
      %v871 = vadd.f32 %v759, %v870
      %v872 = vpop.f32.mrf.mxu0
      %873 = vmatprep.mubr.bf16.mxu0 0
      %874 = vmatmul.mubr.bf16.gmra.mxu0 %v710
      %v875 = vpop.f32.mrf.mxu0
      %v876 = vadd.f32 %v759, %v875
      %v877 = vpop.f32.mrf.mxu0
      %v878 = vpop.f32.mrf.mxu0
      %v879 = vadd.f32 %v759, %v878
      %v880 = vpop.f32.mrf.mxu0
      %881 = vmatprep.mubr.bf16.mxu0 0
      %882 = vmatmul.mubr.bf16.gmra.mxu0 %v711
      %v883 = vpop.f32.mrf.mxu0
      %v884 = vadd.f32 %v759, %v883
      %v885 = vpop.f32.mrf.mxu0
      %v886 = vpop.f32.mrf.mxu0
      %v887 = vadd.f32 %v759, %v886
      %v888 = vpop.f32.mrf.mxu0
      %889 = vmatprep.mubr.bf16.mxu0 0
      %890 = vmatmul.mubr.bf16.gmra.mxu0 %v712
      %v891 = vpop.f32.mrf.mxu0
      %v892 = vadd.f32 %v759, %v891
      %v893 = vpop.f32.mrf.mxu0
      %v894 = vpop.f32.mrf.mxu0
      %v895 = vadd.f32 %v759, %v894
      %v896 = vpop.f32.mrf.mxu0
      %897 = vmatprep.mubr.bf16.mxu0 0
      %898 = vmatmul.mubr.bf16.gmra.mxu0 %v713
      %v899 = vpop.f32.mrf.mxu0
      %v900 = vadd.f32 %v759, %v899
      %v901 = vpop.f32.mrf.mxu0
      %v902 = vpop.f32.mrf.mxu0
      %v903 = vadd.f32 %v759, %v902
      %v904 = vpop.f32.mrf.mxu0
      %905 = vmatprep.mubr.bf16.mxu0 0
      %906 = vmatmul.mubr.bf16.gmra.mxu0 %v714
      %v907 = vpop.f32.mrf.mxu0
      %v908 = vadd.f32 %v759, %v907
      %v909 = vpop.f32.mrf.mxu0
      %v910 = vpop.f32.mrf.mxu0
      %v911 = vadd.f32 %v759, %v910
      %v912 = vpop.f32.mrf.mxu0
      %913 = vmatprep.mubr.bf16.mxu0 0
      %914 = vmatmul.mubr.bf16.gmra.mxu0 %v715
      %v915 = vpop.f32.mrf.mxu0
      %v916 = vadd.f32 %v759, %v915
      %v917 = vpop.f32.mrf.mxu0
      %v918 = vpop.f32.mrf.mxu0
      %v919 = vadd.f32 %v759, %v918
      %v920 = vpop.f32.mrf.mxu0
      %921 = vmatprep.mubr.bf16.mxu0 0
      %922 = vmatmul.mubr.bf16.gmra.mxu0 %v716
      %v923 = vpop.f32.mrf.mxu0
      %v924 = vadd.f32 %v759, %v923
      %v925 = vpop.f32.mrf.mxu0
      %v926 = vpop.f32.mrf.mxu0
      %v927 = vadd.f32 %v759, %v926
      %v928 = vpop.f32.mrf.mxu0
      %929 = vmatprep.mubr.bf16.mxu0 0
      %930 = vmatmul.mubr.bf16.gmra.mxu0 %v717
      %v931 = vpop.f32.mrf.mxu0
      %v932 = vadd.f32 %v759, %v931
      %v933 = vpop.f32.mrf.mxu0
      %v934 = vpop.f32.mrf.mxu0
      %v935 = vadd.f32 %v759, %v934
      %v936 = vpop.f32.mrf.mxu0
      %937 = vmatprep.mubr.bf16.mxu0 0
      %938 = vmatmul.mubr.bf16.gmra.mxu0 %v718
      %v939 = vpop.f32.mrf.mxu0
      %v940 = vadd.f32 %v759, %v939
      %v941 = vpop.f32.mrf.mxu0
      %v942 = vpop.f32.mrf.mxu0
      %v943 = vadd.f32 %v759, %v942
      %v944 = vpop.f32.mrf.mxu0
      %945 = vmatprep.mubr.bf16.mxu0 0
      %946 = vmatmul.mubr.bf16.gmra.mxu0 %v719
      %v947 = vpop.f32.mrf.mxu0
      %v948 = vadd.f32 %v759, %v947
      %v949 = vpop.f32.mrf.mxu0
      %v950 = vpop.f32.mrf.mxu0
      %v951 = vadd.f32 %v759, %v950
      %v952 = vpop.f32.mrf.mxu0
      %953 = vmatprep.mubr.bf16.mxu0 0
      %954 = vmatmul.mubr.bf16.gmra.mxu0 %v720
      %v955 = vpop.f32.mrf.mxu0
      %v956 = vadd.f32 %v759, %v955
      %v957 = vpop.f32.mrf.mxu0
      %v958 = vpop.f32.mrf.mxu0
      %v959 = vadd.f32 %v759, %v958
      %v960 = vpop.f32.mrf.mxu0
      %961 = vmatprep.mubr.bf16.mxu0 0
      %962 = vmatmul.mubr.bf16.gmra.mxu0 %v721
      %v963 = vpop.f32.mrf.mxu0
      %v964 = vadd.f32 %v759, %v963
      %v965 = vpop.f32.mrf.mxu0
      %v966 = vpop.f32.mrf.mxu0
      %v967 = vadd.f32 %v759, %v966
      %v968 = vpop.f32.mrf.mxu0
      %969 = vmatprep.mubr.bf16.mxu0 0
      %970 = vmatmul.mubr.bf16.gmra.mxu0 %v722
      %v971 = vpop.f32.mrf.mxu0
      %v972 = vadd.f32 %v759, %v971
      %v973 = vpop.f32.mrf.mxu0
      %v974 = vpop.f32.mrf.mxu0
      %v975 = vadd.f32 %v759, %v974
      %v976 = vpop.f32.mrf.mxu0
      %977 = vmatprep.mubr.bf16.mxu0 0
      %978 = vmatmul.mubr.bf16.gmra.mxu0 %v723
      %v979 = vpop.f32.mrf.mxu0
      %v980 = vadd.f32 %v759, %v979
      %v981 = vpop.f32.mrf.mxu0
      %v982 = vpop.f32.mrf.mxu0
      %v983 = vadd.f32 %v759, %v982
      %v984 = vpop.f32.mrf.mxu0
      %985 = vmatprep.mubr.bf16.mxu0 0
      %986 = vmatmul.mubr.bf16.gmra.mxu0 %v724
      %v987 = vpop.f32.mrf.mxu0
      %v988 = vadd.f32 %v759, %v987
      %v989 = vpop.f32.mrf.mxu0
      %v990 = vpop.f32.mrf.mxu0
      %v991 = vadd.f32 %v759, %v990
      %v992 = vpop.f32.mrf.mxu0
      %993 = vmatprep.mubr.bf16.mxu0 0
      %994 = vmatmul.mubr.bf16.gmra.mxu0 %v725
      %v995 = vpop.f32.mrf.mxu0
      %v996 = vadd.f32 %v759, %v995
      %v997 = vpop.f32.mrf.mxu0
      %v998 = vpop.f32.mrf.mxu0
      %v999 = vadd.f32 %v759, %v998
      %v1000 = vpop.f32.mrf.mxu0
      %1001 = vmatprep.mubr.bf16.mxu0 0
      %1002 = vmatmul.mubr.bf16.gmra.mxu0 %v726
      %v1003 = vpop.f32.mrf.mxu0
      %v1004 = vadd.f32 %v759, %v1003
      %v1005 = vpop.f32.mrf.mxu0
      %v1006 = vpop.f32.mrf.mxu0
      %v1007 = vadd.f32 %v759, %v1006
      %v1008 = vpop.f32.mrf.mxu0
      %1009 = vmatprep.mubr.bf16.mxu0 0
      %1010 = vmatmul.mubr.bf16.gmra.mxu0 %v727
      %v1011 = vpop.f32.mrf.mxu0
      %v1012 = vadd.f32 %v759, %v1011
      %v1013 = vpop.f32.mrf.mxu0
      %v1014 = vpop.f32.mrf.mxu0
      %v1015 = vadd.f32 %v759, %v1014
      %v1016 = vpop.f32.mrf.mxu0
      %1017 = vmatprep.mubr.bf16.mxu0 0
      %1018 = vmatmul.mubr.bf16.gmra.mxu0 %v728
      %v1019 = vpop.f32.mrf.mxu0
      %v1020 = vadd.f32 %v759, %v1019
      %v1021 = vpop.f32.mrf.mxu0
      %v1022 = vpop.f32.mrf.mxu0
      %v1023 = vadd.f32 %v759, %v1022
      %v1024 = vpop.f32.mrf.mxu0
      %1025 = vmatprep.mubr.bf16.mxu0 0
      %1026 = vmatmul.mubr.bf16.gmra.mxu0 %v729
      %v1027 = vpop.f32.mrf.mxu0
      %v1028 = vadd.f32 %v759, %v1027
      %v1029 = vpop.f32.mrf.mxu0
      %v1030 = vpop.f32.mrf.mxu0
      %v1031 = vadd.f32 %v759, %v1030
      %v1032 = vpop.f32.mrf.mxu0
      %1033 = vmatprep.mubr.bf16.mxu0 0
      %1034 = vmatmul.mubr.bf16.gmra.mxu0 %v730
      %v1035 = vpop.f32.mrf.mxu0
      %v1036 = vadd.f32 %v759, %v1035
      %v1037 = vpop.f32.mrf.mxu0
      %v1038 = vpop.f32.mrf.mxu0
      %v1039 = vadd.f32 %v759, %v1038
      %v1040 = vpop.f32.mrf.mxu0
      %1041 = vmatprep.mubr.bf16.mxu0 0
      %1042 = vmatmul.mubr.bf16.gmra.mxu0 %v731
      %v1043 = vpop.f32.mrf.mxu0
      %v1044 = vadd.f32 %v759, %v1043
      %v1045 = vpop.f32.mrf.mxu0
      %v1046 = vpop.f32.mrf.mxu0
      %v1047 = vadd.f32 %v759, %v1046
      %v1048 = vpop.f32.mrf.mxu0
      %1049 = vmatprep.mubr.bf16.mxu0 0
      %1050 = vmatmul.mubr.bf16.gmra.mxu0 %v732
      %v1051 = vpop.f32.mrf.mxu0
      %v1052 = vadd.f32 %v759, %v1051
      %v1053 = vpop.f32.mrf.mxu0
      %v1054 = vpop.f32.mrf.mxu0
      %v1055 = vadd.f32 %v759, %v1054
      %v1056 = vpop.f32.mrf.mxu0
      %1057 = vmatprep.mubr.bf16.mxu0 0
      %1058 = vmatmul.mubr.bf16.gmra.mxu0 %v733
      %v1059 = vpop.f32.mrf.mxu0
      %v1060 = vadd.f32 %v759, %v1059
      %v1061 = vpop.f32.mrf.mxu0
      %v1062 = vpop.f32.mrf.mxu0
      %v1063 = vadd.f32 %v759, %v1062
      %v1064 = vpop.f32.mrf.mxu0
      %1065 = vmatprep.mubr.bf16.mxu0 0
      %1066 = vmatmul.mubr.bf16.gmra.mxu0 %v734
      %v1067 = vpop.f32.mrf.mxu0
      %v1068 = vadd.f32 %v759, %v1067
      %v1069 = vpop.f32.mrf.mxu0
      %v1070 = vpop.f32.mrf.mxu0
      %v1071 = vadd.f32 %v759, %v1070
      %v1072 = vpop.f32.mrf.mxu0
      %1073 = vmatprep.mubr.bf16.mxu0 0
      %1074 = vmatmul.mubr.bf16.gmra.mxu0 %v735
      %v1075 = vpop.f32.mrf.mxu0
      %v1076 = vadd.f32 %v759, %v1075
      %v1077 = vpop.f32.mrf.mxu0
      %v1078 = vpop.f32.mrf.mxu0
      %v1079 = vadd.f32 %v759, %v1078
      %v1080 = vpop.f32.mrf.mxu0
      %1081 = vmatprep.mubr.bf16.mxu0 0
      %1082 = vmatmul.mubr.bf16.gmra.mxu0 %v736
      %v1083 = vpop.f32.mrf.mxu0
      %v1084 = vadd.f32 %v759, %v1083
      %v1085 = vpop.f32.mrf.mxu0
      %v1086 = vpop.f32.mrf.mxu0
      %v1087 = vadd.f32 %v759, %v1086
      %v1088 = vpop.f32.mrf.mxu0
      %1089 = vmatprep.mubr.bf16.mxu0 0
      %1090 = vmatmul.mubr.bf16.gmra.mxu0 %v737
      %v1091 = vpop.f32.mrf.mxu0
      %v1092 = vadd.f32 %v759, %v1091
      %v1093 = vpop.f32.mrf.mxu0
      %v1094 = vpop.f32.mrf.mxu0
      %v1095 = vadd.f32 %v759, %v1094
      %v1096 = vpop.f32.mrf.mxu0
      %1097 = vdwg.mxu0
      %vm1098 = vcmask 130048
      %v1099 = vsel %vm1098, %v844, 0.0
      %v1100 = vsel %vm1098, %v847, 0.0
      %v1101 = vadd.f32 %v1099, %v1100
      %v1102 = vsel %vm1098, %v852, 0.0
      %v1103 = vadd.f32 %v1101, %v1102
      %v1104 = vsel %vm1098, %v855, 0.0
      %v1105 = vadd.f32 %v1103, %v1104
      %v1106 = vsel %vm1098, %v860, 0.0
      %v1107 = vadd.f32 %v1105, %v1106
      %v1108 = vsel %vm1098, %v863, 0.0
      %v1109 = vadd.f32 %v1107, %v1108
      %v1110 = vsel %vm1098, %v868, 0.0
      %v1111 = vadd.f32 %v1109, %v1110
      %v1112 = vsel %vm1098, %v871, 0.0
      %v1113 = vadd.f32 %v1111, %v1112
      %v1114 = vsel %vm1098, %v876, 0.0
      %v1115 = vadd.f32 %v1113, %v1114
      %v1116 = vsel %vm1098, %v879, 0.0
      %v1117 = vadd.f32 %v1115, %v1116
      %v1118 = vsel %vm1098, %v884, 0.0
      %v1119 = vadd.f32 %v1117, %v1118
      %v1120 = vsel %vm1098, %v887, 0.0
      %v1121 = vadd.f32 %v1119, %v1120
      %v1122 = vsel %vm1098, %v892, 0.0
      %v1123 = vadd.f32 %v1121, %v1122
      %v1124 = vsel %vm1098, %v895, 0.0
      %v1125 = vadd.f32 %v1123, %v1124
      %v1126 = vsel %vm1098, %v900, 0.0
      %v1127 = vadd.f32 %v1125, %v1126
      %v1128 = vsel %vm1098, %v903, 0.0
      %v1129 = vadd.f32 %v1127, %v1128
      %v1130 = vsel %vm1098, %v908, 0.0
      %v1131 = vadd.f32 %v1129, %v1130
      %v1132 = vsel %vm1098, %v911, 0.0
      %v1133 = vadd.f32 %v1131, %v1132
      %v1134 = vsel %vm1098, %v916, 0.0
      %v1135 = vadd.f32 %v1133, %v1134
      %v1136 = vsel %vm1098, %v919, 0.0
      %v1137 = vadd.f32 %v1135, %v1136
      %v1138 = vsel %vm1098, %v924, 0.0
      %v1139 = vadd.f32 %v1137, %v1138
      %v1140 = vsel %vm1098, %v927, 0.0
      %v1141 = vadd.f32 %v1139, %v1140
      %v1142 = vsel %vm1098, %v932, 0.0
      %v1143 = vadd.f32 %v1141, %v1142
      %v1144 = vsel %vm1098, %v935, 0.0
      %v1145 = vadd.f32 %v1143, %v1144
      %v1146 = vsel %vm1098, %v940, 0.0
      %v1147 = vadd.f32 %v1145, %v1146
      %v1148 = vsel %vm1098, %v943, 0.0
      %v1149 = vadd.f32 %v1147, %v1148
      %v1150 = vsel %vm1098, %v948, 0.0
      %v1151 = vadd.f32 %v1149, %v1150
      %v1152 = vsel %vm1098, %v951, 0.0
      %v1153 = vadd.f32 %v1151, %v1152
      %v1154 = vsel %vm1098, %v956, 0.0
      %v1155 = vadd.f32 %v1153, %v1154
      %v1156 = vsel %vm1098, %v959, 0.0
      %v1157 = vadd.f32 %v1155, %v1156
      %v1158 = vsel %vm1098, %v964, 0.0
      %v1159 = vadd.f32 %v1157, %v1158
      %v1160 = vsel %vm1098, %v967, 0.0
      %v1161 = vadd.f32 %v1159, %v1160
      %v1162 = vsel %vm1098, %v972, 0.0
      %v1163 = vadd.f32 %v1161, %v1162
      %v1164 = vsel %vm1098, %v975, 0.0
      %v1165 = vadd.f32 %v1163, %v1164
      %v1166 = vsel %vm1098, %v980, 0.0
      %v1167 = vadd.f32 %v1165, %v1166
      %v1168 = vsel %vm1098, %v983, 0.0
      %v1169 = vadd.f32 %v1167, %v1168
      %v1170 = vsel %vm1098, %v988, 0.0
      %v1171 = vadd.f32 %v1169, %v1170
      %v1172 = vsel %vm1098, %v991, 0.0
      %v1173 = vadd.f32 %v1171, %v1172
      %v1174 = vsel %vm1098, %v996, 0.0
      %v1175 = vadd.f32 %v1173, %v1174
      %v1176 = vsel %vm1098, %v999, 0.0
      %v1177 = vadd.f32 %v1175, %v1176
      %v1178 = vsel %vm1098, %v1004, 0.0
      %v1179 = vadd.f32 %v1177, %v1178
      %v1180 = vsel %vm1098, %v1007, 0.0
      %v1181 = vadd.f32 %v1179, %v1180
      %v1182 = vsel %vm1098, %v1012, 0.0
      %v1183 = vadd.f32 %v1181, %v1182
      %v1184 = vsel %vm1098, %v1015, 0.0
      %v1185 = vadd.f32 %v1183, %v1184
      %v1186 = vsel %vm1098, %v1020, 0.0
      %v1187 = vadd.f32 %v1185, %v1186
      %v1188 = vsel %vm1098, %v1023, 0.0
      %v1189 = vadd.f32 %v1187, %v1188
      %v1190 = vsel %vm1098, %v1028, 0.0
      %v1191 = vadd.f32 %v1189, %v1190
      %v1192 = vsel %vm1098, %v1031, 0.0
      %v1193 = vadd.f32 %v1191, %v1192
      %v1194 = vsel %vm1098, %v1036, 0.0
      %v1195 = vadd.f32 %v1193, %v1194
      %v1196 = vsel %vm1098, %v1039, 0.0
      %v1197 = vadd.f32 %v1195, %v1196
      %v1198 = vsel %vm1098, %v1044, 0.0
      %v1199 = vadd.f32 %v1197, %v1198
      %v1200 = vsel %vm1098, %v1047, 0.0
      %v1201 = vadd.f32 %v1199, %v1200
      %v1202 = vsel %vm1098, %v1052, 0.0
      %v1203 = vadd.f32 %v1201, %v1202
      %v1204 = vsel %vm1098, %v1055, 0.0
      %v1205 = vadd.f32 %v1203, %v1204
      %v1206 = vsel %vm1098, %v1060, 0.0
      %v1207 = vadd.f32 %v1205, %v1206
      %v1208 = vsel %vm1098, %v1063, 0.0
      %v1209 = vadd.f32 %v1207, %v1208
      %v1210 = vsel %vm1098, %v1068, 0.0
      %v1211 = vadd.f32 %v1209, %v1210
      %v1212 = vsel %vm1098, %v1071, 0.0
      %v1213 = vadd.f32 %v1211, %v1212
      %v1214 = vsel %vm1098, %v1076, 0.0
      %v1215 = vadd.f32 %v1213, %v1214
      %v1216 = vsel %vm1098, %v1079, 0.0
      %v1217 = vadd.f32 %v1215, %v1216
      %v1218 = vsel %vm1098, %v1084, 0.0
      %v1219 = vadd.f32 %v1217, %v1218
      %v1220 = vsel %vm1098, %v1087, 0.0
      %v1221 = vadd.f32 %v1219, %v1220
      %v1222 = vsel %vm1098, %v1092, 0.0
      %v1223 = vadd.f32 %v1221, %v1222
      %v1224 = vsel %vm1098, %v1095, 0.0
      %v1225 = vadd.f32 %v1223, %v1224
      %v1226 = vrot.slane %v1225, 4
      %v1227 = vadd.f32 %v1225, %v1226
      %v1228 = vrot.slane %v1227, 2
      %v1229 = vadd.f32 %v1227, %v1228
      %v1230 = vrot.slane %v1229, 1
      %v1231 = vadd.f32 %v1229, %v1230
      %vm1232 = vcmask 122880
      %1233 = vst.msk [vmem:[%s364] sm:$0x1] %vm1232, %v1231
      %v1234 = vmul.f32 %v844, %v844
      %v1235 = vmul.f32 %v847, %v847
      %v1236 = vmul.f32 %v852, %v852
      %v1237 = vmul.f32 %v855, %v855
      %v1238 = vmul.f32 %v860, %v860
      %v1239 = vmul.f32 %v863, %v863
      %v1240 = vmul.f32 %v868, %v868
      %v1241 = vmul.f32 %v871, %v871
      %v1242 = vmul.f32 %v876, %v876
      %v1243 = vmul.f32 %v879, %v879
      %v1244 = vmul.f32 %v884, %v884
      %v1245 = vmul.f32 %v887, %v887
      %v1246 = vmul.f32 %v892, %v892
      %v1247 = vmul.f32 %v895, %v895
      %v1248 = vmul.f32 %v900, %v900
      %v1249 = vmul.f32 %v903, %v903
      %v1250 = vmul.f32 %v908, %v908
      %v1251 = vmul.f32 %v911, %v911
      %v1252 = vmul.f32 %v916, %v916
      %v1253 = vmul.f32 %v919, %v919
      %v1254 = vmul.f32 %v924, %v924
      %v1255 = vmul.f32 %v927, %v927
      %v1256 = vmul.f32 %v932, %v932
      %v1257 = vmul.f32 %v935, %v935
      %v1258 = vmul.f32 %v940, %v940
      %v1259 = vmul.f32 %v943, %v943
      %v1260 = vmul.f32 %v948, %v948
      %v1261 = vmul.f32 %v951, %v951
      %v1262 = vmul.f32 %v956, %v956
      %v1263 = vmul.f32 %v959, %v959
      %v1264 = vmul.f32 %v964, %v964
      %v1265 = vmul.f32 %v967, %v967
      %v1266 = vmul.f32 %v972, %v972
      %v1267 = vmul.f32 %v975, %v975
      %v1268 = vmul.f32 %v980, %v980
      %v1269 = vmul.f32 %v983, %v983
      %v1270 = vmul.f32 %v988, %v988
      %v1271 = vmul.f32 %v991, %v991
      %v1272 = vmul.f32 %v996, %v996
      %v1273 = vmul.f32 %v999, %v999
      %v1274 = vmul.f32 %v1004, %v1004
      %v1275 = vmul.f32 %v1007, %v1007
      %v1276 = vmul.f32 %v1012, %v1012
      %v1277 = vmul.f32 %v1015, %v1015
      %v1278 = vmul.f32 %v1020, %v1020
      %v1279 = vmul.f32 %v1023, %v1023
      %v1280 = vmul.f32 %v1028, %v1028
      %v1281 = vmul.f32 %v1031, %v1031
      %v1282 = vmul.f32 %v1036, %v1036
      %v1283 = vmul.f32 %v1039, %v1039
      %v1284 = vmul.f32 %v1044, %v1044
      %v1285 = vmul.f32 %v1047, %v1047
      %v1286 = vmul.f32 %v1052, %v1052
      %v1287 = vmul.f32 %v1055, %v1055
      %v1288 = vmul.f32 %v1060, %v1060
      %v1289 = vmul.f32 %v1063, %v1063
      %v1290 = vmul.f32 %v1068, %v1068
      %v1291 = vmul.f32 %v1071, %v1071
      %v1292 = vmul.f32 %v1076, %v1076
      %v1293 = vmul.f32 %v1079, %v1079
      %v1294 = vmul.f32 %v1084, %v1084
      %v1295 = vmul.f32 %v1087, %v1087
      %v1296 = vmul.f32 %v1092, %v1092
      %v1297 = vmul.f32 %v1095, %v1095
      %v1298 = vsel %vm1098, %v1234, 0.0
      %v1299 = vsel %vm1098, %v1235, 0.0
      %v1300 = vadd.f32 %v1298, %v1299
      %v1301 = vsel %vm1098, %v1236, 0.0
      %v1302 = vadd.f32 %v1300, %v1301
      %v1303 = vsel %vm1098, %v1237, 0.0
      %v1304 = vadd.f32 %v1302, %v1303
      %v1305 = vsel %vm1098, %v1238, 0.0
      %v1306 = vadd.f32 %v1304, %v1305
      %v1307 = vsel %vm1098, %v1239, 0.0
      %v1308 = vadd.f32 %v1306, %v1307
      %v1309 = vsel %vm1098, %v1240, 0.0
      %v1310 = vadd.f32 %v1308, %v1309
      %v1311 = vsel %vm1098, %v1241, 0.0
      %v1312 = vadd.f32 %v1310, %v1311
      %v1313 = vsel %vm1098, %v1242, 0.0
      %v1314 = vadd.f32 %v1312, %v1313
      %v1315 = vsel %vm1098, %v1243, 0.0
      %v1316 = vadd.f32 %v1314, %v1315
      %v1317 = vsel %vm1098, %v1244, 0.0
      %v1318 = vadd.f32 %v1316, %v1317
      %v1319 = vsel %vm1098, %v1245, 0.0
      %v1320 = vadd.f32 %v1318, %v1319
      %v1321 = vsel %vm1098, %v1246, 0.0
      %v1322 = vadd.f32 %v1320, %v1321
      %v1323 = vsel %vm1098, %v1247, 0.0
      %v1324 = vadd.f32 %v1322, %v1323
      %v1325 = vsel %vm1098, %v1248, 0.0
      %v1326 = vadd.f32 %v1324, %v1325
      %v1327 = vsel %vm1098, %v1249, 0.0
      %v1328 = vadd.f32 %v1326, %v1327
      %v1329 = vsel %vm1098, %v1250, 0.0
      %v1330 = vadd.f32 %v1328, %v1329
      %v1331 = vsel %vm1098, %v1251, 0.0
      %v1332 = vadd.f32 %v1330, %v1331
      %v1333 = vsel %vm1098, %v1252, 0.0
      %v1334 = vadd.f32 %v1332, %v1333
      %v1335 = vsel %vm1098, %v1253, 0.0
      %v1336 = vadd.f32 %v1334, %v1335
      %v1337 = vsel %vm1098, %v1254, 0.0
      %v1338 = vadd.f32 %v1336, %v1337
      %v1339 = vsel %vm1098, %v1255, 0.0
      %v1340 = vadd.f32 %v1338, %v1339
      %v1341 = vsel %vm1098, %v1256, 0.0
      %v1342 = vadd.f32 %v1340, %v1341
      %v1343 = vsel %vm1098, %v1257, 0.0
      %v1344 = vadd.f32 %v1342, %v1343
      %v1345 = vsel %vm1098, %v1258, 0.0
      %v1346 = vadd.f32 %v1344, %v1345
      %v1347 = vsel %vm1098, %v1259, 0.0
      %v1348 = vadd.f32 %v1346, %v1347
      %v1349 = vsel %vm1098, %v1260, 0.0
      %v1350 = vadd.f32 %v1348, %v1349
      %v1351 = vsel %vm1098, %v1261, 0.0
      %v1352 = vadd.f32 %v1350, %v1351
      %v1353 = vsel %vm1098, %v1262, 0.0
      %v1354 = vadd.f32 %v1352, %v1353
      %v1355 = vsel %vm1098, %v1263, 0.0
      %v1356 = vadd.f32 %v1354, %v1355
      %v1357 = vsel %vm1098, %v1264, 0.0
      %v1358 = vadd.f32 %v1356, %v1357
      %v1359 = vsel %vm1098, %v1265, 0.0
      %v1360 = vadd.f32 %v1358, %v1359
      %v1361 = vsel %vm1098, %v1266, 0.0
      %v1362 = vadd.f32 %v1360, %v1361
      %v1363 = vsel %vm1098, %v1267, 0.0
      %v1364 = vadd.f32 %v1362, %v1363
      %v1365 = vsel %vm1098, %v1268, 0.0
      %v1366 = vadd.f32 %v1364, %v1365
      %v1367 = vsel %vm1098, %v1269, 0.0
      %v1368 = vadd.f32 %v1366, %v1367
      %v1369 = vsel %vm1098, %v1270, 0.0
      %v1370 = vadd.f32 %v1368, %v1369
      %v1371 = vsel %vm1098, %v1271, 0.0
      %v1372 = vadd.f32 %v1370, %v1371
      %v1373 = vsel %vm1098, %v1272, 0.0
      %v1374 = vadd.f32 %v1372, %v1373
      %v1375 = vsel %vm1098, %v1273, 0.0
      %v1376 = vadd.f32 %v1374, %v1375
      %v1377 = vsel %vm1098, %v1274, 0.0
      %v1378 = vadd.f32 %v1376, %v1377
      %v1379 = vsel %vm1098, %v1275, 0.0
      %v1380 = vadd.f32 %v1378, %v1379
      %v1381 = vsel %vm1098, %v1276, 0.0
      %v1382 = vadd.f32 %v1380, %v1381
      %v1383 = vsel %vm1098, %v1277, 0.0
      %v1384 = vadd.f32 %v1382, %v1383
      %v1385 = vsel %vm1098, %v1278, 0.0
      %v1386 = vadd.f32 %v1384, %v1385
      %v1387 = vsel %vm1098, %v1279, 0.0
      %v1388 = vadd.f32 %v1386, %v1387
      %v1389 = vsel %vm1098, %v1280, 0.0
      %v1390 = vadd.f32 %v1388, %v1389
      %v1391 = vsel %vm1098, %v1281, 0.0
      %v1392 = vadd.f32 %v1390, %v1391
      %v1393 = vsel %vm1098, %v1282, 0.0
      %v1394 = vadd.f32 %v1392, %v1393
      %v1395 = vsel %vm1098, %v1283, 0.0
      %v1396 = vadd.f32 %v1394, %v1395
      %v1397 = vsel %vm1098, %v1284, 0.0
      %v1398 = vadd.f32 %v1396, %v1397
      %v1399 = vsel %vm1098, %v1285, 0.0
      %v1400 = vadd.f32 %v1398, %v1399
      %v1401 = vsel %vm1098, %v1286, 0.0
      %v1402 = vadd.f32 %v1400, %v1401
      %v1403 = vsel %vm1098, %v1287, 0.0
      %v1404 = vadd.f32 %v1402, %v1403
      %v1405 = vsel %vm1098, %v1288, 0.0
      %v1406 = vadd.f32 %v1404, %v1405
      %v1407 = vsel %vm1098, %v1289, 0.0
      %v1408 = vadd.f32 %v1406, %v1407
      %v1409 = vsel %vm1098, %v1290, 0.0
      %v1410 = vadd.f32 %v1408, %v1409
      %v1411 = vsel %vm1098, %v1291, 0.0
      %v1412 = vadd.f32 %v1410, %v1411
      %v1413 = vsel %vm1098, %v1292, 0.0
      %v1414 = vadd.f32 %v1412, %v1413
      %v1415 = vsel %vm1098, %v1293, 0.0
      %v1416 = vadd.f32 %v1414, %v1415
      %v1417 = vsel %vm1098, %v1294, 0.0
      %v1418 = vadd.f32 %v1416, %v1417
      %v1419 = vsel %vm1098, %v1295, 0.0
      %v1420 = vadd.f32 %v1418, %v1419
      %v1421 = vsel %vm1098, %v1296, 0.0
      %v1422 = vadd.f32 %v1420, %v1421
      %v1423 = vsel %vm1098, %v1297, 0.0
      %v1424 = vadd.f32 %v1422, %v1423
      %v1425 = vrot.slane %v1424, 4
      %v1426 = vadd.f32 %v1424, %v1425
      %v1427 = vrot.slane %v1426, 2
      %v1428 = vadd.f32 %v1426, %v1427
      %v1429 = vrot.slane %v1428, 1
      %v1430 = vadd.f32 %v1428, %v1429
      %1431 = vst.msk [vmem:[%s370] sm:$0x1] %vm1232, %v1430
      %v1432 = vpack.c.bf16 %v847, %v844
      %v1433 = vpack.c.bf16 %v855, %v852
      %v1434 = vpack.c.bf16 %v863, %v860
      %v1435 = vpack.c.bf16 %v871, %v868
      %v1436 = vpack.c.bf16 %v879, %v876
      %v1437 = vpack.c.bf16 %v887, %v884
      %v1438 = vpack.c.bf16 %v895, %v892
      %v1439 = vpack.c.bf16 %v903, %v900
      %v1440 = vpack.c.bf16 %v911, %v908
      %v1441 = vpack.c.bf16 %v919, %v916
      %v1442 = vpack.c.bf16 %v927, %v924
      %v1443 = vpack.c.bf16 %v935, %v932
      %v1444 = vpack.c.bf16 %v943, %v940
      %v1445 = vpack.c.bf16 %v951, %v948
      %v1446 = vpack.c.bf16 %v959, %v956
      %v1447 = vpack.c.bf16 %v967, %v964
      %v1448 = vpack.c.bf16 %v975, %v972
      %v1449 = vpack.c.bf16 %v983, %v980
      %v1450 = vpack.c.bf16 %v991, %v988
      %v1451 = vpack.c.bf16 %v999, %v996
      %v1452 = vpack.c.bf16 %v1007, %v1004
      %v1453 = vpack.c.bf16 %v1015, %v1012
      %v1454 = vpack.c.bf16 %v1023, %v1020
      %v1455 = vpack.c.bf16 %v1031, %v1028
      %v1456 = vpack.c.bf16 %v1039, %v1036
      %v1457 = vpack.c.bf16 %v1047, %v1044
      %v1458 = vpack.c.bf16 %v1055, %v1052
      %v1459 = vpack.c.bf16 %v1063, %v1060
      %v1460 = vpack.c.bf16 %v1071, %v1068
      %v1461 = vpack.c.bf16 %v1079, %v1076
      %v1462 = vpack.c.bf16 %v1087, %v1084
      %v1463 = vpack.c.bf16 %v1095, %v1092
      %v1496 = vunpack.c.l.b16 %v1432
      %v1497 = vunpack.c.h.b16 %v1432
      %v1498 = vunpack.c.l.b16 %v1433
      %v1499 = vunpack.c.h.b16 %v1433
      %v1500 = vunpack.c.l.b16 %v1434
      %v1501 = vunpack.c.h.b16 %v1434
      %v1502 = vunpack.c.l.b16 %v1435
      %v1503 = vunpack.c.h.b16 %v1435
      %v1504 = vunpack.c.l.b16 %v1436
      %v1505 = vunpack.c.h.b16 %v1436
      %v1506 = vunpack.c.l.b16 %v1437
      %v1507 = vunpack.c.h.b16 %v1437
      %v1508 = vunpack.c.l.b16 %v1438
      %v1509 = vunpack.c.h.b16 %v1438
      %v1510 = vunpack.c.l.b16 %v1439
      %v1511 = vunpack.c.h.b16 %v1439
      %v1512 = vunpack.c.l.b16 %v1440
      %v1513 = vunpack.c.h.b16 %v1440
      %v1514 = vunpack.c.l.b16 %v1441
      %v1515 = vunpack.c.h.b16 %v1441
      %v1516 = vunpack.c.l.b16 %v1442
      %v1517 = vunpack.c.h.b16 %v1442
      %v1518 = vunpack.c.l.b16 %v1443
      %v1519 = vunpack.c.h.b16 %v1443
      %v1520 = vunpack.c.l.b16 %v1444
      %v1521 = vunpack.c.h.b16 %v1444
      %v1522 = vunpack.c.l.b16 %v1445
      %v1523 = vunpack.c.h.b16 %v1445
      %v1524 = vunpack.c.l.b16 %v1446
      %v1525 = vunpack.c.h.b16 %v1446
      %v1526 = vunpack.c.l.b16 %v1447
      %v1527 = vunpack.c.h.b16 %v1447
      %v1528 = vunpack.c.l.b16 %v1448
      %v1529 = vunpack.c.h.b16 %v1448
      %v1530 = vunpack.c.l.b16 %v1449
      %v1531 = vunpack.c.h.b16 %v1449
      %v1532 = vunpack.c.l.b16 %v1450
      %v1533 = vunpack.c.h.b16 %v1450
      %v1534 = vunpack.c.l.b16 %v1451
      %v1535 = vunpack.c.h.b16 %v1451
      %v1536 = vunpack.c.l.b16 %v1452
      %v1537 = vunpack.c.h.b16 %v1452
      %v1538 = vunpack.c.l.b16 %v1453
      %v1539 = vunpack.c.h.b16 %v1453
      %v1540 = vunpack.c.l.b16 %v1454
      %v1541 = vunpack.c.h.b16 %v1454
      %v1542 = vunpack.c.l.b16 %v1455
      %v1543 = vunpack.c.h.b16 %v1455
      %v1544 = vunpack.c.l.b16 %v1456
      %v1545 = vunpack.c.h.b16 %v1456
      %v1546 = vunpack.c.l.b16 %v1457
      %v1547 = vunpack.c.h.b16 %v1457
      %v1548 = vunpack.c.l.b16 %v1458
      %v1549 = vunpack.c.h.b16 %v1458
      %v1550 = vunpack.c.l.b16 %v1459
      %v1551 = vunpack.c.h.b16 %v1459
      %v1552 = vunpack.c.l.b16 %v1460
      %v1553 = vunpack.c.h.b16 %v1460
      %v1554 = vunpack.c.l.b16 %v1461
      %v1555 = vunpack.c.h.b16 %v1461
      %v1556 = vunpack.c.l.b16 %v1462
      %v1557 = vunpack.c.h.b16 %v1462
      %v1558 = vunpack.c.l.b16 %v1463
      %v1559 = vunpack.c.h.b16 %v1463
      %v1560 = vpack.c.b16 %v1496, %v1496
      %v1561 = vpack.c.b16 %v1497, %v1497
      %v1562 = vpack.c.b16 %v1498, %v1498
      %v1563 = vpack.c.b16 %v1499, %v1499
      %v1564 = vpack.c.b16 %v1500, %v1500
      %v1565 = vpack.c.b16 %v1501, %v1501
      %v1566 = vpack.c.b16 %v1502, %v1502
      %v1567 = vpack.c.b16 %v1503, %v1503
      %v1568 = vpack.c.b16 %v1504, %v1504
      %v1569 = vpack.c.b16 %v1505, %v1505
      %v1570 = vpack.c.b16 %v1506, %v1506
      %v1571 = vpack.c.b16 %v1507, %v1507
      %v1572 = vpack.c.b16 %v1508, %v1508
      %v1573 = vpack.c.b16 %v1509, %v1509
      %v1574 = vpack.c.b16 %v1510, %v1510
      %v1575 = vpack.c.b16 %v1511, %v1511
      %v1576 = vpack.c.b16 %v1512, %v1512
      %v1577 = vpack.c.b16 %v1513, %v1513
      %v1578 = vpack.c.b16 %v1514, %v1514
      %v1579 = vpack.c.b16 %v1515, %v1515
      %v1580 = vpack.c.b16 %v1516, %v1516
      %v1581 = vpack.c.b16 %v1517, %v1517
      %v1582 = vpack.c.b16 %v1518, %v1518
      %v1583 = vpack.c.b16 %v1519, %v1519
      %v1584 = vpack.c.b16 %v1520, %v1520
      %v1585 = vpack.c.b16 %v1521, %v1521
      %v1586 = vpack.c.b16 %v1522, %v1522
      %v1587 = vpack.c.b16 %v1523, %v1523
      %v1588 = vpack.c.b16 %v1524, %v1524
      %v1589 = vpack.c.b16 %v1525, %v1525
      %v1590 = vpack.c.b16 %v1526, %v1526
      %v1591 = vpack.c.b16 %v1527, %v1527
      %v1592 = vpack.c.b16 %v1528, %v1528
      %v1593 = vpack.c.b16 %v1529, %v1529
      %v1594 = vpack.c.b16 %v1530, %v1530
      %v1595 = vpack.c.b16 %v1531, %v1531
      %v1596 = vpack.c.b16 %v1532, %v1532
      %v1597 = vpack.c.b16 %v1533, %v1533
      %v1598 = vpack.c.b16 %v1534, %v1534
      %v1599 = vpack.c.b16 %v1535, %v1535
      %v1600 = vpack.c.b16 %v1536, %v1536
      %v1601 = vpack.c.b16 %v1537, %v1537
      %v1602 = vpack.c.b16 %v1538, %v1538
      %v1603 = vpack.c.b16 %v1539, %v1539
      %v1604 = vpack.c.b16 %v1540, %v1540
      %v1605 = vpack.c.b16 %v1541, %v1541
      %v1606 = vpack.c.b16 %v1542, %v1542
      %v1607 = vpack.c.b16 %v1543, %v1543
      %v1608 = vpack.c.b16 %v1544, %v1544
      %v1609 = vpack.c.b16 %v1545, %v1545
      %v1610 = vpack.c.b16 %v1546, %v1546
      %v1611 = vpack.c.b16 %v1547, %v1547
      %v1612 = vpack.c.b16 %v1548, %v1548
      %v1613 = vpack.c.b16 %v1549, %v1549
      %v1614 = vpack.c.b16 %v1550, %v1550
      %v1615 = vpack.c.b16 %v1551, %v1551
      %v1616 = vpack.c.b16 %v1552, %v1552
      %v1617 = vpack.c.b16 %v1553, %v1553
      %v1618 = vpack.c.b16 %v1554, %v1554
      %v1619 = vpack.c.b16 %v1555, %v1555
      %v1620 = vpack.c.b16 %v1556, %v1556
      %v1621 = vpack.c.b16 %v1557, %v1557
      %v1622 = vpack.c.b16 %v1558, %v1558
      %v1623 = vpack.c.b16 %v1559, %v1559
      %vm1688 = vcmask 125952
      %1689 = vst.msk [vmem:[%s357] sm:$0xf] %vm1688, %v1560
      %1690 = vst.msk [vmem:[%s357 + $0x4] sm:$0xf] %vm1688, %v1561
      %1691 = vst.msk [vmem:[%s357 + $0x8] sm:$0xf] %vm1688, %v1562
      %1692 = vst.msk [vmem:[%s357 + $0xc] sm:$0xf] %vm1688, %v1563
      %1693 = vst.msk [vmem:[%s357 + $0x10] sm:$0xf] %vm1688, %v1564
      %1694 = vst.msk [vmem:[%s357 + $0x14] sm:$0xf] %vm1688, %v1565
      %1695 = vst.msk [vmem:[%s357 + $0x18] sm:$0xf] %vm1688, %v1566
      %1696 = vst.msk [vmem:[%s357 + $0x1c] sm:$0xf] %vm1688, %v1567
      %1697 = vst.msk [vmem:[%s357 + $0x20] sm:$0xf] %vm1688, %v1568
      %1698 = vst.msk [vmem:[%s357 + $0x24] sm:$0xf] %vm1688, %v1569
      %1699 = vst.msk [vmem:[%s357 + $0x28] sm:$0xf] %vm1688, %v1570
      %1700 = vst.msk [vmem:[%s357 + $0x2c] sm:$0xf] %vm1688, %v1571
      %1701 = vst.msk [vmem:[%s357 + $0x30] sm:$0xf] %vm1688, %v1572
      %1702 = vst.msk [vmem:[%s357 + $0x34] sm:$0xf] %vm1688, %v1573
      %1703 = vst.msk [vmem:[%s357 + $0x38] sm:$0xf] %vm1688, %v1574
      %1704 = vst.msk [vmem:[%s357 + $0x3c] sm:$0xf] %vm1688, %v1575
      %1705 = vst.msk [vmem:[%s357 + $0x40] sm:$0xf] %vm1688, %v1576
      %1706 = vst.msk [vmem:[%s357 + $0x44] sm:$0xf] %vm1688, %v1577
      %1707 = vst.msk [vmem:[%s357 + $0x48] sm:$0xf] %vm1688, %v1578
      %1708 = vst.msk [vmem:[%s357 + $0x4c] sm:$0xf] %vm1688, %v1579
      %1709 = vst.msk [vmem:[%s357 + $0x50] sm:$0xf] %vm1688, %v1580
      %1710 = vst.msk [vmem:[%s357 + $0x54] sm:$0xf] %vm1688, %v1581
      %1711 = vst.msk [vmem:[%s357 + $0x58] sm:$0xf] %vm1688, %v1582
      %1712 = vst.msk [vmem:[%s357 + $0x5c] sm:$0xf] %vm1688, %v1583
      %1713 = vst.msk [vmem:[%s357 + $0x60] sm:$0xf] %vm1688, %v1584
      %1714 = vst.msk [vmem:[%s357 + $0x64] sm:$0xf] %vm1688, %v1585
      %1715 = vst.msk [vmem:[%s357 + $0x68] sm:$0xf] %vm1688, %v1586
      %1716 = vst.msk [vmem:[%s357 + $0x6c] sm:$0xf] %vm1688, %v1587
      %1717 = vst.msk [vmem:[%s357 + $0x70] sm:$0xf] %vm1688, %v1588
      %1718 = vst.msk [vmem:[%s357 + $0x74] sm:$0xf] %vm1688, %v1589
      %1719 = vst.msk [vmem:[%s357 + $0x78] sm:$0xf] %vm1688, %v1590
      %1720 = vst.msk [vmem:[%s357 + $0x7c] sm:$0xf] %vm1688, %v1591
      %1721 = vst.msk [vmem:[%s357 + $0x80] sm:$0xf] %vm1688, %v1592
      %1722 = vst.msk [vmem:[%s357 + $0x84] sm:$0xf] %vm1688, %v1593
      %1723 = vst.msk [vmem:[%s357 + $0x88] sm:$0xf] %vm1688, %v1594
      %1724 = vst.msk [vmem:[%s357 + $0x8c] sm:$0xf] %vm1688, %v1595
      %1725 = vst.msk [vmem:[%s357 + $0x90] sm:$0xf] %vm1688, %v1596
      %1726 = vst.msk [vmem:[%s357 + $0x94] sm:$0xf] %vm1688, %v1597
      %1727 = vst.msk [vmem:[%s357 + $0x98] sm:$0xf] %vm1688, %v1598
      %1728 = vst.msk [vmem:[%s357 + $0x9c] sm:$0xf] %vm1688, %v1599
      %1729 = vst.msk [vmem:[%s357 + $0xa0] sm:$0xf] %vm1688, %v1600
      %1730 = vst.msk [vmem:[%s357 + $0xa4] sm:$0xf] %vm1688, %v1601
      %1731 = vst.msk [vmem:[%s357 + $0xa8] sm:$0xf] %vm1688, %v1602
      %1732 = vst.msk [vmem:[%s357 + $0xac] sm:$0xf] %vm1688, %v1603
      %1733 = vst.msk [vmem:[%s357 + $0xb0] sm:$0xf] %vm1688, %v1604
      %1734 = vst.msk [vmem:[%s357 + $0xb4] sm:$0xf] %vm1688, %v1605
      %1735 = vst.msk [vmem:[%s357 + $0xb8] sm:$0xf] %vm1688, %v1606
      %1736 = vst.msk [vmem:[%s357 + $0xbc] sm:$0xf] %vm1688, %v1607
      %1737 = vst.msk [vmem:[%s357 + $0xc0] sm:$0xf] %vm1688, %v1608
      %1738 = vst.msk [vmem:[%s357 + $0xc4] sm:$0xf] %vm1688, %v1609
      %1739 = vst.msk [vmem:[%s357 + $0xc8] sm:$0xf] %vm1688, %v1610
      %1740 = vst.msk [vmem:[%s357 + $0xcc] sm:$0xf] %vm1688, %v1611
      %1741 = vst.msk [vmem:[%s357 + $0xd0] sm:$0xf] %vm1688, %v1612
      %1742 = vst.msk [vmem:[%s357 + $0xd4] sm:$0xf] %vm1688, %v1613
      %1743 = vst.msk [vmem:[%s357 + $0xd8] sm:$0xf] %vm1688, %v1614
      %1744 = vst.msk [vmem:[%s357 + $0xdc] sm:$0xf] %vm1688, %v1615
      %1745 = vst.msk [vmem:[%s357 + $0xe0] sm:$0xf] %vm1688, %v1616
      %1746 = vst.msk [vmem:[%s357 + $0xe4] sm:$0xf] %vm1688, %v1617
      %1747 = vst.msk [vmem:[%s357 + $0xe8] sm:$0xf] %vm1688, %v1618
      %1748 = vst.msk [vmem:[%s357 + $0xec] sm:$0xf] %vm1688, %v1619
      %1749 = vst.msk [vmem:[%s357 + $0xf0] sm:$0xf] %vm1688, %v1620
      %1750 = vst.msk [vmem:[%s357 + $0xf4] sm:$0xf] %vm1688, %v1621
      %1751 = vst.msk [vmem:[%s357 + $0xf8] sm:$0xf] %vm1688, %v1622
      %1752 = vst.msk [vmem:[%s357 + $0xfc] sm:$0xf] %vm1688, %v1623
      %s1753 = smul.u32 64, %s24
      %p1754 = scmp.lt.s32.totalorder %s23, 3
      %s1755 = scalar_select %p1754, %s23, 3
      %p1756 = scmp.lt.s32.totalorder %s1753, 63
      %s1757 = scalar_select %p1756, %s1753, 63
      %s1758 = smul.addr %s1755, 64
      %s1759 = sadd.s32 %s1757, %s1758
      %s1760 = smul.addr %s1759, 4
      %s1761 = scalar_lea.vmem %s5, %s1760
      %p1762 = scmp.lt.s32.totalorder %s23, 3
      %s1763 = scalar_select %p1762, %s23, 3
      %p1764 = scmp.lt.s32.totalorder %s24, 0
      %s1765 = scalar_select %p1764, %s24, 0
      %s1766 = sadd.s32 %s1765, %s1763
      %s1767 = scalar_lea.vmem %s6, %s1766
      %p1768 = scmp.lt.s32.totalorder %s23, 3
      %s1769 = scalar_select %p1768, %s23, 3
      %p1770 = scmp.lt.s32.totalorder %s24, 0
      %s1771 = scalar_select %p1770, %s24, 0
      %s1772 = sadd.s32 %s1771, %s1769
      %s1773 = scalar_lea.vmem %s7, %s1772
      // Predicated region
      $region41: #{generator_forward.8} parent=39 // pred_check
        %p1774 = pneg %p168
      $region42: #{generator_forward.8} parent=39 // pred_check_branch
        %1776 = sbr.rel (%p1774) target = $region44
      $region43: #{generator_forward.8} parent=39 // pred_region
        %s1777 = smul.u32 64, %s24
      $region44: #{generator_forward.8} parent=39 // pred_fallthru
        _
      // Predicated region
      $region45: #{generator_forward.8} parent=39 // pred_check
        %p1778 = pneg %p196
      $region46: #{generator_forward.8} parent=39 // pred_check_branch
        %1780 = sbr.rel (%p1778) target = $region48
      $region47: #{generator_forward.8} parent=39 // pred_region
        _
      $region48: #{generator_forward.8} parent=39 // pred_fallthru
        _
      // Predicated region
      $region49: #{generator_forward.8} parent=39 // pred_check
        %p1781 = pneg %p224
      $region50: #{generator_forward.8} parent=39 // pred_check_branch
        %1783 = sbr.rel (%p1781) target = $region52
      $region51: #{generator_forward.8} parent=39 // pred_region
        _
      $region52: #{generator_forward.8} parent=39 // pred_fallthru
        _
    $region40: #{generator_forward.8} parent=5 // pred_fallthru
      _
    %p1784 = scmp.le.s32.totalorder 2, %s14
    // Predicated region
    $region53: #{generator_forward.8} parent=5 // pred_check
      %p1785 = pneg %p1784
    $region54: #{generator_forward.8} parent=5 // pred_check_branch
      %1787 = sbr.rel (%p1785) target = $region56
    $region55: #{generator_forward.8} parent=5 // pred_region
      %s1788 = ssub.s32 %s14, 2
      // Predicated region
      $region57: #{generator_forward.8} parent=55 // pred_check
        %p1789 = pneg %p174
      $region58: #{generator_forward.8} parent=55 // pred_check_branch
        %1791 = sbr.rel (%p1789) target = $region60
      $region59: #{generator_forward.8} parent=55 // pred_region
        %s1792 = smul.u32 64, %s26
        %p1793 = scmp.lt.s32.totalorder %s25, 3
        %s1794 = scalar_select %p1793, %s25, 3
        %p1795 = scmp.lt.s32.totalorder %s1792, 63
        %s1796 = scalar_select %p1795, %s1792, 63
        %s1797 = smul.addr %s1794, 64
        %s1798 = sadd.s32 %s1796, %s1797
        %s1799 = smul.addr %s1798, 4
        %s1800 = scalar_lea.vmem %s5, %s1799
      $region60: #{generator_forward.8} parent=55 // pred_fallthru
        _
      // Predicated region
      $region61: #{generator_forward.8} parent=55 // pred_check
        %p1801 = pneg %p202
      $region62: #{generator_forward.8} parent=55 // pred_check_branch
        %1803 = sbr.rel (%p1801) target = $region64
      $region63: #{generator_forward.8} parent=55 // pred_region
        %p1804 = scmp.lt.s32.totalorder %s25, 3
        %s1805 = scalar_select %p1804, %s25, 3
        %p1806 = scmp.lt.s32.totalorder %s26, 0
        %s1807 = scalar_select %p1806, %s26, 0
        %s1808 = sadd.s32 %s1807, %s1805
        %s1809 = scalar_lea.vmem %s6, %s1808
      $region64: #{generator_forward.8} parent=55 // pred_fallthru
        _
      // Predicated region
      $region65: #{generator_forward.8} parent=55 // pred_check
        %p1810 = pneg %p230
      $region66: #{generator_forward.8} parent=55 // pred_check_branch
        %1812 = sbr.rel (%p1810) target = $region68
      $region67: #{generator_forward.8} parent=55 // pred_region
        %p1813 = scmp.lt.s32.totalorder %s25, 3
        %s1814 = scalar_select %p1813, %s25, 3
        %p1815 = scmp.lt.s32.totalorder %s26, 0
        %s1816 = scalar_select %p1815, %s26, 0
        %s1817 = sadd.s32 %s1816, %s1814
        %s1818 = scalar_lea.vmem %s7, %s1817
      $region68: #{generator_forward.8} parent=55 // pred_fallthru
        _
    $region56: #{generator_forward.8} parent=5 // pred_fallthru
      _
  $region6: #{generator_forward.8} parent=0 // loop_footer
    %s18 = sadd.s32 1, %s14
  $region7: #{generator_forward.8} parent=0 // loop_footer_branch
    %13 = sbr.rel target = $region3
  $region8: #{generator_forward.8} parent=0 // loop_exit
    _

// kernel: generator_forward.9
$region0: #{generator_forward.9}
  #allocation0 [shape = 'u32[]', space=smem, size = 0x4, offset = 0x4, fixed_abs, tag = 'smem constant byte address 0x4 - core index']
  #allocation1 [shape = 'u32[144,128]{1,0:T(1,128)}', space=vmem, size = 0x12000, scoped, tag = 'internal scratch']
  %s0 = inlined_call_operand.vmem [shape: bf16[4,2048,64], index: 0, kind: input, shape index: {}]
  %s1 = inlined_call_operand.vmem [shape: bf16[4,64,128], index: 1, kind: input, shape index: {}]
  %s2 = inlined_call_operand.vmem [shape: f32[1,1,128], index: 2, kind: input, shape index: {}]
  %s3 = inlined_call_operand.vmem [shape: f32[1,1,64], index: 3, kind: input, shape index: {}]
  %s4 = inlined_call_operand.vmem [shape: f32[1,1,64], index: 4, kind: input, shape index: {}]
  %s5 = inlined_call_operand.vmem [shape: f32[4,2048,3], index: 5, kind: output, shape index: {}]
  %s6 = sld [smem:[#allocation0]]
  $region53: #{generator_forward.9} parent=0
    _
  %s8 = ssub.s32 1, %s6
  %s9 = scalar_select 0, %s8, %s6
  loop: start=0, step=1, limit=10
  $region2: #{generator_forward.9} parent=0 // loop_pre_header
    _
  $region3: #{generator_forward.9} parent=0 // loop_header
    %s11 = sphi 0, %s15
    %p12 = scmp.ge.s32.totalorder %s11, 10
    %s18 = sphi 0, %s30
    %s19 = sphi 0, %s26
    %s20 = sphi 0, %s18
    %s21 = sphi 0, %s19
    %s22 = sphi 0, %s20
    %s23 = sphi 0, %s21
    %s35 = sphi 0, %s37
    %s38 = sphi 0, %s35
    %s39 = sphi 0, %s38
    %s55 = sphi 0, %s39
    %s61 = sphi 0, %s63
    %s64 = sphi 0, %s61
    %s65 = sphi 0, %s64
    %s81 = sphi 0, %s65
    %s85 = sphi 0, %s85
    %s87 = sphi 0, %s85
    %s88 = sphi 0, %s87
    %s102 = sphi 0, %s88
    %s106 = sphi 0, %s106
    %s108 = sphi 0, %s106
    %s109 = sphi 0, %s108
    %s123 = sphi 0, %s109
    %s127 = sphi 0, %s127
    %s129 = sphi 0, %s127
    %s130 = sphi 0, %s129
    %s144 = sphi 0, %s130
    %s152 = sphi 0, %s154
    %s155 = sphi 0, %s152
    %s156 = sphi 0, %s155
    %s172 = sphi 0, %s156
  $region4: #{generator_forward.9} parent=0 // loop_header_branch
    %14 = sbr.rel (%p12) target = $region8
  $region5: #{generator_forward.9} parent=0 // loop_body
    %s16 = ssub.s32 %s11, 1
    %s17 = ssub.s32 %s11, 2
    %s24 = sadd.s32 1, %s19
    %p25 = scmp.ge.s32.totalorder %s24, 2
    %s26 = scalar_select %p25, 0, %s24
    %s27 = sadd.s32 1, %s18
    %s28 = scalar_select %p25, %s27, %s18
    %p29 = scmp.ge.s32.totalorder %s28, 4
    %s30 = scalar_select %p29, 0, %s28
    %s31 = ssub.s32 %s18, %s30
    %s32 = ssub.s32 %s19, %s26
    %s33 = sor.u32 %s31, %s32
    %p34 = scmp.eq.s32.totalorder %s33, 0
    %s36 = sadd.s32 %s35, 1
    %s37 = scalar_select %p34, %s35, %s36
    %p40 = pneg %p34
    %p41 = scmp.eq.s32.totalorder %s11, 7
    %p42 = por %p40, %p41
    %p43 = scmp.ne.s32.totalorder %s35, %s38
    %p44 = scmp.eq.s32.totalorder %s11, 0
    %p45 = por %p43, %p44
    %p46 = scmp.ne.s32.totalorder %s35, %s38
    %p47 = scmp.eq.s32.totalorder %s16, 7
    %p48 = por %p46, %p47
    %p49 = scmp.ne.s32.totalorder %s38, %s39
    %p50 = scmp.eq.s32.totalorder %s16, 0
    %p51 = por %p49, %p50
    %p52 = scmp.ne.s32.totalorder %s38, %s39
    %p53 = scmp.eq.s32.totalorder %s17, 7
    %p54 = por %p52, %p53
    %p56 = scmp.ne.s32.totalorder %s39, %s55
    %p57 = scmp.eq.s32.totalorder %s17, 0
    %p58 = por %p56, %p57
    %s59 = ssub.s32 %s18, %s30
    %p60 = scmp.eq.s32.totalorder %s59, 0
    %s62 = sadd.s32 %s61, 1
    %s63 = scalar_select %p60, %s61, %s62
    %p66 = pneg %p60
    %p67 = scmp.eq.s32.totalorder %s11, 7
    %p68 = por %p66, %p67
    %p69 = scmp.ne.s32.totalorder %s61, %s64
    %p70 = scmp.eq.s32.totalorder %s11, 0
    %p71 = por %p69, %p70
    %p72 = scmp.ne.s32.totalorder %s61, %s64
    %p73 = scmp.eq.s32.totalorder %s16, 7
    %p74 = por %p72, %p73
    %p75 = scmp.ne.s32.totalorder %s64, %s65
    %p76 = scmp.eq.s32.totalorder %s16, 0
    %p77 = por %p75, %p76
    %p78 = scmp.ne.s32.totalorder %s64, %s65
    %p79 = scmp.eq.s32.totalorder %s17, 7
    %p80 = por %p78, %p79
    %p82 = scmp.ne.s32.totalorder %s65, %s81
    %p83 = scmp.eq.s32.totalorder %s17, 0
    %p84 = por %p82, %p83
    %s86 = sadd.s32 %s85, 1
    %p89 = scmp.eq.s32.totalorder %s11, 7
    %p90 = scmp.ne.s32.totalorder %s85, %s87
    %p91 = scmp.eq.s32.totalorder %s11, 0
    %p92 = por %p90, %p91
    %p93 = scmp.ne.s32.totalorder %s85, %s87
    %p94 = scmp.eq.s32.totalorder %s16, 7
    %p95 = por %p93, %p94
    %p96 = scmp.ne.s32.totalorder %s87, %s88
    %p97 = scmp.eq.s32.totalorder %s16, 0
    %p98 = por %p96, %p97
    %p99 = scmp.ne.s32.totalorder %s87, %s88
    %p100 = scmp.eq.s32.totalorder %s17, 7
    %p101 = por %p99, %p100
    %p103 = scmp.ne.s32.totalorder %s88, %s102
    %p104 = scmp.eq.s32.totalorder %s17, 0
    %p105 = por %p103, %p104
    %s107 = sadd.s32 %s106, 1
    %p110 = scmp.eq.s32.totalorder %s11, 7
    %p111 = scmp.ne.s32.totalorder %s106, %s108
    %p112 = scmp.eq.s32.totalorder %s11, 0
    %p113 = por %p111, %p112
    %p114 = scmp.ne.s32.totalorder %s106, %s108
    %p115 = scmp.eq.s32.totalorder %s16, 7
    %p116 = por %p114, %p115
    %p117 = scmp.ne.s32.totalorder %s108, %s109
    %p118 = scmp.eq.s32.totalorder %s16, 0
    %p119 = por %p117, %p118
    %p120 = scmp.ne.s32.totalorder %s108, %s109
    %p121 = scmp.eq.s32.totalorder %s17, 7
    %p122 = por %p120, %p121
    %p124 = scmp.ne.s32.totalorder %s109, %s123
    %p125 = scmp.eq.s32.totalorder %s17, 0
    %p126 = por %p124, %p125
    %s128 = sadd.s32 %s127, 1
    %p131 = scmp.eq.s32.totalorder %s11, 7
    %p132 = scmp.ne.s32.totalorder %s127, %s129
    %p133 = scmp.eq.s32.totalorder %s11, 0
    %p134 = por %p132, %p133
    %p135 = scmp.ne.s32.totalorder %s127, %s129
    %p136 = scmp.eq.s32.totalorder %s16, 7
    %p137 = por %p135, %p136
    %p138 = scmp.ne.s32.totalorder %s129, %s130
    %p139 = scmp.eq.s32.totalorder %s16, 0
    %p140 = por %p138, %p139
    %p141 = scmp.ne.s32.totalorder %s129, %s130
    %p142 = scmp.eq.s32.totalorder %s17, 7
    %p143 = por %p141, %p142
    %p145 = scmp.ne.s32.totalorder %s130, %s144
    %p146 = scmp.eq.s32.totalorder %s17, 0
    %p147 = por %p145, %p146
    %s148 = ssub.s32 %s18, %s30
    %s149 = ssub.s32 %s19, %s26
    %s150 = sor.u32 %s148, %s149
    %p151 = scmp.eq.s32.totalorder %s150, 0
    %s153 = sadd.s32 %s152, 1
    %s154 = scalar_select %p151, %s152, %s153
    %p157 = pneg %p151
    %p158 = scmp.eq.s32.totalorder %s11, 7
    %p159 = por %p157, %p158
    %p160 = scmp.ne.s32.totalorder %s152, %s155
    %p161 = scmp.eq.s32.totalorder %s11, 0
    %p162 = por %p160, %p161
    %p163 = scmp.ne.s32.totalorder %s152, %s155
    %p164 = scmp.eq.s32.totalorder %s16, 7
    %p165 = por %p163, %p164
    %p166 = scmp.ne.s32.totalorder %s155, %s156
    %p167 = scmp.eq.s32.totalorder %s16, 0
    %p168 = por %p166, %p167
    %p169 = scmp.ne.s32.totalorder %s155, %s156
    %p170 = scmp.eq.s32.totalorder %s17, 7
    %p171 = por %p169, %p170
    %p173 = scmp.ne.s32.totalorder %s156, %s172
    %p174 = scmp.eq.s32.totalorder %s17, 0
    %p175 = por %p173, %p174
    %p176 = scmp.le.s32.totalorder 1, %s11
    %p177 = scmp.lt.s32.totalorder %s11, 9
    %p178 = pnand %p176, %p177
    %p179 = pneg %p178
    // Predicated region
    $region9: #{generator_forward.9} parent=5 // pred_check
      _
    $region10: #{generator_forward.9} parent=5 // pred_check_branch
      %181 = sbr.rel (%p178) target = $region12
    $region11: #{generator_forward.9} parent=5 // pred_region
      %s182 = ssub.s32 %s11, 1
      // Predicated region
      $region13: #{generator_forward.9} parent=11 // pred_check
        %p183 = pneg %p98
      $region14: #{generator_forward.9} parent=11 // pred_check_branch
        %185 = sbr.rel (%p183) target = $region16
      $region15: #{generator_forward.9} parent=11 // pred_region
        _
      $region16: #{generator_forward.9} parent=11 // pred_fallthru
        _
      // Predicated region
      $region17: #{generator_forward.9} parent=11 // pred_check
        %p186 = pneg %p119
      $region18: #{generator_forward.9} parent=11 // pred_check_branch
        %188 = sbr.rel (%p186) target = $region20
      $region19: #{generator_forward.9} parent=11 // pred_region
        _
      $region20: #{generator_forward.9} parent=11 // pred_fallthru
        _
      // Predicated region
      $region21: #{generator_forward.9} parent=11 // pred_check
        %p189 = pneg %p140
      $region22: #{generator_forward.9} parent=11 // pred_check_branch
        %191 = sbr.rel (%p189) target = $region24
      $region23: #{generator_forward.9} parent=11 // pred_region
        _
      $region24: #{generator_forward.9} parent=11 // pred_fallthru
        _
    $region12: #{generator_forward.9} parent=5 // pred_fallthru
      _
    %p192 = scmp.lt.s32.totalorder %s11, 8
    // Predicated region
    $region25: #{generator_forward.9} parent=5 // pred_check
      %p193 = pneg %p192
    $region26: #{generator_forward.9} parent=5 // pred_check_branch
      %195 = sbr.rel (%p193) target = $region28
    $region27: #{generator_forward.9} parent=5 // pred_region
      // Predicated region
      $region29: #{generator_forward.9} parent=27 // pred_check
        %p196 = pneg %p45
      $region30: #{generator_forward.9} parent=27 // pred_check_branch
        %198 = sbr.rel (%p196) target = $region32
      $region31: #{generator_forward.9} parent=27 // pred_region
        %s199 = smul.u32 128, %s19
        %p200 = scmp.lt.s32.totalorder %s18, 3
        %s201 = scalar_select %p200, %s18, 3
        %p202 = scmp.lt.s32.totalorder %s199, 255
        %s203 = scalar_select %p202, %s199, 255
        %s204 = smul.addr %s201, 256
        %s205 = sadd.s32 %s203, %s204
        %s206 = smul.addr %s205, 4
        %s207 = scalar_lea.vmem %s0, %s206
        %s208 = smul.u32 128, %s19
      $region32: #{generator_forward.9} parent=27 // pred_fallthru
        _
      // Predicated region
      $region33: #{generator_forward.9} parent=27 // pred_check
        %p209 = pneg %p71
      $region34: #{generator_forward.9} parent=27 // pred_check_branch
        %211 = sbr.rel (%p209) target = $region36
      $region35: #{generator_forward.9} parent=27 // pred_region
        %p212 = scmp.lt.s32.totalorder %s18, 3
        %s213 = scalar_select %p212, %s18, 3
        %s214 = smul.addr %s213, 8
        %s215 = smul.addr %s214, 4
        %s216 = scalar_lea.vmem %s1, %s215
      $region36: #{generator_forward.9} parent=27 // pred_fallthru
        _
    $region28: #{generator_forward.9} parent=5 // pred_fallthru
      _
    %p217 = scmp.le.s32.totalorder 1, %s11
    %p218 = scmp.lt.s32.totalorder %s11, 9
    %p219 = pnand %p217, %p218
    %p220 = pneg %p219
    // Predicated region
    $region37: #{generator_forward.9} parent=5 // pred_check
      _
    $region38: #{generator_forward.9} parent=5 // pred_check_branch
      %222 = sbr.rel (%p219) target = $region40
    $region39: #{generator_forward.9} parent=5 // pred_region
      %s223 = ssub.s32 %s11, 1
      %s224 = smul.u32 128, %s21
      %p225 = scmp.lt.s32.totalorder %s20, 3
      %s226 = scalar_select %p225, %s20, 3
      %p227 = scmp.lt.s32.totalorder %s224, 255
      %s228 = scalar_select %p227, %s224, 255
      %s229 = smul.addr %s226, 256
      %s230 = sadd.s32 %s228, %s229
      %s231 = smul.addr %s230, 4
      %s232 = scalar_lea.vmem %s0, %s231
      %p233 = pneg %p51
      %p234 = pneg %p48
      %p235 = scmp.lt.s32.totalorder %s20, 3
      %s236 = scalar_select %p235, %s20, 3
      %s237 = smul.addr %s236, 8
      %s238 = smul.addr %s237, 4
      %s239 = scalar_lea.vmem %s1, %s238
      %p240 = pneg %p77
      %p241 = pneg %p74
      %p242 = pneg %p98
      %p243 = pneg %p95
      %p244 = pneg %p119
      %p245 = pneg %p116
      %p246 = pneg %p140
      %p247 = pneg %p137
      %p248 = pneg %p168
      %p249 = pneg %p165
      %s250 = smul.u32 128, %s21
      %p251 = scmp.lt.s32.totalorder %s20, 3
      %s252 = scalar_select %p251, %s20, 3
      %p253 = scmp.lt.s32.totalorder %s250, 255
      %s254 = scalar_select %p253, %s250, 255
      %s255 = smul.addr %s252, 256
      %s256 = sadd.s32 %s254, %s255
      %s257 = smul.addr %s256, 8
      %s258 = scalar_lea.vmem %s5, %s257
      %s259 = smul.u32 128, %s21
      %p260 = scmp.lt.s32.totalorder %s20, 3
      %s261 = scalar_select %p260, %s20, 3
      %p262 = scmp.lt.s32.totalorder %s259, 255
      %s263 = scalar_select %p262, %s259, 255
      %s264 = smul.addr %s261, 256
      %s265 = sadd.s32 %s263, %s264
      %s266 = smul.addr %s265, 4
      %s267 = scalar_lea.vmem %s0, %s266
      %s268 = smul.u32 128, %s21
      %p269 = scmp.lt.s32.totalorder %s20, 3
      %s270 = scalar_select %p269, %s20, 3
      %s271 = smul.addr %s270, 8
      %s272 = smul.addr %s271, 4
      %s273 = scalar_lea.vmem %s1, %s272
      %s274 = smul.u32 128, %s21
      %p275 = scmp.lt.s32.totalorder %s20, 3
      %s276 = scalar_select %p275, %s20, 3
      %p277 = scmp.lt.s32.totalorder %s274, 255
      %s278 = scalar_select %p277, %s274, 255
      %s279 = smul.addr %s276, 256
      %s280 = sadd.s32 %s278, %s279
      %s281 = smul.addr %s280, 8
      %s282 = scalar_lea.vmem %s5, %s281
      %s283 = smul.u32 128, %s21
      %v285 = vld [vmem:[%s267] sm:$0xf]
      %v286 = vld [vmem:[%s267 + $0x4] sm:$0xf]
      %v287 = vld [vmem:[%s267 + $0x8] sm:$0xf]
      %v288 = vld [vmem:[%s267 + $0xc] sm:$0xf]
      %v289 = vld [vmem:[%s267 + $0x10] sm:$0xf]
      %v290 = vld [vmem:[%s267 + $0x14] sm:$0xf]
      %v291 = vld [vmem:[%s267 + $0x18] sm:$0xf]
      %v292 = vld [vmem:[%s267 + $0x1c] sm:$0xf]
      %v293 = vld [vmem:[%s267 + $0x20] sm:$0xf]
      %v294 = vld [vmem:[%s267 + $0x24] sm:$0xf]
      %v295 = vld [vmem:[%s267 + $0x28] sm:$0xf]
      %v296 = vld [vmem:[%s267 + $0x2c] sm:$0xf]
      %v297 = vld [vmem:[%s267 + $0x30] sm:$0xf]
      %v298 = vld [vmem:[%s267 + $0x34] sm:$0xf]
      %v299 = vld [vmem:[%s267 + $0x38] sm:$0xf]
      %v300 = vld [vmem:[%s267 + $0x3c] sm:$0xf]
      %v301 = vld [vmem:[%s267 + $0x40] sm:$0xf]
      %v302 = vld [vmem:[%s267 + $0x44] sm:$0xf]
      %v303 = vld [vmem:[%s267 + $0x48] sm:$0xf]
      %v304 = vld [vmem:[%s267 + $0x4c] sm:$0xf]
      %v305 = vld [vmem:[%s267 + $0x50] sm:$0xf]
      %v306 = vld [vmem:[%s267 + $0x54] sm:$0xf]
      %v307 = vld [vmem:[%s267 + $0x58] sm:$0xf]
      %v308 = vld [vmem:[%s267 + $0x5c] sm:$0xf]
      %v309 = vld [vmem:[%s267 + $0x60] sm:$0xf]
      %v310 = vld [vmem:[%s267 + $0x64] sm:$0xf]
      %v311 = vld [vmem:[%s267 + $0x68] sm:$0xf]
      %v312 = vld [vmem:[%s267 + $0x6c] sm:$0xf]
      %v313 = vld [vmem:[%s267 + $0x70] sm:$0xf]
      %v314 = vld [vmem:[%s267 + $0x74] sm:$0xf]
      %v315 = vld [vmem:[%s267 + $0x78] sm:$0xf]
      %v316 = vld [vmem:[%s267 + $0x7c] sm:$0xf]
      %v317 = vld [vmem:[%s267 + $0x80] sm:$0xf]
      %v318 = vld [vmem:[%s267 + $0x84] sm:$0xf]
      %v319 = vld [vmem:[%s267 + $0x88] sm:$0xf]
      %v320 = vld [vmem:[%s267 + $0x8c] sm:$0xf]
      %v321 = vld [vmem:[%s267 + $0x90] sm:$0xf]
      %v322 = vld [vmem:[%s267 + $0x94] sm:$0xf]
      %v323 = vld [vmem:[%s267 + $0x98] sm:$0xf]
      %v324 = vld [vmem:[%s267 + $0x9c] sm:$0xf]
      %v325 = vld [vmem:[%s267 + $0xa0] sm:$0xf]
      %v326 = vld [vmem:[%s267 + $0xa4] sm:$0xf]
      %v327 = vld [vmem:[%s267 + $0xa8] sm:$0xf]
      %v328 = vld [vmem:[%s267 + $0xac] sm:$0xf]
      %v329 = vld [vmem:[%s267 + $0xb0] sm:$0xf]
      %v330 = vld [vmem:[%s267 + $0xb4] sm:$0xf]
      %v331 = vld [vmem:[%s267 + $0xb8] sm:$0xf]
      %v332 = vld [vmem:[%s267 + $0xbc] sm:$0xf]
      %v333 = vld [vmem:[%s267 + $0xc0] sm:$0xf]
      %v334 = vld [vmem:[%s267 + $0xc4] sm:$0xf]
      %v335 = vld [vmem:[%s267 + $0xc8] sm:$0xf]
      %v336 = vld [vmem:[%s267 + $0xcc] sm:$0xf]
      %v337 = vld [vmem:[%s267 + $0xd0] sm:$0xf]
      %v338 = vld [vmem:[%s267 + $0xd4] sm:$0xf]
      %v339 = vld [vmem:[%s267 + $0xd8] sm:$0xf]
      %v340 = vld [vmem:[%s267 + $0xdc] sm:$0xf]
      %v341 = vld [vmem:[%s267 + $0xe0] sm:$0xf]
      %v342 = vld [vmem:[%s267 + $0xe4] sm:$0xf]
      %v343 = vld [vmem:[%s267 + $0xe8] sm:$0xf]
      %v344 = vld [vmem:[%s267 + $0xec] sm:$0xf]
      %v345 = vld [vmem:[%s267 + $0xf0] sm:$0xf]
      %v346 = vld [vmem:[%s267 + $0xf4] sm:$0xf]
      %v347 = vld [vmem:[%s267 + $0xf8] sm:$0xf]
      %v348 = vld [vmem:[%s267 + $0xfc] sm:$0xf]
      %v349 = vld [vmem:[%s267 + $0x100] sm:$0xf]
      %v350 = vld [vmem:[%s267 + $0x104] sm:$0xf]
      %v351 = vld [vmem:[%s267 + $0x108] sm:$0xf]
      %v352 = vld [vmem:[%s267 + $0x10c] sm:$0xf]
      %v353 = vld [vmem:[%s267 + $0x110] sm:$0xf]
      %v354 = vld [vmem:[%s267 + $0x114] sm:$0xf]
      %v355 = vld [vmem:[%s267 + $0x118] sm:$0xf]
      %v356 = vld [vmem:[%s267 + $0x11c] sm:$0xf]
      %v357 = vld [vmem:[%s267 + $0x120] sm:$0xf]
      %v358 = vld [vmem:[%s267 + $0x124] sm:$0xf]
      %v359 = vld [vmem:[%s267 + $0x128] sm:$0xf]
      %v360 = vld [vmem:[%s267 + $0x12c] sm:$0xf]
      %v361 = vld [vmem:[%s267 + $0x130] sm:$0xf]
      %v362 = vld [vmem:[%s267 + $0x134] sm:$0xf]
      %v363 = vld [vmem:[%s267 + $0x138] sm:$0xf]
      %v364 = vld [vmem:[%s267 + $0x13c] sm:$0xf]
      %v365 = vld [vmem:[%s267 + $0x140] sm:$0xf]
      %v366 = vld [vmem:[%s267 + $0x144] sm:$0xf]
      %v367 = vld [vmem:[%s267 + $0x148] sm:$0xf]
      %v368 = vld [vmem:[%s267 + $0x14c] sm:$0xf]
      %v369 = vld [vmem:[%s267 + $0x150] sm:$0xf]
      %v370 = vld [vmem:[%s267 + $0x154] sm:$0xf]
      %v371 = vld [vmem:[%s267 + $0x158] sm:$0xf]
      %v372 = vld [vmem:[%s267 + $0x15c] sm:$0xf]
      %v373 = vld [vmem:[%s267 + $0x160] sm:$0xf]
      %v374 = vld [vmem:[%s267 + $0x164] sm:$0xf]
      %v375 = vld [vmem:[%s267 + $0x168] sm:$0xf]
      %v376 = vld [vmem:[%s267 + $0x16c] sm:$0xf]
      %v377 = vld [vmem:[%s267 + $0x170] sm:$0xf]
      %v378 = vld [vmem:[%s267 + $0x174] sm:$0xf]
      %v379 = vld [vmem:[%s267 + $0x178] sm:$0xf]
      %v380 = vld [vmem:[%s267 + $0x17c] sm:$0xf]
      %v381 = vld [vmem:[%s267 + $0x180] sm:$0xf]
      %v382 = vld [vmem:[%s267 + $0x184] sm:$0xf]
      %v383 = vld [vmem:[%s267 + $0x188] sm:$0xf]
      %v384 = vld [vmem:[%s267 + $0x18c] sm:$0xf]
      %v385 = vld [vmem:[%s267 + $0x190] sm:$0xf]
      %v386 = vld [vmem:[%s267 + $0x194] sm:$0xf]
      %v387 = vld [vmem:[%s267 + $0x198] sm:$0xf]
      %v388 = vld [vmem:[%s267 + $0x19c] sm:$0xf]
      %v389 = vld [vmem:[%s267 + $0x1a0] sm:$0xf]
      %v390 = vld [vmem:[%s267 + $0x1a4] sm:$0xf]
      %v391 = vld [vmem:[%s267 + $0x1a8] sm:$0xf]
      %v392 = vld [vmem:[%s267 + $0x1ac] sm:$0xf]
      %v393 = vld [vmem:[%s267 + $0x1b0] sm:$0xf]
      %v394 = vld [vmem:[%s267 + $0x1b4] sm:$0xf]
      %v395 = vld [vmem:[%s267 + $0x1b8] sm:$0xf]
      %v396 = vld [vmem:[%s267 + $0x1bc] sm:$0xf]
      %v397 = vld [vmem:[%s267 + $0x1c0] sm:$0xf]
      %v398 = vld [vmem:[%s267 + $0x1c4] sm:$0xf]
      %v399 = vld [vmem:[%s267 + $0x1c8] sm:$0xf]
      %v400 = vld [vmem:[%s267 + $0x1cc] sm:$0xf]
      %v401 = vld [vmem:[%s267 + $0x1d0] sm:$0xf]
      %v402 = vld [vmem:[%s267 + $0x1d4] sm:$0xf]
      %v403 = vld [vmem:[%s267 + $0x1d8] sm:$0xf]
      %v404 = vld [vmem:[%s267 + $0x1dc] sm:$0xf]
      %v405 = vld [vmem:[%s267 + $0x1e0] sm:$0xf]
      %v406 = vld [vmem:[%s267 + $0x1e4] sm:$0xf]
      %v407 = vld [vmem:[%s267 + $0x1e8] sm:$0xf]
      %v408 = vld [vmem:[%s267 + $0x1ec] sm:$0xf]
      %v409 = vld [vmem:[%s267 + $0x1f0] sm:$0xf]
      %v410 = vld [vmem:[%s267 + $0x1f4] sm:$0xf]
      %v411 = vld [vmem:[%s267 + $0x1f8] sm:$0xf]
      %v412 = vld [vmem:[%s267 + $0x1fc] sm:$0xf]
      %v413 = vunpack.c.l.bf16 %v285
      %v414 = vunpack.c.l.bf16 %v286
      %v415 = vunpack.c.l.bf16 %v287
      %v416 = vunpack.c.l.bf16 %v288
      %v417 = vunpack.c.l.bf16 %v289
      %v418 = vunpack.c.l.bf16 %v290
      %v419 = vunpack.c.l.bf16 %v291
      %v420 = vunpack.c.l.bf16 %v292
      %v421 = vunpack.c.l.bf16 %v293
      %v422 = vunpack.c.l.bf16 %v294
      %v423 = vunpack.c.l.bf16 %v295
      %v424 = vunpack.c.l.bf16 %v296
      %v425 = vunpack.c.l.bf16 %v297
      %v426 = vunpack.c.l.bf16 %v298
      %v427 = vunpack.c.l.bf16 %v299
      %v428 = vunpack.c.l.bf16 %v300
      %v429 = vunpack.c.l.bf16 %v301
      %v430 = vunpack.c.l.bf16 %v302
      %v431 = vunpack.c.l.bf16 %v303
      %v432 = vunpack.c.l.bf16 %v304
      %v433 = vunpack.c.l.bf16 %v305
      %v434 = vunpack.c.l.bf16 %v306
      %v435 = vunpack.c.l.bf16 %v307
      %v436 = vunpack.c.l.bf16 %v308
      %v437 = vunpack.c.l.bf16 %v309
      %v438 = vunpack.c.l.bf16 %v310
      %v439 = vunpack.c.l.bf16 %v311
      %v440 = vunpack.c.l.bf16 %v312
      %v441 = vunpack.c.l.bf16 %v313
      %v442 = vunpack.c.l.bf16 %v314
      %v443 = vunpack.c.l.bf16 %v315
      %v444 = vunpack.c.l.bf16 %v316
      %v445 = vunpack.c.l.bf16 %v317
      %v446 = vunpack.c.l.bf16 %v318
      %v447 = vunpack.c.l.bf16 %v319
      %v448 = vunpack.c.l.bf16 %v320
      %v449 = vunpack.c.l.bf16 %v321
      %v450 = vunpack.c.l.bf16 %v322
      %v451 = vunpack.c.l.bf16 %v323
      %v452 = vunpack.c.l.bf16 %v324
      %v453 = vunpack.c.l.bf16 %v325
      %v454 = vunpack.c.l.bf16 %v326
      %v455 = vunpack.c.l.bf16 %v327
      %v456 = vunpack.c.l.bf16 %v328
      %v457 = vunpack.c.l.bf16 %v329
      %v458 = vunpack.c.l.bf16 %v330
      %v459 = vunpack.c.l.bf16 %v331
      %v460 = vunpack.c.l.bf16 %v332
      %v461 = vunpack.c.l.bf16 %v333
      %v462 = vunpack.c.l.bf16 %v334
      %v463 = vunpack.c.l.bf16 %v335
      %v464 = vunpack.c.l.bf16 %v336
      %v465 = vunpack.c.l.bf16 %v337
      %v466 = vunpack.c.l.bf16 %v338
      %v467 = vunpack.c.l.bf16 %v339
      %v468 = vunpack.c.l.bf16 %v340
      %v469 = vunpack.c.l.bf16 %v341
      %v470 = vunpack.c.l.bf16 %v342
      %v471 = vunpack.c.l.bf16 %v343
      %v472 = vunpack.c.l.bf16 %v344
      %v473 = vunpack.c.l.bf16 %v345
      %v474 = vunpack.c.l.bf16 %v346
      %v475 = vunpack.c.l.bf16 %v347
      %v476 = vunpack.c.l.bf16 %v348
      %v477 = vunpack.c.l.bf16 %v349
      %v478 = vunpack.c.l.bf16 %v350
      %v479 = vunpack.c.l.bf16 %v351
      %v480 = vunpack.c.l.bf16 %v352
      %v481 = vunpack.c.l.bf16 %v353
      %v482 = vunpack.c.l.bf16 %v354
      %v483 = vunpack.c.l.bf16 %v355
      %v484 = vunpack.c.l.bf16 %v356
      %v485 = vunpack.c.l.bf16 %v357
      %v486 = vunpack.c.l.bf16 %v358
      %v487 = vunpack.c.l.bf16 %v359
      %v488 = vunpack.c.l.bf16 %v360
      %v489 = vunpack.c.l.bf16 %v361
      %v490 = vunpack.c.l.bf16 %v362
      %v491 = vunpack.c.l.bf16 %v363
      %v492 = vunpack.c.l.bf16 %v364
      %v493 = vunpack.c.l.bf16 %v365
      %v494 = vunpack.c.l.bf16 %v366
      %v495 = vunpack.c.l.bf16 %v367
      %v496 = vunpack.c.l.bf16 %v368
      %v497 = vunpack.c.l.bf16 %v369
      %v498 = vunpack.c.l.bf16 %v370
      %v499 = vunpack.c.l.bf16 %v371
      %v500 = vunpack.c.l.bf16 %v372
      %v501 = vunpack.c.l.bf16 %v373
      %v502 = vunpack.c.l.bf16 %v374
      %v503 = vunpack.c.l.bf16 %v375
      %v504 = vunpack.c.l.bf16 %v376
      %v505 = vunpack.c.l.bf16 %v377
      %v506 = vunpack.c.l.bf16 %v378
      %v507 = vunpack.c.l.bf16 %v379
      %v508 = vunpack.c.l.bf16 %v380
      %v509 = vunpack.c.l.bf16 %v381
      %v510 = vunpack.c.l.bf16 %v382
      %v511 = vunpack.c.l.bf16 %v383
      %v512 = vunpack.c.l.bf16 %v384
      %v513 = vunpack.c.l.bf16 %v385
      %v514 = vunpack.c.l.bf16 %v386
      %v515 = vunpack.c.l.bf16 %v387
      %v516 = vunpack.c.l.bf16 %v388
      %v517 = vunpack.c.l.bf16 %v389
      %v518 = vunpack.c.l.bf16 %v390
      %v519 = vunpack.c.l.bf16 %v391
      %v520 = vunpack.c.l.bf16 %v392
      %v521 = vunpack.c.l.bf16 %v393
      %v522 = vunpack.c.l.bf16 %v394
      %v523 = vunpack.c.l.bf16 %v395
      %v524 = vunpack.c.l.bf16 %v396
      %v525 = vunpack.c.l.bf16 %v397
      %v526 = vunpack.c.l.bf16 %v398
      %v527 = vunpack.c.l.bf16 %v399
      %v528 = vunpack.c.l.bf16 %v400
      %v529 = vunpack.c.l.bf16 %v401
      %v530 = vunpack.c.l.bf16 %v402
      %v531 = vunpack.c.l.bf16 %v403
      %v532 = vunpack.c.l.bf16 %v404
      %v533 = vunpack.c.l.bf16 %v405
      %v534 = vunpack.c.l.bf16 %v406
      %v535 = vunpack.c.l.bf16 %v407
      %v536 = vunpack.c.l.bf16 %v408
      %v537 = vunpack.c.l.bf16 %v409
      %v538 = vunpack.c.l.bf16 %v410
      %v539 = vunpack.c.l.bf16 %v411
      %v540 = vunpack.c.l.bf16 %v412
      %v541 = vld [vmem:[%s3] sm:$0x1]
      %v543 = vlaneseq
      %v544 = vshrl.u32 %v543, 7
      %v545 = vsub.s32 0, %v544
      %v546 = vrot.slane %v541, %v545
      %v548 = vmul.f32 %v413, %v546
      %v549 = vmul.f32 %v414, %v546
      %v550 = vmul.f32 %v415, %v546
      %v551 = vmul.f32 %v416, %v546
      %v552 = vmul.f32 %v417, %v546
      %v553 = vmul.f32 %v418, %v546
      %v554 = vmul.f32 %v419, %v546
      %v555 = vmul.f32 %v420, %v546
      %v556 = vmul.f32 %v421, %v546
      %v557 = vmul.f32 %v422, %v546
      %v558 = vmul.f32 %v423, %v546
      %v559 = vmul.f32 %v424, %v546
      %v560 = vmul.f32 %v425, %v546
      %v561 = vmul.f32 %v426, %v546
      %v562 = vmul.f32 %v427, %v546
      %v563 = vmul.f32 %v428, %v546
      %v564 = vmul.f32 %v429, %v546
      %v565 = vmul.f32 %v430, %v546
      %v566 = vmul.f32 %v431, %v546
      %v567 = vmul.f32 %v432, %v546
      %v568 = vmul.f32 %v433, %v546
      %v569 = vmul.f32 %v434, %v546
      %v570 = vmul.f32 %v435, %v546
      %v571 = vmul.f32 %v436, %v546
      %v572 = vmul.f32 %v437, %v546
      %v573 = vmul.f32 %v438, %v546
      %v574 = vmul.f32 %v439, %v546
      %v575 = vmul.f32 %v440, %v546
      %v576 = vmul.f32 %v441, %v546
      %v577 = vmul.f32 %v442, %v546
      %v578 = vmul.f32 %v443, %v546
      %v579 = vmul.f32 %v444, %v546
      %v580 = vmul.f32 %v445, %v546
      %v581 = vmul.f32 %v446, %v546
      %v582 = vmul.f32 %v447, %v546
      %v583 = vmul.f32 %v448, %v546
      %v584 = vmul.f32 %v449, %v546
      %v585 = vmul.f32 %v450, %v546
      %v586 = vmul.f32 %v451, %v546
      %v587 = vmul.f32 %v452, %v546
      %v588 = vmul.f32 %v453, %v546
      %v589 = vmul.f32 %v454, %v546
      %v590 = vmul.f32 %v455, %v546
      %v591 = vmul.f32 %v456, %v546
      %v592 = vmul.f32 %v457, %v546
      %v593 = vmul.f32 %v458, %v546
      %v594 = vmul.f32 %v459, %v546
      %v595 = vmul.f32 %v460, %v546
      %v596 = vmul.f32 %v461, %v546
      %v597 = vmul.f32 %v462, %v546
      %v598 = vmul.f32 %v463, %v546
      %v599 = vmul.f32 %v464, %v546
      %v600 = vmul.f32 %v465, %v546
      %v601 = vmul.f32 %v466, %v546
      %v602 = vmul.f32 %v467, %v546
      %v603 = vmul.f32 %v468, %v546
      %v604 = vmul.f32 %v469, %v546
      %v605 = vmul.f32 %v470, %v546
      %v606 = vmul.f32 %v471, %v546
      %v607 = vmul.f32 %v472, %v546
      %v608 = vmul.f32 %v473, %v546
      %v609 = vmul.f32 %v474, %v546
      %v610 = vmul.f32 %v475, %v546
      %v611 = vmul.f32 %v476, %v546
      %v612 = vmul.f32 %v477, %v546
      %v613 = vmul.f32 %v478, %v546
      %v614 = vmul.f32 %v479, %v546
      %v615 = vmul.f32 %v480, %v546
      %v616 = vmul.f32 %v481, %v546
      %v617 = vmul.f32 %v482, %v546
      %v618 = vmul.f32 %v483, %v546
      %v619 = vmul.f32 %v484, %v546
      %v620 = vmul.f32 %v485, %v546
      %v621 = vmul.f32 %v486, %v546
      %v622 = vmul.f32 %v487, %v546
      %v623 = vmul.f32 %v488, %v546
      %v624 = vmul.f32 %v489, %v546
      %v625 = vmul.f32 %v490, %v546
      %v626 = vmul.f32 %v491, %v546
      %v627 = vmul.f32 %v492, %v546
      %v628 = vmul.f32 %v493, %v546
      %v629 = vmul.f32 %v494, %v546
      %v630 = vmul.f32 %v495, %v546
      %v631 = vmul.f32 %v496, %v546
      %v632 = vmul.f32 %v497, %v546
      %v633 = vmul.f32 %v498, %v546
      %v634 = vmul.f32 %v499, %v546
      %v635 = vmul.f32 %v500, %v546
      %v636 = vmul.f32 %v501, %v546
      %v637 = vmul.f32 %v502, %v546
      %v638 = vmul.f32 %v503, %v546
      %v639 = vmul.f32 %v504, %v546
      %v640 = vmul.f32 %v505, %v546
      %v641 = vmul.f32 %v506, %v546
      %v642 = vmul.f32 %v507, %v546
      %v643 = vmul.f32 %v508, %v546
      %v644 = vmul.f32 %v509, %v546
      %v645 = vmul.f32 %v510, %v546
      %v646 = vmul.f32 %v511, %v546
      %v647 = vmul.f32 %v512, %v546
      %v648 = vmul.f32 %v513, %v546
      %v649 = vmul.f32 %v514, %v546
      %v650 = vmul.f32 %v515, %v546
      %v651 = vmul.f32 %v516, %v546
      %v652 = vmul.f32 %v517, %v546
      %v653 = vmul.f32 %v518, %v546
      %v654 = vmul.f32 %v519, %v546
      %v655 = vmul.f32 %v520, %v546
      %v656 = vmul.f32 %v521, %v546
      %v657 = vmul.f32 %v522, %v546
      %v658 = vmul.f32 %v523, %v546
      %v659 = vmul.f32 %v524, %v546
      %v660 = vmul.f32 %v525, %v546
      %v661 = vmul.f32 %v526, %v546
      %v662 = vmul.f32 %v527, %v546
      %v663 = vmul.f32 %v528, %v546
      %v664 = vmul.f32 %v529, %v546
      %v665 = vmul.f32 %v530, %v546
      %v666 = vmul.f32 %v531, %v546
      %v667 = vmul.f32 %v532, %v546
      %v668 = vmul.f32 %v533, %v546
      %v669 = vmul.f32 %v534, %v546
      %v670 = vmul.f32 %v535, %v546
      %v671 = vmul.f32 %v536, %v546
      %v672 = vmul.f32 %v537, %v546
      %v673 = vmul.f32 %v538, %v546
      %v674 = vmul.f32 %v539, %v546
      %v675 = vmul.f32 %v540, %v546
      %v676 = vld [vmem:[%s4] sm:$0x1]
      %v678 = vlaneseq
      %v679 = vshrl.u32 %v678, 7
      %v680 = vsub.s32 0, %v679
      %v681 = vrot.slane %v676, %v680
      %v683 = vadd.f32 %v548, %v681
      %v684 = vadd.f32 %v549, %v681
      %v685 = vadd.f32 %v550, %v681
      %v686 = vadd.f32 %v551, %v681
      %v687 = vadd.f32 %v552, %v681
      %v688 = vadd.f32 %v553, %v681
      %v689 = vadd.f32 %v554, %v681
      %v690 = vadd.f32 %v555, %v681
      %v691 = vadd.f32 %v556, %v681
      %v692 = vadd.f32 %v557, %v681
      %v693 = vadd.f32 %v558, %v681
      %v694 = vadd.f32 %v559, %v681
      %v695 = vadd.f32 %v560, %v681
      %v696 = vadd.f32 %v561, %v681
      %v697 = vadd.f32 %v562, %v681
      %v698 = vadd.f32 %v563, %v681
      %v699 = vadd.f32 %v564, %v681
      %v700 = vadd.f32 %v565, %v681
      %v701 = vadd.f32 %v566, %v681
      %v702 = vadd.f32 %v567, %v681
      %v703 = vadd.f32 %v568, %v681
      %v704 = vadd.f32 %v569, %v681
      %v705 = vadd.f32 %v570, %v681
      %v706 = vadd.f32 %v571, %v681
      %v707 = vadd.f32 %v572, %v681
      %v708 = vadd.f32 %v573, %v681
      %v709 = vadd.f32 %v574, %v681
      %v710 = vadd.f32 %v575, %v681
      %v711 = vadd.f32 %v576, %v681
      %v712 = vadd.f32 %v577, %v681
      %v713 = vadd.f32 %v578, %v681
      %v714 = vadd.f32 %v579, %v681
      %v715 = vadd.f32 %v580, %v681
      %v716 = vadd.f32 %v581, %v681
      %v717 = vadd.f32 %v582, %v681
      %v718 = vadd.f32 %v583, %v681
      %v719 = vadd.f32 %v584, %v681
      %v720 = vadd.f32 %v585, %v681
      %v721 = vadd.f32 %v586, %v681
      %v722 = vadd.f32 %v587, %v681
      %v723 = vadd.f32 %v588, %v681
      %v724 = vadd.f32 %v589, %v681
      %v725 = vadd.f32 %v590, %v681
      %v726 = vadd.f32 %v591, %v681
      %v727 = vadd.f32 %v592, %v681
      %v728 = vadd.f32 %v593, %v681
      %v729 = vadd.f32 %v594, %v681
      %v730 = vadd.f32 %v595, %v681
      %v731 = vadd.f32 %v596, %v681
      %v732 = vadd.f32 %v597, %v681
      %v733 = vadd.f32 %v598, %v681
      %v734 = vadd.f32 %v599, %v681
      %v735 = vadd.f32 %v600, %v681
      %v736 = vadd.f32 %v601, %v681
      %v737 = vadd.f32 %v602, %v681
      %v738 = vadd.f32 %v603, %v681
      %v739 = vadd.f32 %v604, %v681
      %v740 = vadd.f32 %v605, %v681
      %v741 = vadd.f32 %v606, %v681
      %v742 = vadd.f32 %v607, %v681
      %v743 = vadd.f32 %v608, %v681
      %v744 = vadd.f32 %v609, %v681
      %v745 = vadd.f32 %v610, %v681
      %v746 = vadd.f32 %v611, %v681
      %v747 = vadd.f32 %v612, %v681
      %v748 = vadd.f32 %v613, %v681
      %v749 = vadd.f32 %v614, %v681
      %v750 = vadd.f32 %v615, %v681
      %v751 = vadd.f32 %v616, %v681
      %v752 = vadd.f32 %v617, %v681
      %v753 = vadd.f32 %v618, %v681
      %v754 = vadd.f32 %v619, %v681
      %v755 = vadd.f32 %v620, %v681
      %v756 = vadd.f32 %v621, %v681
      %v757 = vadd.f32 %v622, %v681
      %v758 = vadd.f32 %v623, %v681
      %v759 = vadd.f32 %v624, %v681
      %v760 = vadd.f32 %v625, %v681
      %v761 = vadd.f32 %v626, %v681
      %v762 = vadd.f32 %v627, %v681
      %v763 = vadd.f32 %v628, %v681
      %v764 = vadd.f32 %v629, %v681
      %v765 = vadd.f32 %v630, %v681
      %v766 = vadd.f32 %v631, %v681
      %v767 = vadd.f32 %v632, %v681
      %v768 = vadd.f32 %v633, %v681
      %v769 = vadd.f32 %v634, %v681
      %v770 = vadd.f32 %v635, %v681
      %v771 = vadd.f32 %v636, %v681
      %v772 = vadd.f32 %v637, %v681
      %v773 = vadd.f32 %v638, %v681
      %v774 = vadd.f32 %v639, %v681
      %v775 = vadd.f32 %v640, %v681
      %v776 = vadd.f32 %v641, %v681
      %v777 = vadd.f32 %v642, %v681
      %v778 = vadd.f32 %v643, %v681
      %v779 = vadd.f32 %v644, %v681
      %v780 = vadd.f32 %v645, %v681
      %v781 = vadd.f32 %v646, %v681
      %v782 = vadd.f32 %v647, %v681
      %v783 = vadd.f32 %v648, %v681
      %v784 = vadd.f32 %v649, %v681
      %v785 = vadd.f32 %v650, %v681
      %v786 = vadd.f32 %v651, %v681
      %v787 = vadd.f32 %v652, %v681
      %v788 = vadd.f32 %v653, %v681
      %v789 = vadd.f32 %v654, %v681
      %v790 = vadd.f32 %v655, %v681
      %v791 = vadd.f32 %v656, %v681
      %v792 = vadd.f32 %v657, %v681
      %v793 = vadd.f32 %v658, %v681
      %v794 = vadd.f32 %v659, %v681
      %v795 = vadd.f32 %v660, %v681
      %v796 = vadd.f32 %v661, %v681
      %v797 = vadd.f32 %v662, %v681
      %v798 = vadd.f32 %v663, %v681
      %v799 = vadd.f32 %v664, %v681
      %v800 = vadd.f32 %v665, %v681
      %v801 = vadd.f32 %v666, %v681
      %v802 = vadd.f32 %v667, %v681
      %v803 = vadd.f32 %v668, %v681
      %v804 = vadd.f32 %v669, %v681
      %v805 = vadd.f32 %v670, %v681
      %v806 = vadd.f32 %v671, %v681
      %v807 = vadd.f32 %v672, %v681
      %v808 = vadd.f32 %v673, %v681
      %v809 = vadd.f32 %v674, %v681
      %v810 = vadd.f32 %v675, %v681
      %v811 = vmax.f32 %v683, 0.0
      %v812 = vmax.f32 %v684, 0.0
      %v813 = vmax.f32 %v685, 0.0
      %v814 = vmax.f32 %v686, 0.0
      %v815 = vmax.f32 %v687, 0.0
      %v816 = vmax.f32 %v688, 0.0
      %v817 = vmax.f32 %v689, 0.0
      %v818 = vmax.f32 %v690, 0.0
      %v819 = vmax.f32 %v691, 0.0
      %v820 = vmax.f32 %v692, 0.0
      %v821 = vmax.f32 %v693, 0.0
      %v822 = vmax.f32 %v694, 0.0
      %v823 = vmax.f32 %v695, 0.0
      %v824 = vmax.f32 %v696, 0.0
      %v825 = vmax.f32 %v697, 0.0
      %v826 = vmax.f32 %v698, 0.0
      %v827 = vmax.f32 %v699, 0.0
      %v828 = vmax.f32 %v700, 0.0
      %v829 = vmax.f32 %v701, 0.0
      %v830 = vmax.f32 %v702, 0.0
      %v831 = vmax.f32 %v703, 0.0
      %v832 = vmax.f32 %v704, 0.0
      %v833 = vmax.f32 %v705, 0.0
      %v834 = vmax.f32 %v706, 0.0
      %v835 = vmax.f32 %v707, 0.0
      %v836 = vmax.f32 %v708, 0.0
      %v837 = vmax.f32 %v709, 0.0
      %v838 = vmax.f32 %v710, 0.0
      %v839 = vmax.f32 %v711, 0.0
      %v840 = vmax.f32 %v712, 0.0
      %v841 = vmax.f32 %v713, 0.0
      %v842 = vmax.f32 %v714, 0.0
      %v843 = vmax.f32 %v715, 0.0
      %v844 = vmax.f32 %v716, 0.0
      %v845 = vmax.f32 %v717, 0.0
      %v846 = vmax.f32 %v718, 0.0
      %v847 = vmax.f32 %v719, 0.0
      %v848 = vmax.f32 %v720, 0.0
      %v849 = vmax.f32 %v721, 0.0
      %v850 = vmax.f32 %v722, 0.0
      %v851 = vmax.f32 %v723, 0.0
      %v852 = vmax.f32 %v724, 0.0
      %v853 = vmax.f32 %v725, 0.0
      %v854 = vmax.f32 %v726, 0.0
      %v855 = vmax.f32 %v727, 0.0
      %v856 = vmax.f32 %v728, 0.0
      %v857 = vmax.f32 %v729, 0.0
      %v858 = vmax.f32 %v730, 0.0
      %v859 = vmax.f32 %v731, 0.0
      %v860 = vmax.f32 %v732, 0.0
      %v861 = vmax.f32 %v733, 0.0
      %v862 = vmax.f32 %v734, 0.0
      %v863 = vmax.f32 %v735, 0.0
      %v864 = vmax.f32 %v736, 0.0
      %v865 = vmax.f32 %v737, 0.0
      %v866 = vmax.f32 %v738, 0.0
      %v867 = vmax.f32 %v739, 0.0
      %v868 = vmax.f32 %v740, 0.0
      %v869 = vmax.f32 %v741, 0.0
      %v870 = vmax.f32 %v742, 0.0
      %v871 = vmax.f32 %v743, 0.0
      %v872 = vmax.f32 %v744, 0.0
      %v873 = vmax.f32 %v745, 0.0
      %v874 = vmax.f32 %v746, 0.0
      %v875 = vmax.f32 %v747, 0.0
      %v876 = vmax.f32 %v748, 0.0
      %v877 = vmax.f32 %v749, 0.0
      %v878 = vmax.f32 %v750, 0.0
      %v879 = vmax.f32 %v751, 0.0
      %v880 = vmax.f32 %v752, 0.0
      %v881 = vmax.f32 %v753, 0.0
      %v882 = vmax.f32 %v754, 0.0
      %v883 = vmax.f32 %v755, 0.0
      %v884 = vmax.f32 %v756, 0.0
      %v885 = vmax.f32 %v757, 0.0
      %v886 = vmax.f32 %v758, 0.0
      %v887 = vmax.f32 %v759, 0.0
      %v888 = vmax.f32 %v760, 0.0
      %v889 = vmax.f32 %v761, 0.0
      %v890 = vmax.f32 %v762, 0.0
      %v891 = vmax.f32 %v763, 0.0
      %v892 = vmax.f32 %v764, 0.0
      %v893 = vmax.f32 %v765, 0.0
      %v894 = vmax.f32 %v766, 0.0
      %v895 = vmax.f32 %v767, 0.0
      %v896 = vmax.f32 %v768, 0.0
      %v897 = vmax.f32 %v769, 0.0
      %v898 = vmax.f32 %v770, 0.0
      %v899 = vmax.f32 %v771, 0.0
      %v900 = vmax.f32 %v772, 0.0
      %v901 = vmax.f32 %v773, 0.0
      %v902 = vmax.f32 %v774, 0.0
      %v903 = vmax.f32 %v775, 0.0
      %v904 = vmax.f32 %v776, 0.0
      %v905 = vmax.f32 %v777, 0.0
      %v906 = vmax.f32 %v778, 0.0
      %v907 = vmax.f32 %v779, 0.0
      %v908 = vmax.f32 %v780, 0.0
      %v909 = vmax.f32 %v781, 0.0
      %v910 = vmax.f32 %v782, 0.0
      %v911 = vmax.f32 %v783, 0.0
      %v912 = vmax.f32 %v784, 0.0
      %v913 = vmax.f32 %v785, 0.0
      %v914 = vmax.f32 %v786, 0.0
      %v915 = vmax.f32 %v787, 0.0
      %v916 = vmax.f32 %v788, 0.0
      %v917 = vmax.f32 %v789, 0.0
      %v918 = vmax.f32 %v790, 0.0
      %v919 = vmax.f32 %v791, 0.0
      %v920 = vmax.f32 %v792, 0.0
      %v921 = vmax.f32 %v793, 0.0
      %v922 = vmax.f32 %v794, 0.0
      %v923 = vmax.f32 %v795, 0.0
      %v924 = vmax.f32 %v796, 0.0
      %v925 = vmax.f32 %v797, 0.0
      %v926 = vmax.f32 %v798, 0.0
      %v927 = vmax.f32 %v799, 0.0
      %v928 = vmax.f32 %v800, 0.0
      %v929 = vmax.f32 %v801, 0.0
      %v930 = vmax.f32 %v802, 0.0
      %v931 = vmax.f32 %v803, 0.0
      %v932 = vmax.f32 %v804, 0.0
      %v933 = vmax.f32 %v805, 0.0
      %v934 = vmax.f32 %v806, 0.0
      %v935 = vmax.f32 %v807, 0.0
      %v936 = vmax.f32 %v808, 0.0
      %v937 = vmax.f32 %v809, 0.0
      %v938 = vmax.f32 %v810, 0.0
      %v939 = vpack.c.bf16 %v812, %v811
      %v940 = vpack.c.bf16 %v814, %v813
      %v941 = vpack.c.bf16 %v816, %v815
      %v942 = vpack.c.bf16 %v818, %v817
      %v943 = vpack.c.bf16 %v820, %v819
      %v944 = vpack.c.bf16 %v822, %v821
      %v945 = vpack.c.bf16 %v824, %v823
      %v946 = vpack.c.bf16 %v826, %v825
      %v947 = vpack.c.bf16 %v828, %v827
      %v948 = vpack.c.bf16 %v830, %v829
      %v949 = vpack.c.bf16 %v832, %v831
      %v950 = vpack.c.bf16 %v834, %v833
      %v951 = vpack.c.bf16 %v836, %v835
      %v952 = vpack.c.bf16 %v838, %v837
      %v953 = vpack.c.bf16 %v840, %v839
      %v954 = vpack.c.bf16 %v842, %v841
      %v955 = vpack.c.bf16 %v844, %v843
      %v956 = vpack.c.bf16 %v846, %v845
      %v957 = vpack.c.bf16 %v848, %v847
      %v958 = vpack.c.bf16 %v850, %v849
      %v959 = vpack.c.bf16 %v852, %v851
      %v960 = vpack.c.bf16 %v854, %v853
      %v961 = vpack.c.bf16 %v856, %v855
      %v962 = vpack.c.bf16 %v858, %v857
      %v963 = vpack.c.bf16 %v860, %v859
      %v964 = vpack.c.bf16 %v862, %v861
      %v965 = vpack.c.bf16 %v864, %v863
      %v966 = vpack.c.bf16 %v866, %v865
      %v967 = vpack.c.bf16 %v868, %v867
      %v968 = vpack.c.bf16 %v870, %v869
      %v969 = vpack.c.bf16 %v872, %v871
      %v970 = vpack.c.bf16 %v874, %v873
      %v971 = vpack.c.bf16 %v876, %v875
      %v972 = vpack.c.bf16 %v878, %v877
      %v973 = vpack.c.bf16 %v880, %v879
      %v974 = vpack.c.bf16 %v882, %v881
      %v975 = vpack.c.bf16 %v884, %v883
      %v976 = vpack.c.bf16 %v886, %v885
      %v977 = vpack.c.bf16 %v888, %v887
      %v978 = vpack.c.bf16 %v890, %v889
      %v979 = vpack.c.bf16 %v892, %v891
      %v980 = vpack.c.bf16 %v894, %v893
      %v981 = vpack.c.bf16 %v896, %v895
      %v982 = vpack.c.bf16 %v898, %v897
      %v983 = vpack.c.bf16 %v900, %v899
      %v984 = vpack.c.bf16 %v902, %v901
      %v985 = vpack.c.bf16 %v904, %v903
      %v986 = vpack.c.bf16 %v906, %v905
      %v987 = vpack.c.bf16 %v908, %v907
      %v988 = vpack.c.bf16 %v910, %v909
      %v989 = vpack.c.bf16 %v912, %v911
      %v990 = vpack.c.bf16 %v914, %v913
      %v991 = vpack.c.bf16 %v916, %v915
      %v992 = vpack.c.bf16 %v918, %v917
      %v993 = vpack.c.bf16 %v920, %v919
      %v994 = vpack.c.bf16 %v922, %v921
      %v995 = vpack.c.bf16 %v924, %v923
      %v996 = vpack.c.bf16 %v926, %v925
      %v997 = vpack.c.bf16 %v928, %v927
      %v998 = vpack.c.bf16 %v930, %v929
      %v999 = vpack.c.bf16 %v932, %v931
      %v1000 = vpack.c.bf16 %v934, %v933
      %v1001 = vpack.c.bf16 %v936, %v935
      %v1002 = vpack.c.bf16 %v938, %v937
      %v1003 = vld [vmem:[%s273] sm:$0xf]
      %v1004 = vld [vmem:[%s273 + $0x4] sm:$0xf]
      %v1005 = vld [vmem:[%s273 + $0x8] sm:$0xf]
      %v1006 = vld [vmem:[%s273 + $0xc] sm:$0xf]
      %v1007 = vld [vmem:[%s273 + $0x10] sm:$0xf]
      %v1008 = vld [vmem:[%s273 + $0x14] sm:$0xf]
      %v1009 = vld [vmem:[%s273 + $0x18] sm:$0xf]
      %v1010 = vld [vmem:[%s273 + $0x1c] sm:$0xf]
      %v1011 = vld [vmem:[%s2] sm:$0x1]
      %v1013 = vlaneseq
      %v1014 = vshrl.u32 %v1013, 7
      %v1015 = vsub.s32 0, %v1014
      %v1016 = vrot.slane %v1011, %v1015
      %v1026 = vunpack.c.l.b16 %v1003
      %v1027 = vunpack.c.l.b16 %v1004
      %v1028 = vunpack.c.l.b16 %v1005
      %v1029 = vunpack.c.l.b16 %v1006
      %v1030 = vunpack.c.l.b16 %v1007
      %v1031 = vunpack.c.l.b16 %v1008
      %v1032 = vunpack.c.l.b16 %v1009
      %v1033 = vunpack.c.l.b16 %v1010
      %v1034 = vpack.c.b16 %v1027, %v1026
      %v1035 = vpack.c.b16 %v1029, %v1028
      %v1036 = vpack.c.b16 %v1031, %v1030
      %v1037 = vpack.c.b16 %v1033, %v1032
      %vm1042 = vcmask 523264
      %v1044 = vsel %vm1042, %v939, 0
      %v1047 = vsel %vm1042, %v940, 0
      %v1050 = vsel %vm1042, %v941, 0
      %v1053 = vsel %vm1042, %v942, 0
      %v1056 = vsel %vm1042, %v943, 0
      %v1059 = vsel %vm1042, %v944, 0
      %v1062 = vsel %vm1042, %v945, 0
      %v1065 = vsel %vm1042, %v946, 0
      %v1068 = vsel %vm1042, %v947, 0
      %v1071 = vsel %vm1042, %v948, 0
      %v1074 = vsel %vm1042, %v949, 0
      %v1077 = vsel %vm1042, %v950, 0
      %v1080 = vsel %vm1042, %v951, 0
      %v1083 = vsel %vm1042, %v952, 0
      %v1086 = vsel %vm1042, %v953, 0
      %v1089 = vsel %vm1042, %v954, 0
      %v1092 = vsel %vm1042, %v955, 0
      %v1095 = vsel %vm1042, %v956, 0
      %v1098 = vsel %vm1042, %v957, 0
      %v1101 = vsel %vm1042, %v958, 0
      %v1104 = vsel %vm1042, %v959, 0
      %v1107 = vsel %vm1042, %v960, 0
      %v1110 = vsel %vm1042, %v961, 0
      %v1113 = vsel %vm1042, %v962, 0
      %v1116 = vsel %vm1042, %v963, 0
      %v1119 = vsel %vm1042, %v964, 0
      %v1122 = vsel %vm1042, %v965, 0
      %v1125 = vsel %vm1042, %v966, 0
      %v1128 = vsel %vm1042, %v967, 0
      %v1131 = vsel %vm1042, %v968, 0
      %v1134 = vsel %vm1042, %v969, 0
      %v1137 = vsel %vm1042, %v970, 0
      %v1140 = vsel %vm1042, %v971, 0
      %v1143 = vsel %vm1042, %v972, 0
      %v1146 = vsel %vm1042, %v973, 0
      %v1149 = vsel %vm1042, %v974, 0
      %v1152 = vsel %vm1042, %v975, 0
      %v1155 = vsel %vm1042, %v976, 0
      %v1158 = vsel %vm1042, %v977, 0
      %v1161 = vsel %vm1042, %v978, 0
      %v1164 = vsel %vm1042, %v979, 0
      %v1167 = vsel %vm1042, %v980, 0
      %v1170 = vsel %vm1042, %v981, 0
      %v1173 = vsel %vm1042, %v982, 0
      %v1176 = vsel %vm1042, %v983, 0
      %v1179 = vsel %vm1042, %v984, 0
      %v1182 = vsel %vm1042, %v985, 0
      %v1185 = vsel %vm1042, %v986, 0
      %v1188 = vsel %vm1042, %v987, 0
      %v1191 = vsel %vm1042, %v988, 0
      %v1194 = vsel %vm1042, %v989, 0
      %v1197 = vsel %vm1042, %v990, 0
      %v1200 = vsel %vm1042, %v991, 0
      %v1203 = vsel %vm1042, %v992, 0
      %v1206 = vsel %vm1042, %v993, 0
      %v1209 = vsel %vm1042, %v994, 0
      %v1212 = vsel %vm1042, %v995, 0
      %v1215 = vsel %vm1042, %v996, 0
      %v1218 = vsel %vm1042, %v997, 0
      %v1221 = vsel %vm1042, %v998, 0
      %v1224 = vsel %vm1042, %v999, 0
      %v1227 = vsel %vm1042, %v1000, 0
      %v1230 = vsel %vm1042, %v1001, 0
      %v1233 = vsel %vm1042, %v1002, 0
      %1235 = vmatprep.subr.bf16.mxu0 0
      %1236 = vmatpush1.bf16.msra.mxu0 0
      %1237 = vmatprep.subr.bf16.mxu0 0
      %1238 = vmatpush1.bf16.msra.mxu0 0
      %1239 = vmatprep.subr.bf16.mxu0 0
      %1240 = vmatpush1.bf16.msra.mxu0 0
      %1241 = vmatprep.subr.bf16.mxu0 0
      %1242 = vmatpush1.bf16.msra.mxu0 0
      %1243 = vmatprep.subr.bf16.mxu0 0
      %1244 = vmatpush1.bf16.msra.mxu0 %v1037
      %1245 = vmatprep.subr.bf16.mxu0 0
      %1246 = vmatpush1.bf16.msra.mxu0 %v1036
      %1247 = vmatprep.subr.bf16.mxu0 0
      %1248 = vmatpush1.bf16.msra.mxu0 %v1035
      %1249 = vmatprep.subr.bf16.mxu0 0
      %1250 = vmatpush1.bf16.msra.mxu0 %v1034
      %1251 = vmatprep.subr.bf16.mxu0 0
      %1252 = vmatpush2.bf16.msra.mxu0 0
      %1253 = vmatprep.subr.bf16.mxu0 0
      %1254 = vmatpush2.bf16.msra.mxu0 0
      %1255 = vmatprep.subr.bf16.mxu0 0
      %1256 = vmatpush2.bf16.msra.mxu0 0
      %1257 = vmatprep.subr.bf16.mxu0 0
      %1258 = vmatpush2.bf16.msra.mxu0 0
      %1259 = vmatprep.subr.bf16.mxu0 0
      %1260 = vmatpush2.bf16.msra.mxu0 0
      %1261 = vmatprep.subr.bf16.mxu0 0
      %1262 = vmatpush2.bf16.msra.mxu0 0
      %1263 = vmatprep.subr.bf16.mxu0 0
      %1264 = vmatpush2.bf16.msra.mxu0 0
      %1265 = vmatprep.subr.bf16.mxu0 0
      %1266 = vmatpush2.bf16.msra.mxu0 0
      %1267 = vmatprep.mubr.bf16.mxu0 0
      %1268 = vmatmul.mubr.bf16.gmra.mxu0 %v1044
      %v1269 = vpop.f32.mrf.mxu0
      %v1270 = vadd.f32 %v1016, %v1269
      %v1271 = vpop.f32.mrf.mxu0
      %v1272 = vpop.f32.mrf.mxu0
      %v1273 = vadd.f32 %v1016, %v1272
      %v1274 = vpop.f32.mrf.mxu0
      %1275 = vmatprep.mubr.bf16.mxu0 0
      %1276 = vmatmul.mubr.bf16.gmra.mxu0 %v1047
      %v1277 = vpop.f32.mrf.mxu0
      %v1278 = vadd.f32 %v1016, %v1277
      %v1279 = vpop.f32.mrf.mxu0
      %v1280 = vpop.f32.mrf.mxu0
      %v1281 = vadd.f32 %v1016, %v1280
      %v1282 = vpop.f32.mrf.mxu0
      %1283 = vmatprep.mubr.bf16.mxu0 0
      %1284 = vmatmul.mubr.bf16.gmra.mxu0 %v1050
      %v1285 = vpop.f32.mrf.mxu0
      %v1286 = vadd.f32 %v1016, %v1285
      %v1287 = vpop.f32.mrf.mxu0
      %v1288 = vpop.f32.mrf.mxu0
      %v1289 = vadd.f32 %v1016, %v1288
      %v1290 = vpop.f32.mrf.mxu0
      %1291 = vmatprep.mubr.bf16.mxu0 0
      %1292 = vmatmul.mubr.bf16.gmra.mxu0 %v1053
      %v1293 = vpop.f32.mrf.mxu0
      %v1294 = vadd.f32 %v1016, %v1293
      %v1295 = vpop.f32.mrf.mxu0
      %v1296 = vpop.f32.mrf.mxu0
      %v1297 = vadd.f32 %v1016, %v1296
      %v1298 = vpop.f32.mrf.mxu0
      %1299 = vmatprep.mubr.bf16.mxu0 0
      %1300 = vmatmul.mubr.bf16.gmra.mxu0 %v1056
      %v1301 = vpop.f32.mrf.mxu0
      %v1302 = vadd.f32 %v1016, %v1301
      %v1303 = vpop.f32.mrf.mxu0
      %v1304 = vpop.f32.mrf.mxu0
      %v1305 = vadd.f32 %v1016, %v1304
      %v1306 = vpop.f32.mrf.mxu0
      %1307 = vmatprep.mubr.bf16.mxu0 0
      %1308 = vmatmul.mubr.bf16.gmra.mxu0 %v1059
      %v1309 = vpop.f32.mrf.mxu0
      %v1310 = vadd.f32 %v1016, %v1309
      %v1311 = vpop.f32.mrf.mxu0
      %v1312 = vpop.f32.mrf.mxu0
      %v1313 = vadd.f32 %v1016, %v1312
      %v1314 = vpop.f32.mrf.mxu0
      %1315 = vmatprep.mubr.bf16.mxu0 0
      %1316 = vmatmul.mubr.bf16.gmra.mxu0 %v1062
      %v1317 = vpop.f32.mrf.mxu0
      %v1318 = vadd.f32 %v1016, %v1317
      %v1319 = vpop.f32.mrf.mxu0
      %v1320 = vpop.f32.mrf.mxu0
      %v1321 = vadd.f32 %v1016, %v1320
      %v1322 = vpop.f32.mrf.mxu0
      %1323 = vmatprep.mubr.bf16.mxu0 0
      %1324 = vmatmul.mubr.bf16.gmra.mxu0 %v1065
      %v1325 = vpop.f32.mrf.mxu0
      %v1326 = vadd.f32 %v1016, %v1325
      %v1327 = vpop.f32.mrf.mxu0
      %v1328 = vpop.f32.mrf.mxu0
      %v1329 = vadd.f32 %v1016, %v1328
      %v1330 = vpop.f32.mrf.mxu0
      %1331 = vmatprep.mubr.bf16.mxu0 0
      %1332 = vmatmul.mubr.bf16.gmra.mxu0 %v1068
      %v1333 = vpop.f32.mrf.mxu0
      %v1334 = vadd.f32 %v1016, %v1333
      %v1335 = vpop.f32.mrf.mxu0
      %v1336 = vpop.f32.mrf.mxu0
      %v1337 = vadd.f32 %v1016, %v1336
      %v1338 = vpop.f32.mrf.mxu0
      %1339 = vmatprep.mubr.bf16.mxu0 0
      %1340 = vmatmul.mubr.bf16.gmra.mxu0 %v1071
      %v1341 = vpop.f32.mrf.mxu0
      %v1342 = vadd.f32 %v1016, %v1341
      %v1343 = vpop.f32.mrf.mxu0
      %v1344 = vpop.f32.mrf.mxu0
      %v1345 = vadd.f32 %v1016, %v1344
      %v1346 = vpop.f32.mrf.mxu0
      %1347 = vmatprep.mubr.bf16.mxu0 0
      %1348 = vmatmul.mubr.bf16.gmra.mxu0 %v1074
      %v1349 = vpop.f32.mrf.mxu0
      %v1350 = vadd.f32 %v1016, %v1349
      %v1351 = vpop.f32.mrf.mxu0
      %v1352 = vpop.f32.mrf.mxu0
      %v1353 = vadd.f32 %v1016, %v1352
      %v1354 = vpop.f32.mrf.mxu0
      %1355 = vmatprep.mubr.bf16.mxu0 0
      %1356 = vmatmul.mubr.bf16.gmra.mxu0 %v1077
      %v1357 = vpop.f32.mrf.mxu0
      %v1358 = vadd.f32 %v1016, %v1357
      %v1359 = vpop.f32.mrf.mxu0
      %v1360 = vpop.f32.mrf.mxu0
      %v1361 = vadd.f32 %v1016, %v1360
      %v1362 = vpop.f32.mrf.mxu0
      %1363 = vmatprep.mubr.bf16.mxu0 0
      %1364 = vmatmul.mubr.bf16.gmra.mxu0 %v1080
      %v1365 = vpop.f32.mrf.mxu0
      %v1366 = vadd.f32 %v1016, %v1365
      %v1367 = vpop.f32.mrf.mxu0
      %v1368 = vpop.f32.mrf.mxu0
      %v1369 = vadd.f32 %v1016, %v1368
      %v1370 = vpop.f32.mrf.mxu0
      %1371 = vmatprep.mubr.bf16.mxu0 0
      %1372 = vmatmul.mubr.bf16.gmra.mxu0 %v1083
      %v1373 = vpop.f32.mrf.mxu0
      %v1374 = vadd.f32 %v1016, %v1373
      %v1375 = vpop.f32.mrf.mxu0
      %v1376 = vpop.f32.mrf.mxu0
      %v1377 = vadd.f32 %v1016, %v1376
      %v1378 = vpop.f32.mrf.mxu0
      %1379 = vmatprep.mubr.bf16.mxu0 0
      %1380 = vmatmul.mubr.bf16.gmra.mxu0 %v1086
      %v1381 = vpop.f32.mrf.mxu0
      %v1382 = vadd.f32 %v1016, %v1381
      %v1383 = vpop.f32.mrf.mxu0
      %v1384 = vpop.f32.mrf.mxu0
      %v1385 = vadd.f32 %v1016, %v1384
      %v1386 = vpop.f32.mrf.mxu0
      %1387 = vmatprep.mubr.bf16.mxu0 0
      %1388 = vmatmul.mubr.bf16.gmra.mxu0 %v1089
      %v1389 = vpop.f32.mrf.mxu0
      %v1390 = vadd.f32 %v1016, %v1389
      %v1391 = vpop.f32.mrf.mxu0
      %v1392 = vpop.f32.mrf.mxu0
      %v1393 = vadd.f32 %v1016, %v1392
      %v1394 = vpop.f32.mrf.mxu0
      %1395 = vmatprep.mubr.bf16.mxu0 0
      %1396 = vmatmul.mubr.bf16.gmra.mxu0 %v1092
      %v1397 = vpop.f32.mrf.mxu0
      %v1398 = vadd.f32 %v1016, %v1397
      %v1399 = vpop.f32.mrf.mxu0
      %v1400 = vpop.f32.mrf.mxu0
      %v1401 = vadd.f32 %v1016, %v1400
      %v1402 = vpop.f32.mrf.mxu0
      %1403 = vmatprep.mubr.bf16.mxu0 0
      %1404 = vmatmul.mubr.bf16.gmra.mxu0 %v1095
      %v1405 = vpop.f32.mrf.mxu0
      %v1406 = vadd.f32 %v1016, %v1405
      %v1407 = vpop.f32.mrf.mxu0
      %v1408 = vpop.f32.mrf.mxu0
      %v1409 = vadd.f32 %v1016, %v1408
      %v1410 = vpop.f32.mrf.mxu0
      %1411 = vmatprep.mubr.bf16.mxu0 0
      %1412 = vmatmul.mubr.bf16.gmra.mxu0 %v1098
      %v1413 = vpop.f32.mrf.mxu0
      %v1414 = vadd.f32 %v1016, %v1413
      %v1415 = vpop.f32.mrf.mxu0
      %v1416 = vpop.f32.mrf.mxu0
      %v1417 = vadd.f32 %v1016, %v1416
      %v1418 = vpop.f32.mrf.mxu0
      %1419 = vmatprep.mubr.bf16.mxu0 0
      %1420 = vmatmul.mubr.bf16.gmra.mxu0 %v1101
      %v1421 = vpop.f32.mrf.mxu0
      %v1422 = vadd.f32 %v1016, %v1421
      %v1423 = vpop.f32.mrf.mxu0
      %v1424 = vpop.f32.mrf.mxu0
      %v1425 = vadd.f32 %v1016, %v1424
      %v1426 = vpop.f32.mrf.mxu0
      %1427 = vmatprep.mubr.bf16.mxu0 0
      %1428 = vmatmul.mubr.bf16.gmra.mxu0 %v1104
      %v1429 = vpop.f32.mrf.mxu0
      %v1430 = vadd.f32 %v1016, %v1429
      %v1431 = vpop.f32.mrf.mxu0
      %v1432 = vpop.f32.mrf.mxu0
      %v1433 = vadd.f32 %v1016, %v1432
      %v1434 = vpop.f32.mrf.mxu0
      %1435 = vmatprep.mubr.bf16.mxu0 0
      %1436 = vmatmul.mubr.bf16.gmra.mxu0 %v1107
      %v1437 = vpop.f32.mrf.mxu0
      %v1438 = vadd.f32 %v1016, %v1437
      %v1439 = vpop.f32.mrf.mxu0
      %v1440 = vpop.f32.mrf.mxu0
      %v1441 = vadd.f32 %v1016, %v1440
      %v1442 = vpop.f32.mrf.mxu0
      %1443 = vmatprep.mubr.bf16.mxu0 0
      %1444 = vmatmul.mubr.bf16.gmra.mxu0 %v1110
      %v1445 = vpop.f32.mrf.mxu0
      %v1446 = vadd.f32 %v1016, %v1445
      %v1447 = vpop.f32.mrf.mxu0
      %v1448 = vpop.f32.mrf.mxu0
      %v1449 = vadd.f32 %v1016, %v1448
      %v1450 = vpop.f32.mrf.mxu0
      %1451 = vmatprep.mubr.bf16.mxu0 0
      %1452 = vmatmul.mubr.bf16.gmra.mxu0 %v1113
      %v1453 = vpop.f32.mrf.mxu0
      %v1454 = vadd.f32 %v1016, %v1453
      %v1455 = vpop.f32.mrf.mxu0
      %v1456 = vpop.f32.mrf.mxu0
      %v1457 = vadd.f32 %v1016, %v1456
      %v1458 = vpop.f32.mrf.mxu0
      %1459 = vmatprep.mubr.bf16.mxu0 0
      %1460 = vmatmul.mubr.bf16.gmra.mxu0 %v1116
      %v1461 = vpop.f32.mrf.mxu0
      %v1462 = vadd.f32 %v1016, %v1461
      %v1463 = vpop.f32.mrf.mxu0
      %v1464 = vpop.f32.mrf.mxu0
      %v1465 = vadd.f32 %v1016, %v1464
      %v1466 = vpop.f32.mrf.mxu0
      %1467 = vmatprep.mubr.bf16.mxu0 0
      %1468 = vmatmul.mubr.bf16.gmra.mxu0 %v1119
      %v1469 = vpop.f32.mrf.mxu0
      %v1470 = vadd.f32 %v1016, %v1469
      %v1471 = vpop.f32.mrf.mxu0
      %v1472 = vpop.f32.mrf.mxu0
      %v1473 = vadd.f32 %v1016, %v1472
      %v1474 = vpop.f32.mrf.mxu0
      %1475 = vmatprep.mubr.bf16.mxu0 0
      %1476 = vmatmul.mubr.bf16.gmra.mxu0 %v1122
      %v1477 = vpop.f32.mrf.mxu0
      %v1478 = vadd.f32 %v1016, %v1477
      %v1479 = vpop.f32.mrf.mxu0
      %v1480 = vpop.f32.mrf.mxu0
      %v1481 = vadd.f32 %v1016, %v1480
      %v1482 = vpop.f32.mrf.mxu0
      %1483 = vmatprep.mubr.bf16.mxu0 0
      %1484 = vmatmul.mubr.bf16.gmra.mxu0 %v1125
      %v1485 = vpop.f32.mrf.mxu0
      %v1486 = vadd.f32 %v1016, %v1485
      %v1487 = vpop.f32.mrf.mxu0
      %v1488 = vpop.f32.mrf.mxu0
      %v1489 = vadd.f32 %v1016, %v1488
      %v1490 = vpop.f32.mrf.mxu0
      %1491 = vmatprep.mubr.bf16.mxu0 0
      %1492 = vmatmul.mubr.bf16.gmra.mxu0 %v1128
      %v1493 = vpop.f32.mrf.mxu0
      %v1494 = vadd.f32 %v1016, %v1493
      %v1495 = vpop.f32.mrf.mxu0
      %v1496 = vpop.f32.mrf.mxu0
      %v1497 = vadd.f32 %v1016, %v1496
      %v1498 = vpop.f32.mrf.mxu0
      %1499 = vmatprep.mubr.bf16.mxu0 0
      %1500 = vmatmul.mubr.bf16.gmra.mxu0 %v1131
      %v1501 = vpop.f32.mrf.mxu0
      %v1502 = vadd.f32 %v1016, %v1501
      %v1503 = vpop.f32.mrf.mxu0
      %v1504 = vpop.f32.mrf.mxu0
      %v1505 = vadd.f32 %v1016, %v1504
      %v1506 = vpop.f32.mrf.mxu0
      %1507 = vmatprep.mubr.bf16.mxu0 0
      %1508 = vmatmul.mubr.bf16.gmra.mxu0 %v1134
      %v1509 = vpop.f32.mrf.mxu0
      %v1510 = vadd.f32 %v1016, %v1509
      %v1511 = vpop.f32.mrf.mxu0
      %v1512 = vpop.f32.mrf.mxu0
      %v1513 = vadd.f32 %v1016, %v1512
      %v1514 = vpop.f32.mrf.mxu0
      %1515 = vmatprep.mubr.bf16.mxu0 0
      %1516 = vmatmul.mubr.bf16.gmra.mxu0 %v1137
      %v1517 = vpop.f32.mrf.mxu0
      %v1518 = vadd.f32 %v1016, %v1517
      %v1519 = vpop.f32.mrf.mxu0
      %v1520 = vpop.f32.mrf.mxu0
      %v1521 = vadd.f32 %v1016, %v1520
      %v1522 = vpop.f32.mrf.mxu0
      %1523 = vmatprep.mubr.bf16.mxu0 0
      %1524 = vmatmul.mubr.bf16.gmra.mxu0 %v1140
      %v1525 = vpop.f32.mrf.mxu0
      %v1526 = vadd.f32 %v1016, %v1525
      %v1527 = vpop.f32.mrf.mxu0
      %v1528 = vpop.f32.mrf.mxu0
      %v1529 = vadd.f32 %v1016, %v1528
      %v1530 = vpop.f32.mrf.mxu0
      %1531 = vmatprep.mubr.bf16.mxu0 0
      %1532 = vmatmul.mubr.bf16.gmra.mxu0 %v1143
      %v1533 = vpop.f32.mrf.mxu0
      %v1534 = vadd.f32 %v1016, %v1533
      %v1535 = vpop.f32.mrf.mxu0
      %v1536 = vpop.f32.mrf.mxu0
      %v1537 = vadd.f32 %v1016, %v1536
      %v1538 = vpop.f32.mrf.mxu0
      %1539 = vmatprep.mubr.bf16.mxu0 0
      %1540 = vmatmul.mubr.bf16.gmra.mxu0 %v1146
      %v1541 = vpop.f32.mrf.mxu0
      %v1542 = vadd.f32 %v1016, %v1541
      %v1543 = vpop.f32.mrf.mxu0
      %v1544 = vpop.f32.mrf.mxu0
      %v1545 = vadd.f32 %v1016, %v1544
      %v1546 = vpop.f32.mrf.mxu0
      %1547 = vmatprep.mubr.bf16.mxu0 0
      %1548 = vmatmul.mubr.bf16.gmra.mxu0 %v1149
      %v1549 = vpop.f32.mrf.mxu0
      %v1550 = vadd.f32 %v1016, %v1549
      %v1551 = vpop.f32.mrf.mxu0
      %v1552 = vpop.f32.mrf.mxu0
      %v1553 = vadd.f32 %v1016, %v1552
      %v1554 = vpop.f32.mrf.mxu0
      %1555 = vmatprep.mubr.bf16.mxu0 0
      %1556 = vmatmul.mubr.bf16.gmra.mxu0 %v1152
      %v1557 = vpop.f32.mrf.mxu0
      %v1558 = vadd.f32 %v1016, %v1557
      %v1559 = vpop.f32.mrf.mxu0
      %v1560 = vpop.f32.mrf.mxu0
      %v1561 = vadd.f32 %v1016, %v1560
      %v1562 = vpop.f32.mrf.mxu0
      %1563 = vmatprep.mubr.bf16.mxu0 0
      %1564 = vmatmul.mubr.bf16.gmra.mxu0 %v1155
      %v1565 = vpop.f32.mrf.mxu0
      %v1566 = vadd.f32 %v1016, %v1565
      %v1567 = vpop.f32.mrf.mxu0
      %v1568 = vpop.f32.mrf.mxu0
      %v1569 = vadd.f32 %v1016, %v1568
      %v1570 = vpop.f32.mrf.mxu0
      %1571 = vmatprep.mubr.bf16.mxu0 0
      %1572 = vmatmul.mubr.bf16.gmra.mxu0 %v1158
      %v1573 = vpop.f32.mrf.mxu0
      %v1574 = vadd.f32 %v1016, %v1573
      %v1575 = vpop.f32.mrf.mxu0
      %v1576 = vpop.f32.mrf.mxu0
      %v1577 = vadd.f32 %v1016, %v1576
      %v1578 = vpop.f32.mrf.mxu0
      %1579 = vmatprep.mubr.bf16.mxu0 0
      %1580 = vmatmul.mubr.bf16.gmra.mxu0 %v1161
      %v1581 = vpop.f32.mrf.mxu0
      %v1582 = vadd.f32 %v1016, %v1581
      %v1583 = vpop.f32.mrf.mxu0
      %v1584 = vpop.f32.mrf.mxu0
      %v1585 = vadd.f32 %v1016, %v1584
      %v1586 = vpop.f32.mrf.mxu0
      %1587 = vmatprep.mubr.bf16.mxu0 0
      %1588 = vmatmul.mubr.bf16.gmra.mxu0 %v1164
      %v1589 = vpop.f32.mrf.mxu0
      %v1590 = vadd.f32 %v1016, %v1589
      %v1591 = vpop.f32.mrf.mxu0
      %v1592 = vpop.f32.mrf.mxu0
      %v1593 = vadd.f32 %v1016, %v1592
      %v1594 = vpop.f32.mrf.mxu0
      %1595 = vmatprep.mubr.bf16.mxu0 0
      %1596 = vmatmul.mubr.bf16.gmra.mxu0 %v1167
      %v1597 = vpop.f32.mrf.mxu0
      %v1598 = vadd.f32 %v1016, %v1597
      %v1599 = vpop.f32.mrf.mxu0
      %v1600 = vpop.f32.mrf.mxu0
      %v1601 = vadd.f32 %v1016, %v1600
      %v1602 = vpop.f32.mrf.mxu0
      %1603 = vmatprep.mubr.bf16.mxu0 0
      %1604 = vmatmul.mubr.bf16.gmra.mxu0 %v1170
      %v1605 = vpop.f32.mrf.mxu0
      %v1606 = vadd.f32 %v1016, %v1605
      %v1607 = vpop.f32.mrf.mxu0
      %v1608 = vpop.f32.mrf.mxu0
      %v1609 = vadd.f32 %v1016, %v1608
      %v1610 = vpop.f32.mrf.mxu0
      %1611 = vmatprep.mubr.bf16.mxu0 0
      %1612 = vmatmul.mubr.bf16.gmra.mxu0 %v1173
      %v1613 = vpop.f32.mrf.mxu0
      %v1614 = vadd.f32 %v1016, %v1613
      %v1615 = vpop.f32.mrf.mxu0
      %v1616 = vpop.f32.mrf.mxu0
      %v1617 = vadd.f32 %v1016, %v1616
      %v1618 = vpop.f32.mrf.mxu0
      %1619 = vmatprep.mubr.bf16.mxu0 0
      %1620 = vmatmul.mubr.bf16.gmra.mxu0 %v1176
      %v1621 = vpop.f32.mrf.mxu0
      %v1622 = vadd.f32 %v1016, %v1621
      %v1623 = vpop.f32.mrf.mxu0
      %v1624 = vpop.f32.mrf.mxu0
      %v1625 = vadd.f32 %v1016, %v1624
      %v1626 = vpop.f32.mrf.mxu0
      %1627 = vmatprep.mubr.bf16.mxu0 0
      %1628 = vmatmul.mubr.bf16.gmra.mxu0 %v1179
      %v1629 = vpop.f32.mrf.mxu0
      %v1630 = vadd.f32 %v1016, %v1629
      %v1631 = vpop.f32.mrf.mxu0
      %v1632 = vpop.f32.mrf.mxu0
      %v1633 = vadd.f32 %v1016, %v1632
      %v1634 = vpop.f32.mrf.mxu0
      %1635 = vmatprep.mubr.bf16.mxu0 0
      %1636 = vmatmul.mubr.bf16.gmra.mxu0 %v1182
      %v1637 = vpop.f32.mrf.mxu0
      %v1638 = vadd.f32 %v1016, %v1637
      %v1639 = vpop.f32.mrf.mxu0
      %v1640 = vpop.f32.mrf.mxu0
      %v1641 = vadd.f32 %v1016, %v1640
      %v1642 = vpop.f32.mrf.mxu0
      %1643 = vmatprep.mubr.bf16.mxu0 0
      %1644 = vmatmul.mubr.bf16.gmra.mxu0 %v1185
      %v1645 = vpop.f32.mrf.mxu0
      %v1646 = vadd.f32 %v1016, %v1645
      %v1647 = vpop.f32.mrf.mxu0
      %v1648 = vpop.f32.mrf.mxu0
      %v1649 = vadd.f32 %v1016, %v1648
      %v1650 = vpop.f32.mrf.mxu0
      %1651 = vmatprep.mubr.bf16.mxu0 0
      %1652 = vmatmul.mubr.bf16.gmra.mxu0 %v1188
      %v1653 = vpop.f32.mrf.mxu0
      %v1654 = vadd.f32 %v1016, %v1653
      %v1655 = vpop.f32.mrf.mxu0
      %v1656 = vpop.f32.mrf.mxu0
      %v1657 = vadd.f32 %v1016, %v1656
      %v1658 = vpop.f32.mrf.mxu0
      %1659 = vmatprep.mubr.bf16.mxu0 0
      %1660 = vmatmul.mubr.bf16.gmra.mxu0 %v1191
      %v1661 = vpop.f32.mrf.mxu0
      %v1662 = vadd.f32 %v1016, %v1661
      %v1663 = vpop.f32.mrf.mxu0
      %v1664 = vpop.f32.mrf.mxu0
      %v1665 = vadd.f32 %v1016, %v1664
      %v1666 = vpop.f32.mrf.mxu0
      %1667 = vmatprep.mubr.bf16.mxu0 0
      %1668 = vmatmul.mubr.bf16.gmra.mxu0 %v1194
      %v1669 = vpop.f32.mrf.mxu0
      %v1670 = vadd.f32 %v1016, %v1669
      %v1671 = vpop.f32.mrf.mxu0
      %v1672 = vpop.f32.mrf.mxu0
      %v1673 = vadd.f32 %v1016, %v1672
      %v1674 = vpop.f32.mrf.mxu0
      %1675 = vmatprep.mubr.bf16.mxu0 0
      %1676 = vmatmul.mubr.bf16.gmra.mxu0 %v1197
      %v1677 = vpop.f32.mrf.mxu0
      %v1678 = vadd.f32 %v1016, %v1677
      %v1679 = vpop.f32.mrf.mxu0
      %v1680 = vpop.f32.mrf.mxu0
      %v1681 = vadd.f32 %v1016, %v1680
      %v1682 = vpop.f32.mrf.mxu0
      %1683 = vmatprep.mubr.bf16.mxu0 0
      %1684 = vmatmul.mubr.bf16.gmra.mxu0 %v1200
      %v1685 = vpop.f32.mrf.mxu0
      %v1686 = vadd.f32 %v1016, %v1685
      %v1687 = vpop.f32.mrf.mxu0
      %v1688 = vpop.f32.mrf.mxu0
      %v1689 = vadd.f32 %v1016, %v1688
      %v1690 = vpop.f32.mrf.mxu0
      %1691 = vmatprep.mubr.bf16.mxu0 0
      %1692 = vmatmul.mubr.bf16.gmra.mxu0 %v1203
      %v1693 = vpop.f32.mrf.mxu0
      %v1694 = vadd.f32 %v1016, %v1693
      %v1695 = vpop.f32.mrf.mxu0
      %v1696 = vpop.f32.mrf.mxu0
      %v1697 = vadd.f32 %v1016, %v1696
      %v1698 = vpop.f32.mrf.mxu0
      %1699 = vmatprep.mubr.bf16.mxu0 0
      %1700 = vmatmul.mubr.bf16.gmra.mxu0 %v1206
      %v1701 = vpop.f32.mrf.mxu0
      %v1702 = vadd.f32 %v1016, %v1701
      %v1703 = vpop.f32.mrf.mxu0
      %v1704 = vpop.f32.mrf.mxu0
      %v1705 = vadd.f32 %v1016, %v1704
      %v1706 = vpop.f32.mrf.mxu0
      %1707 = vmatprep.mubr.bf16.mxu0 0
      %1708 = vmatmul.mubr.bf16.gmra.mxu0 %v1209
      %v1709 = vpop.f32.mrf.mxu0
      %v1710 = vadd.f32 %v1016, %v1709
      %v1711 = vpop.f32.mrf.mxu0
      %v1712 = vpop.f32.mrf.mxu0
      %v1713 = vadd.f32 %v1016, %v1712
      %v1714 = vpop.f32.mrf.mxu0
      %1715 = vmatprep.mubr.bf16.mxu0 0
      %1716 = vmatmul.mubr.bf16.gmra.mxu0 %v1212
      %v1717 = vpop.f32.mrf.mxu0
      %v1718 = vadd.f32 %v1016, %v1717
      %v1719 = vpop.f32.mrf.mxu0
      %v1720 = vpop.f32.mrf.mxu0
      %v1721 = vadd.f32 %v1016, %v1720
      %v1722 = vpop.f32.mrf.mxu0
      %1723 = vmatprep.mubr.bf16.mxu0 0
      %1724 = vmatmul.mubr.bf16.gmra.mxu0 %v1215
      %v1725 = vpop.f32.mrf.mxu0
      %v1726 = vadd.f32 %v1016, %v1725
      %v1727 = vpop.f32.mrf.mxu0
      %v1728 = vpop.f32.mrf.mxu0
      %v1729 = vadd.f32 %v1016, %v1728
      %v1730 = vpop.f32.mrf.mxu0
      %1731 = vmatprep.mubr.bf16.mxu0 0
      %1732 = vmatmul.mubr.bf16.gmra.mxu0 %v1218
      %v1733 = vpop.f32.mrf.mxu0
      %v1734 = vadd.f32 %v1016, %v1733
      %v1735 = vpop.f32.mrf.mxu0
      %v1736 = vpop.f32.mrf.mxu0
      %v1737 = vadd.f32 %v1016, %v1736
      %v1738 = vpop.f32.mrf.mxu0
      %1739 = vmatprep.mubr.bf16.mxu0 0
      %1740 = vmatmul.mubr.bf16.gmra.mxu0 %v1221
      %v1741 = vpop.f32.mrf.mxu0
      %v1742 = vadd.f32 %v1016, %v1741
      %v1743 = vpop.f32.mrf.mxu0
      %v1744 = vpop.f32.mrf.mxu0
      %v1745 = vadd.f32 %v1016, %v1744
      %v1746 = vpop.f32.mrf.mxu0
      %1747 = vmatprep.mubr.bf16.mxu0 0
      %1748 = vmatmul.mubr.bf16.gmra.mxu0 %v1224
      %v1749 = vpop.f32.mrf.mxu0
      %v1750 = vadd.f32 %v1016, %v1749
      %v1751 = vpop.f32.mrf.mxu0
      %v1752 = vpop.f32.mrf.mxu0
      %v1753 = vadd.f32 %v1016, %v1752
      %v1754 = vpop.f32.mrf.mxu0
      %1755 = vmatprep.mubr.bf16.mxu0 0
      %1756 = vmatmul.mubr.bf16.gmra.mxu0 %v1227
      %v1757 = vpop.f32.mrf.mxu0
      %v1758 = vadd.f32 %v1016, %v1757
      %v1759 = vpop.f32.mrf.mxu0
      %v1760 = vpop.f32.mrf.mxu0
      %v1761 = vadd.f32 %v1016, %v1760
      %v1762 = vpop.f32.mrf.mxu0
      %1763 = vmatprep.mubr.bf16.mxu0 0
      %1764 = vmatmul.mubr.bf16.gmra.mxu0 %v1230
      %v1765 = vpop.f32.mrf.mxu0
      %v1766 = vadd.f32 %v1016, %v1765
      %v1767 = vpop.f32.mrf.mxu0
      %v1768 = vpop.f32.mrf.mxu0
      %v1769 = vadd.f32 %v1016, %v1768
      %v1770 = vpop.f32.mrf.mxu0
      %1771 = vmatprep.mubr.bf16.mxu0 0
      %1772 = vmatmul.mubr.bf16.gmra.mxu0 %v1233
      %v1773 = vpop.f32.mrf.mxu0
      %v1774 = vadd.f32 %v1016, %v1773
      %v1775 = vpop.f32.mrf.mxu0
      %v1776 = vpop.f32.mrf.mxu0
      %v1777 = vadd.f32 %v1016, %v1776
      %v1778 = vpop.f32.mrf.mxu0
      %1779 = vdwg.mxu0
      %v1780 = vtanh.pop %v1270
      %v1781 = vtanh.pop %v1273
      %v1782 = vtanh.pop %v1278
      %v1783 = vtanh.pop %v1281
      %v1784 = vtanh.pop %v1286
      %v1785 = vtanh.pop %v1289
      %v1786 = vtanh.pop %v1294
      %v1787 = vtanh.pop %v1297
      %v1788 = vtanh.pop %v1302
      %v1789 = vtanh.pop %v1305
      %v1790 = vtanh.pop %v1310
      %v1791 = vtanh.pop %v1313
      %v1792 = vtanh.pop %v1318
      %v1793 = vtanh.pop %v1321
      %v1794 = vtanh.pop %v1326
      %v1795 = vtanh.pop %v1329
      %v1796 = vtanh.pop %v1334
      %v1797 = vtanh.pop %v1337
      %v1798 = vtanh.pop %v1342
      %v1799 = vtanh.pop %v1345
      %v1800 = vtanh.pop %v1350
      %v1801 = vtanh.pop %v1353
      %v1802 = vtanh.pop %v1358
      %v1803 = vtanh.pop %v1361
      %v1804 = vtanh.pop %v1366
      %v1805 = vtanh.pop %v1369
      %v1806 = vtanh.pop %v1374
      %v1807 = vtanh.pop %v1377
      %v1808 = vtanh.pop %v1382
      %v1809 = vtanh.pop %v1385
      %v1810 = vtanh.pop %v1390
      %v1811 = vtanh.pop %v1393
      %v1812 = vtanh.pop %v1398
      %v1813 = vtanh.pop %v1401
      %v1814 = vtanh.pop %v1406
      %v1815 = vtanh.pop %v1409
      %v1816 = vtanh.pop %v1414
      %v1817 = vtanh.pop %v1417
      %v1818 = vtanh.pop %v1422
      %v1819 = vtanh.pop %v1425
      %v1820 = vtanh.pop %v1430
      %v1821 = vtanh.pop %v1433
      %v1822 = vtanh.pop %v1438
      %v1823 = vtanh.pop %v1441
      %v1824 = vtanh.pop %v1446
      %v1825 = vtanh.pop %v1449
      %v1826 = vtanh.pop %v1454
      %v1827 = vtanh.pop %v1457
      %v1828 = vtanh.pop %v1462
      %v1829 = vtanh.pop %v1465
      %v1830 = vtanh.pop %v1470
      %v1831 = vtanh.pop %v1473
      %v1832 = vtanh.pop %v1478
      %v1833 = vtanh.pop %v1481
      %v1834 = vtanh.pop %v1486
      %v1835 = vtanh.pop %v1489
      %v1836 = vtanh.pop %v1494
      %v1837 = vtanh.pop %v1497
      %v1838 = vtanh.pop %v1502
      %v1839 = vtanh.pop %v1505
      %v1840 = vtanh.pop %v1510
      %v1841 = vtanh.pop %v1513
      %v1842 = vtanh.pop %v1518
      %v1843 = vtanh.pop %v1521
      %v1844 = vtanh.pop %v1526
      %v1845 = vtanh.pop %v1529
      %v1846 = vtanh.pop %v1534
      %v1847 = vtanh.pop %v1537
      %v1848 = vtanh.pop %v1542
      %v1849 = vtanh.pop %v1545
      %v1850 = vtanh.pop %v1550
      %v1851 = vtanh.pop %v1553
      %v1852 = vtanh.pop %v1558
      %v1853 = vtanh.pop %v1561
      %v1854 = vtanh.pop %v1566
      %v1855 = vtanh.pop %v1569
      %v1856 = vtanh.pop %v1574
      %v1857 = vtanh.pop %v1577
      %v1858 = vtanh.pop %v1582
      %v1859 = vtanh.pop %v1585
      %v1860 = vtanh.pop %v1590
      %v1861 = vtanh.pop %v1593
      %v1862 = vtanh.pop %v1598
      %v1863 = vtanh.pop %v1601
      %v1864 = vtanh.pop %v1606
      %v1865 = vtanh.pop %v1609
      %v1866 = vtanh.pop %v1614
      %v1867 = vtanh.pop %v1617
      %v1868 = vtanh.pop %v1622
      %v1869 = vtanh.pop %v1625
      %v1870 = vtanh.pop %v1630
      %v1871 = vtanh.pop %v1633
      %v1872 = vtanh.pop %v1638
      %v1873 = vtanh.pop %v1641
      %v1874 = vtanh.pop %v1646
      %v1875 = vtanh.pop %v1649
      %v1876 = vtanh.pop %v1654
      %v1877 = vtanh.pop %v1657
      %v1878 = vtanh.pop %v1662
      %v1879 = vtanh.pop %v1665
      %v1880 = vtanh.pop %v1670
      %v1881 = vtanh.pop %v1673
      %v1882 = vtanh.pop %v1678
      %v1883 = vtanh.pop %v1681
      %v1884 = vtanh.pop %v1686
      %v1885 = vtanh.pop %v1689
      %v1886 = vtanh.pop %v1694
      %v1887 = vtanh.pop %v1697
      %v1888 = vtanh.pop %v1702
      %v1889 = vtanh.pop %v1705
      %v1890 = vtanh.pop %v1710
      %v1891 = vtanh.pop %v1713
      %v1892 = vtanh.pop %v1718
      %v1893 = vtanh.pop %v1721
      %v1894 = vtanh.pop %v1726
      %v1895 = vtanh.pop %v1729
      %v1896 = vtanh.pop %v1734
      %v1897 = vtanh.pop %v1737
      %v1898 = vtanh.pop %v1742
      %v1899 = vtanh.pop %v1745
      %v1900 = vtanh.pop %v1750
      %v1901 = vtanh.pop %v1753
      %v1902 = vtanh.pop %v1758
      %v1903 = vtanh.pop %v1761
      %v1904 = vtanh.pop %v1766
      %v1905 = vtanh.pop %v1769
      %v1906 = vtanh.pop %v1774
      %v1907 = vtanh.pop %v1777
      %vm1908 = vcmask 23552
      %1909 = vst.msk [vmem:[%s282] sm:$0xff] %vm1908, %v1780
      %1910 = vst.msk [vmem:[%s282 + $0x8] sm:$0xff] %vm1908, %v1781
      %1911 = vst.msk [vmem:[%s282 + $0x10] sm:$0xff] %vm1908, %v1782
      %1912 = vst.msk [vmem:[%s282 + $0x18] sm:$0xff] %vm1908, %v1783
      %1913 = vst.msk [vmem:[%s282 + $0x20] sm:$0xff] %vm1908, %v1784
      %1914 = vst.msk [vmem:[%s282 + $0x28] sm:$0xff] %vm1908, %v1785
      %1915 = vst.msk [vmem:[%s282 + $0x30] sm:$0xff] %vm1908, %v1786
      %1916 = vst.msk [vmem:[%s282 + $0x38] sm:$0xff] %vm1908, %v1787
      %1917 = vst.msk [vmem:[%s282 + $0x40] sm:$0xff] %vm1908, %v1788
      %1918 = vst.msk [vmem:[%s282 + $0x48] sm:$0xff] %vm1908, %v1789
      %1919 = vst.msk [vmem:[%s282 + $0x50] sm:$0xff] %vm1908, %v1790
      %1920 = vst.msk [vmem:[%s282 + $0x58] sm:$0xff] %vm1908, %v1791
      %1921 = vst.msk [vmem:[%s282 + $0x60] sm:$0xff] %vm1908, %v1792
      %1922 = vst.msk [vmem:[%s282 + $0x68] sm:$0xff] %vm1908, %v1793
      %1923 = vst.msk [vmem:[%s282 + $0x70] sm:$0xff] %vm1908, %v1794
      %1924 = vst.msk [vmem:[%s282 + $0x78] sm:$0xff] %vm1908, %v1795
      %1925 = vst.msk [vmem:[%s282 + $0x80] sm:$0xff] %vm1908, %v1796
      %1926 = vst.msk [vmem:[%s282 + $0x88] sm:$0xff] %vm1908, %v1797
      %1927 = vst.msk [vmem:[%s282 + $0x90] sm:$0xff] %vm1908, %v1798
      %1928 = vst.msk [vmem:[%s282 + $0x98] sm:$0xff] %vm1908, %v1799
      %1929 = vst.msk [vmem:[%s282 + $0xa0] sm:$0xff] %vm1908, %v1800
      %1930 = vst.msk [vmem:[%s282 + $0xa8] sm:$0xff] %vm1908, %v1801
      %1931 = vst.msk [vmem:[%s282 + $0xb0] sm:$0xff] %vm1908, %v1802
      %1932 = vst.msk [vmem:[%s282 + $0xb8] sm:$0xff] %vm1908, %v1803
      %1933 = vst.msk [vmem:[%s282 + $0xc0] sm:$0xff] %vm1908, %v1804
      %1934 = vst.msk [vmem:[%s282 + $0xc8] sm:$0xff] %vm1908, %v1805
      %1935 = vst.msk [vmem:[%s282 + $0xd0] sm:$0xff] %vm1908, %v1806
      %1936 = vst.msk [vmem:[%s282 + $0xd8] sm:$0xff] %vm1908, %v1807
      %1937 = vst.msk [vmem:[%s282 + $0xe0] sm:$0xff] %vm1908, %v1808
      %1938 = vst.msk [vmem:[%s282 + $0xe8] sm:$0xff] %vm1908, %v1809
      %1939 = vst.msk [vmem:[%s282 + $0xf0] sm:$0xff] %vm1908, %v1810
      %1940 = vst.msk [vmem:[%s282 + $0xf8] sm:$0xff] %vm1908, %v1811
      %1941 = vst.msk [vmem:[%s282 + $0x100] sm:$0xff] %vm1908, %v1812
      %1942 = vst.msk [vmem:[%s282 + $0x108] sm:$0xff] %vm1908, %v1813
      %1943 = vst.msk [vmem:[%s282 + $0x110] sm:$0xff] %vm1908, %v1814
      %1944 = vst.msk [vmem:[%s282 + $0x118] sm:$0xff] %vm1908, %v1815
      %1945 = vst.msk [vmem:[%s282 + $0x120] sm:$0xff] %vm1908, %v1816
      %1946 = vst.msk [vmem:[%s282 + $0x128] sm:$0xff] %vm1908, %v1817
      %1947 = vst.msk [vmem:[%s282 + $0x130] sm:$0xff] %vm1908, %v1818
      %1948 = vst.msk [vmem:[%s282 + $0x138] sm:$0xff] %vm1908, %v1819
      %1949 = vst.msk [vmem:[%s282 + $0x140] sm:$0xff] %vm1908, %v1820
      %1950 = vst.msk [vmem:[%s282 + $0x148] sm:$0xff] %vm1908, %v1821
      %1951 = vst.msk [vmem:[%s282 + $0x150] sm:$0xff] %vm1908, %v1822
      %1952 = vst.msk [vmem:[%s282 + $0x158] sm:$0xff] %vm1908, %v1823
      %1953 = vst.msk [vmem:[%s282 + $0x160] sm:$0xff] %vm1908, %v1824
      %1954 = vst.msk [vmem:[%s282 + $0x168] sm:$0xff] %vm1908, %v1825
      %1955 = vst.msk [vmem:[%s282 + $0x170] sm:$0xff] %vm1908, %v1826
      %1956 = vst.msk [vmem:[%s282 + $0x178] sm:$0xff] %vm1908, %v1827
      %1957 = vst.msk [vmem:[%s282 + $0x180] sm:$0xff] %vm1908, %v1828
      %1958 = vst.msk [vmem:[%s282 + $0x188] sm:$0xff] %vm1908, %v1829
      %1959 = vst.msk [vmem:[%s282 + $0x190] sm:$0xff] %vm1908, %v1830
      %1960 = vst.msk [vmem:[%s282 + $0x198] sm:$0xff] %vm1908, %v1831
      %1961 = vst.msk [vmem:[%s282 + $0x1a0] sm:$0xff] %vm1908, %v1832
      %1962 = vst.msk [vmem:[%s282 + $0x1a8] sm:$0xff] %vm1908, %v1833
      %1963 = vst.msk [vmem:[%s282 + $0x1b0] sm:$0xff] %vm1908, %v1834
      %1964 = vst.msk [vmem:[%s282 + $0x1b8] sm:$0xff] %vm1908, %v1835
      %1965 = vst.msk [vmem:[%s282 + $0x1c0] sm:$0xff] %vm1908, %v1836
      %1966 = vst.msk [vmem:[%s282 + $0x1c8] sm:$0xff] %vm1908, %v1837
      %1967 = vst.msk [vmem:[%s282 + $0x1d0] sm:$0xff] %vm1908, %v1838
      %1968 = vst.msk [vmem:[%s282 + $0x1d8] sm:$0xff] %vm1908, %v1839
      %1969 = vst.msk [vmem:[%s282 + $0x1e0] sm:$0xff] %vm1908, %v1840
      %1970 = vst.msk [vmem:[%s282 + $0x1e8] sm:$0xff] %vm1908, %v1841
      %1971 = vst.msk [vmem:[%s282 + $0x1f0] sm:$0xff] %vm1908, %v1842
      %1972 = vst.msk [vmem:[%s282 + $0x1f8] sm:$0xff] %vm1908, %v1843
      %1973 = vst.msk [vmem:[%s282 + $0x200] sm:$0xff] %vm1908, %v1844
      %1974 = vst.msk [vmem:[%s282 + $0x208] sm:$0xff] %vm1908, %v1845
      %1975 = vst.msk [vmem:[%s282 + $0x210] sm:$0xff] %vm1908, %v1846
      %1976 = vst.msk [vmem:[%s282 + $0x218] sm:$0xff] %vm1908, %v1847
      %1977 = vst.msk [vmem:[%s282 + $0x220] sm:$0xff] %vm1908, %v1848
      %1978 = vst.msk [vmem:[%s282 + $0x228] sm:$0xff] %vm1908, %v1849
      %1979 = vst.msk [vmem:[%s282 + $0x230] sm:$0xff] %vm1908, %v1850
      %1980 = vst.msk [vmem:[%s282 + $0x238] sm:$0xff] %vm1908, %v1851
      %1981 = vst.msk [vmem:[%s282 + $0x240] sm:$0xff] %vm1908, %v1852
      %1982 = vst.msk [vmem:[%s282 + $0x248] sm:$0xff] %vm1908, %v1853
      %1983 = vst.msk [vmem:[%s282 + $0x250] sm:$0xff] %vm1908, %v1854
      %1984 = vst.msk [vmem:[%s282 + $0x258] sm:$0xff] %vm1908, %v1855
      %1985 = vst.msk [vmem:[%s282 + $0x260] sm:$0xff] %vm1908, %v1856
      %1986 = vst.msk [vmem:[%s282 + $0x268] sm:$0xff] %vm1908, %v1857
      %1987 = vst.msk [vmem:[%s282 + $0x270] sm:$0xff] %vm1908, %v1858
      %1988 = vst.msk [vmem:[%s282 + $0x278] sm:$0xff] %vm1908, %v1859
      %1989 = vst.msk [vmem:[%s282 + $0x280] sm:$0xff] %vm1908, %v1860
      %1990 = vst.msk [vmem:[%s282 + $0x288] sm:$0xff] %vm1908, %v1861
      %1991 = vst.msk [vmem:[%s282 + $0x290] sm:$0xff] %vm1908, %v1862
      %1992 = vst.msk [vmem:[%s282 + $0x298] sm:$0xff] %vm1908, %v1863
      %1993 = vst.msk [vmem:[%s282 + $0x2a0] sm:$0xff] %vm1908, %v1864
      %1994 = vst.msk [vmem:[%s282 + $0x2a8] sm:$0xff] %vm1908, %v1865
      %1995 = vst.msk [vmem:[%s282 + $0x2b0] sm:$0xff] %vm1908, %v1866
      %1996 = vst.msk [vmem:[%s282 + $0x2b8] sm:$0xff] %vm1908, %v1867
      %1997 = vst.msk [vmem:[%s282 + $0x2c0] sm:$0xff] %vm1908, %v1868
      %1998 = vst.msk [vmem:[%s282 + $0x2c8] sm:$0xff] %vm1908, %v1869
      %1999 = vst.msk [vmem:[%s282 + $0x2d0] sm:$0xff] %vm1908, %v1870
      %2000 = vst.msk [vmem:[%s282 + $0x2d8] sm:$0xff] %vm1908, %v1871
      %2001 = vst.msk [vmem:[%s282 + $0x2e0] sm:$0xff] %vm1908, %v1872
      %2002 = vst.msk [vmem:[%s282 + $0x2e8] sm:$0xff] %vm1908, %v1873
      %2003 = vst.msk [vmem:[%s282 + $0x2f0] sm:$0xff] %vm1908, %v1874
      %2004 = vst.msk [vmem:[%s282 + $0x2f8] sm:$0xff] %vm1908, %v1875
      %2005 = vst.msk [vmem:[%s282 + $0x300] sm:$0xff] %vm1908, %v1876
      %2006 = vst.msk [vmem:[%s282 + $0x308] sm:$0xff] %vm1908, %v1877
      %2007 = vst.msk [vmem:[%s282 + $0x310] sm:$0xff] %vm1908, %v1878
      %2008 = vst.msk [vmem:[%s282 + $0x318] sm:$0xff] %vm1908, %v1879
      %2009 = vst.msk [vmem:[%s282 + $0x320] sm:$0xff] %vm1908, %v1880
      %2010 = vst.msk [vmem:[%s282 + $0x328] sm:$0xff] %vm1908, %v1881
      %2011 = vst.msk [vmem:[%s282 + $0x330] sm:$0xff] %vm1908, %v1882
      %2012 = vst.msk [vmem:[%s282 + $0x338] sm:$0xff] %vm1908, %v1883
      %2013 = vst.msk [vmem:[%s282 + $0x340] sm:$0xff] %vm1908, %v1884
      %2014 = vst.msk [vmem:[%s282 + $0x348] sm:$0xff] %vm1908, %v1885
      %2015 = vst.msk [vmem:[%s282 + $0x350] sm:$0xff] %vm1908, %v1886
      %2016 = vst.msk [vmem:[%s282 + $0x358] sm:$0xff] %vm1908, %v1887
      %2017 = vst.msk [vmem:[%s282 + $0x360] sm:$0xff] %vm1908, %v1888
      %2018 = vst.msk [vmem:[%s282 + $0x368] sm:$0xff] %vm1908, %v1889
      %2019 = vst.msk [vmem:[%s282 + $0x370] sm:$0xff] %vm1908, %v1890
      %2020 = vst.msk [vmem:[%s282 + $0x378] sm:$0xff] %vm1908, %v1891
      %2021 = vst.msk [vmem:[%s282 + $0x380] sm:$0xff] %vm1908, %v1892
      %2022 = vst.msk [vmem:[%s282 + $0x388] sm:$0xff] %vm1908, %v1893
      %2023 = vst.msk [vmem:[%s282 + $0x390] sm:$0xff] %vm1908, %v1894
      %2024 = vst.msk [vmem:[%s282 + $0x398] sm:$0xff] %vm1908, %v1895
      %2025 = vst.msk [vmem:[%s282 + $0x3a0] sm:$0xff] %vm1908, %v1896
      %2026 = vst.msk [vmem:[%s282 + $0x3a8] sm:$0xff] %vm1908, %v1897
      %2027 = vst.msk [vmem:[%s282 + $0x3b0] sm:$0xff] %vm1908, %v1898
      %2028 = vst.msk [vmem:[%s282 + $0x3b8] sm:$0xff] %vm1908, %v1899
      %2029 = vst.msk [vmem:[%s282 + $0x3c0] sm:$0xff] %vm1908, %v1900
      %2030 = vst.msk [vmem:[%s282 + $0x3c8] sm:$0xff] %vm1908, %v1901
      %2031 = vst.msk [vmem:[%s282 + $0x3d0] sm:$0xff] %vm1908, %v1902
      %2032 = vst.msk [vmem:[%s282 + $0x3d8] sm:$0xff] %vm1908, %v1903
      %2033 = vst.msk [vmem:[%s282 + $0x3e0] sm:$0xff] %vm1908, %v1904
      %2034 = vst.msk [vmem:[%s282 + $0x3e8] sm:$0xff] %vm1908, %v1905
      %2035 = vst.msk [vmem:[%s282 + $0x3f0] sm:$0xff] %vm1908, %v1906
      %2036 = vst.msk [vmem:[%s282 + $0x3f8] sm:$0xff] %vm1908, %v1907
      %s2037 = smul.u32 128, %s21
      %p2038 = scmp.lt.s32.totalorder %s20, 3
      %s2039 = scalar_select %p2038, %s20, 3
      %p2040 = scmp.lt.s32.totalorder %s2037, 255
      %s2041 = scalar_select %p2040, %s2037, 255
      %s2042 = smul.addr %s2039, 256
      %s2043 = sadd.s32 %s2041, %s2042
      %s2044 = smul.addr %s2043, 8
      %s2045 = scalar_lea.vmem %s5, %s2044
      // Predicated region
      $region41: #{generator_forward.9} parent=39 // pred_check
        %p2046 = pneg %p165
      $region42: #{generator_forward.9} parent=39 // pred_check_branch
        %2048 = sbr.rel (%p2046) target = $region44
      $region43: #{generator_forward.9} parent=39 // pred_region
        %s2049 = smul.u32 128, %s21
      $region44: #{generator_forward.9} parent=39 // pred_fallthru
        _
    $region40: #{generator_forward.9} parent=5 // pred_fallthru
      _
    %p2050 = scmp.le.s32.totalorder 2, %s11
    // Predicated region
    $region45: #{generator_forward.9} parent=5 // pred_check
      %p2051 = pneg %p2050
    $region46: #{generator_forward.9} parent=5 // pred_check_branch
      %2053 = sbr.rel (%p2051) target = $region48
    $region47: #{generator_forward.9} parent=5 // pred_region
      %s2054 = ssub.s32 %s11, 2
      // Predicated region
      $region49: #{generator_forward.9} parent=47 // pred_check
        %p2055 = pneg %p171
      $region50: #{generator_forward.9} parent=47 // pred_check_branch
        %2057 = sbr.rel (%p2055) target = $region52
      $region51: #{generator_forward.9} parent=47 // pred_region
        %s2058 = smul.u32 128, %s23
        %p2059 = scmp.lt.s32.totalorder %s22, 3
        %s2060 = scalar_select %p2059, %s22, 3
        %p2061 = scmp.lt.s32.totalorder %s2058, 255
        %s2062 = scalar_select %p2061, %s2058, 255
        %s2063 = smul.addr %s2060, 256
        %s2064 = sadd.s32 %s2062, %s2063
        %s2065 = smul.addr %s2064, 8
        %s2066 = scalar_lea.vmem %s5, %s2065
      $region52: #{generator_forward.9} parent=47 // pred_fallthru
        _
    $region48: #{generator_forward.9} parent=5 // pred_fallthru
      _
  $region6: #{generator_forward.9} parent=0 // loop_footer
    %s15 = sadd.s32 1, %s11
  $region7: #{generator_forward.9} parent=0 // loop_footer_branch
    %10 = sbr.rel target = $region3
  $region8: #{generator_forward.9} parent=0 // loop_exit
    _

</llo_original>
